<compile_context>
chip_gen: v7x
topology: tpu7x:2x2x1
jax: 0.10.0
libtpu: 0.0.40
codegen_flags: <defaults>
</compile_context>

<pallas_src>
import functools

import jax
import jax.numpy as jnp
from jax.experimental import pallas as pl
from jax.experimental.pallas import tpu as pltpu

VMEM_LIMIT_BYTES = 32 * 1024 * 1024  # safe on v7x (64 MiB/TC) and v5e/v6e
HEAD_NAMES = ("xyz", "scaling", "rotation", "opacity", "features_dc", "features_rest")
H1 = 512  # hidden width of every predictor head


# --------------------------------------------------------------------------
# Helpers
# --------------------------------------------------------------------------
def _round_up(x, m):
    return (x + m - 1) // m * m


def _pick_tile(dim, max_tile, align):
    """Pick (block, padded_dim). Small dims use a full-extent block; large dims
    use the biggest align-multiple tile <= max_tile dividing the dim; fallback
    pads to the next align multiple and picks a divisor of that."""
    if dim <= max_tile:
        return dim, dim
    t = (max_tile // align) * align
    while t >= align:
        if dim % t == 0:
            return t, dim
        t -= align
    padded = _round_up(dim, align)
    t = (max_tile // align) * align
    while t >= align:
        if padded % t == 0:
            return t, padded
        t -= align
    return align, padded


def _head_layout(head_dims, num_gaussians):
    """Per-head output widths, 128-lane padded widths, column offsets, total."""
    n_out = [num_gaussians * head_dims[n] for n in HEAD_NAMES]
    widths = [_round_up(n, 128) for n in n_out]
    offsets, off = [], 0
    for w in widths:
        offsets.append(off)
        off += w
    return n_out, widths, offsets, off


# --------------------------------------------------------------------------
# Fused matmul kernels:  out = relu?(x @ w + b)
# --------------------------------------------------------------------------
def _mm_bias_kernel_single(x_ref, w_ref, b_ref, o_ref, *, relu):
    # gk == 1 fast path: no accumulator scratch, no pl.when branches.
    out = jnp.dot(x_ref[...], w_ref[...], preferred_element_type=jnp.float32)
    out = out + b_ref[...]
    if relu:
        out = jnp.maximum(out, 0.0)
    o_ref[...] = out.astype(o_ref.dtype)


def _mm_bias_kernel_acc(x_ref, w_ref, b_ref, o_ref, acc_ref, *, relu):
    @pl.when(pl.program_id(2) == 0)
    def _():
        acc_ref[...] = jnp.zeros_like(acc_ref)

    acc_ref[...] += jnp.dot(x_ref[...], w_ref[...],
                            preferred_element_type=jnp.float32)

    @pl.when(pl.program_id(2) == pl.num_programs(2) - 1)
    def _():
        out = acc_ref[...] + b_ref[...]
        if relu:
            out = jnp.maximum(out, 0.0)
        o_ref[...] = out.astype(o_ref.dtype)


def pallas_linear(x, w, b2d, *, relu, out_dtype=jnp.float32, fuse_input=False):
    """x: (M, K), w: (K, N), b2d: (1, N)  ->  (M, N) in out_dtype.
    bf16 MXU inputs, f32 accumulation, pipelined tiles."""
    M, K = x.shape
    Kw, N = w.shape
    assert K == Kw and b2d.shape == (1, N)

    bm, Mp = _pick_tile(M, 256, 16)     # rows; bf16 sublane packing is (16,128)
    bn, Np = _pick_tile(N, 512, 128)    # output lanes (keep lane-dense)
    bk, Kp = _pick_tile(K, 2048, 128)   # reduction; covers every K here -> gk==1

    # v7x megacore: guarantee >= 2 parallel output blocks when sizes allow.
    if (Mp // bm) * (Np // bn) == 1:
        if bn % 256 == 0:
            bn //= 2
        elif bm % 32 == 0:
            bm //= 2

    if x.dtype != jnp.bfloat16:
        x = x.astype(jnp.bfloat16)
    if w.dtype != jnp.bfloat16:
        w = w.astype(jnp.bfloat16)
    if (Mp, Kp) != (M, K):
        x = jnp.pad(x, ((0, Mp - M), (0, Kp - K)))
    if (Kp, Np) != (K, N):
        w = jnp.pad(w, ((0, Kp - K), (0, Np - N)))
    b2d = b2d.astype(jnp.float32)
    if Np != N:
        b2d = jnp.pad(b2d, ((0, 0), (0, Np - N)))

    gm, gn, gk = Mp // bm, Np // bn, Kp // bk
    out_bytes = jnp.dtype(out_dtype).itemsize
    cost = pl.CostEstimate(
        flops=2 * M * K * N, transcendentals=0,
        bytes_accessed=(Mp * Kp + Kp * Np) * 2 + Np * 4 + Mp * Np * out_bytes)
    fusion = ([True, False, False] if fuse_input else None)

    if gk == 1:
        out = pl.pallas_call(
            functools.partial(_mm_bias_kernel_single, relu=relu),
            out_shape=jax.ShapeDtypeStruct((Mp, Np), out_dtype),
            grid=(gm, gn),
            in_specs=[
                pl.BlockSpec((bm, Kp), lambda i, j: (i, 0)),
                pl.BlockSpec((Kp, bn), lambda i, j: (0, j)),
                pl.BlockSpec((1, bn), lambda i, j: (0, j)),
            ],
            out_specs=pl.BlockSpec((bm, bn), lambda i, j: (i, j)),
            compiler_params=pltpu.CompilerParams(
                dimension_semantics=("parallel", "parallel"),
                vmem_limit_bytes=VMEM_LIMIT_BYTES,
                allow_input_fusion=fusion,
            ),
            cost_estimate=cost,
        )(x, w, b2d)
    else:
        out = pl.pallas_call(
            functools.partial(_mm_bias_kernel_acc, relu=relu),
            out_shape=jax.ShapeDtypeStruct((Mp, Np), out_dtype),
            grid=(gm, gn, gk),
            in_specs=[
                pl.BlockSpec((bm, bk), lambda i, j, k: (i, k)),
                pl.BlockSpec((bk, bn), lambda i, j, k: (k, j)),
                pl.BlockSpec((1, bn), lambda i, j, k: (0, j)),
            ],
            out_specs=pl.BlockSpec((bm, bn), lambda i, j, k: (i, j)),
            scratch_shapes=[pltpu.VMEM((bm, bn), jnp.float32)],
            compiler_params=pltpu.CompilerParams(
                dimension_semantics=("parallel", "parallel", "arbitrary"),
                vmem_limit_bytes=VMEM_LIMIT_BYTES,
                allow_input_fusion=fusion,
            ),
            cost_estimate=cost,
        )(x, w, b2d)

    if (Mp, Np) != (M, N):
        out = out[:M, :N]
    return out


# --------------------------------------------------------------------------
# Conv (3x3, stride 2, pad 1) via bf16 im2col + Pallas matmul
# --------------------------------------------------------------------------
def _im2col_s2(x_nhwc):
    """x: (B, H, W, C) -> (B*Ho*Wo, 9*C), (B, Ho, Wo).  Single stacked reshape."""
    B, Hd, Wd, C = x_nhwc.shape
    Ho, Wo = (Hd + 1) // 2, (Wd + 1) // 2
    xp = jnp.pad(x_nhwc, ((0, 0), (1, 1), (1, 1), (0, 0)))
    taps = [xp[:, kh:kh + 2 * Ho:2, kw:kw + 2 * Wo:2, :]
            for kh in range(3) for kw in range(3)]
    patches = jnp.stack(taps, axis=3)                     # (B, Ho, Wo, 9, C)
    return patches.reshape(B * Ho * Wo, 9 * C), (B, Ho, Wo)


def conv3x3_s2_relu(x_nhwc, w_mat, b2d, *, out_dtype=jnp.bfloat16):
    """w_mat: (9*Cin, Cout) pre-transposed bf16.  Returns ReLU(conv(x)) NHWC."""
    cols, (B, Ho, Wo) = _im2col_s2(x_nhwc)
    out = pallas_linear(cols, w_mat, b2d, relu=True, out_dtype=out_dtype,
                        fuse_input=True)
    return out.reshape(B, Ho, Wo, w_mat.shape[1])


# --------------------------------------------------------------------------
# Fused tail: conv4 + global-avg-pool + encoder FC + all 6 heads in ONE call
# --------------------------------------------------------------------------
def _tail_kernel(cols_ref, w4_ref, b4_ref, fcw_ref, fcb_ref,
                 w1_ref, b1_ref, w2_ref, b2_ref, o_ref,
                 *, batch, spatial, offsets, widths):
    # conv4 (as im2col matmul) + ReLU
    h4 = jnp.dot(cols_ref[...], w4_ref[...], preferred_element_type=jnp.float32)
    h4 = jnp.maximum(h4 + b4_ref[...], 0.0)                       # (B*S, 512)
    # AdaptiveAvgPool2d(1) + Flatten
    if spatial == 1:
        pooled = h4
    else:
        pooled = jnp.mean(h4.reshape(batch, spatial, h4.shape[-1]), axis=1)
    # Linear(512, feature_dim) + ReLU
    feats = jnp.dot(pooled.astype(jnp.bfloat16), fcw_ref[...],
                    preferred_element_type=jnp.float32) + fcb_ref[...]
    feats = jnp.maximum(feats, 0.0).astype(jnp.bfloat16)          # (B, fd)
    # All 6 heads' first Linear+ReLU as one wide matmul -> (B, 6*512)
    hall = jnp.dot(feats, w1_ref[...], preferred_element_type=jnp.float32)
    hall = jnp.maximum(hall + b1_ref[...], 0.0).astype(jnp.bfloat16)
    # Second Linear per head; 128-lane-aligned offsets keep slices/stores clean.
    for i, (off, width) in enumerate(zip(offsets, widths)):
        hi = hall[:, i * H1:(i + 1) * H1]
        oi = jnp.dot(hi, w2_ref[:, off:off + width],
                     preferred_element_type=jnp.float32)
        o_ref[:, off:off + width] = oi + b2_ref[:, off:off + width]


def fused_tail(cols4, batch, spatial, pp, feature_dim, head_dims, num_gaussians):
    _, widths, offsets, total = _head_layout(head_dims, num_gaussians)
    M4, K4 = cols4.shape
    kernel = functools.partial(_tail_kernel, batch=batch, spatial=spatial,
                               offsets=tuple(offsets), widths=tuple(widths))
    return pl.pallas_call(
        kernel,
        out_shape=jax.ShapeDtypeStruct((batch, total), jnp.float32),
        grid=(1,),
        in_specs=[
            pl.BlockSpec((M4, K4), lambda i: (0, 0)),
            pl.BlockSpec((K4, H1), lambda i: (0, 0)),
            pl.BlockSpec((1, H1), lambda i: (0, 0)),
            pl.BlockSpec((H1, feature_dim), lambda i: (0, 0)),
            pl.BlockSpec((1, feature_dim), lambda i: (0, 0)),
            pl.BlockSpec((feature_dim, len(HEAD_NAMES) * H1), lambda i: (0, 0)),
            pl.BlockSpec((1, len(HEAD_NAMES) * H1), lambda i: (0, 0)),
            pl.BlockSpec((H1, total), lambda i: (0, 0)),
            pl.BlockSpec((1, total), lambda i: (0, 0)),
        ],
        out_specs=pl.BlockSpec((batch, total), lambda i: (0, 0)),
        compiler_params=pltpu.CompilerParams(
            dimension_semantics=("arbitrary",),
            vmem_limit_bytes=VMEM_LIMIT_BYTES,
        ),
    )(cols4, pp["conv4_w"], pp["conv4_b"], pp["fc_w"], pp["fc_b"],
      pp["heads_w1"], pp["heads_b1"], pp["heads_w2"], pp["heads_b2"])


# --------------------------------------------------------------------------
# Parameter init (PyTorch-like) and ONE-TIME weight preprocessing
# --------------------------------------------------------------------------
def _uniform(key, shape, fan_in):
    bound = 1.0 / jnp.sqrt(jnp.float32(fan_in))
    return jax.random.uniform(key, shape, jnp.float32, -bound, bound)


def init_params(key, input_channels, feature_dim, num_gaussians, sh_degree):
    keys = iter(jax.random.split(key, 64))
    p = {}
    conv_dims = [(input_channels, 64), (64, 128), (128, 256), (256, 512)]
    for i, (cin, cout) in enumerate(conv_dims, start=1):
        fan_in = cin * 9
        p[f"conv{i}_w"] = _uniform(next(keys), (cout, cin, 3, 3), fan_in)
        p[f"conv{i}_b"] = _uniform(next(keys), (cout,), fan_in)
    p["enc_fc_w"] = _uniform(next(keys), (512, feature_dim), 512)
    p["enc_fc_b"] = _uniform(next(keys), (feature_dim,), 512)
    rest_dim = 3 * ((sh_degree + 1) ** 2 - 1)
    head_dims = {"xyz": 3, "scaling": 2, "rotation": 4, "opacity": 1,
                 "features_dc": 3, "features_rest": rest_dim}
    for name, d in head_dims.items():
        p[f"{name}_w1"] = _uniform(next(keys), (feature_dim, H1), feature_dim)
        p[f"{name}_b1"] = _uniform(next(keys), (H1,), feature_dim)
        p[f"{name}_w2"] = _uniform(next(keys), (H1, num_gaussians * d), H1)
        p[f"{name}_b2"] = _uniform(next(keys), (num_gaussians * d,), H1)
    return p, head_dims


def prepare_params(params, head_dims, num_gaussians):
    """Cast/transpose/pad/stack all weights ONCE (hoisted out of the forward)."""
    pp = {}
    for i in range(1, 5):
        w = params[f"conv{i}_w"]                              # (Cout, Cin, 3, 3)
        cout, cin = w.shape[0], w.shape[1]
        pp[f"conv{i}_w"] = (jnp.transpose(w, (2, 3, 1, 0))
                            .reshape(9 * cin, cout).astype(jnp.bfloat16))
        pp[f"conv{i}_b"] = params[f"conv{i}_b"].astype(jnp.float32).reshape(1, cout)
    pp["fc_w"] = params["enc_fc_w"].astype(jnp.bfloat16)      # (512, feature_dim)
    pp["fc_b"] = params["enc_fc_b"].astype(jnp.float32).reshape(1, -1)

    n_out, widths, _, _ = _head_layout(head_dims, num_gaussians)
    pp["heads_w1"] = jnp.concatenate(
        [params[f"{n}_w1"] for n in HEAD_NAMES], axis=1).astype(jnp.bfloat16)
    pp["heads_b1"] = jnp.concatenate(
        [params[f"{n}_b1"] for n in HEAD_NAMES], axis=0
    ).astype(jnp.float32).reshape(1, -1)
    pp["heads_w2"] = jnp.concatenate(
        [jnp.pad(params[f"{n}_w2"], ((0, 0), (0, wd - no)))
         for n, no, wd in zip(HEAD_NAMES, n_out, widths)],
        axis=1).astype(jnp.bfloat16)                          # (512, sum widths)
    pp["heads_b2"] = jnp.concatenate(
        [jnp.pad(params[f"{n}_b2"], ((0, wd - no),))
         for n, no, wd in zip(HEAD_NAMES, n_out, widths)],
        axis=0).astype(jnp.float32).reshape(1, -1)
    return pp


# --------------------------------------------------------------------------
# Forward pass
# --------------------------------------------------------------------------
def feed_forward_gaussian_splatting(x_nchw, pp, head_dims, num_gaussians,
                                    feature_dim):
    B = x_nchw.shape[0]
    G = num_gaussians
    x = jnp.transpose(x_nchw, (0, 2, 3, 1)).astype(jnp.bfloat16)  # NCHW -> NHWC

    # ---- conv1..conv3 (3x3, stride 2, pad 1) + ReLU, bf16 activations ----
    # TODO(synk): replace im2col + matmul with a direct stride-2 conv kernel
    # that loads each output tile's input patch + halo once (largest win on v5e).
    for i in range(1, 4):
        x = conv3x3_s2_relu(x, pp[f"conv{i}_w"], pp[f"conv{i}_b"])

    # ---- conv4 + AdaptiveAvgPool2d(1) + Linear(512,fd)+ReLU + 6 heads ----
    cols4, (_, Ho4, Wo4) = _im2col_s2(x)
    flat = fused_tail(cols4, B, Ho4 * Wo4, pp, feature_dim, head_dims, G)

    n_out, _, offsets, _ = _head_layout(head_dims, G)
    per_head = {n: flat[:, off:off + no]
                for n, off, no in zip(HEAD_NAMES, offsets, n_out)}

    out = {
        "xyz": per_head["xyz"].reshape(B, G, head_dims["xyz"]),
        "scaling": per_head["scaling"].reshape(B, G, head_dims["scaling"]),
        "rotation": per_head["rotation"].reshape(B, G, head_dims["rotation"]),
        "opacity": per_head["opacity"].reshape(B, G, head_dims["opacity"]),
    }
    fdc = per_head["features_dc"].reshape(B, G, 1, head_dims["features_dc"])
    frest = per_head["features_rest"].reshape(
        B, G, head_dims["features_rest"] // 3, 3)
    out["features_dc"] = jnp.transpose(fdc, (0, 1, 3, 2))      # (B, G, 3, 1)
    out["features_rest"] = jnp.transpose(frest, (0, 1, 3, 2))  # (B, G, 3, (sh+1)^2-1)
    return out


# --------------------------------------------------------------------------
if __name__ == "__main__":
    B, C_in, Himg, Wimg = 2, 3, 16, 16
    feature_dim, num_gaussians, sh_degree = 32, 16, 3

    key = jax.random.PRNGKey(0)
    k_x, k_p = jax.random.split(key)
    x = jax.random.normal(k_x, (B, C_in, Himg, Wimg), jnp.float32)
    params, head_dims = init_params(k_p, C_in, feature_dim, num_gaussians, sh_degree)

    # One-time preprocessing outside the jitted forward (no per-forward weight prep).
    pp = prepare_params(params, head_dims, num_gaussians)
    pp = jax.block_until_ready(pp)

    fwd = jax.jit(functools.partial(
        feed_forward_gaussian_splatting,
        head_dims=head_dims, num_gaussians=num_gaussians, feature_dim=feature_dim))
    out = jax.block_until_ready(fwd(x, pp))

    # sanity: shapes match the PyTorch module
    assert out["xyz"].shape == (B, num_gaussians, 3)
    assert out["scaling"].shape == (B, num_gaussians, 2)
    assert out["rotation"].shape == (B, num_gaussians, 4)
    assert out["opacity"].shape == (B, num_gaussians, 1)
    assert out["features_dc"].shape == (B, num_gaussians, 3, 1)
    assert out["features_rest"].shape == (B, num_gaussians, 3, (sh_degree + 1) ** 2 - 1)

    print("KERNEL_OK")
</pallas_src>

<mosaic_0001>
module attributes {stable_mosaic.version = 11 : i64} {
  func.func @_mm_bias_kernel_single(%arg0: i32, %arg1: i32, %arg2: memref<64x27xbf16, #tpu.memory_space<vmem>>, %arg3: memref<27x64xbf16, #tpu.memory_space<vmem>>, %arg4: memref<1x64xf32, #tpu.memory_space<vmem>>, %arg5: memref<64x64xbf16, #tpu.memory_space<vmem>>) attributes {dimension_semantics = [#tpu.dimension_semantics<parallel>, #tpu.dimension_semantics<parallel>], iteration_bounds = array<i64: 2, 1>, scalar_prefetch = 0 : i64, scratch_operands = 0 : i64, tpu.core_type = #tpu.core_type<tc>, window_params = [{transform_indices = @transform_0, window_bounds = array<i64: 64, 27>}, {transform_indices = @transform_1, window_bounds = array<i64: 27, 64>}, {transform_indices = @transform_2, window_bounds = array<i64: 1, 64>}, {transform_indices = @transform_3, window_bounds = array<i64: 64, 64>}]} {
    %c0 = arith.constant 0 : index
    %c0_0 = arith.constant 0 : index
    %0 = vector.load %arg2[%c0, %c0_0] : memref<64x27xbf16, #tpu.memory_space<vmem>>, vector<64x27xbf16>
    %c0_1 = arith.constant 0 : index
    %c0_2 = arith.constant 0 : index
    %1 = vector.load %arg3[%c0_1, %c0_2] : memref<27x64xbf16, #tpu.memory_space<vmem>>, vector<27x64xbf16>
    %cst = arith.constant dense<0.000000e+00> : vector<64x64xf32>
    %2 = tpu.matmul %0, %1, %cst {dimension_numbers = #tpu.dot_dimension_numbers<[1], [0], [0], [1], [0, 0, 1, 1], [], []>} : vector<64x27xbf16>, vector<27x64xbf16>, vector<64x64xf32> -> vector<64x64xf32>
    %c0_3 = arith.constant 0 : index
    %c0_4 = arith.constant 0 : index
    %3 = vector.load %arg4[%c0_3, %c0_4] : memref<1x64xf32, #tpu.memory_space<vmem>>, vector<1x64xf32>
    %4 = vector.broadcast %3 : vector<1x64xf32> to vector<64x64xf32>
    %5 = arith.addf %2, %4 : vector<64x64xf32>
    %cst_5 = arith.constant 0.000000e+00 : f32
    %6 = vector.broadcast %cst_5 : f32 to vector<64x64xf32>
    %7 = arith.maximumf %5, %6 : vector<64x64xf32>
    %8 = arith.truncf %7 : vector<64x64xf32> to vector<64x64xbf16>
    %c0_6 = arith.constant 0 : index
    %c0_7 = arith.constant 0 : index
    %9 = vector.load %arg5[%c0_6, %c0_7] : memref<64x64xbf16, #tpu.memory_space<vmem>>, vector<64x64xbf16>
    tpu.vector_store %arg5[%c0_6, %c0_7], %8 {strides = array<i32>} : memref<64x64xbf16, #tpu.memory_space<vmem>>, vector<64x64xbf16>,
    return
  }
  func.func @transform_0(%arg0: i32, %arg1: i32) -> (i32, i32) {
    %c0_i32 = arith.constant 0 : i32
    %c0_i32_0 = arith.constant 0 : i32
    return %arg0, %c0_i32 : i32, i32
  }
  func.func @transform_1(%arg0: i32, %arg1: i32) -> (i32, i32) {
    %c0_i32 = arith.constant 0 : i32
    %c0_i32_0 = arith.constant 0 : i32
    return %c0_i32, %arg1 : i32, i32
  }
  func.func @transform_2(%arg0: i32, %arg1: i32) -> (i32, i32) {
    %c0_i32 = arith.constant 0 : i32
    %c0_i32_0 = arith.constant 0 : i32
    return %c0_i32, %arg1 : i32, i32
  }
  func.func @transform_3(%arg0: i32, %arg1: i32) -> (i32, i32) {
    %c0_i32 = arith.constant 0 : i32
    return %arg0, %arg1 : i32, i32
  }
}

module attributes {stable_mosaic.version = 11 : i64} {
  func.func @_mm_bias_kernel_single(%arg0: i32, %arg1: i32, %arg2: memref<16x576xbf16, #tpu.memory_space<vmem>>, %arg3: memref<576x128xbf16, #tpu.memory_space<vmem>>, %arg4: memref<1x128xf32, #tpu.memory_space<vmem>>, %arg5: memref<16x128xbf16, #tpu.memory_space<vmem>>) attributes {dimension_semantics = [#tpu.dimension_semantics<parallel>, #tpu.dimension_semantics<parallel>], iteration_bounds = array<i64: 2, 1>, scalar_prefetch = 0 : i64, scratch_operands = 0 : i64, tpu.core_type = #tpu.core_type<tc>, window_params = [{transform_indices = @transform_0, window_bounds = array<i64: 16, 576>}, {transform_indices = @transform_1, window_bounds = array<i64: 576, 128>}, {transform_indices = @transform_2, window_bounds = array<i64: 1, 128>}, {transform_indices = @transform_3, window_bounds = array<i64: 16, 128>}]} {
    %c0 = arith.constant 0 : index
    %c0_0 = arith.constant 0 : index
    %0 = vector.load %arg2[%c0, %c0_0] : memref<16x576xbf16, #tpu.memory_space<vmem>>, vector<16x576xbf16>
    %c0_1 = arith.constant 0 : index
    %c0_2 = arith.constant 0 : index
    %1 = vector.load %arg3[%c0_1, %c0_2] : memref<576x128xbf16, #tpu.memory_space<vmem>>, vector<576x128xbf16>
    %cst = arith.constant dense<0.000000e+00> : vector<16x128xf32>
    %2 = tpu.matmul %0, %1, %cst {dimension_numbers = #tpu.dot_dimension_numbers<[1], [0], [0], [1], [0, 0, 1, 1], [], []>} : vector<16x576xbf16>, vector<576x128xbf16>, vector<16x128xf32> -> vector<16x128xf32>
    %c0_3 = arith.constant 0 : index
    %c0_4 = arith.constant 0 : index
    %3 = vector.load %arg4[%c0_3, %c0_4] : memref<1x128xf32, #tpu.memory_space<vmem>>, vector<1x128xf32>
    %4 = vector.broadcast %3 : vector<1x128xf32> to vector<16x128xf32>
    %5 = arith.addf %2, %4 : vector<16x128xf32>
    %cst_5 = arith.constant 0.000000e+00 : f32
    %6 = vector.broadcast %cst_5 : f32 to vector<16x128xf32>
    %7 = arith.maximumf %5, %6 : vector<16x128xf32>
    %8 = arith.truncf %7 : vector<16x128xf32> to vector<16x128xbf16>
    %c0_6 = arith.constant 0 : index
    %c0_7 = arith.constant 0 : index
    %9 = vector.load %arg5[%c0_6, %c0_7] : memref<16x128xbf16, #tpu.memory_space<vmem>>, vector<16x128xbf16>
    tpu.vector_store %arg5[%c0_6, %c0_7], %8 {strides = array<i32>} : memref<16x128xbf16, #tpu.memory_space<vmem>>, vector<16x128xbf16>,
    return
  }
  func.func @transform_0(%arg0: i32, %arg1: i32) -> (i32, i32) {
    %c0_i32 = arith.constant 0 : i32
    %c0_i32_0 = arith.constant 0 : i32
    return %arg0, %c0_i32 : i32, i32
  }
  func.func @transform_1(%arg0: i32, %arg1: i32) -> (i32, i32) {
    %c0_i32 = arith.constant 0 : i32
    %c0_i32_0 = arith.constant 0 : i32
    return %c0_i32, %arg1 : i32, i32
  }
  func.func @transform_2(%arg0: i32, %arg1: i32) -> (i32, i32) {
    %c0_i32 = arith.constant 0 : i32
    %c0_i32_0 = arith.constant 0 : i32
    return %c0_i32, %arg1 : i32, i32
  }
  func.func @transform_3(%arg0: i32, %arg1: i32) -> (i32, i32) {
    %c0_i32 = arith.constant 0 : i32
    return %arg0, %arg1 : i32, i32
  }
}

module attributes {stable_mosaic.version = 11 : i64} {
  func.func @_mm_bias_kernel_single(%arg0: i32, %arg1: i32, %arg2: memref<8x1152xbf16, #tpu.memory_space<vmem>>, %arg3: memref<1152x128xbf16, #tpu.memory_space<vmem>>, %arg4: memref<1x128xf32, #tpu.memory_space<vmem>>, %arg5: memref<8x128xbf16, #tpu.memory_space<vmem>>) attributes {dimension_semantics = [#tpu.dimension_semantics<parallel>, #tpu.dimension_semantics<parallel>], iteration_bounds = array<i64: 1, 2>, scalar_prefetch = 0 : i64, scratch_operands = 0 : i64, tpu.core_type = #tpu.core_type<tc>, window_params = [{transform_indices = @transform_0, window_bounds = array<i64: 8, 1152>}, {transform_indices = @transform_1, window_bounds = array<i64: 1152, 128>}, {transform_indices = @transform_2, window_bounds = array<i64: 1, 128>}, {transform_indices = @transform_3, window_bounds = array<i64: 8, 128>}]} {
    %c0 = arith.constant 0 : index
    %c0_0 = arith.constant 0 : index
    %0 = vector.load %arg2[%c0, %c0_0] : memref<8x1152xbf16, #tpu.memory_space<vmem>>, vector<8x1152xbf16>
    %c0_1 = arith.constant 0 : index
    %c0_2 = arith.constant 0 : index
    %1 = vector.load %arg3[%c0_1, %c0_2] : memref<1152x128xbf16, #tpu.memory_space<vmem>>, vector<1152x128xbf16>
    %cst = arith.constant dense<0.000000e+00> : vector<8x128xf32>
    %2 = tpu.matmul %0, %1, %cst {dimension_numbers = #tpu.dot_dimension_numbers<[1], [0], [0], [1], [0, 0, 1, 1], [], []>} : vector<8x1152xbf16>, vector<1152x128xbf16>, vector<8x128xf32> -> vector<8x128xf32>
    %c0_3 = arith.constant 0 : index
    %c0_4 = arith.constant 0 : index
    %3 = vector.load %arg4[%c0_3, %c0_4] : memref<1x128xf32, #tpu.memory_space<vmem>>, vector<1x128xf32>
    %4 = vector.broadcast %3 : vector<1x128xf32> to vector<8x128xf32>
    %5 = arith.addf %2, %4 : vector<8x128xf32>
    %cst_5 = arith.constant 0.000000e+00 : f32
    %6 = vector.broadcast %cst_5 : f32 to vector<8x128xf32>
    %7 = arith.maximumf %5, %6 : vector<8x128xf32>
    %8 = arith.truncf %7 : vector<8x128xf32> to vector<8x128xbf16>
    %c0_6 = arith.constant 0 : index
    %c0_7 = arith.constant 0 : index
    %9 = vector.load %arg5[%c0_6, %c0_7] : memref<8x128xbf16, #tpu.memory_space<vmem>>, vector<8x128xbf16>
    tpu.vector_store %arg5[%c0_6, %c0_7], %8 {strides = array<i32>} : memref<8x128xbf16, #tpu.memory_space<vmem>>, vector<8x128xbf16>,
    return
  }
  func.func @transform_0(%arg0: i32, %arg1: i32) -> (i32, i32) {
    %c0_i32 = arith.constant 0 : i32
    %c0_i32_0 = arith.constant 0 : i32
    return %arg0, %c0_i32 : i32, i32
  }
  func.func @transform_1(%arg0: i32, %arg1: i32) -> (i32, i32) {
    %c0_i32 = arith.constant 0 : i32
    %c0_i32_0 = arith.constant 0 : i32
    return %c0_i32, %arg1 : i32, i32
  }
  func.func @transform_2(%arg0: i32, %arg1: i32) -> (i32, i32) {
    %c0_i32 = arith.constant 0 : i32
    %c0_i32_0 = arith.constant 0 : i32
    return %c0_i32, %arg1 : i32, i32
  }
  func.func @transform_3(%arg0: i32, %arg1: i32) -> (i32, i32) {
    %c0_i32 = arith.constant 0 : i32
    return %arg0, %arg1 : i32, i32
  }
}

module attributes {stable_mosaic.version = 11 : i64} {
  func.func @_tail_kernel(%arg0: i32, %arg1: memref<2x2304xbf16, #tpu.memory_space<vmem>>, %arg2: memref<2304x512xbf16, #tpu.memory_space<vmem>>, %arg3: memref<1x512xf32, #tpu.memory_space<vmem>>, %arg4: memref<512x32xbf16, #tpu.memory_space<vmem>>, %arg5: memref<1x32xf32, #tpu.memory_space<vmem>>, %arg6: memref<32x3072xbf16, #tpu.memory_space<vmem>>, %arg7: memref<1x3072xf32, #tpu.memory_space<vmem>>, %arg8: memref<512x1408xbf16, #tpu.memory_space<vmem>>, %arg9: memref<1x1408xf32, #tpu.memory_space<vmem>>, %arg10: memref<2x1408xf32, #tpu.memory_space<vmem>>) attributes {dimension_semantics = [#tpu.dimension_semantics<arbitrary>], iteration_bounds = array<i64: 1>, scalar_prefetch = 0 : i64, scratch_operands = 0 : i64, tpu.core_type = #tpu.core_type<tc>, window_params = [{pipeline_mode = #tpu.pipeline_mode<synchronous>, transform_indices = @transform_0, window_bounds = array<i64: 2, 2304>}, {pipeline_mode = #tpu.pipeline_mode<synchronous>, transform_indices = @transform_1, window_bounds = array<i64: 2304, 512>}, {pipeline_mode = #tpu.pipeline_mode<synchronous>, transform_indices = @transform_2, window_bounds = array<i64: 1, 512>}, {pipeline_mode = #tpu.pipeline_mode<synchronous>, transform_indices = @transform_3, window_bounds = array<i64: 512, 32>}, {pipeline_mode = #tpu.pipeline_mode<synchronous>, transform_indices = @transform_4, window_bounds = array<i64: 1, 32>}, {pipeline_mode = #tpu.pipeline_mode<synchronous>, transform_indices = @transform_5, window_bounds = array<i64: 32, 3072>}, {pipeline_mode = #tpu.pipeline_mode<synchronous>, transform_indices = @transform_6, window_bounds = array<i64: 1, 3072>}, {pipeline_mode = #tpu.pipeline_mode<synchronous>, transform_indices = @transform_7, window_bounds = array<i64: 512, 1408>}, {pipeline_mode = #tpu.pipeline_mode<synchronous>, transform_indices = @transform_8, window_bounds = array<i64: 1, 1408>}, {pipeline_mode = #tpu.pipeline_mode<synchronous>, transform_indices = @transform_9, window_bounds = array<i64: 2, 1408>}]} {
    %c0 = arith.constant 0 : index
    %c0_0 = arith.constant 0 : index
    %0 = vector.load %arg1[%c0, %c0_0] : memref<2x2304xbf16, #tpu.memory_space<vmem>>, vector<2x2304xbf16>
    %c0_1 = arith.constant 0 : index
    %c0_2 = arith.constant 0 : index
    %1 = vector.load %arg2[%c0_1, %c0_2] : memref<2304x512xbf16, #tpu.memory_space<vmem>>, vector<2304x512xbf16>
    %cst = arith.constant dense<0.000000e+00> : vector<2x512xf32>
    %2 = tpu.matmul %0, %1, %cst {dimension_numbers = #tpu.dot_dimension_numbers<[1], [0], [0], [1], [0, 0, 1, 1], [], []>} : vector<2x2304xbf16>, vector<2304x512xbf16>, vector<2x512xf32> -> vector<2x512xf32>
    %c0_3 = arith.constant 0 : index
    %c0_4 = arith.constant 0 : index
    %3 = vector.load %arg3[%c0_3, %c0_4] : memref<1x512xf32, #tpu.memory_space<vmem>>, vector<1x512xf32>
    %4 = vector.broadcast %3 : vector<1x512xf32> to vector<2x512xf32>
    %5 = arith.addf %2, %4 : vector<2x512xf32>
    %cst_5 = arith.constant 0.000000e+00 : f32
    %6 = vector.broadcast %cst_5 : f32 to vector<2x512xf32>
    %7 = arith.maximumf %5, %6 : vector<2x512xf32>
    %8 = arith.truncf %7 : vector<2x512xf32> to vector<2x512xbf16>
    %c0_6 = arith.constant 0 : index
    %c0_7 = arith.constant 0 : index
    %9 = vector.load %arg4[%c0_6, %c0_7] : memref<512x32xbf16, #tpu.memory_space<vmem>>, vector<512x32xbf16>
    %cst_8 = arith.constant dense<0.000000e+00> : vector<2x32xf32>
    %10 = tpu.matmul %8, %9, %cst_8 {dimension_numbers = #tpu.dot_dimension_numbers<[1], [0], [0], [1], [0, 0, 1, 1], [], []>} : vector<2x512xbf16>, vector<512x32xbf16>, vector<2x32xf32> -> vector<2x32xf32>
    %c0_9 = arith.constant 0 : index
    %c0_10 = arith.constant 0 : index
    %11 = vector.load %arg5[%c0_9, %c0_10] : memref<1x32xf32, #tpu.memory_space<vmem>>, vector<1x32xf32>
    %12 = vector.broadcast %11 : vector<1x32xf32> to vector<2x32xf32>
    %13 = arith.addf %10, %12 : vector<2x32xf32>
    %cst_11 = arith.constant 0.000000e+00 : f32
    %14 = vector.broadcast %cst_11 : f32 to vector<2x32xf32>
    %15 = arith.maximumf %13, %14 : vector<2x32xf32>
    %16 = arith.truncf %15 : vector<2x32xf32> to vector<2x32xbf16>
    %c0_12 = arith.constant 0 : index
    %c0_13 = arith.constant 0 : index
    %17 = vector.load %arg6[%c0_12, %c0_13] : memref<32x3072xbf16, #tpu.memory_space<vmem>>, vector<32x3072xbf16>
    %cst_14 = arith.constant dense<0.000000e+00> : vector<2x3072xf32>
    %18 = tpu.matmul %16, %17, %cst_14 {dimension_numbers = #tpu.dot_dimension_numbers<[1], [0], [0], [1], [0, 0, 1, 1], [], []>} : vector<2x32xbf16>, vector<32x3072xbf16>, vector<2x3072xf32> -> vector<2x3072xf32>
    %c0_15 = arith.constant 0 : index
    %c0_16 = arith.constant 0 : index
    %19 = vector.load %arg7[%c0_15, %c0_16] : memref<1x3072xf32, #tpu.memory_space<vmem>>, vector<1x3072xf32>
    %20 = vector.broadcast %19 : vector<1x3072xf32> to vector<2x3072xf32>
    %21 = arith.addf %18, %20 : vector<2x3072xf32>
    %cst_17 = arith.constant 0.000000e+00 : f32
    %22 = vector.broadcast %cst_17 : f32 to vector<2x3072xf32>
    %23 = arith.maximumf %21, %22 : vector<2x3072xf32>
    %24 = arith.truncf %23 : vector<2x3072xf32> to vector<2x3072xbf16>
    %25 = vector.extract_strided_slice %24 {offsets = [0, 0], sizes = [2, 512], strides = [1, 1]} : vector<2x3072xbf16> to vector<2x512xbf16>
    %c0_18 = arith.constant 0 : index
    %c0_19 = arith.constant 0 : index
    %26 = vector.load %arg8[%c0_18, %c0_19] : memref<512x1408xbf16, #tpu.memory_space<vmem>>, vector<512x128xbf16>
    %cst_20 = arith.constant dense<0.000000e+00> : vector<2x128xf32>
    %27 = tpu.matmul %25, %26, %cst_20 {dimension_numbers = #tpu.dot_dimension_numbers<[1], [0], [0], [1], [0, 0, 1, 1], [], []>} : vector<2x512xbf16>, vector<512x128xbf16>, vector<2x128xf32> -> vector<2x128xf32>
    %c0_21 = arith.constant 0 : index
    %c0_22 = arith.constant 0 : index
    %28 = vector.load %arg9[%c0_21, %c0_22] : memref<1x1408xf32, #tpu.memory_space<vmem>>, vector<1x128xf32>
    %29 = vector.broadcast %28 : vector<1x128xf32> to vector<2x128xf32>
    %30 = arith.addf %27, %29 : vector<2x128xf32>
    %c0_23 = arith.constant 0 : index
    %c0_24 = arith.constant 0 : index
    %31 = vector.load %arg10[%c0_23, %c0_24] : memref<2x1408xf32, #tpu.memory_space<vmem>>, vector<2x128xf32>
    tpu.vector_store %arg10[%c0_23, %c0_24], %30 {strides = array<i32>} : memref<2x1408xf32, #tpu.memory_space<vmem>>, vector<2x128xf32>,
    %32 = vector.extract_strided_slice %24 {offsets = [0, 512], sizes = [2, 512], strides = [1, 1]} : vector<2x3072xbf16> to vector<2x512xbf16>
    %c0_25 = arith.constant 0 : index
    %c128 = arith.constant 128 : index
    %33 = vector.load %arg8[%c0_25, %c128] : memref<512x1408xbf16, #tpu.memory_space<vmem>>, vector<512x128xbf16>
    %cst_26 = arith.constant dense<0.000000e+00> : vector<2x128xf32>
    %34 = tpu.matmul %32, %33, %cst_26 {dimension_numbers = #tpu.dot_dimension_numbers<[1], [0], [0], [1], [0, 0, 1, 1], [], []>} : vector<2x512xbf16>, vector<512x128xbf16>, vector<2x128xf32> -> vector<2x128xf32>
    %c0_27 = arith.constant 0 : index
    %c128_28 = arith.constant 128 : index
    %35 = vector.load %arg9[%c0_27, %c128_28] : memref<1x1408xf32, #tpu.memory_space<vmem>>, vector<1x128xf32>
    %36 = vector.broadcast %35 : vector<1x128xf32> to vector<2x128xf32>
    %37 = arith.addf %34, %36 : vector<2x128xf32>
    %c0_29 = arith.constant 0 : index
    %c128_30 = arith.constant 128 : index
    %38 = vector.load %arg10[%c0_29, %c128_30] : memref<2x1408xf32, #tpu.memory_space<vmem>>, vector<2x128xf32>
    tpu.vector_store %arg10[%c0_29, %c128_30], %37 {strides = array<i32>} : memref<2x1408xf32, #tpu.memory_space<vmem>>, vector<2x128xf32>,
    %39 = vector.extract_strided_slice %24 {offsets = [0, 1024], sizes = [2, 512], strides = [1, 1]} : vector<2x3072xbf16> to vector<2x512xbf16>
    %c0_31 = arith.constant 0 : index
    %c256 = arith.constant 256 : index
    %40 = vector.load %arg8[%c0_31, %c256] : memref<512x1408xbf16, #tpu.memory_space<vmem>>, vector<512x128xbf16>
    %cst_32 = arith.constant dense<0.000000e+00> : vector<2x128xf32>
    %41 = tpu.matmul %39, %40, %cst_32 {dimension_numbers = #tpu.dot_dimension_numbers<[1], [0], [0], [1], [0, 0, 1, 1], [], []>} : vector<2x512xbf16>, vector<512x128xbf16>, vector<2x128xf32> -> vector<2x128xf32>
    %c0_33 = arith.constant 0 : index
    %c256_34 = arith.constant 256 : index
    %42 = vector.load %arg9[%c0_33, %c256_34] : memref<1x1408xf32, #tpu.memory_space<vmem>>, vector<1x128xf32>
    %43 = vector.broadcast %42 : vector<1x128xf32> to vector<2x128xf32>
    %44 = arith.addf %41, %43 : vector<2x128xf32>
    %c0_35 = arith.constant 0 : index
    %c256_36 = arith.constant 256 : index
    %45 = vector.load %arg10[%c0_35, %c256_36] : memref<2x1408xf32, #tpu.memory_space<vmem>>, vector<2x128xf32>
    tpu.vector_store %arg10[%c0_35, %c256_36], %44 {strides = array<i32>} : memref<2x1408xf32, #tpu.memory_space<vmem>>, vector<2x128xf32>,
    %46 = vector.extract_strided_slice %24 {offsets = [0, 1536], sizes = [2, 512], strides = [1, 1]} : vector<2x3072xbf16> to vector<2x512xbf16>
    %c0_37 = arith.constant 0 : index
    %c384 = arith.constant 384 : index
    %47 = vector.load %arg8[%c0_37, %c384] : memref<512x1408xbf16, #tpu.memory_space<vmem>>, vector<512x128xbf16>
    %cst_38 = arith.constant dense<0.000000e+00> : vector<2x128xf32>
    %48 = tpu.matmul %46, %47, %cst_38 {dimension_numbers = #tpu.dot_dimension_numbers<[1], [0], [0], [1], [0, 0, 1, 1], [], []>} : vector<2x512xbf16>, vector<512x128xbf16>, vector<2x128xf32> -> vector<2x128xf32>
    %c0_39 = arith.constant 0 : index
    %c384_40 = arith.constant 384 : index
    %49 = vector.load %arg9[%c0_39, %c384_40] : memref<1x1408xf32, #tpu.memory_space<vmem>>, vector<1x128xf32>
    %50 = vector.broadcast %49 : vector<1x128xf32> to vector<2x128xf32>
    %51 = arith.addf %48, %50 : vector<2x128xf32>
    %c0_41 = arith.constant 0 : index
    %c384_42 = arith.constant 384 : index
    %52 = vector.load %arg10[%c0_41, %c384_42] : memref<2x1408xf32, #tpu.memory_space<vmem>>, vector<2x128xf32>
    tpu.vector_store %arg10[%c0_41, %c384_42], %51 {strides = array<i32>} : memref<2x1408xf32, #tpu.memory_space<vmem>>, vector<2x128xf32>,
    %53 = vector.extract_strided_slice %24 {offsets = [0, 2048], sizes = [2, 512], strides = [1, 1]} : vector<2x3072xbf16> to vector<2x512xbf16>
    %c0_43 = arith.constant 0 : index
    %c512 = arith.constant 512 : index
    %54 = vector.load %arg8[%c0_43, %c512] : memref<512x1408xbf16, #tpu.memory_space<vmem>>, vector<512x128xbf16>
    %cst_44 = arith.constant dense<0.000000e+00> : vector<2x128xf32>
    %55 = tpu.matmul %53, %54, %cst_44 {dimension_numbers = #tpu.dot_dimension_numbers<[1], [0], [0], [1], [0, 0, 1, 1], [], []>} : vector<2x512xbf16>, vector<512x128xbf16>, vector<2x128xf32> -> vector<2x128xf32>
    %c0_45 = arith.constant 0 : index
    %c512_46 = arith.constant 512 : index
    %56 = vector.load %arg9[%c0_45, %c512_46] : memref<1x1408xf32, #tpu.memory_space<vmem>>, vector<1x128xf32>
    %57 = vector.broadcast %56 : vector<1x128xf32> to vector<2x128xf32>
    %58 = arith.addf %55, %57 : vector<2x128xf32>
    %c0_47 = arith.constant 0 : index
    %c512_48 = arith.constant 512 : index
    %59 = vector.load %arg10[%c0_47, %c512_48] : memref<2x1408xf32, #tpu.memory_space<vmem>>, vector<2x128xf32>
    tpu.vector_store %arg10[%c0_47, %c512_48], %58 {strides = array<i32>} : memref<2x1408xf32, #tpu.memory_space<vmem>>, vector<2x128xf32>,
    %60 = vector.extract_strided_slice %24 {offsets = [0, 2560], sizes = [2, 512], strides = [1, 1]} : vector<2x3072xbf16> to vector<2x512xbf16>
    %c0_49 = arith.constant 0 : index
    %c640 = arith.constant 640 : index
    %61 = vector.load %arg8[%c0_49, %c640] : memref<512x1408xbf16, #tpu.memory_space<vmem>>, vector<512x768xbf16>
    %cst_50 = arith.constant dense<0.000000e+00> : vector<2x768xf32>
    %62 = tpu.matmul %60, %61, %cst_50 {dimension_numbers = #tpu.dot_dimension_numbers<[1], [0], [0], [1], [0, 0, 1, 1], [], []>} : vector<2x512xbf16>, vector<512x768xbf16>, vector<2x768xf32> -> vector<2x768xf32>
    %c0_51 = arith.constant 0 : index
    %c640_52 = arith.constant 640 : index
    %63 = vector.load %arg9[%c0_51, %c640_52] : memref<1x1408xf32, #tpu.memory_space<vmem>>, vector<1x768xf32>
    %64 = vector.broadcast %63 : vector<1x768xf32> to vector<2x768xf32>
    %65 = arith.addf %62, %64 : vector<2x768xf32>
    %c0_53 = arith.constant 0 : index
    %c640_54 = arith.constant 640 : index
    %66 = vector.load %arg10[%c0_53, %c640_54] : memref<2x1408xf32, #tpu.memory_space<vmem>>, vector<2x768xf32>
    tpu.vector_store %arg10[%c0_53, %c640_54], %65 {strides = array<i32>} : memref<2x1408xf32, #tpu.memory_space<vmem>>, vector<2x768xf32>,
    return
  }
  func.func @transform_0(%arg0: i32) -> (i32, i32) {
    %c0_i32 = arith.constant 0 : i32
    %c0_i32_0 = arith.constant 0 : i32
    %c0_i32_1 = arith.constant 0 : i32
    return %c0_i32, %c0_i32_0 : i32, i32
  }
  func.func @transform_1(%arg0: i32) -> (i32, i32) {
    %c0_i32 = arith.constant 0 : i32
    %c0_i32_0 = arith.constant 0 : i32
    %c0_i32_1 = arith.constant 0 : i32
    return %c0_i32, %c0_i32_0 : i32, i32
  }
  func.func @transform_2(%arg0: i32) -> (i32, i32) {
    %c0_i32 = arith.constant 0 : i32
    %c0_i32_0 = arith.constant 0 : i32
    %c0_i32_1 = arith.constant 0 : i32
    return %c0_i32, %c0_i32_0 : i32, i32
  }
  func.func @transform_3(%arg0: i32) -> (i32, i32) {
    %c0_i32 = arith.constant 0 : i32
    %c0_i32_0 = arith.constant 0 : i32
    %c0_i32_1 = arith.constant 0 : i32
    return %c0_i32, %c0_i32_0 : i32, i32
  }
  func.func @transform_4(%arg0: i32) -> (i32, i32) {
    %c0_i32 = arith.constant 0 : i32
    %c0_i32_0 = arith.constant 0 : i32
    %c0_i32_1 = arith.constant 0 : i32
    return %c0_i32, %c0_i32_0 : i32, i32
  }
  func.func @transform_5(%arg0: i32) -> (i32, i32) {
    %c0_i32 = arith.constant 0 : i32
    %c0_i32_0 = arith.constant 0 : i32
    %c0_i32_1 = arith.constant 0 : i32
    return %c0_i32, %c0_i32_0 : i32, i32
  }
  func.func @transform_6(%arg0: i32) -> (i32, i32) {
    %c0_i32 = arith.constant 0 : i32
    %c0_i32_0 = arith.constant 0 : i32
    %c0_i32_1 = arith.constant 0 : i32
    return %c0_i32, %c0_i32_0 : i32, i32
  }
  func.func @transform_7(%arg0: i32) -> (i32, i32) {
    %c0_i32 = arith.constant 0 : i32
    %c0_i32_0 = arith.constant 0 : i32
    %c0_i32_1 = arith.constant 0 : i32
    return %c0_i32, %c0_i32_0 : i32, i32
  }
  func.func @transform_8(%arg0: i32) -> (i32, i32) {
    %c0_i32 = arith.constant 0 : i32
    %c0_i32_0 = arith.constant 0 : i32
    %c0_i32_1 = arith.constant 0 : i32
    return %c0_i32, %c0_i32_0 : i32, i32
  }
  func.func @transform_9(%arg0: i32) -> (i32, i32) {
    %c0_i32 = arith.constant 0 : i32
    %c0_i32_0 = arith.constant 0 : i32
    %c0_i32_1 = arith.constant 0 : i32
    return %c0_i32, %c0_i32_0 : i32, i32
  }
}

</mosaic_0001>

<llo_original>
// kernel: feed_forward_gaussian_splatting.4
$region0: #{feed_forward_gaussian_splatting.4}
  #allocation0 [shape = 'u32[]', space=smem, size = 0x4, offset = 0x4, fixed_abs, tag = 'smem constant byte address 0x4 - core index']
  #allocation1 [shape = 'u32[144,128]{1,0:T(1,128)}', space=vmem, size = 0x12000, scoped, tag = 'internal scratch']
  %s0 = inlined_call_operand.vmem [shape: bf16[128,27], index: 0, kind: input, shape index: {}]
  %s1 = inlined_call_operand.hbm [shape: bf16[27,64], index: 1, kind: input, shape index: {}]
  %s2 = inlined_call_operand.hbm [shape: f32[1,64], index: 2, kind: input, shape index: {}]
  %s3 = inlined_call_operand.vmem [shape: bf16[128,64], index: 3, kind: output, shape index: {}]
  %s4 = sld [smem:[#allocation0]]
  $region53: #{feed_forward_gaussian_splatting.4} parent=0
    _
  %s6 = ssub.s32 1, %s4
  %s7 = scalar_select 0, %s6, %s4
  $region1: #{feed_forward_gaussian_splatting.4} parent=0
    #allocation2 [shape = 'u8[8192]{0}', space=vmem, size = 0x2000, scoped, tag = 'input window, operand 1, single buffered']
    #allocation3 [shape = 's32[2]{0}', space=sflag, size = 0x8, scoped, tag = 'scoped memory for feed_forward_gaussian_splatting.4']
    #allocation4 [shape = 'u8[512]{0}', space=vmem, size = 0x400, scoped, tag = 'input window, operand 2, single buffered']
    #allocation5 [shape = 's32[1]{0}', space=sflag, size = 0x4, scoped, tag = 'scoped memory for feed_forward_gaussian_splatting.4']
    %8 = vsyncpa [#allocation3], 0
    %9 = vsyncpa [#allocation5], 0
    loop: start=0, step=1, limit=4
    $region2: #{feed_forward_gaussian_splatting.4} parent=1 // loop_pre_header
      _
    $region3: #{feed_forward_gaussian_splatting.4} parent=1 // loop_header
      %s11 = sphi 0, %s15
      %p12 = scmp.ge.s32.totalorder %s11, 4
      %s18 = sphi 0, %s30
      %s19 = sphi 0, %s26
      %s20 = sphi 0, %s18
      %s21 = sphi 0, %s19
      %s22 = sphi 0, %s20
      %s23 = sphi 0, %s21
      %s33 = sphi 0, %s35
      %s36 = sphi 0, %s33
      %s37 = sphi 0, %s36
      %s53 = sphi 0, %s37
      %s59 = sphi 0, %s61
      %s62 = sphi 0, %s59
      %s63 = sphi 0, %s62
      %s79 = sphi 0, %s63
      %s85 = sphi 0, %s87
      %s88 = sphi 0, %s85
      %s89 = sphi 0, %s88
      %s105 = sphi 0, %s89
      %s113 = sphi 0, %s115
      %s116 = sphi 0, %s113
      %s117 = sphi 0, %s116
      %s133 = sphi 0, %s117
    $region4: #{feed_forward_gaussian_splatting.4} parent=1 // loop_header_branch
      %14 = sbr.rel (%p12) target = $region8
    $region5: #{feed_forward_gaussian_splatting.4} parent=1 // loop_body
      %s16 = ssub.s32 %s11, 1
      %s17 = ssub.s32 %s11, 2
      %s24 = sadd.s32 1, %s19
      %p25 = scmp.ge.s32.totalorder %s24, 1
      %s26 = scalar_select %p25, 0, %s24
      %s27 = sadd.s32 1, %s18
      %s28 = scalar_select %p25, %s27, %s18
      %p29 = scmp.ge.s32.totalorder %s28, 2
      %s30 = scalar_select %p29, 0, %s28
      %s31 = ssub.s32 %s18, %s30
      %p32 = scmp.eq.s32.totalorder %s31, 0
      %s34 = sadd.s32 %s33, 1
      %s35 = scalar_select %p32, %s33, %s34
      %p38 = pneg %p32
      %p39 = scmp.eq.s32.totalorder %s11, 1
      %p40 = por %p38, %p39
      %p41 = scmp.ne.s32.totalorder %s33, %s36
      %p42 = scmp.eq.s32.totalorder %s11, 0
      %p43 = por %p41, %p42
      %p44 = scmp.ne.s32.totalorder %s33, %s36
      %p45 = scmp.eq.s32.totalorder %s16, 1
      %p46 = por %p44, %p45
      %p47 = scmp.ne.s32.totalorder %s36, %s37
      %p48 = scmp.eq.s32.totalorder %s16, 0
      %p49 = por %p47, %p48
      %p50 = scmp.ne.s32.totalorder %s36, %s37
      %p51 = scmp.eq.s32.totalorder %s17, 1
      %p52 = por %p50, %p51
      %p54 = scmp.ne.s32.totalorder %s37, %s53
      %p55 = scmp.eq.s32.totalorder %s17, 0
      %p56 = por %p54, %p55
      %s57 = ssub.s32 %s19, %s26
      %p58 = scmp.eq.s32.totalorder %s57, 0
      %s60 = sadd.s32 %s59, 1
      %s61 = scalar_select %p58, %s59, %s60
      %p64 = pneg %p58
      %p65 = scmp.eq.s32.totalorder %s11, 1
      %p66 = por %p64, %p65
      %p67 = scmp.ne.s32.totalorder %s59, %s62
      %p68 = scmp.eq.s32.totalorder %s11, 0
      %p69 = por %p67, %p68
      %p70 = scmp.ne.s32.totalorder %s59, %s62
      %p71 = scmp.eq.s32.totalorder %s16, 1
      %p72 = por %p70, %p71
      %p73 = scmp.ne.s32.totalorder %s62, %s63
      %p74 = scmp.eq.s32.totalorder %s16, 0
      %p75 = por %p73, %p74
      %p76 = scmp.ne.s32.totalorder %s62, %s63
      %p77 = scmp.eq.s32.totalorder %s17, 1
      %p78 = por %p76, %p77
      %p80 = scmp.ne.s32.totalorder %s63, %s79
      %p81 = scmp.eq.s32.totalorder %s17, 0
      %p82 = por %p80, %p81
      %s83 = ssub.s32 %s19, %s26
      %p84 = scmp.eq.s32.totalorder %s83, 0
      %s86 = sadd.s32 %s85, 1
      %s87 = scalar_select %p84, %s85, %s86
      %p90 = pneg %p84
      %p91 = scmp.eq.s32.totalorder %s11, 1
      %p92 = por %p90, %p91
      %p93 = scmp.ne.s32.totalorder %s85, %s88
      %p94 = scmp.eq.s32.totalorder %s11, 0
      %p95 = por %p93, %p94
      %p96 = scmp.ne.s32.totalorder %s85, %s88
      %p97 = scmp.eq.s32.totalorder %s16, 1
      %p98 = por %p96, %p97
      %p99 = scmp.ne.s32.totalorder %s88, %s89
      %p100 = scmp.eq.s32.totalorder %s16, 0
      %p101 = por %p99, %p100
      %p102 = scmp.ne.s32.totalorder %s88, %s89
      %p103 = scmp.eq.s32.totalorder %s17, 1
      %p104 = por %p102, %p103
      %p106 = scmp.ne.s32.totalorder %s89, %s105
      %p107 = scmp.eq.s32.totalorder %s17, 0
      %p108 = por %p106, %p107
      %s109 = ssub.s32 %s18, %s30
      %s110 = ssub.s32 %s19, %s26
      %s111 = sor.u32 %s109, %s110
      %p112 = scmp.eq.s32.totalorder %s111, 0
      %s114 = sadd.s32 %s113, 1
      %s115 = scalar_select %p112, %s113, %s114
      %p118 = pneg %p112
      %p119 = scmp.eq.s32.totalorder %s11, 1
      %p120 = por %p118, %p119
      %p121 = scmp.ne.s32.totalorder %s113, %s116
      %p122 = scmp.eq.s32.totalorder %s11, 0
      %p123 = por %p121, %p122
      %p124 = scmp.ne.s32.totalorder %s113, %s116
      %p125 = scmp.eq.s32.totalorder %s16, 1
      %p126 = por %p124, %p125
      %p127 = scmp.ne.s32.totalorder %s116, %s117
      %p128 = scmp.eq.s32.totalorder %s16, 0
      %p129 = por %p127, %p128
      %p130 = scmp.ne.s32.totalorder %s116, %s117
      %p131 = scmp.eq.s32.totalorder %s17, 1
      %p132 = por %p130, %p131
      %p134 = scmp.ne.s32.totalorder %s117, %s133
      %p135 = scmp.eq.s32.totalorder %s17, 0
      %p136 = por %p134, %p135
      %p137 = scmp.le.s32.totalorder 1, %s11
      %p138 = scmp.lt.s32.totalorder %s11, 3
      %p139 = pnand %p137, %p138
      %p140 = pneg %p139
      // Predicated region
      $region9: #{feed_forward_gaussian_splatting.4} parent=5 // pred_check
        _
      $region10: #{feed_forward_gaussian_splatting.4} parent=5 // pred_check_branch
        %142 = sbr.rel (%p139) target = $region12
      $region11: #{feed_forward_gaussian_splatting.4} parent=5 // pred_region
        %s143 = ssub.s32 %s11, 1
        // Predicated region
        $region13: #{feed_forward_gaussian_splatting.4} parent=11 // pred_check
          %p144 = pneg %p75
        $region14: #{feed_forward_gaussian_splatting.4} parent=11 // pred_check_branch
          %146 = sbr.rel (%p144) target = $region16
        $region15: #{feed_forward_gaussian_splatting.4} parent=11 // pred_region
          %s148 = ssub.s32 256, 256
          %149 = vsyncadd [#allocation3], %s148
          %s150 = smul.addr %s21, 64
          %s151 = scalar_lea.hbm %s1, %s150
          %s152 = sshll.u32 [#allocation2], 4
          %s153 = int_to_ptr.vmem [resolvable:$true] %s152
          %158 = dma.hbm_to_vmem [thread:$0]  %s151, 256, %s153, [#allocation3], 64, 64, 4
        $region16: #{feed_forward_gaussian_splatting.4} parent=11 // pred_fallthru
          _
        // Predicated region
        $region17: #{feed_forward_gaussian_splatting.4} parent=11 // pred_check
          %p159 = pneg %p101
        $region18: #{feed_forward_gaussian_splatting.4} parent=11 // pred_check_branch
          %161 = sbr.rel (%p159) target = $region20
        $region19: #{feed_forward_gaussian_splatting.4} parent=11 // pred_region
          %s163 = ssub.s32 16, 16
          %164 = vsyncadd [#allocation5], %s163
          %s165 = smul.addr %s21, 16
          %s166 = scalar_lea.hbm %s2, %s165
          %s168 = sshll.u32 [#allocation4], 4
          %s169 = int_to_ptr.vmem [resolvable:$true] %s168
          %171 = dma.hbm_to_vmem [thread:$0]  %s166, 16, %s169, [#allocation5]
        $region20: #{feed_forward_gaussian_splatting.4} parent=11 // pred_fallthru
          _
      $region12: #{feed_forward_gaussian_splatting.4} parent=5 // pred_fallthru
        _
      %p172 = scmp.lt.s32.totalorder %s11, 2
      // Predicated region
      $region21: #{feed_forward_gaussian_splatting.4} parent=5 // pred_check
        %p173 = pneg %p172
      $region22: #{feed_forward_gaussian_splatting.4} parent=5 // pred_check_branch
        %175 = sbr.rel (%p173) target = $region24
      $region23: #{feed_forward_gaussian_splatting.4} parent=5 // pred_region
        // Predicated region
        $region25: #{feed_forward_gaussian_splatting.4} parent=23 // pred_check
          %p176 = pneg %p43
        $region26: #{feed_forward_gaussian_splatting.4} parent=23 // pred_check_branch
          %178 = sbr.rel (%p176) target = $region28
        $region27: #{feed_forward_gaussian_splatting.4} parent=23 // pred_region
          %s179 = smul.u32 8, %s18
          %p180 = scmp.lt.s32.totalorder %s179, 15
          %s181 = scalar_select %p180, %s179, 15
          %s182 = smul.addr %s181, 4
          %s183 = scalar_lea.vmem %s0, %s182
          %s184 = smul.u32 8, %s18
        $region28: #{feed_forward_gaussian_splatting.4} parent=23 // pred_fallthru
          _
      $region24: #{feed_forward_gaussian_splatting.4} parent=5 // pred_fallthru
        _
      %p185 = scmp.le.s32.totalorder 1, %s11
      %p186 = scmp.lt.s32.totalorder %s11, 3
      %p187 = pnand %p185, %p186
      %p188 = pneg %p187
      // Predicated region
      $region29: #{feed_forward_gaussian_splatting.4} parent=5 // pred_check
        _
      $region30: #{feed_forward_gaussian_splatting.4} parent=5 // pred_check_branch
        %190 = sbr.rel (%p187) target = $region32
      $region31: #{feed_forward_gaussian_splatting.4} parent=5 // pred_region
        %s191 = ssub.s32 %s11, 1
        // Predicated region
        $region33: #{feed_forward_gaussian_splatting.4} parent=31 // pred_check
          %p192 = pneg %p75
        $region34: #{feed_forward_gaussian_splatting.4} parent=31 // pred_check_branch
          %194 = sbr.rel (%p192) target = $region36
        $region35: #{feed_forward_gaussian_splatting.4} parent=31 // pred_region
          %195 = dma.done [#allocation3], 256
        $region36: #{feed_forward_gaussian_splatting.4} parent=31 // pred_fallthru
          _
        // Predicated region
        $region37: #{feed_forward_gaussian_splatting.4} parent=31 // pred_check
          %p196 = pneg %p101
        $region38: #{feed_forward_gaussian_splatting.4} parent=31 // pred_check_branch
          %198 = sbr.rel (%p196) target = $region40
        $region39: #{feed_forward_gaussian_splatting.4} parent=31 // pred_region
          %199 = dma.done [#allocation5], 16
        $region40: #{feed_forward_gaussian_splatting.4} parent=31 // pred_fallthru
          _
        %s200 = smul.u32 8, %s20
        %p201 = scmp.lt.s32.totalorder %s200, 15
        %s202 = scalar_select %p201, %s200, 15
        %s203 = smul.addr %s202, 4
        %s204 = scalar_lea.vmem %s0, %s203
        %p205 = pneg %p49
        %p206 = pneg %p46
        %p207 = pneg %p75
        %p208 = pneg %p72
        %p209 = pneg %p101
        %p210 = pneg %p98
        %p211 = pneg %p129
        %p212 = pneg %p126
        %s213 = smul.u32 8, %s20
        %p214 = scmp.lt.s32.totalorder %s213, 15
        %s215 = scalar_select %p214, %s213, 15
        %p216 = scmp.lt.s32.totalorder %s21, 0
        %s217 = scalar_select %p216, %s21, 0
        %s218 = sadd.s32 %s217, %s215
        %s219 = smul.addr %s218, 4
        %s220 = scalar_lea.vmem %s3, %s219
        %s221 = smul.u32 8, %s20
        %p222 = scmp.lt.s32.totalorder %s221, 15
        %s223 = scalar_select %p222, %s221, 15
        %s224 = smul.addr %s223, 4
        %s225 = scalar_lea.vmem %s0, %s224
        %s226 = smul.u32 8, %s20
        %s227 = smul.u32 8, %s20
        %p228 = scmp.lt.s32.totalorder %s227, 15
        %s229 = scalar_select %p228, %s227, 15
        %p230 = scmp.lt.s32.totalorder %s21, 0
        %s231 = scalar_select %p230, %s21, 0
        %s232 = sadd.s32 %s231, %s229
        %s233 = smul.addr %s232, 4
        %s234 = scalar_lea.vmem %s3, %s233
        %s235 = smul.u32 8, %s20
        %v237 = vld [vmem:[%s225] sm:$0xf]
        %v238 = vld [vmem:[%s225 + $0x4] sm:$0xf]
        %v239 = vld [vmem:[%s225 + $0x8] sm:$0xf]
        %v240 = vld [vmem:[%s225 + $0xc] sm:$0xf]
        %v241 = vld [vmem:[%s225 + $0x10] sm:$0xf]
        %v242 = vld [vmem:[%s225 + $0x14] sm:$0xf]
        %v243 = vld [vmem:[%s225 + $0x18] sm:$0xf]
        %v244 = vld [vmem:[%s225 + $0x1c] sm:$0xf]
        %v245 = vld [vmem:[#allocation2] sm:$0xf]
        %v246 = vld [vmem:[#allocation2 + $0x4] sm:$0xf]
        %v247 = vld [vmem:[#allocation2 + $0x8] sm:$0xf]
        %v248 = vld [vmem:[#allocation2 + $0xc] sm:$0x3]
        %v249 = vld [vmem:[#allocation4] sm:$0x1]
        %v251 = vlaneseq
        %v252 = vshrl.u32 %v251, 7
        %v253 = vsub.s32 0, %v252
        %v254 = vrot.slane %v249, %v253
        %v264 = vunpack.c.l.b16 %v237
        %v265 = vunpack.c.l.b16 %v238
        %v266 = vunpack.c.l.b16 %v239
        %v267 = vunpack.c.l.b16 %v240
        %v268 = vunpack.c.l.b16 %v241
        %v269 = vunpack.c.l.b16 %v242
        %v270 = vunpack.c.l.b16 %v243
        %v271 = vunpack.c.l.b16 %v244
        %v272 = vpack.c.b16 %v265, %v264
        %v273 = vpack.c.b16 %v267, %v266
        %v274 = vpack.c.b16 %v269, %v268
        %v275 = vpack.c.b16 %v271, %v270
        %v280 = vunpack.c.l.b16 %v245
        %v281 = vunpack.c.l.b16 %v246
        %v282 = vunpack.c.l.b16 %v247
        %v283 = vunpack.c.l.b16 %v248
        %v284 = vpack.c.b16 %v281, %v280
        %v285 = vpack.c.b16 %v283, %v282
        %vm287 = vcmask 220160
        %v289 = vsel %vm287, %v272, 0
        %v292 = vsel %vm287, %v273, 0
        %v295 = vsel %vm287, %v274, 0
        %v298 = vsel %vm287, %v275, 0
        %vm300 = vcmask 1044480
        %vm301 = vcmask 1045504
        %v302 = vsel %vm300, 4294967295, 65535
        %v303 = vsel %vm301, %v302, 0
        %v305 = vand.u32 %v285, %v303
        %307 = vmatprep.subr.bf16.mxu0 0
        %308 = vmatpush1.bf16.msra.mxu0 %v284
        %309 = vmatprep.subr.bf16.mxu0 0
        %310 = vmatpush1.bf16.msra.mxu0 %v305
        %311 = vmatprep.subr.bf16.mxu0 0
        %312 = vmatpush1.bf16.msra.mxu0 0
        %313 = vmatprep.subr.bf16.mxu0 0
        %314 = vmatpush1.bf16.msra.mxu0 0
        %315 = vmatprep.subr.bf16.mxu0 0
        %316 = vmatpush1.bf16.msra.mxu0 0
        %317 = vmatprep.subr.bf16.mxu0 0
        %318 = vmatpush1.bf16.msra.mxu0 0
        %319 = vmatprep.subr.bf16.mxu0 0
        %320 = vmatpush1.bf16.msra.mxu0 0
        %321 = vmatprep.subr.bf16.mxu0 0
        %322 = vmatpush1.bf16.msra.mxu0 0
        %323 = vmatprep.subr.bf16.mxu0 0
        %324 = vmatpush1.bf16.msra.mxu0 0
        %325 = vmatprep.subr.bf16.mxu0 0
        %326 = vmatpush1.bf16.msra.mxu0 0
        %327 = vmatprep.subr.bf16.mxu0 0
        %328 = vmatpush1.bf16.msra.mxu0 0
        %329 = vmatprep.subr.bf16.mxu0 0
        %330 = vmatpush1.bf16.msra.mxu0 0
        %331 = vmatprep.subr.bf16.mxu0 0
        %332 = vmatpush1.bf16.msra.mxu0 0
        %333 = vmatprep.subr.bf16.mxu0 0
        %334 = vmatpush1.bf16.msra.mxu0 0
        %335 = vmatprep.subr.bf16.mxu0 0
        %336 = vmatpush1.bf16.msra.mxu0 0
        %337 = vmatprep.subr.bf16.mxu0 0
        %338 = vmatpush1.bf16.msra.mxu0 0
        %339 = vmatprep.mubr.bf16.mxu0 0
        %340 = vmatmul.mubr.bf16.gmra.mrb[0].mxu0 %v289
        %v341 = vpop.f32.mrb[0].mxu0
        %v342 = vadd.f32 %v254, %v341
        %v343 = vpop.f32.mrb[0].mxu0
        %v344 = vpop.f32.mrb[0].mxu0
        %v345 = vadd.f32 %v254, %v344
        %v346 = vpop.f32.mrb[0].mxu0
        %347 = vmatprep.mubr.bf16.mxu0 0
        %348 = vmatmul.mubr.bf16.gmra.mrb[0].mxu0 %v292
        %v349 = vpop.f32.mrb[0].mxu0
        %v350 = vadd.f32 %v254, %v349
        %v351 = vpop.f32.mrb[0].mxu0
        %v352 = vpop.f32.mrb[0].mxu0
        %v353 = vadd.f32 %v254, %v352
        %v354 = vpop.f32.mrb[0].mxu0
        %355 = vmatprep.mubr.bf16.mxu0 0
        %356 = vmatmul.mubr.bf16.gmra.mrb[0].mxu0 %v295
        %v357 = vpop.f32.mrb[0].mxu0
        %v358 = vadd.f32 %v254, %v357
        %v359 = vpop.f32.mrb[0].mxu0
        %v360 = vpop.f32.mrb[0].mxu0
        %v361 = vadd.f32 %v254, %v360
        %v362 = vpop.f32.mrb[0].mxu0
        %363 = vmatprep.mubr.bf16.mxu0 0
        %364 = vmatmul.mubr.bf16.gmra.mrb[0].mxu0 %v298
        %v365 = vpop.f32.mrb[0].mxu0
        %v366 = vadd.f32 %v254, %v365
        %v367 = vpop.f32.mrb[0].mxu0
        %v368 = vpop.f32.mrb[0].mxu0
        %v369 = vadd.f32 %v254, %v368
        %v370 = vpop.f32.mrb[0].mxu0
        %371 = vdwg.mxu0
        %v372 = vmax.f32 %v342, 0.0
        %v373 = vmax.f32 %v345, 0.0
        %v374 = vmax.f32 %v350, 0.0
        %v375 = vmax.f32 %v353, 0.0
        %v376 = vmax.f32 %v358, 0.0
        %v377 = vmax.f32 %v361, 0.0
        %v378 = vmax.f32 %v366, 0.0
        %v379 = vmax.f32 %v369, 0.0
        %v380 = vpack.c.bf16 %v373, %v372
        %v381 = vpack.c.bf16 %v375, %v374
        %v382 = vpack.c.bf16 %v377, %v376
        %v383 = vpack.c.bf16 %v379, %v378
        %v388 = vunpack.c.l.b16 %v380
        %v389 = vunpack.c.h.b16 %v380
        %v390 = vunpack.c.l.b16 %v381
        %v391 = vunpack.c.h.b16 %v381
        %v392 = vunpack.c.l.b16 %v382
        %v393 = vunpack.c.h.b16 %v382
        %v394 = vunpack.c.l.b16 %v383
        %v395 = vunpack.c.h.b16 %v383
        %v396 = vpack.c.b16 %v388, %v388
        %v397 = vpack.c.b16 %v389, %v389
        %v398 = vpack.c.b16 %v390, %v390
        %v399 = vpack.c.b16 %v391, %v391
        %v400 = vpack.c.b16 %v392, %v392
        %v401 = vpack.c.b16 %v393, %v393
        %v402 = vpack.c.b16 %v394, %v394
        %v403 = vpack.c.b16 %v395, %v395
        %vm412 = vcmask 519168
        %413 = vst.msk [vmem:[%s234] sm:$0xf] %vm412, %v396
        %414 = vst.msk [vmem:[%s234 + $0x4] sm:$0xf] %vm412, %v397
        %415 = vst.msk [vmem:[%s234 + $0x8] sm:$0xf] %vm412, %v398
        %416 = vst.msk [vmem:[%s234 + $0xc] sm:$0xf] %vm412, %v399
        %417 = vst.msk [vmem:[%s234 + $0x10] sm:$0xf] %vm412, %v400
        %418 = vst.msk [vmem:[%s234 + $0x14] sm:$0xf] %vm412, %v401
        %419 = vst.msk [vmem:[%s234 + $0x18] sm:$0xf] %vm412, %v402
        %420 = vst.msk [vmem:[%s234 + $0x1c] sm:$0xf] %vm412, %v403
        %s421 = smul.u32 8, %s20
        %p422 = scmp.lt.s32.totalorder %s421, 15
        %s423 = scalar_select %p422, %s421, 15
        %p424 = scmp.lt.s32.totalorder %s21, 0
        %s425 = scalar_select %p424, %s21, 0
        %s426 = sadd.s32 %s425, %s423
        %s427 = smul.addr %s426, 4
        %s428 = scalar_lea.vmem %s3, %s427
        // Predicated region
        $region41: #{feed_forward_gaussian_splatting.4} parent=31 // pred_check
          %p429 = pneg %p126
        $region42: #{feed_forward_gaussian_splatting.4} parent=31 // pred_check_branch
          %431 = sbr.rel (%p429) target = $region44
        $region43: #{feed_forward_gaussian_splatting.4} parent=31 // pred_region
          %s432 = smul.u32 8, %s20
        $region44: #{feed_forward_gaussian_splatting.4} parent=31 // pred_fallthru
          _
      $region32: #{feed_forward_gaussian_splatting.4} parent=5 // pred_fallthru
        _
      %p433 = scmp.le.s32.totalorder 2, %s11
      // Predicated region
      $region45: #{feed_forward_gaussian_splatting.4} parent=5 // pred_check
        %p434 = pneg %p433
      $region46: #{feed_forward_gaussian_splatting.4} parent=5 // pred_check_branch
        %436 = sbr.rel (%p434) target = $region48
      $region47: #{feed_forward_gaussian_splatting.4} parent=5 // pred_region
        %s437 = ssub.s32 %s11, 2
        // Predicated region
        $region49: #{feed_forward_gaussian_splatting.4} parent=47 // pred_check
          %p438 = pneg %p132
        $region50: #{feed_forward_gaussian_splatting.4} parent=47 // pred_check_branch
          %440 = sbr.rel (%p438) target = $region52
        $region51: #{feed_forward_gaussian_splatting.4} parent=47 // pred_region
          %s441 = smul.u32 8, %s22
          %p442 = scmp.lt.s32.totalorder %s441, 15
          %s443 = scalar_select %p442, %s441, 15
          %p444 = scmp.lt.s32.totalorder %s23, 0
          %s445 = scalar_select %p444, %s23, 0
          %s446 = sadd.s32 %s445, %s443
          %s447 = smul.addr %s446, 4
          %s448 = scalar_lea.vmem %s3, %s447
        $region52: #{feed_forward_gaussian_splatting.4} parent=47 // pred_fallthru
          _
      $region48: #{feed_forward_gaussian_splatting.4} parent=5 // pred_fallthru
        _
    $region6: #{feed_forward_gaussian_splatting.4} parent=1 // loop_footer
      %s15 = sadd.s32 1, %s11
    $region7: #{feed_forward_gaussian_splatting.4} parent=1 // loop_footer_branch
      %10 = sbr.rel target = $region3
    $region8: #{feed_forward_gaussian_splatting.4} parent=1 // loop_exit
      _
    %449 = vsyncpa [#allocation3], 1
    %s450 = scalar_lea.sflag [#allocation3], 1
    %451 = vsyncpa %s450, 1
    %452 = vsyncpa [#allocation5], 1

// kernel: feed_forward_gaussian_splatting.5
$region0: #{feed_forward_gaussian_splatting.5}
  #allocation0 [shape = 'u32[]', space=smem, size = 0x4, offset = 0x4, fixed_abs, tag = 'smem constant byte address 0x4 - core index']
  #allocation1 [shape = 'u32[144,128]{1,0:T(1,128)}', space=vmem, size = 0x12000, scoped, tag = 'internal scratch']
  %s0 = inlined_call_operand.vmem [shape: bf16[32,576], index: 0, kind: input, shape index: {}]
  %s1 = inlined_call_operand.hbm [shape: bf16[576,128], index: 1, kind: input, shape index: {}]
  %s2 = inlined_call_operand.hbm [shape: f32[1,128], index: 2, kind: input, shape index: {}]
  %s3 = inlined_call_operand.vmem [shape: bf16[32,128], index: 3, kind: output, shape index: {}]
  %s4 = sld [smem:[#allocation0]]
  $region53: #{feed_forward_gaussian_splatting.5} parent=0
    _
  %s6 = ssub.s32 1, %s4
  %s7 = scalar_select 0, %s6, %s4
  $region1: #{feed_forward_gaussian_splatting.5} parent=0
    #allocation2 [shape = 'u8[147456]{0}', space=vmem, size = 0x24000, scoped, tag = 'input window, operand 1, single buffered']
    #allocation3 [shape = 's32[2]{0}', space=sflag, size = 0x8, scoped, tag = 'scoped memory for feed_forward_gaussian_splatting.5']
    #allocation4 [shape = 'u8[512]{0}', space=vmem, size = 0x400, scoped, tag = 'input window, operand 2, single buffered']
    #allocation5 [shape = 's32[1]{0}', space=sflag, size = 0x4, scoped, tag = 'scoped memory for feed_forward_gaussian_splatting.5']
    %8 = vsyncpa [#allocation3], 0
    %9 = vsyncpa [#allocation5], 0
    loop: start=0, step=1, limit=4
    $region2: #{feed_forward_gaussian_splatting.5} parent=1 // loop_pre_header
      _
    $region3: #{feed_forward_gaussian_splatting.5} parent=1 // loop_header
      %s11 = sphi 0, %s15
      %p12 = scmp.ge.s32.totalorder %s11, 4
      %s18 = sphi 0, %s30
      %s19 = sphi 0, %s26
      %s20 = sphi 0, %s18
      %s21 = sphi 0, %s19
      %s22 = sphi 0, %s20
      %s23 = sphi 0, %s21
      %s33 = sphi 0, %s35
      %s36 = sphi 0, %s33
      %s37 = sphi 0, %s36
      %s53 = sphi 0, %s37
      %s59 = sphi 0, %s61
      %s62 = sphi 0, %s59
      %s63 = sphi 0, %s62
      %s79 = sphi 0, %s63
      %s85 = sphi 0, %s87
      %s88 = sphi 0, %s85
      %s89 = sphi 0, %s88
      %s105 = sphi 0, %s89
      %s113 = sphi 0, %s115
      %s116 = sphi 0, %s113
      %s117 = sphi 0, %s116
      %s133 = sphi 0, %s117
    $region4: #{feed_forward_gaussian_splatting.5} parent=1 // loop_header_branch
      %14 = sbr.rel (%p12) target = $region8
    $region5: #{feed_forward_gaussian_splatting.5} parent=1 // loop_body
      %s16 = ssub.s32 %s11, 1
      %s17 = ssub.s32 %s11, 2
      %s24 = sadd.s32 1, %s19
      %p25 = scmp.ge.s32.totalorder %s24, 1
      %s26 = scalar_select %p25, 0, %s24
      %s27 = sadd.s32 1, %s18
      %s28 = scalar_select %p25, %s27, %s18
      %p29 = scmp.ge.s32.totalorder %s28, 2
      %s30 = scalar_select %p29, 0, %s28
      %s31 = ssub.s32 %s18, %s30
      %p32 = scmp.eq.s32.totalorder %s31, 0
      %s34 = sadd.s32 %s33, 1
      %s35 = scalar_select %p32, %s33, %s34
      %p38 = pneg %p32
      %p39 = scmp.eq.s32.totalorder %s11, 1
      %p40 = por %p38, %p39
      %p41 = scmp.ne.s32.totalorder %s33, %s36
      %p42 = scmp.eq.s32.totalorder %s11, 0
      %p43 = por %p41, %p42
      %p44 = scmp.ne.s32.totalorder %s33, %s36
      %p45 = scmp.eq.s32.totalorder %s16, 1
      %p46 = por %p44, %p45
      %p47 = scmp.ne.s32.totalorder %s36, %s37
      %p48 = scmp.eq.s32.totalorder %s16, 0
      %p49 = por %p47, %p48
      %p50 = scmp.ne.s32.totalorder %s36, %s37
      %p51 = scmp.eq.s32.totalorder %s17, 1
      %p52 = por %p50, %p51
      %p54 = scmp.ne.s32.totalorder %s37, %s53
      %p55 = scmp.eq.s32.totalorder %s17, 0
      %p56 = por %p54, %p55
      %s57 = ssub.s32 %s19, %s26
      %p58 = scmp.eq.s32.totalorder %s57, 0
      %s60 = sadd.s32 %s59, 1
      %s61 = scalar_select %p58, %s59, %s60
      %p64 = pneg %p58
      %p65 = scmp.eq.s32.totalorder %s11, 1
      %p66 = por %p64, %p65
      %p67 = scmp.ne.s32.totalorder %s59, %s62
      %p68 = scmp.eq.s32.totalorder %s11, 0
      %p69 = por %p67, %p68
      %p70 = scmp.ne.s32.totalorder %s59, %s62
      %p71 = scmp.eq.s32.totalorder %s16, 1
      %p72 = por %p70, %p71
      %p73 = scmp.ne.s32.totalorder %s62, %s63
      %p74 = scmp.eq.s32.totalorder %s16, 0
      %p75 = por %p73, %p74
      %p76 = scmp.ne.s32.totalorder %s62, %s63
      %p77 = scmp.eq.s32.totalorder %s17, 1
      %p78 = por %p76, %p77
      %p80 = scmp.ne.s32.totalorder %s63, %s79
      %p81 = scmp.eq.s32.totalorder %s17, 0
      %p82 = por %p80, %p81
      %s83 = ssub.s32 %s19, %s26
      %p84 = scmp.eq.s32.totalorder %s83, 0
      %s86 = sadd.s32 %s85, 1
      %s87 = scalar_select %p84, %s85, %s86
      %p90 = pneg %p84
      %p91 = scmp.eq.s32.totalorder %s11, 1
      %p92 = por %p90, %p91
      %p93 = scmp.ne.s32.totalorder %s85, %s88
      %p94 = scmp.eq.s32.totalorder %s11, 0
      %p95 = por %p93, %p94
      %p96 = scmp.ne.s32.totalorder %s85, %s88
      %p97 = scmp.eq.s32.totalorder %s16, 1
      %p98 = por %p96, %p97
      %p99 = scmp.ne.s32.totalorder %s88, %s89
      %p100 = scmp.eq.s32.totalorder %s16, 0
      %p101 = por %p99, %p100
      %p102 = scmp.ne.s32.totalorder %s88, %s89
      %p103 = scmp.eq.s32.totalorder %s17, 1
      %p104 = por %p102, %p103
      %p106 = scmp.ne.s32.totalorder %s89, %s105
      %p107 = scmp.eq.s32.totalorder %s17, 0
      %p108 = por %p106, %p107
      %s109 = ssub.s32 %s18, %s30
      %s110 = ssub.s32 %s19, %s26
      %s111 = sor.u32 %s109, %s110
      %p112 = scmp.eq.s32.totalorder %s111, 0
      %s114 = sadd.s32 %s113, 1
      %s115 = scalar_select %p112, %s113, %s114
      %p118 = pneg %p112
      %p119 = scmp.eq.s32.totalorder %s11, 1
      %p120 = por %p118, %p119
      %p121 = scmp.ne.s32.totalorder %s113, %s116
      %p122 = scmp.eq.s32.totalorder %s11, 0
      %p123 = por %p121, %p122
      %p124 = scmp.ne.s32.totalorder %s113, %s116
      %p125 = scmp.eq.s32.totalorder %s16, 1
      %p126 = por %p124, %p125
      %p127 = scmp.ne.s32.totalorder %s116, %s117
      %p128 = scmp.eq.s32.totalorder %s16, 0
      %p129 = por %p127, %p128
      %p130 = scmp.ne.s32.totalorder %s116, %s117
      %p131 = scmp.eq.s32.totalorder %s17, 1
      %p132 = por %p130, %p131
      %p134 = scmp.ne.s32.totalorder %s117, %s133
      %p135 = scmp.eq.s32.totalorder %s17, 0
      %p136 = por %p134, %p135
      %p137 = scmp.le.s32.totalorder 1, %s11
      %p138 = scmp.lt.s32.totalorder %s11, 3
      %p139 = pnand %p137, %p138
      %p140 = pneg %p139
      // Predicated region
      $region9: #{feed_forward_gaussian_splatting.5} parent=5 // pred_check
        _
      $region10: #{feed_forward_gaussian_splatting.5} parent=5 // pred_check_branch
        %142 = sbr.rel (%p139) target = $region12
      $region11: #{feed_forward_gaussian_splatting.5} parent=5 // pred_region
        %s143 = ssub.s32 %s11, 1
        // Predicated region
        $region13: #{feed_forward_gaussian_splatting.5} parent=11 // pred_check
          %p144 = pneg %p75
        $region14: #{feed_forward_gaussian_splatting.5} parent=11 // pred_check_branch
          %146 = sbr.rel (%p144) target = $region16
        $region15: #{feed_forward_gaussian_splatting.5} parent=11 // pred_region
          %s148 = ssub.s32 4608, 4608
          %149 = vsyncadd [#allocation3], %s148
          %s150 = smul.addr %s21, 64
          %s151 = scalar_lea.hbm %s1, %s150
          %s152 = sshll.u32 [#allocation2], 4
          %s153 = int_to_ptr.vmem [resolvable:$true] %s152
          %158 = dma.hbm_to_vmem [thread:$0]  %s151, 4608, %s153, [#allocation3], 64, 64, 4
        $region16: #{feed_forward_gaussian_splatting.5} parent=11 // pred_fallthru
          _
        // Predicated region
        $region17: #{feed_forward_gaussian_splatting.5} parent=11 // pred_check
          %p159 = pneg %p101
        $region18: #{feed_forward_gaussian_splatting.5} parent=11 // pred_check_branch
          %161 = sbr.rel (%p159) target = $region20
        $region19: #{feed_forward_gaussian_splatting.5} parent=11 // pred_region
          %s163 = ssub.s32 16, 16
          %164 = vsyncadd [#allocation5], %s163
          %s165 = smul.addr %s21, 16
          %s166 = scalar_lea.hbm %s2, %s165
          %s168 = sshll.u32 [#allocation4], 4
          %s169 = int_to_ptr.vmem [resolvable:$true] %s168
          %171 = dma.hbm_to_vmem [thread:$0]  %s166, 16, %s169, [#allocation5]
        $region20: #{feed_forward_gaussian_splatting.5} parent=11 // pred_fallthru
          _
      $region12: #{feed_forward_gaussian_splatting.5} parent=5 // pred_fallthru
        _
      %p172 = scmp.lt.s32.totalorder %s11, 2
      // Predicated region
      $region21: #{feed_forward_gaussian_splatting.5} parent=5 // pred_check
        %p173 = pneg %p172
      $region22: #{feed_forward_gaussian_splatting.5} parent=5 // pred_check_branch
        %175 = sbr.rel (%p173) target = $region24
      $region23: #{feed_forward_gaussian_splatting.5} parent=5 // pred_region
        // Predicated region
        $region25: #{feed_forward_gaussian_splatting.5} parent=23 // pred_check
          %p176 = pneg %p43
        $region26: #{feed_forward_gaussian_splatting.5} parent=23 // pred_check_branch
          %178 = sbr.rel (%p176) target = $region28
        $region27: #{feed_forward_gaussian_splatting.5} parent=23 // pred_region
          %s179 = smul.u32 2, %s18
          %p180 = scmp.lt.s32.totalorder %s179, 3
          %s181 = scalar_select %p180, %s179, 3
          %s182 = smul.addr %s181, 5
          %s183 = smul.addr %s182, 4
          %s184 = scalar_lea.vmem %s0, %s183
          %s185 = smul.u32 2, %s18
        $region28: #{feed_forward_gaussian_splatting.5} parent=23 // pred_fallthru
          _
      $region24: #{feed_forward_gaussian_splatting.5} parent=5 // pred_fallthru
        _
      %p186 = scmp.le.s32.totalorder 1, %s11
      %p187 = scmp.lt.s32.totalorder %s11, 3
      %p188 = pnand %p186, %p187
      %p189 = pneg %p188
      // Predicated region
      $region29: #{feed_forward_gaussian_splatting.5} parent=5 // pred_check
        _
      $region30: #{feed_forward_gaussian_splatting.5} parent=5 // pred_check_branch
        %191 = sbr.rel (%p188) target = $region32
      $region31: #{feed_forward_gaussian_splatting.5} parent=5 // pred_region
        %s192 = ssub.s32 %s11, 1
        // Predicated region
        $region33: #{feed_forward_gaussian_splatting.5} parent=31 // pred_check
          %p193 = pneg %p75
        $region34: #{feed_forward_gaussian_splatting.5} parent=31 // pred_check_branch
          %195 = sbr.rel (%p193) target = $region36
        $region35: #{feed_forward_gaussian_splatting.5} parent=31 // pred_region
          %196 = dma.done [#allocation3], 4608
        $region36: #{feed_forward_gaussian_splatting.5} parent=31 // pred_fallthru
          _
        // Predicated region
        $region37: #{feed_forward_gaussian_splatting.5} parent=31 // pred_check
          %p197 = pneg %p101
        $region38: #{feed_forward_gaussian_splatting.5} parent=31 // pred_check_branch
          %199 = sbr.rel (%p197) target = $region40
        $region39: #{feed_forward_gaussian_splatting.5} parent=31 // pred_region
          %200 = dma.done [#allocation5], 16
        $region40: #{feed_forward_gaussian_splatting.5} parent=31 // pred_fallthru
          _
        %s201 = smul.u32 2, %s20
        %p202 = scmp.lt.s32.totalorder %s201, 3
        %s203 = scalar_select %p202, %s201, 3
        %s204 = smul.addr %s203, 5
        %s205 = smul.addr %s204, 4
        %s206 = scalar_lea.vmem %s0, %s205
        %p207 = pneg %p49
        %p208 = pneg %p46
        %p209 = pneg %p75
        %p210 = pneg %p72
        %p211 = pneg %p101
        %p212 = pneg %p98
        %p213 = pneg %p129
        %p214 = pneg %p126
        %s215 = smul.u32 2, %s20
        %p216 = scmp.lt.s32.totalorder %s215, 3
        %s217 = scalar_select %p216, %s215, 3
        %p218 = scmp.lt.s32.totalorder %s21, 0
        %s219 = scalar_select %p218, %s21, 0
        %s220 = sadd.s32 %s219, %s217
        %s221 = smul.addr %s220, 4
        %s222 = scalar_lea.vmem %s3, %s221
        %s223 = smul.u32 2, %s20
        %p224 = scmp.lt.s32.totalorder %s223, 3
        %s225 = scalar_select %p224, %s223, 3
        %s226 = smul.addr %s225, 5
        %s227 = smul.addr %s226, 4
        %s228 = scalar_lea.vmem %s0, %s227
        %s229 = smul.u32 2, %s20
        %s230 = smul.u32 2, %s20
        %p231 = scmp.lt.s32.totalorder %s230, 3
        %s232 = scalar_select %p231, %s230, 3
        %p233 = scmp.lt.s32.totalorder %s21, 0
        %s234 = scalar_select %p233, %s21, 0
        %s235 = sadd.s32 %s234, %s232
        %s236 = smul.addr %s235, 4
        %s237 = scalar_lea.vmem %s3, %s236
        %s238 = smul.u32 2, %s20
        %v240 = vld [vmem:[%s228] sm:$0xff]
        %v241 = vld [vmem:[%s228 + $0x8] sm:$0xff]
        %v242 = vld [vmem:[%s228 + $0x10] sm:$0xf]
        %v243 = vld [vmem:[%s228 + $0x14] sm:$0xff]
        %v244 = vld [vmem:[%s228 + $0x1c] sm:$0xff]
        %v245 = vld [vmem:[%s228 + $0x24] sm:$0xf]
        %v246 = vld [vmem:[#allocation2] sm:$0xf]
        %v247 = vld [vmem:[#allocation2 + $0x4] sm:$0xf]
        %v248 = vld [vmem:[#allocation2 + $0x8] sm:$0xf]
        %v249 = vld [vmem:[#allocation2 + $0xc] sm:$0xf]
        %v250 = vld [vmem:[#allocation2 + $0x10] sm:$0xf]
        %v251 = vld [vmem:[#allocation2 + $0x14] sm:$0xf]
        %v252 = vld [vmem:[#allocation2 + $0x18] sm:$0xf]
        %v253 = vld [vmem:[#allocation2 + $0x1c] sm:$0xf]
        %v254 = vld [vmem:[#allocation2 + $0x20] sm:$0xf]
        %v255 = vld [vmem:[#allocation2 + $0x24] sm:$0xf]
        %v256 = vld [vmem:[#allocation2 + $0x28] sm:$0xf]
        %v257 = vld [vmem:[#allocation2 + $0x2c] sm:$0xf]
        %v258 = vld [vmem:[#allocation2 + $0x30] sm:$0xf]
        %v259 = vld [vmem:[#allocation2 + $0x34] sm:$0xf]
        %v260 = vld [vmem:[#allocation2 + $0x38] sm:$0xf]
        %v261 = vld [vmem:[#allocation2 + $0x3c] sm:$0xf]
        %v262 = vld [vmem:[#allocation2 + $0x40] sm:$0xf]
        %v263 = vld [vmem:[#allocation2 + $0x44] sm:$0xf]
        %v264 = vld [vmem:[#allocation2 + $0x48] sm:$0xf]
        %v265 = vld [vmem:[#allocation2 + $0x4c] sm:$0xf]
        %v266 = vld [vmem:[#allocation2 + $0x50] sm:$0xf]
        %v267 = vld [vmem:[#allocation2 + $0x54] sm:$0xf]
        %v268 = vld [vmem:[#allocation2 + $0x58] sm:$0xf]
        %v269 = vld [vmem:[#allocation2 + $0x5c] sm:$0xf]
        %v270 = vld [vmem:[#allocation2 + $0x60] sm:$0xf]
        %v271 = vld [vmem:[#allocation2 + $0x64] sm:$0xf]
        %v272 = vld [vmem:[#allocation2 + $0x68] sm:$0xf]
        %v273 = vld [vmem:[#allocation2 + $0x6c] sm:$0xf]
        %v274 = vld [vmem:[#allocation2 + $0x70] sm:$0xf]
        %v275 = vld [vmem:[#allocation2 + $0x74] sm:$0xf]
        %v276 = vld [vmem:[#allocation2 + $0x78] sm:$0xf]
        %v277 = vld [vmem:[#allocation2 + $0x7c] sm:$0xf]
        %v278 = vld [vmem:[#allocation2 + $0x80] sm:$0xf]
        %v279 = vld [vmem:[#allocation2 + $0x84] sm:$0xf]
        %v280 = vld [vmem:[#allocation2 + $0x88] sm:$0xf]
        %v281 = vld [vmem:[#allocation2 + $0x8c] sm:$0xf]
        %v282 = vld [vmem:[#allocation2 + $0x90] sm:$0xf]
        %v283 = vld [vmem:[#allocation2 + $0x94] sm:$0xf]
        %v284 = vld [vmem:[#allocation2 + $0x98] sm:$0xf]
        %v285 = vld [vmem:[#allocation2 + $0x9c] sm:$0xf]
        %v286 = vld [vmem:[#allocation2 + $0xa0] sm:$0xf]
        %v287 = vld [vmem:[#allocation2 + $0xa4] sm:$0xf]
        %v288 = vld [vmem:[#allocation2 + $0xa8] sm:$0xf]
        %v289 = vld [vmem:[#allocation2 + $0xac] sm:$0xf]
        %v290 = vld [vmem:[#allocation2 + $0xb0] sm:$0xf]
        %v291 = vld [vmem:[#allocation2 + $0xb4] sm:$0xf]
        %v292 = vld [vmem:[#allocation2 + $0xb8] sm:$0xf]
        %v293 = vld [vmem:[#allocation2 + $0xbc] sm:$0xf]
        %v294 = vld [vmem:[#allocation2 + $0xc0] sm:$0xf]
        %v295 = vld [vmem:[#allocation2 + $0xc4] sm:$0xf]
        %v296 = vld [vmem:[#allocation2 + $0xc8] sm:$0xf]
        %v297 = vld [vmem:[#allocation2 + $0xcc] sm:$0xf]
        %v298 = vld [vmem:[#allocation2 + $0xd0] sm:$0xf]
        %v299 = vld [vmem:[#allocation2 + $0xd4] sm:$0xf]
        %v300 = vld [vmem:[#allocation2 + $0xd8] sm:$0xf]
        %v301 = vld [vmem:[#allocation2 + $0xdc] sm:$0xf]
        %v302 = vld [vmem:[#allocation2 + $0xe0] sm:$0xf]
        %v303 = vld [vmem:[#allocation2 + $0xe4] sm:$0xf]
        %v304 = vld [vmem:[#allocation2 + $0xe8] sm:$0xf]
        %v305 = vld [vmem:[#allocation2 + $0xec] sm:$0xf]
        %v306 = vld [vmem:[#allocation2 + $0xf0] sm:$0xf]
        %v307 = vld [vmem:[#allocation2 + $0xf4] sm:$0xf]
        %v308 = vld [vmem:[#allocation2 + $0xf8] sm:$0xf]
        %v309 = vld [vmem:[#allocation2 + $0xfc] sm:$0xf]
        %v310 = vld [vmem:[#allocation2 + $0x100] sm:$0xf]
        %v311 = vld [vmem:[#allocation2 + $0x104] sm:$0xf]
        %v312 = vld [vmem:[#allocation2 + $0x108] sm:$0xf]
        %v313 = vld [vmem:[#allocation2 + $0x10c] sm:$0xf]
        %v314 = vld [vmem:[#allocation2 + $0x110] sm:$0xf]
        %v315 = vld [vmem:[#allocation2 + $0x114] sm:$0xf]
        %v316 = vld [vmem:[#allocation2 + $0x118] sm:$0xf]
        %v317 = vld [vmem:[#allocation2 + $0x11c] sm:$0xf]
        %v318 = vld [vmem:[#allocation4] sm:$0x1]
        %v320 = vlaneseq
        %v321 = vshrl.u32 %v320, 7
        %v322 = vsub.s32 0, %v321
        %v323 = vrot.slane %v318, %v322
        %v331 = vunpack.c.l.b16 %v240
        %v332 = vunpack.c.h.b16 %v240
        %v333 = vunpack.c.l.b16 %v241
        %v334 = vunpack.c.h.b16 %v241
        %v335 = vunpack.c.l.b16 %v242
        %v336 = vunpack.c.l.b16 %v243
        %v337 = vunpack.c.h.b16 %v243
        %v338 = vunpack.c.l.b16 %v244
        %v339 = vunpack.c.h.b16 %v244
        %v340 = vunpack.c.l.b16 %v245
        %v341 = vpack.c.b16 %v336, %v331
        %v342 = vpack.c.b16 %v337, %v332
        %v343 = vpack.c.b16 %v338, %v333
        %v344 = vpack.c.b16 %v339, %v334
        %v345 = vpack.c.b16 %v340, %v335
        %v422 = vunpack.c.l.b16 %v246
        %v423 = vunpack.c.l.b16 %v247
        %v424 = vunpack.c.l.b16 %v248
        %v425 = vunpack.c.l.b16 %v249
        %v426 = vunpack.c.l.b16 %v250
        %v427 = vunpack.c.l.b16 %v251
        %v428 = vunpack.c.l.b16 %v252
        %v429 = vunpack.c.l.b16 %v253
        %v430 = vunpack.c.l.b16 %v254
        %v431 = vunpack.c.l.b16 %v255
        %v432 = vunpack.c.l.b16 %v256
        %v433 = vunpack.c.l.b16 %v257
        %v434 = vunpack.c.l.b16 %v258
        %v435 = vunpack.c.l.b16 %v259
        %v436 = vunpack.c.l.b16 %v260
        %v437 = vunpack.c.l.b16 %v261
        %v438 = vunpack.c.l.b16 %v262
        %v439 = vunpack.c.l.b16 %v263
        %v440 = vunpack.c.l.b16 %v264
        %v441 = vunpack.c.l.b16 %v265
        %v442 = vunpack.c.l.b16 %v266
        %v443 = vunpack.c.l.b16 %v267
        %v444 = vunpack.c.l.b16 %v268
        %v445 = vunpack.c.l.b16 %v269
        %v446 = vunpack.c.l.b16 %v270
        %v447 = vunpack.c.l.b16 %v271
        %v448 = vunpack.c.l.b16 %v272
        %v449 = vunpack.c.l.b16 %v273
        %v450 = vunpack.c.l.b16 %v274
        %v451 = vunpack.c.l.b16 %v275
        %v452 = vunpack.c.l.b16 %v276
        %v453 = vunpack.c.l.b16 %v277
        %v454 = vunpack.c.l.b16 %v278
        %v455 = vunpack.c.l.b16 %v279
        %v456 = vunpack.c.l.b16 %v280
        %v457 = vunpack.c.l.b16 %v281
        %v458 = vunpack.c.l.b16 %v282
        %v459 = vunpack.c.l.b16 %v283
        %v460 = vunpack.c.l.b16 %v284
        %v461 = vunpack.c.l.b16 %v285
        %v462 = vunpack.c.l.b16 %v286
        %v463 = vunpack.c.l.b16 %v287
        %v464 = vunpack.c.l.b16 %v288
        %v465 = vunpack.c.l.b16 %v289
        %v466 = vunpack.c.l.b16 %v290
        %v467 = vunpack.c.l.b16 %v291
        %v468 = vunpack.c.l.b16 %v292
        %v469 = vunpack.c.l.b16 %v293
        %v470 = vunpack.c.l.b16 %v294
        %v471 = vunpack.c.l.b16 %v295
        %v472 = vunpack.c.l.b16 %v296
        %v473 = vunpack.c.l.b16 %v297
        %v474 = vunpack.c.l.b16 %v298
        %v475 = vunpack.c.l.b16 %v299
        %v476 = vunpack.c.l.b16 %v300
        %v477 = vunpack.c.l.b16 %v301
        %v478 = vunpack.c.l.b16 %v302
        %v479 = vunpack.c.l.b16 %v303
        %v480 = vunpack.c.l.b16 %v304
        %v481 = vunpack.c.l.b16 %v305
        %v482 = vunpack.c.l.b16 %v306
        %v483 = vunpack.c.l.b16 %v307
        %v484 = vunpack.c.l.b16 %v308
        %v485 = vunpack.c.l.b16 %v309
        %v486 = vunpack.c.l.b16 %v310
        %v487 = vunpack.c.l.b16 %v311
        %v488 = vunpack.c.l.b16 %v312
        %v489 = vunpack.c.l.b16 %v313
        %v490 = vunpack.c.l.b16 %v314
        %v491 = vunpack.c.l.b16 %v315
        %v492 = vunpack.c.l.b16 %v316
        %v493 = vunpack.c.l.b16 %v317
        %v494 = vpack.c.b16 %v423, %v422
        %v495 = vpack.c.b16 %v425, %v424
        %v496 = vpack.c.b16 %v427, %v426
        %v497 = vpack.c.b16 %v429, %v428
        %v498 = vpack.c.b16 %v431, %v430
        %v499 = vpack.c.b16 %v433, %v432
        %v500 = vpack.c.b16 %v435, %v434
        %v501 = vpack.c.b16 %v437, %v436
        %v502 = vpack.c.b16 %v439, %v438
        %v503 = vpack.c.b16 %v441, %v440
        %v504 = vpack.c.b16 %v443, %v442
        %v505 = vpack.c.b16 %v445, %v444
        %v506 = vpack.c.b16 %v447, %v446
        %v507 = vpack.c.b16 %v449, %v448
        %v508 = vpack.c.b16 %v451, %v450
        %v509 = vpack.c.b16 %v453, %v452
        %v510 = vpack.c.b16 %v455, %v454
        %v511 = vpack.c.b16 %v457, %v456
        %v512 = vpack.c.b16 %v459, %v458
        %v513 = vpack.c.b16 %v461, %v460
        %v514 = vpack.c.b16 %v463, %v462
        %v515 = vpack.c.b16 %v465, %v464
        %v516 = vpack.c.b16 %v467, %v466
        %v517 = vpack.c.b16 %v469, %v468
        %v518 = vpack.c.b16 %v471, %v470
        %v519 = vpack.c.b16 %v473, %v472
        %v520 = vpack.c.b16 %v475, %v474
        %v521 = vpack.c.b16 %v477, %v476
        %v522 = vpack.c.b16 %v479, %v478
        %v523 = vpack.c.b16 %v481, %v480
        %v524 = vpack.c.b16 %v483, %v482
        %v525 = vpack.c.b16 %v485, %v484
        %v526 = vpack.c.b16 %v487, %v486
        %v527 = vpack.c.b16 %v489, %v488
        %v528 = vpack.c.b16 %v491, %v490
        %v529 = vpack.c.b16 %v493, %v492
        %vm566 = vcmask 523264
        %v568 = vsel %vm566, %v345, 0
        %570 = vmatprep.subr.bf16.mxu0 0
        %571 = vmatpush1.bf16.msra.mxu0 %v494
        %572 = vmatprep.subr.bf16.mxu0 0
        %573 = vmatpush1.bf16.msra.mxu0 %v495
        %574 = vmatprep.subr.bf16.mxu0 0
        %575 = vmatpush1.bf16.msra.mxu0 %v496
        %576 = vmatprep.subr.bf16.mxu0 0
        %577 = vmatpush1.bf16.msra.mxu0 %v497
        %578 = vmatprep.subr.bf16.mxu0 0
        %579 = vmatpush1.bf16.msra.mxu0 %v498
        %580 = vmatprep.subr.bf16.mxu0 0
        %581 = vmatpush1.bf16.msra.mxu0 %v499
        %582 = vmatprep.subr.bf16.mxu0 0
        %583 = vmatpush1.bf16.msra.mxu0 %v500
        %584 = vmatprep.subr.bf16.mxu0 0
        %585 = vmatpush1.bf16.msra.mxu0 %v501
        %586 = vmatprep.subr.bf16.mxu0 0
        %587 = vmatpush1.bf16.msra.mxu0 %v502
        %588 = vmatprep.subr.bf16.mxu0 0
        %589 = vmatpush1.bf16.msra.mxu0 %v503
        %590 = vmatprep.subr.bf16.mxu0 0
        %591 = vmatpush1.bf16.msra.mxu0 %v504
        %592 = vmatprep.subr.bf16.mxu0 0
        %593 = vmatpush1.bf16.msra.mxu0 %v505
        %594 = vmatprep.subr.bf16.mxu0 0
        %595 = vmatpush1.bf16.msra.mxu0 %v506
        %596 = vmatprep.subr.bf16.mxu0 0
        %597 = vmatpush1.bf16.msra.mxu0 %v507
        %598 = vmatprep.subr.bf16.mxu0 0
        %599 = vmatpush1.bf16.msra.mxu0 %v508
        %600 = vmatprep.subr.bf16.mxu0 0
        %601 = vmatpush1.bf16.msra.mxu0 %v509
        %602 = vmatprep.mubr.bf16.mxu0 %v342
        %603 = vmatmul.mubr.bf16.gmra.mrb[0].mxu0 %v341
        %v604 = vpop.f32.mrb[0].mxu0
        %v605 = vadd.f32 %v323, %v604
        %v606 = vpop.f32.mrb[0].mxu0
        %v607 = vpop.f32.mrb[0].mxu0
        %v608 = vadd.f32 %v323, %v607
        %v609 = vpop.f32.mrb[0].mxu0
        %610 = vdwg.mxu0
        %611 = vmatprep.subr.bf16.mxu0 0
        %612 = vmatpush1.bf16.msra.mxu0 %v510
        %613 = vmatprep.subr.bf16.mxu0 0
        %614 = vmatpush1.bf16.msra.mxu0 %v511
        %615 = vmatprep.subr.bf16.mxu0 0
        %616 = vmatpush1.bf16.msra.mxu0 %v512
        %617 = vmatprep.subr.bf16.mxu0 0
        %618 = vmatpush1.bf16.msra.mxu0 %v513
        %619 = vmatprep.subr.bf16.mxu0 0
        %620 = vmatpush1.bf16.msra.mxu0 %v514
        %621 = vmatprep.subr.bf16.mxu0 0
        %622 = vmatpush1.bf16.msra.mxu0 %v515
        %623 = vmatprep.subr.bf16.mxu0 0
        %624 = vmatpush1.bf16.msra.mxu0 %v516
        %625 = vmatprep.subr.bf16.mxu0 0
        %626 = vmatpush1.bf16.msra.mxu0 %v517
        %627 = vmatprep.subr.bf16.mxu0 0
        %628 = vmatpush1.bf16.msra.mxu0 %v518
        %629 = vmatprep.subr.bf16.mxu0 0
        %630 = vmatpush1.bf16.msra.mxu0 %v519
        %631 = vmatprep.subr.bf16.mxu0 0
        %632 = vmatpush1.bf16.msra.mxu0 %v520
        %633 = vmatprep.subr.bf16.mxu0 0
        %634 = vmatpush1.bf16.msra.mxu0 %v521
        %635 = vmatprep.subr.bf16.mxu0 0
        %636 = vmatpush1.bf16.msra.mxu0 %v522
        %637 = vmatprep.subr.bf16.mxu0 0
        %638 = vmatpush1.bf16.msra.mxu0 %v523
        %639 = vmatprep.subr.bf16.mxu0 0
        %640 = vmatpush1.bf16.msra.mxu0 %v524
        %641 = vmatprep.subr.bf16.mxu0 0
        %642 = vmatpush1.bf16.msra.mxu0 %v525
        %643 = vmatprep.mubr.bf16.mxu0 %v344
        %644 = vmatmul.mubr.bf16.gmra.mrb[0].mxu0 %v343
        %v645 = vpop.f32.mrb[0].mxu0
        %v646 = vadd.f32 %v605, %v645
        %v647 = vpop.f32.mrb[0].mxu0
        %v648 = vpop.f32.mrb[0].mxu0
        %v649 = vadd.f32 %v608, %v648
        %v650 = vpop.f32.mrb[0].mxu0
        %651 = vdwg.mxu0
        %652 = vmatprep.subr.bf16.mxu0 0
        %653 = vmatpush1.bf16.msra.mxu0 %v526
        %654 = vmatprep.subr.bf16.mxu0 0
        %655 = vmatpush1.bf16.msra.mxu0 %v527
        %656 = vmatprep.subr.bf16.mxu0 0
        %657 = vmatpush1.bf16.msra.mxu0 %v528
        %658 = vmatprep.subr.bf16.mxu0 0
        %659 = vmatpush1.bf16.msra.mxu0 %v529
        %660 = vmatprep.subr.bf16.mxu0 0
        %661 = vmatpush1.bf16.msra.mxu0 0
        %662 = vmatprep.subr.bf16.mxu0 0
        %663 = vmatpush1.bf16.msra.mxu0 0
        %664 = vmatprep.subr.bf16.mxu0 0
        %665 = vmatpush1.bf16.msra.mxu0 0
        %666 = vmatprep.subr.bf16.mxu0 0
        %667 = vmatpush1.bf16.msra.mxu0 0
        %668 = vmatprep.subr.bf16.mxu0 0
        %669 = vmatpush1.bf16.msra.mxu0 0
        %670 = vmatprep.subr.bf16.mxu0 0
        %671 = vmatpush1.bf16.msra.mxu0 0
        %672 = vmatprep.subr.bf16.mxu0 0
        %673 = vmatpush1.bf16.msra.mxu0 0
        %674 = vmatprep.subr.bf16.mxu0 0
        %675 = vmatpush1.bf16.msra.mxu0 0
        %676 = vmatprep.subr.bf16.mxu0 0
        %677 = vmatpush1.bf16.msra.mxu0 0
        %678 = vmatprep.subr.bf16.mxu0 0
        %679 = vmatpush1.bf16.msra.mxu0 0
        %680 = vmatprep.subr.bf16.mxu0 0
        %681 = vmatpush1.bf16.msra.mxu0 0
        %682 = vmatprep.subr.bf16.mxu0 0
        %683 = vmatpush1.bf16.msra.mxu0 0
        %684 = vmatprep.mubr.bf16.mxu0 0
        %685 = vmatmul.mubr.bf16.gmra.mrb[0].mxu0 %v568
        %v686 = vpop.f32.mrb[0].mxu0
        %v687 = vadd.f32 %v646, %v686
        %v688 = vpop.f32.mrb[0].mxu0
        %v689 = vpop.f32.mrb[0].mxu0
        %v690 = vadd.f32 %v649, %v689
        %v691 = vpop.f32.mrb[0].mxu0
        %692 = vdwg.mxu0
        %v693 = vmax.f32 %v687, 0.0
        %v694 = vmax.f32 %v690, 0.0
        %v695 = vpack.c.bf16 %v694, %v693
        %v697 = vunpack.c.l.b16 %v695
        %v698 = vunpack.c.h.b16 %v695
        %v699 = vpack.c.b16 %v697, %v697
        %v700 = vpack.c.b16 %v698, %v698
        %703 = vst [vmem:[%s237] sm:$0xf] %v699
        %704 = vst [vmem:[%s237 + $0x4] sm:$0xf] %v700
        %s705 = smul.u32 2, %s20
        %p706 = scmp.lt.s32.totalorder %s705, 3
        %s707 = scalar_select %p706, %s705, 3
        %p708 = scmp.lt.s32.totalorder %s21, 0
        %s709 = scalar_select %p708, %s21, 0
        %s710 = sadd.s32 %s709, %s707
        %s711 = smul.addr %s710, 4
        %s712 = scalar_lea.vmem %s3, %s711
        // Predicated region
        $region41: #{feed_forward_gaussian_splatting.5} parent=31 // pred_check
          %p713 = pneg %p126
        $region42: #{feed_forward_gaussian_splatting.5} parent=31 // pred_check_branch
          %715 = sbr.rel (%p713) target = $region44
        $region43: #{feed_forward_gaussian_splatting.5} parent=31 // pred_region
          %s716 = smul.u32 2, %s20
        $region44: #{feed_forward_gaussian_splatting.5} parent=31 // pred_fallthru
          _
      $region32: #{feed_forward_gaussian_splatting.5} parent=5 // pred_fallthru
        _
      %p717 = scmp.le.s32.totalorder 2, %s11
      // Predicated region
      $region45: #{feed_forward_gaussian_splatting.5} parent=5 // pred_check
        %p718 = pneg %p717
      $region46: #{feed_forward_gaussian_splatting.5} parent=5 // pred_check_branch
        %720 = sbr.rel (%p718) target = $region48
      $region47: #{feed_forward_gaussian_splatting.5} parent=5 // pred_region
        %s721 = ssub.s32 %s11, 2
        // Predicated region
        $region49: #{feed_forward_gaussian_splatting.5} parent=47 // pred_check
          %p722 = pneg %p132
        $region50: #{feed_forward_gaussian_splatting.5} parent=47 // pred_check_branch
          %724 = sbr.rel (%p722) target = $region52
        $region51: #{feed_forward_gaussian_splatting.5} parent=47 // pred_region
          %s725 = smul.u32 2, %s22
          %p726 = scmp.lt.s32.totalorder %s725, 3
          %s727 = scalar_select %p726, %s725, 3
          %p728 = scmp.lt.s32.totalorder %s23, 0
          %s729 = scalar_select %p728, %s23, 0
          %s730 = sadd.s32 %s729, %s727
          %s731 = smul.addr %s730, 4
          %s732 = scalar_lea.vmem %s3, %s731
        $region52: #{feed_forward_gaussian_splatting.5} parent=47 // pred_fallthru
          _
      $region48: #{feed_forward_gaussian_splatting.5} parent=5 // pred_fallthru
        _
    $region6: #{feed_forward_gaussian_splatting.5} parent=1 // loop_footer
      %s15 = sadd.s32 1, %s11
    $region7: #{feed_forward_gaussian_splatting.5} parent=1 // loop_footer_branch
      %10 = sbr.rel target = $region3
    $region8: #{feed_forward_gaussian_splatting.5} parent=1 // loop_exit
      _
    %733 = vsyncpa [#allocation3], 1
    %s734 = scalar_lea.sflag [#allocation3], 1
    %735 = vsyncpa %s734, 1
    %736 = vsyncpa [#allocation5], 1

// kernel: feed_forward_gaussian_splatting.6
$region0: #{feed_forward_gaussian_splatting.6}
  #allocation0 [shape = 'u32[]', space=smem, size = 0x4, offset = 0x4, fixed_abs, tag = 'smem constant byte address 0x4 - core index']
  #allocation1 [shape = 'u32[144,128]{1,0:T(1,128)}', space=vmem, size = 0x12000, scoped, tag = 'internal scratch']
  %s0 = inlined_call_operand.vmem [shape: bf16[8,1152], index: 0, kind: input, shape index: {}]
  %s1 = inlined_call_operand.vmem [shape: bf16[1152,256], index: 1, kind: input, shape index: {}]
  %s2 = inlined_call_operand.hbm [shape: f32[1,256], index: 2, kind: input, shape index: {}]
  %s3 = inlined_call_operand.vmem [shape: bf16[8,256], index: 3, kind: output, shape index: {}]
  %s4 = sld [smem:[#allocation0]]
  $region90: #{feed_forward_gaussian_splatting.6} parent=0
    _
  %s6 = ssub.s32 1, %s4
  %s7 = scalar_select 0, %s6, %s4
  $region1: #{feed_forward_gaussian_splatting.6} parent=0
    #allocation2 [shape = 'u8[589824]{0}', space=vmem, size = 0x90000, scoped, tag = 'input window, operand 1']
    #allocation3 [shape = 'u8[1024]{0}', space=vmem, size = 0x400, scoped, tag = 'input window, operand 2']
    #allocation4 [shape = 's32[2]{0}', space=sflag, size = 0x8, scoped, tag = 'scoped memory for feed_forward_gaussian_splatting.6']
    %8 = vsyncpa [#allocation4], 0
    %s9 = scalar_lea.sflag [#allocation4], 1
    %10 = vsyncpa %s9, 0
    loop: start=0, step=1, limit=4
    $region2: #{feed_forward_gaussian_splatting.6} parent=1 // loop_pre_header
      _
    $region3: #{feed_forward_gaussian_splatting.6} parent=1 // loop_header
      %s12 = sphi 0, %s16
      %p13 = scmp.ge.s32.totalorder %s12, 4
      %s19 = sphi 0, %s31
      %s20 = sphi 0, %s27
      %s21 = sphi 0, %s19
      %s22 = sphi 0, %s20
      %s23 = sphi 0, %s21
      %s24 = sphi 0, %s22
      %s34 = sphi 0, %s36
      %s37 = sphi 0, %s34
      %s38 = sphi 0, %s37
      %s54 = sphi 0, %s38
      %s60 = sphi 0, %s62
      %s63 = sphi 0, %s60
      %s64 = sphi 0, %s63
      %s80 = sphi 0, %s64
      %s86 = sphi 0, %s88
      %s89 = sphi 0, %s86
      %s90 = sphi 0, %s89
      %s106 = sphi 0, %s90
      %s114 = sphi 0, %s116
      %s117 = sphi 0, %s114
      %s118 = sphi 0, %s117
      %s134 = sphi 0, %s118
    $region4: #{feed_forward_gaussian_splatting.6} parent=1 // loop_header_branch
      %15 = sbr.rel (%p13) target = $region8
    $region5: #{feed_forward_gaussian_splatting.6} parent=1 // loop_body
      %s17 = ssub.s32 %s12, 1
      %s18 = ssub.s32 %s12, 2
      %s25 = sadd.s32 1, %s20
      %p26 = scmp.ge.s32.totalorder %s25, 2
      %s27 = scalar_select %p26, 0, %s25
      %s28 = sadd.s32 1, %s19
      %s29 = scalar_select %p26, %s28, %s19
      %p30 = scmp.ge.s32.totalorder %s29, 1
      %s31 = scalar_select %p30, 0, %s29
      %s32 = ssub.s32 %s19, %s31
      %p33 = scmp.eq.s32.totalorder %s32, 0
      %s35 = sadd.s32 %s34, 1
      %s36 = scalar_select %p33, %s34, %s35
      %p39 = pneg %p33
      %p40 = scmp.eq.s32.totalorder %s12, 1
      %p41 = por %p39, %p40
      %p42 = scmp.ne.s32.totalorder %s34, %s37
      %p43 = scmp.eq.s32.totalorder %s12, 0
      %p44 = por %p42, %p43
      %p45 = scmp.ne.s32.totalorder %s34, %s37
      %p46 = scmp.eq.s32.totalorder %s17, 1
      %p47 = por %p45, %p46
      %p48 = scmp.ne.s32.totalorder %s37, %s38
      %p49 = scmp.eq.s32.totalorder %s17, 0
      %p50 = por %p48, %p49
      %p51 = scmp.ne.s32.totalorder %s37, %s38
      %p52 = scmp.eq.s32.totalorder %s18, 1
      %p53 = por %p51, %p52
      %p55 = scmp.ne.s32.totalorder %s38, %s54
      %p56 = scmp.eq.s32.totalorder %s18, 0
      %p57 = por %p55, %p56
      %s58 = ssub.s32 %s20, %s27
      %p59 = scmp.eq.s32.totalorder %s58, 0
      %s61 = sadd.s32 %s60, 1
      %s62 = scalar_select %p59, %s60, %s61
      %p65 = pneg %p59
      %p66 = scmp.eq.s32.totalorder %s12, 1
      %p67 = por %p65, %p66
      %p68 = scmp.ne.s32.totalorder %s60, %s63
      %p69 = scmp.eq.s32.totalorder %s12, 0
      %p70 = por %p68, %p69
      %p71 = scmp.ne.s32.totalorder %s60, %s63
      %p72 = scmp.eq.s32.totalorder %s17, 1
      %p73 = por %p71, %p72
      %p74 = scmp.ne.s32.totalorder %s63, %s64
      %p75 = scmp.eq.s32.totalorder %s17, 0
      %p76 = por %p74, %p75
      %p77 = scmp.ne.s32.totalorder %s63, %s64
      %p78 = scmp.eq.s32.totalorder %s18, 1
      %p79 = por %p77, %p78
      %p81 = scmp.ne.s32.totalorder %s64, %s80
      %p82 = scmp.eq.s32.totalorder %s18, 0
      %p83 = por %p81, %p82
      %s84 = ssub.s32 %s20, %s27
      %p85 = scmp.eq.s32.totalorder %s84, 0
      %s87 = sadd.s32 %s86, 1
      %s88 = scalar_select %p85, %s86, %s87
      %p91 = pneg %p85
      %p92 = scmp.eq.s32.totalorder %s12, 1
      %p93 = por %p91, %p92
      %p94 = scmp.ne.s32.totalorder %s86, %s89
      %p95 = scmp.eq.s32.totalorder %s12, 0
      %p96 = por %p94, %p95
      %p97 = scmp.ne.s32.totalorder %s86, %s89
      %p98 = scmp.eq.s32.totalorder %s17, 1
      %p99 = por %p97, %p98
      %p100 = scmp.ne.s32.totalorder %s89, %s90
      %p101 = scmp.eq.s32.totalorder %s17, 0
      %p102 = por %p100, %p101
      %p103 = scmp.ne.s32.totalorder %s89, %s90
      %p104 = scmp.eq.s32.totalorder %s18, 1
      %p105 = por %p103, %p104
      %p107 = scmp.ne.s32.totalorder %s90, %s106
      %p108 = scmp.eq.s32.totalorder %s18, 0
      %p109 = por %p107, %p108
      %s110 = ssub.s32 %s19, %s31
      %s111 = ssub.s32 %s20, %s27
      %s112 = sor.u32 %s110, %s111
      %p113 = scmp.eq.s32.totalorder %s112, 0
      %s115 = sadd.s32 %s114, 1
      %s116 = scalar_select %p113, %s114, %s115
      %p119 = pneg %p113
      %p120 = scmp.eq.s32.totalorder %s12, 1
      %p121 = por %p119, %p120
      %p122 = scmp.ne.s32.totalorder %s114, %s117
      %p123 = scmp.eq.s32.totalorder %s12, 0
      %p124 = por %p122, %p123
      %p125 = scmp.ne.s32.totalorder %s114, %s117
      %p126 = scmp.eq.s32.totalorder %s17, 1
      %p127 = por %p125, %p126
      %p128 = scmp.ne.s32.totalorder %s117, %s118
      %p129 = scmp.eq.s32.totalorder %s17, 0
      %p130 = por %p128, %p129
      %p131 = scmp.ne.s32.totalorder %s117, %s118
      %p132 = scmp.eq.s32.totalorder %s18, 1
      %p133 = por %p131, %p132
      %p135 = scmp.ne.s32.totalorder %s118, %s134
      %p136 = scmp.eq.s32.totalorder %s18, 0
      %p137 = por %p135, %p136
      %p138 = scmp.le.s32.totalorder 1, %s12
      %p139 = scmp.lt.s32.totalorder %s12, 3
      %p140 = pnand %p138, %p139
      %p141 = pneg %p140
      // Predicated region
      $region9: #{feed_forward_gaussian_splatting.6} parent=5 // pred_check
        _
      $region10: #{feed_forward_gaussian_splatting.6} parent=5 // pred_check_branch
        %143 = sbr.rel (%p140) target = $region12
      $region11: #{feed_forward_gaussian_splatting.6} parent=5 // pred_region
        %s144 = ssub.s32 %s12, 1
        // Predicated region
        $region13: #{feed_forward_gaussian_splatting.6} parent=11 // pred_check
          %p145 = pneg %p50
        $region14: #{feed_forward_gaussian_splatting.6} parent=11 // pred_check_branch
          %147 = sbr.rel (%p145) target = $region16
        $region15: #{feed_forward_gaussian_splatting.6} parent=11 // pred_region
          %p148 = scmp.lt.s32.totalorder %s21, 0
          %s149 = scalar_select %p148, %s21, 0
          %s150 = smul.addr %s149, 9
          %s151 = smul.addr %s150, 4
          %s152 = scalar_lea.vmem %s0, %s151
        $region16: #{feed_forward_gaussian_splatting.6} parent=11 // pred_fallthru
          _
      $region12: #{feed_forward_gaussian_splatting.6} parent=5 // pred_fallthru
        _
      %p153 = scmp.lt.s32.totalorder %s12, 2
      // Predicated region
      $region17: #{feed_forward_gaussian_splatting.6} parent=5 // pred_check
        %p154 = pneg %p153
      $region18: #{feed_forward_gaussian_splatting.6} parent=5 // pred_check_branch
        %156 = sbr.rel (%p154) target = $region20
      $region19: #{feed_forward_gaussian_splatting.6} parent=5 // pred_region
        // Predicated region
        $region21: #{feed_forward_gaussian_splatting.6} parent=19 // pred_check
          %p157 = pneg %p70
        $region22: #{feed_forward_gaussian_splatting.6} parent=19 // pred_check_branch
          %159 = sbr.rel (%p157) target = $region24
        $region23: #{feed_forward_gaussian_splatting.6} parent=19 // pred_region
          %s160 = sand.u32 %s60, 1
          %s161 = sand.u32 %s60, 1
          %s162 = smul.addr %s161, 576
          %s163 = scalar_lea.vmem [#allocation2], %s162
          %s164 = smul.addr %s20, 4
          %s165 = scalar_lea.vmem %s1, %s164
          // Predicated region
          $region25: #{feed_forward_gaussian_splatting.6} parent=23 // pred_check
            _
          $region26: #{feed_forward_gaussian_splatting.6} parent=23 // pred_check_branch
            %167 = sbr.rel (0) target = $region28
          $region27: #{feed_forward_gaussian_splatting.6} parent=23 // pred_region
            // Predicated region
            $region29: #{feed_forward_gaussian_splatting.6} parent=27 // pred_check
              _
            $region30: #{feed_forward_gaussian_splatting.6} parent=27 // pred_check_branch
              %169 = sbr.rel target = $region32
            $region31: #{feed_forward_gaussian_splatting.6} parent=27 // pred_region
              // Predicated region
              $region44: #{feed_forward_gaussian_splatting.6} parent=31 // pred_check
                _
              $region45: #{feed_forward_gaussian_splatting.6} parent=31 // pred_check_branch
                %470 = sbr.rel (0) target = $region47
              $region46: #{feed_forward_gaussian_splatting.6} parent=31 // pred_region
                loop: start=0, step=1, limit=1
                $region48: #{feed_forward_gaussian_splatting.6} parent=46 // loop_pre_header
                  _
                $region49: #{feed_forward_gaussian_splatting.6} parent=46 // loop_header
                  %s472 = sphi 0, %s476
                  %p473 = scmp.ge.s32.totalorder %s472, 1
                  %s477 = sphi %s165, %s165
                  %s478 = sphi %s163, %s163
                $region50: #{feed_forward_gaussian_splatting.6} parent=46 // loop_header_branch
                  %475 = sbr.rel (%p473) target = $region54
                $region51: #{feed_forward_gaussian_splatting.6} parent=46 // loop_body
                  _
                $region52: #{feed_forward_gaussian_splatting.6} parent=46 // loop_footer
                  %s476 = sadd.s32 1, %s472
                $region53: #{feed_forward_gaussian_splatting.6} parent=46 // loop_footer_branch
                  %471 = sbr.rel target = $region49
                $region54: #{feed_forward_gaussian_splatting.6} parent=46 // loop_exit
                  _
                loop: start=0, step=1, limit=1
                $region55: #{feed_forward_gaussian_splatting.6} parent=46 // loop_pre_header
                  _
                $region56: #{feed_forward_gaussian_splatting.6} parent=46 // loop_header
                  %s481 = sphi 0, %s485
                  %p482 = scmp.ge.s32.totalorder %s481, 1
                  %s486 = sphi %s165, %s165
                  %s487 = sphi %s163, %s163
                $region57: #{feed_forward_gaussian_splatting.6} parent=46 // loop_header_branch
                  %484 = sbr.rel (%p482) target = $region61
                $region58: #{feed_forward_gaussian_splatting.6} parent=46 // loop_body
                  %v488 = vld [vmem:[%s486] sm:$0xf]
                  %489 = vst [vmem:[%s487] sm:$0xf] %v488
                  %v490 = vld [vmem:[%s486 + $0x8] sm:$0xf]
                  %491 = vst [vmem:[%s487 + $0x4] sm:$0xf] %v490
                  %v492 = vld [vmem:[%s486 + $0x10] sm:$0xf]
                  %493 = vst [vmem:[%s487 + $0x8] sm:$0xf] %v492
                  %v494 = vld [vmem:[%s486 + $0x18] sm:$0xf]
                  %495 = vst [vmem:[%s487 + $0xc] sm:$0xf] %v494
                  %v496 = vld [vmem:[%s486 + $0x20] sm:$0xf]
                  %497 = vst [vmem:[%s487 + $0x10] sm:$0xf] %v496
                  %v498 = vld [vmem:[%s486 + $0x28] sm:$0xf]
                  %499 = vst [vmem:[%s487 + $0x14] sm:$0xf] %v498
                  %v500 = vld [vmem:[%s486 + $0x30] sm:$0xf]
                  %501 = vst [vmem:[%s487 + $0x18] sm:$0xf] %v500
                  %v502 = vld [vmem:[%s486 + $0x38] sm:$0xf]
                  %503 = vst [vmem:[%s487 + $0x1c] sm:$0xf] %v502
                  %v504 = vld [vmem:[%s486 + $0x40] sm:$0xf]
                  %505 = vst [vmem:[%s487 + $0x20] sm:$0xf] %v504
                  %v506 = vld [vmem:[%s486 + $0x48] sm:$0xf]
                  %507 = vst [vmem:[%s487 + $0x24] sm:$0xf] %v506
                  %v508 = vld [vmem:[%s486 + $0x50] sm:$0xf]
                  %509 = vst [vmem:[%s487 + $0x28] sm:$0xf] %v508
                  %v510 = vld [vmem:[%s486 + $0x58] sm:$0xf]
                  %511 = vst [vmem:[%s487 + $0x2c] sm:$0xf] %v510
                  %v512 = vld [vmem:[%s486 + $0x60] sm:$0xf]
                  %513 = vst [vmem:[%s487 + $0x30] sm:$0xf] %v512
                  %v514 = vld [vmem:[%s486 + $0x68] sm:$0xf]
                  %515 = vst [vmem:[%s487 + $0x34] sm:$0xf] %v514
                  %v516 = vld [vmem:[%s486 + $0x70] sm:$0xf]
                  %517 = vst [vmem:[%s487 + $0x38] sm:$0xf] %v516
                  %v518 = vld [vmem:[%s486 + $0x78] sm:$0xf]
                  %519 = vst [vmem:[%s487 + $0x3c] sm:$0xf] %v518
                  %v520 = vld [vmem:[%s486 + $0x80] sm:$0xf]
                  %521 = vst [vmem:[%s487 + $0x40] sm:$0xf] %v520
                  %v522 = vld [vmem:[%s486 + $0x88] sm:$0xf]
                  %523 = vst [vmem:[%s487 + $0x44] sm:$0xf] %v522
                  %v524 = vld [vmem:[%s486 + $0x90] sm:$0xf]
                  %525 = vst [vmem:[%s487 + $0x48] sm:$0xf] %v524
                  %v526 = vld [vmem:[%s486 + $0x98] sm:$0xf]
                  %527 = vst [vmem:[%s487 + $0x4c] sm:$0xf] %v526
                  %v528 = vld [vmem:[%s486 + $0xa0] sm:$0xf]
                  %529 = vst [vmem:[%s487 + $0x50] sm:$0xf] %v528
                  %v530 = vld [vmem:[%s486 + $0xa8] sm:$0xf]
                  %531 = vst [vmem:[%s487 + $0x54] sm:$0xf] %v530
                  %v532 = vld [vmem:[%s486 + $0xb0] sm:$0xf]
                  %533 = vst [vmem:[%s487 + $0x58] sm:$0xf] %v532
                  %v534 = vld [vmem:[%s486 + $0xb8] sm:$0xf]
                  %535 = vst [vmem:[%s487 + $0x5c] sm:$0xf] %v534
                  %v536 = vld [vmem:[%s486 + $0xc0] sm:$0xf]
                  %537 = vst [vmem:[%s487 + $0x60] sm:$0xf] %v536
                  %v538 = vld [vmem:[%s486 + $0xc8] sm:$0xf]
                  %539 = vst [vmem:[%s487 + $0x64] sm:$0xf] %v538
                  %v540 = vld [vmem:[%s486 + $0xd0] sm:$0xf]
                  %541 = vst [vmem:[%s487 + $0x68] sm:$0xf] %v540
                  %v542 = vld [vmem:[%s486 + $0xd8] sm:$0xf]
                  %543 = vst [vmem:[%s487 + $0x6c] sm:$0xf] %v542
                  %v544 = vld [vmem:[%s486 + $0xe0] sm:$0xf]
                  %545 = vst [vmem:[%s487 + $0x70] sm:$0xf] %v544
                  %v546 = vld [vmem:[%s486 + $0xe8] sm:$0xf]
                  %547 = vst [vmem:[%s487 + $0x74] sm:$0xf] %v546
                  %v548 = vld [vmem:[%s486 + $0xf0] sm:$0xf]
                  %549 = vst [vmem:[%s487 + $0x78] sm:$0xf] %v548
                  %v550 = vld [vmem:[%s486 + $0xf8] sm:$0xf]
                  %551 = vst [vmem:[%s487 + $0x7c] sm:$0xf] %v550
                  %v552 = vld [vmem:[%s486 + $0x100] sm:$0xf]
                  %553 = vst [vmem:[%s487 + $0x80] sm:$0xf] %v552
                  %v554 = vld [vmem:[%s486 + $0x108] sm:$0xf]
                  %555 = vst [vmem:[%s487 + $0x84] sm:$0xf] %v554
                  %v556 = vld [vmem:[%s486 + $0x110] sm:$0xf]
                  %557 = vst [vmem:[%s487 + $0x88] sm:$0xf] %v556
                  %v558 = vld [vmem:[%s486 + $0x118] sm:$0xf]
                  %559 = vst [vmem:[%s487 + $0x8c] sm:$0xf] %v558
                  %v560 = vld [vmem:[%s486 + $0x120] sm:$0xf]
                  %561 = vst [vmem:[%s487 + $0x90] sm:$0xf] %v560
                  %v562 = vld [vmem:[%s486 + $0x128] sm:$0xf]
                  %563 = vst [vmem:[%s487 + $0x94] sm:$0xf] %v562
                  %v564 = vld [vmem:[%s486 + $0x130] sm:$0xf]
                  %565 = vst [vmem:[%s487 + $0x98] sm:$0xf] %v564
                  %v566 = vld [vmem:[%s486 + $0x138] sm:$0xf]
                  %567 = vst [vmem:[%s487 + $0x9c] sm:$0xf] %v566
                  %v568 = vld [vmem:[%s486 + $0x140] sm:$0xf]
                  %569 = vst [vmem:[%s487 + $0xa0] sm:$0xf] %v568
                  %v570 = vld [vmem:[%s486 + $0x148] sm:$0xf]
                  %571 = vst [vmem:[%s487 + $0xa4] sm:$0xf] %v570
                  %v572 = vld [vmem:[%s486 + $0x150] sm:$0xf]
                  %573 = vst [vmem:[%s487 + $0xa8] sm:$0xf] %v572
                  %v574 = vld [vmem:[%s486 + $0x158] sm:$0xf]
                  %575 = vst [vmem:[%s487 + $0xac] sm:$0xf] %v574
                  %v576 = vld [vmem:[%s486 + $0x160] sm:$0xf]
                  %577 = vst [vmem:[%s487 + $0xb0] sm:$0xf] %v576
                  %v578 = vld [vmem:[%s486 + $0x168] sm:$0xf]
                  %579 = vst [vmem:[%s487 + $0xb4] sm:$0xf] %v578
                  %v580 = vld [vmem:[%s486 + $0x170] sm:$0xf]
                  %581 = vst [vmem:[%s487 + $0xb8] sm:$0xf] %v580
                  %v582 = vld [vmem:[%s486 + $0x178] sm:$0xf]
                  %583 = vst [vmem:[%s487 + $0xbc] sm:$0xf] %v582
                  %v584 = vld [vmem:[%s486 + $0x180] sm:$0xf]
                  %585 = vst [vmem:[%s487 + $0xc0] sm:$0xf] %v584
                  %v586 = vld [vmem:[%s486 + $0x188] sm:$0xf]
                  %587 = vst [vmem:[%s487 + $0xc4] sm:$0xf] %v586
                  %v588 = vld [vmem:[%s486 + $0x190] sm:$0xf]
                  %589 = vst [vmem:[%s487 + $0xc8] sm:$0xf] %v588
                  %v590 = vld [vmem:[%s486 + $0x198] sm:$0xf]
                  %591 = vst [vmem:[%s487 + $0xcc] sm:$0xf] %v590
                  %v592 = vld [vmem:[%s486 + $0x1a0] sm:$0xf]
                  %593 = vst [vmem:[%s487 + $0xd0] sm:$0xf] %v592
                  %v594 = vld [vmem:[%s486 + $0x1a8] sm:$0xf]
                  %595 = vst [vmem:[%s487 + $0xd4] sm:$0xf] %v594
                  %v596 = vld [vmem:[%s486 + $0x1b0] sm:$0xf]
                  %597 = vst [vmem:[%s487 + $0xd8] sm:$0xf] %v596
                  %v598 = vld [vmem:[%s486 + $0x1b8] sm:$0xf]
                  %599 = vst [vmem:[%s487 + $0xdc] sm:$0xf] %v598
                  %v600 = vld [vmem:[%s486 + $0x1c0] sm:$0xf]
                  %601 = vst [vmem:[%s487 + $0xe0] sm:$0xf] %v600
                  %v602 = vld [vmem:[%s486 + $0x1c8] sm:$0xf]
                  %603 = vst [vmem:[%s487 + $0xe4] sm:$0xf] %v602
                  %v604 = vld [vmem:[%s486 + $0x1d0] sm:$0xf]
                  %605 = vst [vmem:[%s487 + $0xe8] sm:$0xf] %v604
                  %v606 = vld [vmem:[%s486 + $0x1d8] sm:$0xf]
                  %607 = vst [vmem:[%s487 + $0xec] sm:$0xf] %v606
                  %v608 = vld [vmem:[%s486 + $0x1e0] sm:$0xf]
                  %609 = vst [vmem:[%s487 + $0xf0] sm:$0xf] %v608
                  %v610 = vld [vmem:[%s486 + $0x1e8] sm:$0xf]
                  %611 = vst [vmem:[%s487 + $0xf4] sm:$0xf] %v610
                  %v612 = vld [vmem:[%s486 + $0x1f0] sm:$0xf]
                  %613 = vst [vmem:[%s487 + $0xf8] sm:$0xf] %v612
                  %v614 = vld [vmem:[%s486 + $0x1f8] sm:$0xf]
                  %615 = vst [vmem:[%s487 + $0xfc] sm:$0xf] %v614
                  %v616 = vld [vmem:[%s486 + $0x200] sm:$0xf]
                  %617 = vst [vmem:[%s487 + $0x100] sm:$0xf] %v616
                  %v618 = vld [vmem:[%s486 + $0x208] sm:$0xf]
                  %619 = vst [vmem:[%s487 + $0x104] sm:$0xf] %v618
                  %v620 = vld [vmem:[%s486 + $0x210] sm:$0xf]
                  %621 = vst [vmem:[%s487 + $0x108] sm:$0xf] %v620
                  %v622 = vld [vmem:[%s486 + $0x218] sm:$0xf]
                  %623 = vst [vmem:[%s487 + $0x10c] sm:$0xf] %v622
                  %v624 = vld [vmem:[%s486 + $0x220] sm:$0xf]
                  %625 = vst [vmem:[%s487 + $0x110] sm:$0xf] %v624
                  %v626 = vld [vmem:[%s486 + $0x228] sm:$0xf]
                  %627 = vst [vmem:[%s487 + $0x114] sm:$0xf] %v626
                  %v628 = vld [vmem:[%s486 + $0x230] sm:$0xf]
                  %629 = vst [vmem:[%s487 + $0x118] sm:$0xf] %v628
                  %v630 = vld [vmem:[%s486 + $0x238] sm:$0xf]
                  %631 = vst [vmem:[%s487 + $0x11c] sm:$0xf] %v630
                  %v632 = vld [vmem:[%s486 + $0x240] sm:$0xf]
                  %633 = vst [vmem:[%s487 + $0x120] sm:$0xf] %v632
                  %v634 = vld [vmem:[%s486 + $0x248] sm:$0xf]
                  %635 = vst [vmem:[%s487 + $0x124] sm:$0xf] %v634
                  %v636 = vld [vmem:[%s486 + $0x250] sm:$0xf]
                  %637 = vst [vmem:[%s487 + $0x128] sm:$0xf] %v636
                  %v638 = vld [vmem:[%s486 + $0x258] sm:$0xf]
                  %639 = vst [vmem:[%s487 + $0x12c] sm:$0xf] %v638
                  %v640 = vld [vmem:[%s486 + $0x260] sm:$0xf]
                  %641 = vst [vmem:[%s487 + $0x130] sm:$0xf] %v640
                  %v642 = vld [vmem:[%s486 + $0x268] sm:$0xf]
                  %643 = vst [vmem:[%s487 + $0x134] sm:$0xf] %v642
                  %v644 = vld [vmem:[%s486 + $0x270] sm:$0xf]
                  %645 = vst [vmem:[%s487 + $0x138] sm:$0xf] %v644
                  %v646 = vld [vmem:[%s486 + $0x278] sm:$0xf]
                  %647 = vst [vmem:[%s487 + $0x13c] sm:$0xf] %v646
                  %v648 = vld [vmem:[%s486 + $0x280] sm:$0xf]
                  %649 = vst [vmem:[%s487 + $0x140] sm:$0xf] %v648
                  %v650 = vld [vmem:[%s486 + $0x288] sm:$0xf]
                  %651 = vst [vmem:[%s487 + $0x144] sm:$0xf] %v650
                  %v652 = vld [vmem:[%s486 + $0x290] sm:$0xf]
                  %653 = vst [vmem:[%s487 + $0x148] sm:$0xf] %v652
                  %v654 = vld [vmem:[%s486 + $0x298] sm:$0xf]
                  %655 = vst [vmem:[%s487 + $0x14c] sm:$0xf] %v654
                  %v656 = vld [vmem:[%s486 + $0x2a0] sm:$0xf]
                  %657 = vst [vmem:[%s487 + $0x150] sm:$0xf] %v656
                  %v658 = vld [vmem:[%s486 + $0x2a8] sm:$0xf]
                  %659 = vst [vmem:[%s487 + $0x154] sm:$0xf] %v658
                  %v660 = vld [vmem:[%s486 + $0x2b0] sm:$0xf]
                  %661 = vst [vmem:[%s487 + $0x158] sm:$0xf] %v660
                  %v662 = vld [vmem:[%s486 + $0x2b8] sm:$0xf]
                  %663 = vst [vmem:[%s487 + $0x15c] sm:$0xf] %v662
                  %v664 = vld [vmem:[%s486 + $0x2c0] sm:$0xf]
                  %665 = vst [vmem:[%s487 + $0x160] sm:$0xf] %v664
                  %v666 = vld [vmem:[%s486 + $0x2c8] sm:$0xf]
                  %667 = vst [vmem:[%s487 + $0x164] sm:$0xf] %v666
                  %v668 = vld [vmem:[%s486 + $0x2d0] sm:$0xf]
                  %669 = vst [vmem:[%s487 + $0x168] sm:$0xf] %v668
                  %v670 = vld [vmem:[%s486 + $0x2d8] sm:$0xf]
                  %671 = vst [vmem:[%s487 + $0x16c] sm:$0xf] %v670
                  %v672 = vld [vmem:[%s486 + $0x2e0] sm:$0xf]
                  %673 = vst [vmem:[%s487 + $0x170] sm:$0xf] %v672
                  %v674 = vld [vmem:[%s486 + $0x2e8] sm:$0xf]
                  %675 = vst [vmem:[%s487 + $0x174] sm:$0xf] %v674
                  %v676 = vld [vmem:[%s486 + $0x2f0] sm:$0xf]
                  %677 = vst [vmem:[%s487 + $0x178] sm:$0xf] %v676
                  %v678 = vld [vmem:[%s486 + $0x2f8] sm:$0xf]
                  %679 = vst [vmem:[%s487 + $0x17c] sm:$0xf] %v678
                  %v680 = vld [vmem:[%s486 + $0x300] sm:$0xf]
                  %681 = vst [vmem:[%s487 + $0x180] sm:$0xf] %v680
                  %v682 = vld [vmem:[%s486 + $0x308] sm:$0xf]
                  %683 = vst [vmem:[%s487 + $0x184] sm:$0xf] %v682
                  %v684 = vld [vmem:[%s486 + $0x310] sm:$0xf]
                  %685 = vst [vmem:[%s487 + $0x188] sm:$0xf] %v684
                  %v686 = vld [vmem:[%s486 + $0x318] sm:$0xf]
                  %687 = vst [vmem:[%s487 + $0x18c] sm:$0xf] %v686
                  %v688 = vld [vmem:[%s486 + $0x320] sm:$0xf]
                  %689 = vst [vmem:[%s487 + $0x190] sm:$0xf] %v688
                  %v690 = vld [vmem:[%s486 + $0x328] sm:$0xf]
                  %691 = vst [vmem:[%s487 + $0x194] sm:$0xf] %v690
                  %v692 = vld [vmem:[%s486 + $0x330] sm:$0xf]
                  %693 = vst [vmem:[%s487 + $0x198] sm:$0xf] %v692
                  %v694 = vld [vmem:[%s486 + $0x338] sm:$0xf]
                  %695 = vst [vmem:[%s487 + $0x19c] sm:$0xf] %v694
                  %v696 = vld [vmem:[%s486 + $0x340] sm:$0xf]
                  %697 = vst [vmem:[%s487 + $0x1a0] sm:$0xf] %v696
                  %v698 = vld [vmem:[%s486 + $0x348] sm:$0xf]
                  %699 = vst [vmem:[%s487 + $0x1a4] sm:$0xf] %v698
                  %v700 = vld [vmem:[%s486 + $0x350] sm:$0xf]
                  %701 = vst [vmem:[%s487 + $0x1a8] sm:$0xf] %v700
                  %v702 = vld [vmem:[%s486 + $0x358] sm:$0xf]
                  %703 = vst [vmem:[%s487 + $0x1ac] sm:$0xf] %v702
                  %v704 = vld [vmem:[%s486 + $0x360] sm:$0xf]
                  %705 = vst [vmem:[%s487 + $0x1b0] sm:$0xf] %v704
                  %v706 = vld [vmem:[%s486 + $0x368] sm:$0xf]
                  %707 = vst [vmem:[%s487 + $0x1b4] sm:$0xf] %v706
                  %v708 = vld [vmem:[%s486 + $0x370] sm:$0xf]
                  %709 = vst [vmem:[%s487 + $0x1b8] sm:$0xf] %v708
                  %v710 = vld [vmem:[%s486 + $0x378] sm:$0xf]
                  %711 = vst [vmem:[%s487 + $0x1bc] sm:$0xf] %v710
                  %v712 = vld [vmem:[%s486 + $0x380] sm:$0xf]
                  %713 = vst [vmem:[%s487 + $0x1c0] sm:$0xf] %v712
                  %v714 = vld [vmem:[%s486 + $0x388] sm:$0xf]
                  %715 = vst [vmem:[%s487 + $0x1c4] sm:$0xf] %v714
                  %v716 = vld [vmem:[%s486 + $0x390] sm:$0xf]
                  %717 = vst [vmem:[%s487 + $0x1c8] sm:$0xf] %v716
                  %v718 = vld [vmem:[%s486 + $0x398] sm:$0xf]
                  %719 = vst [vmem:[%s487 + $0x1cc] sm:$0xf] %v718
                  %v720 = vld [vmem:[%s486 + $0x3a0] sm:$0xf]
                  %721 = vst [vmem:[%s487 + $0x1d0] sm:$0xf] %v720
                  %v722 = vld [vmem:[%s486 + $0x3a8] sm:$0xf]
                  %723 = vst [vmem:[%s487 + $0x1d4] sm:$0xf] %v722
                  %v724 = vld [vmem:[%s486 + $0x3b0] sm:$0xf]
                  %725 = vst [vmem:[%s487 + $0x1d8] sm:$0xf] %v724
                  %v726 = vld [vmem:[%s486 + $0x3b8] sm:$0xf]
                  %727 = vst [vmem:[%s487 + $0x1dc] sm:$0xf] %v726
                  %v728 = vld [vmem:[%s486 + $0x3c0] sm:$0xf]
                  %729 = vst [vmem:[%s487 + $0x1e0] sm:$0xf] %v728
                  %v730 = vld [vmem:[%s486 + $0x3c8] sm:$0xf]
                  %731 = vst [vmem:[%s487 + $0x1e4] sm:$0xf] %v730
                  %v732 = vld [vmem:[%s486 + $0x3d0] sm:$0xf]
                  %733 = vst [vmem:[%s487 + $0x1e8] sm:$0xf] %v732
                  %v734 = vld [vmem:[%s486 + $0x3d8] sm:$0xf]
                  %735 = vst [vmem:[%s487 + $0x1ec] sm:$0xf] %v734
                  %v736 = vld [vmem:[%s486 + $0x3e0] sm:$0xf]
                  %737 = vst [vmem:[%s487 + $0x1f0] sm:$0xf] %v736
                  %v738 = vld [vmem:[%s486 + $0x3e8] sm:$0xf]
                  %739 = vst [vmem:[%s487 + $0x1f4] sm:$0xf] %v738
                  %v740 = vld [vmem:[%s486 + $0x3f0] sm:$0xf]
                  %741 = vst [vmem:[%s487 + $0x1f8] sm:$0xf] %v740
                  %v742 = vld [vmem:[%s486 + $0x3f8] sm:$0xf]
                  %743 = vst [vmem:[%s487 + $0x1fc] sm:$0xf] %v742
                  %v744 = vld [vmem:[%s486 + $0x400] sm:$0xf]
                  %745 = vst [vmem:[%s487 + $0x200] sm:$0xf] %v744
                  %v746 = vld [vmem:[%s486 + $0x408] sm:$0xf]
                  %747 = vst [vmem:[%s487 + $0x204] sm:$0xf] %v746
                  %v748 = vld [vmem:[%s486 + $0x410] sm:$0xf]
                  %749 = vst [vmem:[%s487 + $0x208] sm:$0xf] %v748
                  %v750 = vld [vmem:[%s486 + $0x418] sm:$0xf]
                  %751 = vst [vmem:[%s487 + $0x20c] sm:$0xf] %v750
                  %v752 = vld [vmem:[%s486 + $0x420] sm:$0xf]
                  %753 = vst [vmem:[%s487 + $0x210] sm:$0xf] %v752
                  %v754 = vld [vmem:[%s486 + $0x428] sm:$0xf]
                  %755 = vst [vmem:[%s487 + $0x214] sm:$0xf] %v754
                  %v756 = vld [vmem:[%s486 + $0x430] sm:$0xf]
                  %757 = vst [vmem:[%s487 + $0x218] sm:$0xf] %v756
                  %v758 = vld [vmem:[%s486 + $0x438] sm:$0xf]
                  %759 = vst [vmem:[%s487 + $0x21c] sm:$0xf] %v758
                  %v760 = vld [vmem:[%s486 + $0x440] sm:$0xf]
                  %761 = vst [vmem:[%s487 + $0x220] sm:$0xf] %v760
                  %v762 = vld [vmem:[%s486 + $0x448] sm:$0xf]
                  %763 = vst [vmem:[%s487 + $0x224] sm:$0xf] %v762
                  %v764 = vld [vmem:[%s486 + $0x450] sm:$0xf]
                  %765 = vst [vmem:[%s487 + $0x228] sm:$0xf] %v764
                  %v766 = vld [vmem:[%s486 + $0x458] sm:$0xf]
                  %767 = vst [vmem:[%s487 + $0x22c] sm:$0xf] %v766
                  %v768 = vld [vmem:[%s486 + $0x460] sm:$0xf]
                  %769 = vst [vmem:[%s487 + $0x230] sm:$0xf] %v768
                  %v770 = vld [vmem:[%s486 + $0x468] sm:$0xf]
                  %771 = vst [vmem:[%s487 + $0x234] sm:$0xf] %v770
                  %v772 = vld [vmem:[%s486 + $0x470] sm:$0xf]
                  %773 = vst [vmem:[%s487 + $0x238] sm:$0xf] %v772
                  %v774 = vld [vmem:[%s486 + $0x478] sm:$0xf]
                  %775 = vst [vmem:[%s487 + $0x23c] sm:$0xf] %v774
                $region59: #{feed_forward_gaussian_splatting.6} parent=46 // loop_footer
                  %s485 = sadd.s32 1, %s481
                $region60: #{feed_forward_gaussian_splatting.6} parent=46 // loop_footer_branch
                  %480 = sbr.rel target = $region56
                $region61: #{feed_forward_gaussian_splatting.6} parent=46 // loop_exit
                  _
              $region47: #{feed_forward_gaussian_splatting.6} parent=31 // pred_fallthru
                _
            $region32: #{feed_forward_gaussian_splatting.6} parent=27 // pred_fallthru
              _
            // Predicated region
            $region33: #{feed_forward_gaussian_splatting.6} parent=27 // pred_check
              _
            $region34: #{feed_forward_gaussian_splatting.6} parent=27 // pred_check_branch
              %171 = sbr.rel (0) target = $region36
            $region35: #{feed_forward_gaussian_splatting.6} parent=27 // pred_region
              loop: start=0, step=1, limit=1
              $region37: #{feed_forward_gaussian_splatting.6} parent=35 // loop_pre_header
                _
              $region38: #{feed_forward_gaussian_splatting.6} parent=35 // loop_header
                %s174 = sphi 0, %s178
                %p175 = scmp.ge.s32.totalorder %s174, 1
                %s179 = sphi %s165, %s165
                %s180 = sphi %s163, %s163
              $region39: #{feed_forward_gaussian_splatting.6} parent=35 // loop_header_branch
                %177 = sbr.rel (%p175) target = $region43
              $region40: #{feed_forward_gaussian_splatting.6} parent=35 // loop_body
                %v181 = vld [vmem:[%s179] sm:$0xf]
                %182 = vst [vmem:[%s180] sm:$0xf] %v181
                %v183 = vld [vmem:[%s179 + $0x8] sm:$0xf]
                %184 = vst [vmem:[%s180 + $0x4] sm:$0xf] %v183
                %v185 = vld [vmem:[%s179 + $0x10] sm:$0xf]
                %186 = vst [vmem:[%s180 + $0x8] sm:$0xf] %v185
                %v187 = vld [vmem:[%s179 + $0x18] sm:$0xf]
                %188 = vst [vmem:[%s180 + $0xc] sm:$0xf] %v187
                %v189 = vld [vmem:[%s179 + $0x20] sm:$0xf]
                %190 = vst [vmem:[%s180 + $0x10] sm:$0xf] %v189
                %v191 = vld [vmem:[%s179 + $0x28] sm:$0xf]
                %192 = vst [vmem:[%s180 + $0x14] sm:$0xf] %v191
                %v193 = vld [vmem:[%s179 + $0x30] sm:$0xf]
                %194 = vst [vmem:[%s180 + $0x18] sm:$0xf] %v193
                %v195 = vld [vmem:[%s179 + $0x38] sm:$0xf]
                %196 = vst [vmem:[%s180 + $0x1c] sm:$0xf] %v195
                %v197 = vld [vmem:[%s179 + $0x40] sm:$0xf]
                %198 = vst [vmem:[%s180 + $0x20] sm:$0xf] %v197
                %v199 = vld [vmem:[%s179 + $0x48] sm:$0xf]
                %200 = vst [vmem:[%s180 + $0x24] sm:$0xf] %v199
                %v201 = vld [vmem:[%s179 + $0x50] sm:$0xf]
                %202 = vst [vmem:[%s180 + $0x28] sm:$0xf] %v201
                %v203 = vld [vmem:[%s179 + $0x58] sm:$0xf]
                %204 = vst [vmem:[%s180 + $0x2c] sm:$0xf] %v203
                %v205 = vld [vmem:[%s179 + $0x60] sm:$0xf]
                %206 = vst [vmem:[%s180 + $0x30] sm:$0xf] %v205
                %v207 = vld [vmem:[%s179 + $0x68] sm:$0xf]
                %208 = vst [vmem:[%s180 + $0x34] sm:$0xf] %v207
                %v209 = vld [vmem:[%s179 + $0x70] sm:$0xf]
                %210 = vst [vmem:[%s180 + $0x38] sm:$0xf] %v209
                %v211 = vld [vmem:[%s179 + $0x78] sm:$0xf]
                %212 = vst [vmem:[%s180 + $0x3c] sm:$0xf] %v211
                %v213 = vld [vmem:[%s179 + $0x80] sm:$0xf]
                %214 = vst [vmem:[%s180 + $0x40] sm:$0xf] %v213
                %v215 = vld [vmem:[%s179 + $0x88] sm:$0xf]
                %216 = vst [vmem:[%s180 + $0x44] sm:$0xf] %v215
                %v217 = vld [vmem:[%s179 + $0x90] sm:$0xf]
                %218 = vst [vmem:[%s180 + $0x48] sm:$0xf] %v217
                %v219 = vld [vmem:[%s179 + $0x98] sm:$0xf]
                %220 = vst [vmem:[%s180 + $0x4c] sm:$0xf] %v219
                %v221 = vld [vmem:[%s179 + $0xa0] sm:$0xf]
                %222 = vst [vmem:[%s180 + $0x50] sm:$0xf] %v221
                %v223 = vld [vmem:[%s179 + $0xa8] sm:$0xf]
                %224 = vst [vmem:[%s180 + $0x54] sm:$0xf] %v223
                %v225 = vld [vmem:[%s179 + $0xb0] sm:$0xf]
                %226 = vst [vmem:[%s180 + $0x58] sm:$0xf] %v225
                %v227 = vld [vmem:[%s179 + $0xb8] sm:$0xf]
                %228 = vst [vmem:[%s180 + $0x5c] sm:$0xf] %v227
                %v229 = vld [vmem:[%s179 + $0xc0] sm:$0xf]
                %230 = vst [vmem:[%s180 + $0x60] sm:$0xf] %v229
                %v231 = vld [vmem:[%s179 + $0xc8] sm:$0xf]
                %232 = vst [vmem:[%s180 + $0x64] sm:$0xf] %v231
                %v233 = vld [vmem:[%s179 + $0xd0] sm:$0xf]
                %234 = vst [vmem:[%s180 + $0x68] sm:$0xf] %v233
                %v235 = vld [vmem:[%s179 + $0xd8] sm:$0xf]
                %236 = vst [vmem:[%s180 + $0x6c] sm:$0xf] %v235
                %v237 = vld [vmem:[%s179 + $0xe0] sm:$0xf]
                %238 = vst [vmem:[%s180 + $0x70] sm:$0xf] %v237
                %v239 = vld [vmem:[%s179 + $0xe8] sm:$0xf]
                %240 = vst [vmem:[%s180 + $0x74] sm:$0xf] %v239
                %v241 = vld [vmem:[%s179 + $0xf0] sm:$0xf]
                %242 = vst [vmem:[%s180 + $0x78] sm:$0xf] %v241
                %v243 = vld [vmem:[%s179 + $0xf8] sm:$0xf]
                %244 = vst [vmem:[%s180 + $0x7c] sm:$0xf] %v243
                %v245 = vld [vmem:[%s179 + $0x100] sm:$0xf]
                %246 = vst [vmem:[%s180 + $0x80] sm:$0xf] %v245
                %v247 = vld [vmem:[%s179 + $0x108] sm:$0xf]
                %248 = vst [vmem:[%s180 + $0x84] sm:$0xf] %v247
                %v249 = vld [vmem:[%s179 + $0x110] sm:$0xf]
                %250 = vst [vmem:[%s180 + $0x88] sm:$0xf] %v249
                %v251 = vld [vmem:[%s179 + $0x118] sm:$0xf]
                %252 = vst [vmem:[%s180 + $0x8c] sm:$0xf] %v251
                %v253 = vld [vmem:[%s179 + $0x120] sm:$0xf]
                %254 = vst [vmem:[%s180 + $0x90] sm:$0xf] %v253
                %v255 = vld [vmem:[%s179 + $0x128] sm:$0xf]
                %256 = vst [vmem:[%s180 + $0x94] sm:$0xf] %v255
                %v257 = vld [vmem:[%s179 + $0x130] sm:$0xf]
                %258 = vst [vmem:[%s180 + $0x98] sm:$0xf] %v257
                %v259 = vld [vmem:[%s179 + $0x138] sm:$0xf]
                %260 = vst [vmem:[%s180 + $0x9c] sm:$0xf] %v259
                %v261 = vld [vmem:[%s179 + $0x140] sm:$0xf]
                %262 = vst [vmem:[%s180 + $0xa0] sm:$0xf] %v261
                %v263 = vld [vmem:[%s179 + $0x148] sm:$0xf]
                %264 = vst [vmem:[%s180 + $0xa4] sm:$0xf] %v263
                %v265 = vld [vmem:[%s179 + $0x150] sm:$0xf]
                %266 = vst [vmem:[%s180 + $0xa8] sm:$0xf] %v265
                %v267 = vld [vmem:[%s179 + $0x158] sm:$0xf]
                %268 = vst [vmem:[%s180 + $0xac] sm:$0xf] %v267
                %v269 = vld [vmem:[%s179 + $0x160] sm:$0xf]
                %270 = vst [vmem:[%s180 + $0xb0] sm:$0xf] %v269
                %v271 = vld [vmem:[%s179 + $0x168] sm:$0xf]
                %272 = vst [vmem:[%s180 + $0xb4] sm:$0xf] %v271
                %v273 = vld [vmem:[%s179 + $0x170] sm:$0xf]
                %274 = vst [vmem:[%s180 + $0xb8] sm:$0xf] %v273
                %v275 = vld [vmem:[%s179 + $0x178] sm:$0xf]
                %276 = vst [vmem:[%s180 + $0xbc] sm:$0xf] %v275
                %v277 = vld [vmem:[%s179 + $0x180] sm:$0xf]
                %278 = vst [vmem:[%s180 + $0xc0] sm:$0xf] %v277
                %v279 = vld [vmem:[%s179 + $0x188] sm:$0xf]
                %280 = vst [vmem:[%s180 + $0xc4] sm:$0xf] %v279
                %v281 = vld [vmem:[%s179 + $0x190] sm:$0xf]
                %282 = vst [vmem:[%s180 + $0xc8] sm:$0xf] %v281
                %v283 = vld [vmem:[%s179 + $0x198] sm:$0xf]
                %284 = vst [vmem:[%s180 + $0xcc] sm:$0xf] %v283
                %v285 = vld [vmem:[%s179 + $0x1a0] sm:$0xf]
                %286 = vst [vmem:[%s180 + $0xd0] sm:$0xf] %v285
                %v287 = vld [vmem:[%s179 + $0x1a8] sm:$0xf]
                %288 = vst [vmem:[%s180 + $0xd4] sm:$0xf] %v287
                %v289 = vld [vmem:[%s179 + $0x1b0] sm:$0xf]
                %290 = vst [vmem:[%s180 + $0xd8] sm:$0xf] %v289
                %v291 = vld [vmem:[%s179 + $0x1b8] sm:$0xf]
                %292 = vst [vmem:[%s180 + $0xdc] sm:$0xf] %v291
                %v293 = vld [vmem:[%s179 + $0x1c0] sm:$0xf]
                %294 = vst [vmem:[%s180 + $0xe0] sm:$0xf] %v293
                %v295 = vld [vmem:[%s179 + $0x1c8] sm:$0xf]
                %296 = vst [vmem:[%s180 + $0xe4] sm:$0xf] %v295
                %v297 = vld [vmem:[%s179 + $0x1d0] sm:$0xf]
                %298 = vst [vmem:[%s180 + $0xe8] sm:$0xf] %v297
                %v299 = vld [vmem:[%s179 + $0x1d8] sm:$0xf]
                %300 = vst [vmem:[%s180 + $0xec] sm:$0xf] %v299
                %v301 = vld [vmem:[%s179 + $0x1e0] sm:$0xf]
                %302 = vst [vmem:[%s180 + $0xf0] sm:$0xf] %v301
                %v303 = vld [vmem:[%s179 + $0x1e8] sm:$0xf]
                %304 = vst [vmem:[%s180 + $0xf4] sm:$0xf] %v303
                %v305 = vld [vmem:[%s179 + $0x1f0] sm:$0xf]
                %306 = vst [vmem:[%s180 + $0xf8] sm:$0xf] %v305
                %v307 = vld [vmem:[%s179 + $0x1f8] sm:$0xf]
                %308 = vst [vmem:[%s180 + $0xfc] sm:$0xf] %v307
                %v309 = vld [vmem:[%s179 + $0x200] sm:$0xf]
                %310 = vst [vmem:[%s180 + $0x100] sm:$0xf] %v309
                %v311 = vld [vmem:[%s179 + $0x208] sm:$0xf]
                %312 = vst [vmem:[%s180 + $0x104] sm:$0xf] %v311
                %v313 = vld [vmem:[%s179 + $0x210] sm:$0xf]
                %314 = vst [vmem:[%s180 + $0x108] sm:$0xf] %v313
                %v315 = vld [vmem:[%s179 + $0x218] sm:$0xf]
                %316 = vst [vmem:[%s180 + $0x10c] sm:$0xf] %v315
                %v317 = vld [vmem:[%s179 + $0x220] sm:$0xf]
                %318 = vst [vmem:[%s180 + $0x110] sm:$0xf] %v317
                %v319 = vld [vmem:[%s179 + $0x228] sm:$0xf]
                %320 = vst [vmem:[%s180 + $0x114] sm:$0xf] %v319
                %v321 = vld [vmem:[%s179 + $0x230] sm:$0xf]
                %322 = vst [vmem:[%s180 + $0x118] sm:$0xf] %v321
                %v323 = vld [vmem:[%s179 + $0x238] sm:$0xf]
                %324 = vst [vmem:[%s180 + $0x11c] sm:$0xf] %v323
                %v325 = vld [vmem:[%s179 + $0x240] sm:$0xf]
                %326 = vst [vmem:[%s180 + $0x120] sm:$0xf] %v325
                %v327 = vld [vmem:[%s179 + $0x248] sm:$0xf]
                %328 = vst [vmem:[%s180 + $0x124] sm:$0xf] %v327
                %v329 = vld [vmem:[%s179 + $0x250] sm:$0xf]
                %330 = vst [vmem:[%s180 + $0x128] sm:$0xf] %v329
                %v331 = vld [vmem:[%s179 + $0x258] sm:$0xf]
                %332 = vst [vmem:[%s180 + $0x12c] sm:$0xf] %v331
                %v333 = vld [vmem:[%s179 + $0x260] sm:$0xf]
                %334 = vst [vmem:[%s180 + $0x130] sm:$0xf] %v333
                %v335 = vld [vmem:[%s179 + $0x268] sm:$0xf]
                %336 = vst [vmem:[%s180 + $0x134] sm:$0xf] %v335
                %v337 = vld [vmem:[%s179 + $0x270] sm:$0xf]
                %338 = vst [vmem:[%s180 + $0x138] sm:$0xf] %v337
                %v339 = vld [vmem:[%s179 + $0x278] sm:$0xf]
                %340 = vst [vmem:[%s180 + $0x13c] sm:$0xf] %v339
                %v341 = vld [vmem:[%s179 + $0x280] sm:$0xf]
                %342 = vst [vmem:[%s180 + $0x140] sm:$0xf] %v341
                %v343 = vld [vmem:[%s179 + $0x288] sm:$0xf]
                %344 = vst [vmem:[%s180 + $0x144] sm:$0xf] %v343
                %v345 = vld [vmem:[%s179 + $0x290] sm:$0xf]
                %346 = vst [vmem:[%s180 + $0x148] sm:$0xf] %v345
                %v347 = vld [vmem:[%s179 + $0x298] sm:$0xf]
                %348 = vst [vmem:[%s180 + $0x14c] sm:$0xf] %v347
                %v349 = vld [vmem:[%s179 + $0x2a0] sm:$0xf]
                %350 = vst [vmem:[%s180 + $0x150] sm:$0xf] %v349
                %v351 = vld [vmem:[%s179 + $0x2a8] sm:$0xf]
                %352 = vst [vmem:[%s180 + $0x154] sm:$0xf] %v351
                %v353 = vld [vmem:[%s179 + $0x2b0] sm:$0xf]
                %354 = vst [vmem:[%s180 + $0x158] sm:$0xf] %v353
                %v355 = vld [vmem:[%s179 + $0x2b8] sm:$0xf]
                %356 = vst [vmem:[%s180 + $0x15c] sm:$0xf] %v355
                %v357 = vld [vmem:[%s179 + $0x2c0] sm:$0xf]
                %358 = vst [vmem:[%s180 + $0x160] sm:$0xf] %v357
                %v359 = vld [vmem:[%s179 + $0x2c8] sm:$0xf]
                %360 = vst [vmem:[%s180 + $0x164] sm:$0xf] %v359
                %v361 = vld [vmem:[%s179 + $0x2d0] sm:$0xf]
                %362 = vst [vmem:[%s180 + $0x168] sm:$0xf] %v361
                %v363 = vld [vmem:[%s179 + $0x2d8] sm:$0xf]
                %364 = vst [vmem:[%s180 + $0x16c] sm:$0xf] %v363
                %v365 = vld [vmem:[%s179 + $0x2e0] sm:$0xf]
                %366 = vst [vmem:[%s180 + $0x170] sm:$0xf] %v365
                %v367 = vld [vmem:[%s179 + $0x2e8] sm:$0xf]
                %368 = vst [vmem:[%s180 + $0x174] sm:$0xf] %v367
                %v369 = vld [vmem:[%s179 + $0x2f0] sm:$0xf]
                %370 = vst [vmem:[%s180 + $0x178] sm:$0xf] %v369
                %v371 = vld [vmem:[%s179 + $0x2f8] sm:$0xf]
                %372 = vst [vmem:[%s180 + $0x17c] sm:$0xf] %v371
                %v373 = vld [vmem:[%s179 + $0x300] sm:$0xf]
                %374 = vst [vmem:[%s180 + $0x180] sm:$0xf] %v373
                %v375 = vld [vmem:[%s179 + $0x308] sm:$0xf]
                %376 = vst [vmem:[%s180 + $0x184] sm:$0xf] %v375
                %v377 = vld [vmem:[%s179 + $0x310] sm:$0xf]
                %378 = vst [vmem:[%s180 + $0x188] sm:$0xf] %v377
                %v379 = vld [vmem:[%s179 + $0x318] sm:$0xf]
                %380 = vst [vmem:[%s180 + $0x18c] sm:$0xf] %v379
                %v381 = vld [vmem:[%s179 + $0x320] sm:$0xf]
                %382 = vst [vmem:[%s180 + $0x190] sm:$0xf] %v381
                %v383 = vld [vmem:[%s179 + $0x328] sm:$0xf]
                %384 = vst [vmem:[%s180 + $0x194] sm:$0xf] %v383
                %v385 = vld [vmem:[%s179 + $0x330] sm:$0xf]
                %386 = vst [vmem:[%s180 + $0x198] sm:$0xf] %v385
                %v387 = vld [vmem:[%s179 + $0x338] sm:$0xf]
                %388 = vst [vmem:[%s180 + $0x19c] sm:$0xf] %v387
                %v389 = vld [vmem:[%s179 + $0x340] sm:$0xf]
                %390 = vst [vmem:[%s180 + $0x1a0] sm:$0xf] %v389
                %v391 = vld [vmem:[%s179 + $0x348] sm:$0xf]
                %392 = vst [vmem:[%s180 + $0x1a4] sm:$0xf] %v391
                %v393 = vld [vmem:[%s179 + $0x350] sm:$0xf]
                %394 = vst [vmem:[%s180 + $0x1a8] sm:$0xf] %v393
                %v395 = vld [vmem:[%s179 + $0x358] sm:$0xf]
                %396 = vst [vmem:[%s180 + $0x1ac] sm:$0xf] %v395
                %v397 = vld [vmem:[%s179 + $0x360] sm:$0xf]
                %398 = vst [vmem:[%s180 + $0x1b0] sm:$0xf] %v397
                %v399 = vld [vmem:[%s179 + $0x368] sm:$0xf]
                %400 = vst [vmem:[%s180 + $0x1b4] sm:$0xf] %v399
                %v401 = vld [vmem:[%s179 + $0x370] sm:$0xf]
                %402 = vst [vmem:[%s180 + $0x1b8] sm:$0xf] %v401
                %v403 = vld [vmem:[%s179 + $0x378] sm:$0xf]
                %404 = vst [vmem:[%s180 + $0x1bc] sm:$0xf] %v403
                %v405 = vld [vmem:[%s179 + $0x380] sm:$0xf]
                %406 = vst [vmem:[%s180 + $0x1c0] sm:$0xf] %v405
                %v407 = vld [vmem:[%s179 + $0x388] sm:$0xf]
                %408 = vst [vmem:[%s180 + $0x1c4] sm:$0xf] %v407
                %v409 = vld [vmem:[%s179 + $0x390] sm:$0xf]
                %410 = vst [vmem:[%s180 + $0x1c8] sm:$0xf] %v409
                %v411 = vld [vmem:[%s179 + $0x398] sm:$0xf]
                %412 = vst [vmem:[%s180 + $0x1cc] sm:$0xf] %v411
                %v413 = vld [vmem:[%s179 + $0x3a0] sm:$0xf]
                %414 = vst [vmem:[%s180 + $0x1d0] sm:$0xf] %v413
                %v415 = vld [vmem:[%s179 + $0x3a8] sm:$0xf]
                %416 = vst [vmem:[%s180 + $0x1d4] sm:$0xf] %v415
                %v417 = vld [vmem:[%s179 + $0x3b0] sm:$0xf]
                %418 = vst [vmem:[%s180 + $0x1d8] sm:$0xf] %v417
                %v419 = vld [vmem:[%s179 + $0x3b8] sm:$0xf]
                %420 = vst [vmem:[%s180 + $0x1dc] sm:$0xf] %v419
                %v421 = vld [vmem:[%s179 + $0x3c0] sm:$0xf]
                %422 = vst [vmem:[%s180 + $0x1e0] sm:$0xf] %v421
                %v423 = vld [vmem:[%s179 + $0x3c8] sm:$0xf]
                %424 = vst [vmem:[%s180 + $0x1e4] sm:$0xf] %v423
                %v425 = vld [vmem:[%s179 + $0x3d0] sm:$0xf]
                %426 = vst [vmem:[%s180 + $0x1e8] sm:$0xf] %v425
                %v427 = vld [vmem:[%s179 + $0x3d8] sm:$0xf]
                %428 = vst [vmem:[%s180 + $0x1ec] sm:$0xf] %v427
                %v429 = vld [vmem:[%s179 + $0x3e0] sm:$0xf]
                %430 = vst [vmem:[%s180 + $0x1f0] sm:$0xf] %v429
                %v431 = vld [vmem:[%s179 + $0x3e8] sm:$0xf]
                %432 = vst [vmem:[%s180 + $0x1f4] sm:$0xf] %v431
                %v433 = vld [vmem:[%s179 + $0x3f0] sm:$0xf]
                %434 = vst [vmem:[%s180 + $0x1f8] sm:$0xf] %v433
                %v435 = vld [vmem:[%s179 + $0x3f8] sm:$0xf]
                %436 = vst [vmem:[%s180 + $0x1fc] sm:$0xf] %v435
                %v437 = vld [vmem:[%s179 + $0x400] sm:$0xf]
                %438 = vst [vmem:[%s180 + $0x200] sm:$0xf] %v437
                %v439 = vld [vmem:[%s179 + $0x408] sm:$0xf]
                %440 = vst [vmem:[%s180 + $0x204] sm:$0xf] %v439
                %v441 = vld [vmem:[%s179 + $0x410] sm:$0xf]
                %442 = vst [vmem:[%s180 + $0x208] sm:$0xf] %v441
                %v443 = vld [vmem:[%s179 + $0x418] sm:$0xf]
                %444 = vst [vmem:[%s180 + $0x20c] sm:$0xf] %v443
                %v445 = vld [vmem:[%s179 + $0x420] sm:$0xf]
                %446 = vst [vmem:[%s180 + $0x210] sm:$0xf] %v445
                %v447 = vld [vmem:[%s179 + $0x428] sm:$0xf]
                %448 = vst [vmem:[%s180 + $0x214] sm:$0xf] %v447
                %v449 = vld [vmem:[%s179 + $0x430] sm:$0xf]
                %450 = vst [vmem:[%s180 + $0x218] sm:$0xf] %v449
                %v451 = vld [vmem:[%s179 + $0x438] sm:$0xf]
                %452 = vst [vmem:[%s180 + $0x21c] sm:$0xf] %v451
                %v453 = vld [vmem:[%s179 + $0x440] sm:$0xf]
                %454 = vst [vmem:[%s180 + $0x220] sm:$0xf] %v453
                %v455 = vld [vmem:[%s179 + $0x448] sm:$0xf]
                %456 = vst [vmem:[%s180 + $0x224] sm:$0xf] %v455
                %v457 = vld [vmem:[%s179 + $0x450] sm:$0xf]
                %458 = vst [vmem:[%s180 + $0x228] sm:$0xf] %v457
                %v459 = vld [vmem:[%s179 + $0x458] sm:$0xf]
                %460 = vst [vmem:[%s180 + $0x22c] sm:$0xf] %v459
                %v461 = vld [vmem:[%s179 + $0x460] sm:$0xf]
                %462 = vst [vmem:[%s180 + $0x230] sm:$0xf] %v461
                %v463 = vld [vmem:[%s179 + $0x468] sm:$0xf]
                %464 = vst [vmem:[%s180 + $0x234] sm:$0xf] %v463
                %v465 = vld [vmem:[%s179 + $0x470] sm:$0xf]
                %466 = vst [vmem:[%s180 + $0x238] sm:$0xf] %v465
                %v467 = vld [vmem:[%s179 + $0x478] sm:$0xf]
                %468 = vst [vmem:[%s180 + $0x23c] sm:$0xf] %v467
              $region41: #{feed_forward_gaussian_splatting.6} parent=35 // loop_footer
                %s178 = sadd.s32 1, %s174
              $region42: #{feed_forward_gaussian_splatting.6} parent=35 // loop_footer_branch
                %173 = sbr.rel target = $region38
              $region43: #{feed_forward_gaussian_splatting.6} parent=35 // loop_exit
                _
            $region36: #{feed_forward_gaussian_splatting.6} parent=27 // pred_fallthru
              _
          $region28: #{feed_forward_gaussian_splatting.6} parent=23 // pred_fallthru
            _
          %776 = vnop
        $region24: #{feed_forward_gaussian_splatting.6} parent=19 // pred_fallthru
          _
        // Predicated region
        $region62: #{feed_forward_gaussian_splatting.6} parent=19 // pred_check
          %p777 = pneg %p96
        $region63: #{feed_forward_gaussian_splatting.6} parent=19 // pred_check_branch
          %779 = sbr.rel (%p777) target = $region65
        $region64: #{feed_forward_gaussian_splatting.6} parent=19 // pred_region
          %s780 = sand.u32 %s86, 1
          %s781 = scalar_lea.sflag [#allocation4], %s780
          %s782 = sand.u32 %s86, 1
          %s783 = scalar_lea.vmem [#allocation3], %s782
          %s785 = ssub.s32 16, 16
          %786 = vsyncadd %s781, %s785
          %s787 = smul.addr %s20, 16
          %s788 = scalar_lea.hbm %s2, %s787
          %s790 = sshll.u32 %s783, 4
          %s791 = int_to_ptr.vmem [resolvable:$true] %s790
          %793 = dma.hbm_to_vmem [thread:$0]  %s788, 16, %s791, %s781
        $region65: #{feed_forward_gaussian_splatting.6} parent=19 // pred_fallthru
          _
      $region20: #{feed_forward_gaussian_splatting.6} parent=5 // pred_fallthru
        _
      %p794 = scmp.le.s32.totalorder 1, %s12
      %p795 = scmp.lt.s32.totalorder %s12, 3
      %p796 = pnand %p794, %p795
      %p797 = pneg %p796
      // Predicated region
      $region66: #{feed_forward_gaussian_splatting.6} parent=5 // pred_check
        _
      $region67: #{feed_forward_gaussian_splatting.6} parent=5 // pred_check_branch
        %799 = sbr.rel (%p796) target = $region69
      $region68: #{feed_forward_gaussian_splatting.6} parent=5 // pred_region
        %s800 = ssub.s32 %s12, 1
        %s801 = sand.u32 %s63, 1
        %s802 = sand.u32 %s63, 1
        %s803 = smul.addr %s802, 576
        %s804 = scalar_lea.vmem [#allocation2], %s803
        // Predicated region
        $region70: #{feed_forward_gaussian_splatting.6} parent=68 // pred_check
          %p805 = pneg %p76
        $region71: #{feed_forward_gaussian_splatting.6} parent=68 // pred_check_branch
          %807 = sbr.rel (%p805) target = $region73
        $region72: #{feed_forward_gaussian_splatting.6} parent=68 // pred_region
          _
        $region73: #{feed_forward_gaussian_splatting.6} parent=68 // pred_fallthru
          _
        %s808 = sand.u32 %s89, 1
        %s809 = scalar_lea.sflag [#allocation4], %s808
        %s810 = sand.u32 %s89, 1
        %s811 = scalar_lea.vmem [#allocation3], %s810
        // Predicated region
        $region74: #{feed_forward_gaussian_splatting.6} parent=68 // pred_check
          %p812 = pneg %p102
        $region75: #{feed_forward_gaussian_splatting.6} parent=68 // pred_check_branch
          %814 = sbr.rel (%p812) target = $region77
        $region76: #{feed_forward_gaussian_splatting.6} parent=68 // pred_region
          %815 = dma.done %s809, 16
        $region77: #{feed_forward_gaussian_splatting.6} parent=68 // pred_fallthru
          _
        %p816 = scmp.lt.s32.totalorder %s21, 0
        %s817 = scalar_select %p816, %s21, 0
        %s818 = smul.addr %s817, 9
        %s819 = smul.addr %s818, 4
        %s820 = scalar_lea.vmem %s0, %s819
        %p821 = pneg %p50
        %p822 = pneg %p47
        %s823 = sand.u32 %s63, 1
        %s824 = sand.u32 %s63, 1
        %s825 = smul.addr %s824, 576
        %s826 = scalar_lea.vmem [#allocation2], %s825
        %p827 = pneg %p76
        %p828 = pneg %p73
        %s829 = sand.u32 %s89, 1
        %s830 = scalar_lea.sflag [#allocation4], %s829
        %s831 = sand.u32 %s89, 1
        %s832 = scalar_lea.vmem [#allocation3], %s831
        %p833 = pneg %p102
        %p834 = pneg %p99
        %p835 = pneg %p130
        %p836 = pneg %p127
        %p837 = scmp.lt.s32.totalorder %s21, 0
        %s838 = scalar_select %p837, %s21, 0
        %p839 = scmp.lt.s32.totalorder %s22, 1
        %s840 = scalar_select %p839, %s22, 1
        %s841 = smul.addr %s838, 2
        %s842 = sadd.s32 %s840, %s841
        %s843 = smul.addr %s842, 4
        %s844 = scalar_lea.vmem %s3, %s843
        %p845 = scmp.lt.s32.totalorder %s21, 0
        %s846 = scalar_select %p845, %s21, 0
        %s847 = smul.addr %s846, 9
        %s848 = smul.addr %s847, 4
        %s849 = scalar_lea.vmem %s0, %s848
        %p850 = scmp.lt.s32.totalorder %s21, 0
        %s851 = scalar_select %p850, %s21, 0
        %p852 = scmp.lt.s32.totalorder %s22, 1
        %s853 = scalar_select %p852, %s22, 1
        %s854 = smul.addr %s851, 2
        %s855 = sadd.s32 %s853, %s854
        %s856 = smul.addr %s855, 4
        %s857 = scalar_lea.vmem %s3, %s856
        %v859 = vld [vmem:[%s849] sm:$0xff]
        %v860 = vld [vmem:[%s849 + $0x8] sm:$0xff]
        %v861 = vld [vmem:[%s849 + $0x10] sm:$0xff]
        %v862 = vld [vmem:[%s849 + $0x18] sm:$0xff]
        %v863 = vld [vmem:[%s849 + $0x20] sm:$0xf]
        %v864 = vld [vmem:[%s804] sm:$0xf]
        %v865 = vld [vmem:[%s804 + $0x4] sm:$0xf]
        %v866 = vld [vmem:[%s804 + $0x8] sm:$0xf]
        %v867 = vld [vmem:[%s804 + $0xc] sm:$0xf]
        %v868 = vld [vmem:[%s804 + $0x10] sm:$0xf]
        %v869 = vld [vmem:[%s804 + $0x14] sm:$0xf]
        %v870 = vld [vmem:[%s804 + $0x18] sm:$0xf]
        %v871 = vld [vmem:[%s804 + $0x1c] sm:$0xf]
        %v872 = vld [vmem:[%s804 + $0x20] sm:$0xf]
        %v873 = vld [vmem:[%s804 + $0x24] sm:$0xf]
        %v874 = vld [vmem:[%s804 + $0x28] sm:$0xf]
        %v875 = vld [vmem:[%s804 + $0x2c] sm:$0xf]
        %v876 = vld [vmem:[%s804 + $0x30] sm:$0xf]
        %v877 = vld [vmem:[%s804 + $0x34] sm:$0xf]
        %v878 = vld [vmem:[%s804 + $0x38] sm:$0xf]
        %v879 = vld [vmem:[%s804 + $0x3c] sm:$0xf]
        %v880 = vld [vmem:[%s804 + $0x40] sm:$0xf]
        %v881 = vld [vmem:[%s804 + $0x44] sm:$0xf]
        %v882 = vld [vmem:[%s804 + $0x48] sm:$0xf]
        %v883 = vld [vmem:[%s804 + $0x4c] sm:$0xf]
        %v884 = vld [vmem:[%s804 + $0x50] sm:$0xf]
        %v885 = vld [vmem:[%s804 + $0x54] sm:$0xf]
        %v886 = vld [vmem:[%s804 + $0x58] sm:$0xf]
        %v887 = vld [vmem:[%s804 + $0x5c] sm:$0xf]
        %v888 = vld [vmem:[%s804 + $0x60] sm:$0xf]
        %v889 = vld [vmem:[%s804 + $0x64] sm:$0xf]
        %v890 = vld [vmem:[%s804 + $0x68] sm:$0xf]
        %v891 = vld [vmem:[%s804 + $0x6c] sm:$0xf]
        %v892 = vld [vmem:[%s804 + $0x70] sm:$0xf]
        %v893 = vld [vmem:[%s804 + $0x74] sm:$0xf]
        %v894 = vld [vmem:[%s804 + $0x78] sm:$0xf]
        %v895 = vld [vmem:[%s804 + $0x7c] sm:$0xf]
        %v896 = vld [vmem:[%s804 + $0x80] sm:$0xf]
        %v897 = vld [vmem:[%s804 + $0x84] sm:$0xf]
        %v898 = vld [vmem:[%s804 + $0x88] sm:$0xf]
        %v899 = vld [vmem:[%s804 + $0x8c] sm:$0xf]
        %v900 = vld [vmem:[%s804 + $0x90] sm:$0xf]
        %v901 = vld [vmem:[%s804 + $0x94] sm:$0xf]
        %v902 = vld [vmem:[%s804 + $0x98] sm:$0xf]
        %v903 = vld [vmem:[%s804 + $0x9c] sm:$0xf]
        %v904 = vld [vmem:[%s804 + $0xa0] sm:$0xf]
        %v905 = vld [vmem:[%s804 + $0xa4] sm:$0xf]
        %v906 = vld [vmem:[%s804 + $0xa8] sm:$0xf]
        %v907 = vld [vmem:[%s804 + $0xac] sm:$0xf]
        %v908 = vld [vmem:[%s804 + $0xb0] sm:$0xf]
        %v909 = vld [vmem:[%s804 + $0xb4] sm:$0xf]
        %v910 = vld [vmem:[%s804 + $0xb8] sm:$0xf]
        %v911 = vld [vmem:[%s804 + $0xbc] sm:$0xf]
        %v912 = vld [vmem:[%s804 + $0xc0] sm:$0xf]
        %v913 = vld [vmem:[%s804 + $0xc4] sm:$0xf]
        %v914 = vld [vmem:[%s804 + $0xc8] sm:$0xf]
        %v915 = vld [vmem:[%s804 + $0xcc] sm:$0xf]
        %v916 = vld [vmem:[%s804 + $0xd0] sm:$0xf]
        %v917 = vld [vmem:[%s804 + $0xd4] sm:$0xf]
        %v918 = vld [vmem:[%s804 + $0xd8] sm:$0xf]
        %v919 = vld [vmem:[%s804 + $0xdc] sm:$0xf]
        %v920 = vld [vmem:[%s804 + $0xe0] sm:$0xf]
        %v921 = vld [vmem:[%s804 + $0xe4] sm:$0xf]
        %v922 = vld [vmem:[%s804 + $0xe8] sm:$0xf]
        %v923 = vld [vmem:[%s804 + $0xec] sm:$0xf]
        %v924 = vld [vmem:[%s804 + $0xf0] sm:$0xf]
        %v925 = vld [vmem:[%s804 + $0xf4] sm:$0xf]
        %v926 = vld [vmem:[%s804 + $0xf8] sm:$0xf]
        %v927 = vld [vmem:[%s804 + $0xfc] sm:$0xf]
        %v928 = vld [vmem:[%s804 + $0x100] sm:$0xf]
        %v929 = vld [vmem:[%s804 + $0x104] sm:$0xf]
        %v930 = vld [vmem:[%s804 + $0x108] sm:$0xf]
        %v931 = vld [vmem:[%s804 + $0x10c] sm:$0xf]
        %v932 = vld [vmem:[%s804 + $0x110] sm:$0xf]
        %v933 = vld [vmem:[%s804 + $0x114] sm:$0xf]
        %v934 = vld [vmem:[%s804 + $0x118] sm:$0xf]
        %v935 = vld [vmem:[%s804 + $0x11c] sm:$0xf]
        %v936 = vld [vmem:[%s804 + $0x120] sm:$0xf]
        %v937 = vld [vmem:[%s804 + $0x124] sm:$0xf]
        %v938 = vld [vmem:[%s804 + $0x128] sm:$0xf]
        %v939 = vld [vmem:[%s804 + $0x12c] sm:$0xf]
        %v940 = vld [vmem:[%s804 + $0x130] sm:$0xf]
        %v941 = vld [vmem:[%s804 + $0x134] sm:$0xf]
        %v942 = vld [vmem:[%s804 + $0x138] sm:$0xf]
        %v943 = vld [vmem:[%s804 + $0x13c] sm:$0xf]
        %v944 = vld [vmem:[%s804 + $0x140] sm:$0xf]
        %v945 = vld [vmem:[%s804 + $0x144] sm:$0xf]
        %v946 = vld [vmem:[%s804 + $0x148] sm:$0xf]
        %v947 = vld [vmem:[%s804 + $0x14c] sm:$0xf]
        %v948 = vld [vmem:[%s804 + $0x150] sm:$0xf]
        %v949 = vld [vmem:[%s804 + $0x154] sm:$0xf]
        %v950 = vld [vmem:[%s804 + $0x158] sm:$0xf]
        %v951 = vld [vmem:[%s804 + $0x15c] sm:$0xf]
        %v952 = vld [vmem:[%s804 + $0x160] sm:$0xf]
        %v953 = vld [vmem:[%s804 + $0x164] sm:$0xf]
        %v954 = vld [vmem:[%s804 + $0x168] sm:$0xf]
        %v955 = vld [vmem:[%s804 + $0x16c] sm:$0xf]
        %v956 = vld [vmem:[%s804 + $0x170] sm:$0xf]
        %v957 = vld [vmem:[%s804 + $0x174] sm:$0xf]
        %v958 = vld [vmem:[%s804 + $0x178] sm:$0xf]
        %v959 = vld [vmem:[%s804 + $0x17c] sm:$0xf]
        %v960 = vld [vmem:[%s804 + $0x180] sm:$0xf]
        %v961 = vld [vmem:[%s804 + $0x184] sm:$0xf]
        %v962 = vld [vmem:[%s804 + $0x188] sm:$0xf]
        %v963 = vld [vmem:[%s804 + $0x18c] sm:$0xf]
        %v964 = vld [vmem:[%s804 + $0x190] sm:$0xf]
        %v965 = vld [vmem:[%s804 + $0x194] sm:$0xf]
        %v966 = vld [vmem:[%s804 + $0x198] sm:$0xf]
        %v967 = vld [vmem:[%s804 + $0x19c] sm:$0xf]
        %v968 = vld [vmem:[%s804 + $0x1a0] sm:$0xf]
        %v969 = vld [vmem:[%s804 + $0x1a4] sm:$0xf]
        %v970 = vld [vmem:[%s804 + $0x1a8] sm:$0xf]
        %v971 = vld [vmem:[%s804 + $0x1ac] sm:$0xf]
        %v972 = vld [vmem:[%s804 + $0x1b0] sm:$0xf]
        %v973 = vld [vmem:[%s804 + $0x1b4] sm:$0xf]
        %v974 = vld [vmem:[%s804 + $0x1b8] sm:$0xf]
        %v975 = vld [vmem:[%s804 + $0x1bc] sm:$0xf]
        %v976 = vld [vmem:[%s804 + $0x1c0] sm:$0xf]
        %v977 = vld [vmem:[%s804 + $0x1c4] sm:$0xf]
        %v978 = vld [vmem:[%s804 + $0x1c8] sm:$0xf]
        %v979 = vld [vmem:[%s804 + $0x1cc] sm:$0xf]
        %v980 = vld [vmem:[%s804 + $0x1d0] sm:$0xf]
        %v981 = vld [vmem:[%s804 + $0x1d4] sm:$0xf]
        %v982 = vld [vmem:[%s804 + $0x1d8] sm:$0xf]
        %v983 = vld [vmem:[%s804 + $0x1dc] sm:$0xf]
        %v984 = vld [vmem:[%s804 + $0x1e0] sm:$0xf]
        %v985 = vld [vmem:[%s804 + $0x1e4] sm:$0xf]
        %v986 = vld [vmem:[%s804 + $0x1e8] sm:$0xf]
        %v987 = vld [vmem:[%s804 + $0x1ec] sm:$0xf]
        %v988 = vld [vmem:[%s804 + $0x1f0] sm:$0xf]
        %v989 = vld [vmem:[%s804 + $0x1f4] sm:$0xf]
        %v990 = vld [vmem:[%s804 + $0x1f8] sm:$0xf]
        %v991 = vld [vmem:[%s804 + $0x1fc] sm:$0xf]
        %v992 = vld [vmem:[%s804 + $0x200] sm:$0xf]
        %v993 = vld [vmem:[%s804 + $0x204] sm:$0xf]
        %v994 = vld [vmem:[%s804 + $0x208] sm:$0xf]
        %v995 = vld [vmem:[%s804 + $0x20c] sm:$0xf]
        %v996 = vld [vmem:[%s804 + $0x210] sm:$0xf]
        %v997 = vld [vmem:[%s804 + $0x214] sm:$0xf]
        %v998 = vld [vmem:[%s804 + $0x218] sm:$0xf]
        %v999 = vld [vmem:[%s804 + $0x21c] sm:$0xf]
        %v1000 = vld [vmem:[%s804 + $0x220] sm:$0xf]
        %v1001 = vld [vmem:[%s804 + $0x224] sm:$0xf]
        %v1002 = vld [vmem:[%s804 + $0x228] sm:$0xf]
        %v1003 = vld [vmem:[%s804 + $0x22c] sm:$0xf]
        %v1004 = vld [vmem:[%s804 + $0x230] sm:$0xf]
        %v1005 = vld [vmem:[%s804 + $0x234] sm:$0xf]
        %v1006 = vld [vmem:[%s804 + $0x238] sm:$0xf]
        %v1007 = vld [vmem:[%s804 + $0x23c] sm:$0xf]
        %v1008 = vld [vmem:[%s811] sm:$0x1]
        %v1010 = vlaneseq
        %v1011 = vshrl.u32 %v1010, 7
        %v1012 = vsub.s32 0, %v1011
        %v1013 = vrot.slane %v1008, %v1012
        %v1020 = vunpack.c.l.b16 %v859
        %v1021 = vunpack.c.h.b16 %v859
        %v1022 = vunpack.c.l.b16 %v860
        %v1023 = vunpack.c.h.b16 %v860
        %v1024 = vunpack.c.l.b16 %v861
        %v1025 = vunpack.c.h.b16 %v861
        %v1026 = vunpack.c.l.b16 %v862
        %v1027 = vunpack.c.h.b16 %v862
        %v1028 = vunpack.c.l.b16 %v863
        %v1029 = vpack.c.b16 %v1020, %v1020
        %v1030 = vpack.c.b16 %v1021, %v1021
        %v1031 = vpack.c.b16 %v1022, %v1022
        %v1032 = vpack.c.b16 %v1023, %v1023
        %v1033 = vpack.c.b16 %v1024, %v1024
        %v1034 = vpack.c.b16 %v1025, %v1025
        %v1035 = vpack.c.b16 %v1026, %v1026
        %v1036 = vpack.c.b16 %v1027, %v1027
        %v1037 = vpack.c.b16 %v1028, %v1028
        %v1191 = vunpack.c.l.b16 %v864
        %v1192 = vunpack.c.l.b16 %v865
        %v1193 = vunpack.c.l.b16 %v866
        %v1194 = vunpack.c.l.b16 %v867
        %v1195 = vunpack.c.l.b16 %v868
        %v1196 = vunpack.c.l.b16 %v869
        %v1197 = vunpack.c.l.b16 %v870
        %v1198 = vunpack.c.l.b16 %v871
        %v1199 = vunpack.c.l.b16 %v872
        %v1200 = vunpack.c.l.b16 %v873
        %v1201 = vunpack.c.l.b16 %v874
        %v1202 = vunpack.c.l.b16 %v875
        %v1203 = vunpack.c.l.b16 %v876
        %v1204 = vunpack.c.l.b16 %v877
        %v1205 = vunpack.c.l.b16 %v878
        %v1206 = vunpack.c.l.b16 %v879
        %v1207 = vunpack.c.l.b16 %v880
        %v1208 = vunpack.c.l.b16 %v881
        %v1209 = vunpack.c.l.b16 %v882
        %v1210 = vunpack.c.l.b16 %v883
        %v1211 = vunpack.c.l.b16 %v884
        %v1212 = vunpack.c.l.b16 %v885
        %v1213 = vunpack.c.l.b16 %v886
        %v1214 = vunpack.c.l.b16 %v887
        %v1215 = vunpack.c.l.b16 %v888
        %v1216 = vunpack.c.l.b16 %v889
        %v1217 = vunpack.c.l.b16 %v890
        %v1218 = vunpack.c.l.b16 %v891
        %v1219 = vunpack.c.l.b16 %v892
        %v1220 = vunpack.c.l.b16 %v893
        %v1221 = vunpack.c.l.b16 %v894
        %v1222 = vunpack.c.l.b16 %v895
        %v1223 = vunpack.c.l.b16 %v896
        %v1224 = vunpack.c.l.b16 %v897
        %v1225 = vunpack.c.l.b16 %v898
        %v1226 = vunpack.c.l.b16 %v899
        %v1227 = vunpack.c.l.b16 %v900
        %v1228 = vunpack.c.l.b16 %v901
        %v1229 = vunpack.c.l.b16 %v902
        %v1230 = vunpack.c.l.b16 %v903
        %v1231 = vunpack.c.l.b16 %v904
        %v1232 = vunpack.c.l.b16 %v905
        %v1233 = vunpack.c.l.b16 %v906
        %v1234 = vunpack.c.l.b16 %v907
        %v1235 = vunpack.c.l.b16 %v908
        %v1236 = vunpack.c.l.b16 %v909
        %v1237 = vunpack.c.l.b16 %v910
        %v1238 = vunpack.c.l.b16 %v911
        %v1239 = vunpack.c.l.b16 %v912
        %v1240 = vunpack.c.l.b16 %v913
        %v1241 = vunpack.c.l.b16 %v914
        %v1242 = vunpack.c.l.b16 %v915
        %v1243 = vunpack.c.l.b16 %v916
        %v1244 = vunpack.c.l.b16 %v917
        %v1245 = vunpack.c.l.b16 %v918
        %v1246 = vunpack.c.l.b16 %v919
        %v1247 = vunpack.c.l.b16 %v920
        %v1248 = vunpack.c.l.b16 %v921
        %v1249 = vunpack.c.l.b16 %v922
        %v1250 = vunpack.c.l.b16 %v923
        %v1251 = vunpack.c.l.b16 %v924
        %v1252 = vunpack.c.l.b16 %v925
        %v1253 = vunpack.c.l.b16 %v926
        %v1254 = vunpack.c.l.b16 %v927
        %v1255 = vunpack.c.l.b16 %v928
        %v1256 = vunpack.c.l.b16 %v929
        %v1257 = vunpack.c.l.b16 %v930
        %v1258 = vunpack.c.l.b16 %v931
        %v1259 = vunpack.c.l.b16 %v932
        %v1260 = vunpack.c.l.b16 %v933
        %v1261 = vunpack.c.l.b16 %v934
        %v1262 = vunpack.c.l.b16 %v935
        %v1263 = vunpack.c.l.b16 %v936
        %v1264 = vunpack.c.l.b16 %v937
        %v1265 = vunpack.c.l.b16 %v938
        %v1266 = vunpack.c.l.b16 %v939
        %v1267 = vunpack.c.l.b16 %v940
        %v1268 = vunpack.c.l.b16 %v941
        %v1269 = vunpack.c.l.b16 %v942
        %v1270 = vunpack.c.l.b16 %v943
        %v1271 = vunpack.c.l.b16 %v944
        %v1272 = vunpack.c.l.b16 %v945
        %v1273 = vunpack.c.l.b16 %v946
        %v1274 = vunpack.c.l.b16 %v947
        %v1275 = vunpack.c.l.b16 %v948
        %v1276 = vunpack.c.l.b16 %v949
        %v1277 = vunpack.c.l.b16 %v950
        %v1278 = vunpack.c.l.b16 %v951
        %v1279 = vunpack.c.l.b16 %v952
        %v1280 = vunpack.c.l.b16 %v953
        %v1281 = vunpack.c.l.b16 %v954
        %v1282 = vunpack.c.l.b16 %v955
        %v1283 = vunpack.c.l.b16 %v956
        %v1284 = vunpack.c.l.b16 %v957
        %v1285 = vunpack.c.l.b16 %v958
        %v1286 = vunpack.c.l.b16 %v959
        %v1287 = vunpack.c.l.b16 %v960
        %v1288 = vunpack.c.l.b16 %v961
        %v1289 = vunpack.c.l.b16 %v962
        %v1290 = vunpack.c.l.b16 %v963
        %v1291 = vunpack.c.l.b16 %v964
        %v1292 = vunpack.c.l.b16 %v965
        %v1293 = vunpack.c.l.b16 %v966
        %v1294 = vunpack.c.l.b16 %v967
        %v1295 = vunpack.c.l.b16 %v968
        %v1296 = vunpack.c.l.b16 %v969
        %v1297 = vunpack.c.l.b16 %v970
        %v1298 = vunpack.c.l.b16 %v971
        %v1299 = vunpack.c.l.b16 %v972
        %v1300 = vunpack.c.l.b16 %v973
        %v1301 = vunpack.c.l.b16 %v974
        %v1302 = vunpack.c.l.b16 %v975
        %v1303 = vunpack.c.l.b16 %v976
        %v1304 = vunpack.c.l.b16 %v977
        %v1305 = vunpack.c.l.b16 %v978
        %v1306 = vunpack.c.l.b16 %v979
        %v1307 = vunpack.c.l.b16 %v980
        %v1308 = vunpack.c.l.b16 %v981
        %v1309 = vunpack.c.l.b16 %v982
        %v1310 = vunpack.c.l.b16 %v983
        %v1311 = vunpack.c.l.b16 %v984
        %v1312 = vunpack.c.l.b16 %v985
        %v1313 = vunpack.c.l.b16 %v986
        %v1314 = vunpack.c.l.b16 %v987
        %v1315 = vunpack.c.l.b16 %v988
        %v1316 = vunpack.c.l.b16 %v989
        %v1317 = vunpack.c.l.b16 %v990
        %v1318 = vunpack.c.l.b16 %v991
        %v1319 = vunpack.c.l.b16 %v992
        %v1320 = vunpack.c.l.b16 %v993
        %v1321 = vunpack.c.l.b16 %v994
        %v1322 = vunpack.c.l.b16 %v995
        %v1323 = vunpack.c.l.b16 %v996
        %v1324 = vunpack.c.l.b16 %v997
        %v1325 = vunpack.c.l.b16 %v998
        %v1326 = vunpack.c.l.b16 %v999
        %v1327 = vunpack.c.l.b16 %v1000
        %v1328 = vunpack.c.l.b16 %v1001
        %v1329 = vunpack.c.l.b16 %v1002
        %v1330 = vunpack.c.l.b16 %v1003
        %v1331 = vunpack.c.l.b16 %v1004
        %v1332 = vunpack.c.l.b16 %v1005
        %v1333 = vunpack.c.l.b16 %v1006
        %v1334 = vunpack.c.l.b16 %v1007
        %v1335 = vpack.c.b16 %v1192, %v1191
        %v1336 = vpack.c.b16 %v1194, %v1193
        %v1337 = vpack.c.b16 %v1196, %v1195
        %v1338 = vpack.c.b16 %v1198, %v1197
        %v1339 = vpack.c.b16 %v1200, %v1199
        %v1340 = vpack.c.b16 %v1202, %v1201
        %v1341 = vpack.c.b16 %v1204, %v1203
        %v1342 = vpack.c.b16 %v1206, %v1205
        %v1343 = vpack.c.b16 %v1208, %v1207
        %v1344 = vpack.c.b16 %v1210, %v1209
        %v1345 = vpack.c.b16 %v1212, %v1211
        %v1346 = vpack.c.b16 %v1214, %v1213
        %v1347 = vpack.c.b16 %v1216, %v1215
        %v1348 = vpack.c.b16 %v1218, %v1217
        %v1349 = vpack.c.b16 %v1220, %v1219
        %v1350 = vpack.c.b16 %v1222, %v1221
        %v1351 = vpack.c.b16 %v1224, %v1223
        %v1352 = vpack.c.b16 %v1226, %v1225
        %v1353 = vpack.c.b16 %v1228, %v1227
        %v1354 = vpack.c.b16 %v1230, %v1229
        %v1355 = vpack.c.b16 %v1232, %v1231
        %v1356 = vpack.c.b16 %v1234, %v1233
        %v1357 = vpack.c.b16 %v1236, %v1235
        %v1358 = vpack.c.b16 %v1238, %v1237
        %v1359 = vpack.c.b16 %v1240, %v1239
        %v1360 = vpack.c.b16 %v1242, %v1241
        %v1361 = vpack.c.b16 %v1244, %v1243
        %v1362 = vpack.c.b16 %v1246, %v1245
        %v1363 = vpack.c.b16 %v1248, %v1247
        %v1364 = vpack.c.b16 %v1250, %v1249
        %v1365 = vpack.c.b16 %v1252, %v1251
        %v1366 = vpack.c.b16 %v1254, %v1253
        %v1367 = vpack.c.b16 %v1256, %v1255
        %v1368 = vpack.c.b16 %v1258, %v1257
        %v1369 = vpack.c.b16 %v1260, %v1259
        %v1370 = vpack.c.b16 %v1262, %v1261
        %v1371 = vpack.c.b16 %v1264, %v1263
        %v1372 = vpack.c.b16 %v1266, %v1265
        %v1373 = vpack.c.b16 %v1268, %v1267
        %v1374 = vpack.c.b16 %v1270, %v1269
        %v1375 = vpack.c.b16 %v1272, %v1271
        %v1376 = vpack.c.b16 %v1274, %v1273
        %v1377 = vpack.c.b16 %v1276, %v1275
        %v1378 = vpack.c.b16 %v1278, %v1277
        %v1379 = vpack.c.b16 %v1280, %v1279
        %v1380 = vpack.c.b16 %v1282, %v1281
        %v1381 = vpack.c.b16 %v1284, %v1283
        %v1382 = vpack.c.b16 %v1286, %v1285
        %v1383 = vpack.c.b16 %v1288, %v1287
        %v1384 = vpack.c.b16 %v1290, %v1289
        %v1385 = vpack.c.b16 %v1292, %v1291
        %v1386 = vpack.c.b16 %v1294, %v1293
        %v1387 = vpack.c.b16 %v1296, %v1295
        %v1388 = vpack.c.b16 %v1298, %v1297
        %v1389 = vpack.c.b16 %v1300, %v1299
        %v1390 = vpack.c.b16 %v1302, %v1301
        %v1391 = vpack.c.b16 %v1304, %v1303
        %v1392 = vpack.c.b16 %v1306, %v1305
        %v1393 = vpack.c.b16 %v1308, %v1307
        %v1394 = vpack.c.b16 %v1310, %v1309
        %v1395 = vpack.c.b16 %v1312, %v1311
        %v1396 = vpack.c.b16 %v1314, %v1313
        %v1397 = vpack.c.b16 %v1316, %v1315
        %v1398 = vpack.c.b16 %v1318, %v1317
        %v1399 = vpack.c.b16 %v1320, %v1319
        %v1400 = vpack.c.b16 %v1322, %v1321
        %v1401 = vpack.c.b16 %v1324, %v1323
        %v1402 = vpack.c.b16 %v1326, %v1325
        %v1403 = vpack.c.b16 %v1328, %v1327
        %v1404 = vpack.c.b16 %v1330, %v1329
        %v1405 = vpack.c.b16 %v1332, %v1331
        %v1406 = vpack.c.b16 %v1334, %v1333
        %1479 = vmatprep.subr.bf16.mxu0 0
        %1480 = vmatpush1.bf16.msra.mxu0 %v1335
        %1481 = vmatprep.subr.bf16.mxu0 0
        %1482 = vmatpush1.bf16.msra.mxu0 %v1336
        %1483 = vmatprep.subr.bf16.mxu0 0
        %1484 = vmatpush1.bf16.msra.mxu0 %v1337
        %1485 = vmatprep.subr.bf16.mxu0 0
        %1486 = vmatpush1.bf16.msra.mxu0 %v1338
        %1487 = vmatprep.subr.bf16.mxu0 0
        %1488 = vmatpush1.bf16.msra.mxu0 %v1339
        %1489 = vmatprep.subr.bf16.mxu0 0
        %1490 = vmatpush1.bf16.msra.mxu0 %v1340
        %1491 = vmatprep.subr.bf16.mxu0 0
        %1492 = vmatpush1.bf16.msra.mxu0 %v1341
        %1493 = vmatprep.subr.bf16.mxu0 0
        %1494 = vmatpush1.bf16.msra.mxu0 %v1342
        %1495 = vmatprep.subr.bf16.mxu0 0
        %1496 = vmatpush1.bf16.msra.mxu0 %v1343
        %1497 = vmatprep.subr.bf16.mxu0 0
        %1498 = vmatpush1.bf16.msra.mxu0 %v1344
        %1499 = vmatprep.subr.bf16.mxu0 0
        %1500 = vmatpush1.bf16.msra.mxu0 %v1345
        %1501 = vmatprep.subr.bf16.mxu0 0
        %1502 = vmatpush1.bf16.msra.mxu0 %v1346
        %1503 = vmatprep.subr.bf16.mxu0 0
        %1504 = vmatpush1.bf16.msra.mxu0 %v1347
        %1505 = vmatprep.subr.bf16.mxu0 0
        %1506 = vmatpush1.bf16.msra.mxu0 %v1348
        %1507 = vmatprep.subr.bf16.mxu0 0
        %1508 = vmatpush1.bf16.msra.mxu0 %v1349
        %1509 = vmatprep.subr.bf16.mxu0 0
        %1510 = vmatpush1.bf16.msra.mxu0 %v1350
        %1511 = vmatprep.mubr.bf16.mxu0 %v1030
        %1512 = vmatmul.mubr.bf16.gmra.mrb[0].mxu0 %v1029
        %v1513 = vpop.f32.mrb[0].mxu0
        %v1514 = vadd.f32 %v1013, %v1513
        %v1515 = vpop.f32.mrb[0].mxu0
        %v1516 = vpop.f32.mrb[0].mxu0
        %v1517 = vpop.f32.mrb[0].mxu0
        %1518 = vdwg.mxu0
        %1519 = vmatprep.subr.bf16.mxu0 0
        %1520 = vmatpush1.bf16.msra.mxu0 %v1351
        %1521 = vmatprep.subr.bf16.mxu0 0
        %1522 = vmatpush1.bf16.msra.mxu0 %v1352
        %1523 = vmatprep.subr.bf16.mxu0 0
        %1524 = vmatpush1.bf16.msra.mxu0 %v1353
        %1525 = vmatprep.subr.bf16.mxu0 0
        %1526 = vmatpush1.bf16.msra.mxu0 %v1354
        %1527 = vmatprep.subr.bf16.mxu0 0
        %1528 = vmatpush1.bf16.msra.mxu0 %v1355
        %1529 = vmatprep.subr.bf16.mxu0 0
        %1530 = vmatpush1.bf16.msra.mxu0 %v1356
        %1531 = vmatprep.subr.bf16.mxu0 0
        %1532 = vmatpush1.bf16.msra.mxu0 %v1357
        %1533 = vmatprep.subr.bf16.mxu0 0
        %1534 = vmatpush1.bf16.msra.mxu0 %v1358
        %1535 = vmatprep.subr.bf16.mxu0 0
        %1536 = vmatpush1.bf16.msra.mxu0 %v1359
        %1537 = vmatprep.subr.bf16.mxu0 0
        %1538 = vmatpush1.bf16.msra.mxu0 %v1360
        %1539 = vmatprep.subr.bf16.mxu0 0
        %1540 = vmatpush1.bf16.msra.mxu0 %v1361
        %1541 = vmatprep.subr.bf16.mxu0 0
        %1542 = vmatpush1.bf16.msra.mxu0 %v1362
        %1543 = vmatprep.subr.bf16.mxu0 0
        %1544 = vmatpush1.bf16.msra.mxu0 %v1363
        %1545 = vmatprep.subr.bf16.mxu0 0
        %1546 = vmatpush1.bf16.msra.mxu0 %v1364
        %1547 = vmatprep.subr.bf16.mxu0 0
        %1548 = vmatpush1.bf16.msra.mxu0 %v1365
        %1549 = vmatprep.subr.bf16.mxu0 0
        %1550 = vmatpush1.bf16.msra.mxu0 %v1366
        %1551 = vmatprep.mubr.bf16.mxu0 %v1032
        %1552 = vmatmul.mubr.bf16.gmra.mrb[0].mxu0 %v1031
        %v1553 = vpop.f32.mrb[0].mxu0
        %v1554 = vadd.f32 %v1514, %v1553
        %v1555 = vpop.f32.mrb[0].mxu0
        %v1556 = vpop.f32.mrb[0].mxu0
        %v1557 = vpop.f32.mrb[0].mxu0
        %1558 = vdwg.mxu0
        %1559 = vmatprep.subr.bf16.mxu0 0
        %1560 = vmatpush1.bf16.msra.mxu0 %v1367
        %1561 = vmatprep.subr.bf16.mxu0 0
        %1562 = vmatpush1.bf16.msra.mxu0 %v1368
        %1563 = vmatprep.subr.bf16.mxu0 0
        %1564 = vmatpush1.bf16.msra.mxu0 %v1369
        %1565 = vmatprep.subr.bf16.mxu0 0
        %1566 = vmatpush1.bf16.msra.mxu0 %v1370
        %1567 = vmatprep.subr.bf16.mxu0 0
        %1568 = vmatpush1.bf16.msra.mxu0 %v1371
        %1569 = vmatprep.subr.bf16.mxu0 0
        %1570 = vmatpush1.bf16.msra.mxu0 %v1372
        %1571 = vmatprep.subr.bf16.mxu0 0
        %1572 = vmatpush1.bf16.msra.mxu0 %v1373
        %1573 = vmatprep.subr.bf16.mxu0 0
        %1574 = vmatpush1.bf16.msra.mxu0 %v1374
        %1575 = vmatprep.subr.bf16.mxu0 0
        %1576 = vmatpush1.bf16.msra.mxu0 %v1375
        %1577 = vmatprep.subr.bf16.mxu0 0
        %1578 = vmatpush1.bf16.msra.mxu0 %v1376
        %1579 = vmatprep.subr.bf16.mxu0 0
        %1580 = vmatpush1.bf16.msra.mxu0 %v1377
        %1581 = vmatprep.subr.bf16.mxu0 0
        %1582 = vmatpush1.bf16.msra.mxu0 %v1378
        %1583 = vmatprep.subr.bf16.mxu0 0
        %1584 = vmatpush1.bf16.msra.mxu0 %v1379
        %1585 = vmatprep.subr.bf16.mxu0 0
        %1586 = vmatpush1.bf16.msra.mxu0 %v1380
        %1587 = vmatprep.subr.bf16.mxu0 0
        %1588 = vmatpush1.bf16.msra.mxu0 %v1381
        %1589 = vmatprep.subr.bf16.mxu0 0
        %1590 = vmatpush1.bf16.msra.mxu0 %v1382
        %1591 = vmatprep.mubr.bf16.mxu0 %v1034
        %1592 = vmatmul.mubr.bf16.gmra.mrb[0].mxu0 %v1033
        %v1593 = vpop.f32.mrb[0].mxu0
        %v1594 = vadd.f32 %v1554, %v1593
        %v1595 = vpop.f32.mrb[0].mxu0
        %v1596 = vpop.f32.mrb[0].mxu0
        %v1597 = vpop.f32.mrb[0].mxu0
        %1598 = vdwg.mxu0
        %1599 = vmatprep.subr.bf16.mxu0 0
        %1600 = vmatpush1.bf16.msra.mxu0 %v1383
        %1601 = vmatprep.subr.bf16.mxu0 0
        %1602 = vmatpush1.bf16.msra.mxu0 %v1384
        %1603 = vmatprep.subr.bf16.mxu0 0
        %1604 = vmatpush1.bf16.msra.mxu0 %v1385
        %1605 = vmatprep.subr.bf16.mxu0 0
        %1606 = vmatpush1.bf16.msra.mxu0 %v1386
        %1607 = vmatprep.subr.bf16.mxu0 0
        %1608 = vmatpush1.bf16.msra.mxu0 %v1387
        %1609 = vmatprep.subr.bf16.mxu0 0
        %1610 = vmatpush1.bf16.msra.mxu0 %v1388
        %1611 = vmatprep.subr.bf16.mxu0 0
        %1612 = vmatpush1.bf16.msra.mxu0 %v1389
        %1613 = vmatprep.subr.bf16.mxu0 0
        %1614 = vmatpush1.bf16.msra.mxu0 %v1390
        %1615 = vmatprep.subr.bf16.mxu0 0
        %1616 = vmatpush1.bf16.msra.mxu0 %v1391
        %1617 = vmatprep.subr.bf16.mxu0 0
        %1618 = vmatpush1.bf16.msra.mxu0 %v1392
        %1619 = vmatprep.subr.bf16.mxu0 0
        %1620 = vmatpush1.bf16.msra.mxu0 %v1393
        %1621 = vmatprep.subr.bf16.mxu0 0
        %1622 = vmatpush1.bf16.msra.mxu0 %v1394
        %1623 = vmatprep.subr.bf16.mxu0 0
        %1624 = vmatpush1.bf16.msra.mxu0 %v1395
        %1625 = vmatprep.subr.bf16.mxu0 0
        %1626 = vmatpush1.bf16.msra.mxu0 %v1396
        %1627 = vmatprep.subr.bf16.mxu0 0
        %1628 = vmatpush1.bf16.msra.mxu0 %v1397
        %1629 = vmatprep.subr.bf16.mxu0 0
        %1630 = vmatpush1.bf16.msra.mxu0 %v1398
        %1631 = vmatprep.mubr.bf16.mxu0 %v1036
        %1632 = vmatmul.mubr.bf16.gmra.mrb[0].mxu0 %v1035
        %v1633 = vpop.f32.mrb[0].mxu0
        %v1634 = vadd.f32 %v1594, %v1633
        %v1635 = vpop.f32.mrb[0].mxu0
        %v1636 = vpop.f32.mrb[0].mxu0
        %v1637 = vpop.f32.mrb[0].mxu0
        %1638 = vdwg.mxu0
        %1639 = vmatprep.subr.bf16.mxu0 0
        %1640 = vmatpush1.bf16.msra.mxu0 %v1399
        %1641 = vmatprep.subr.bf16.mxu0 0
        %1642 = vmatpush1.bf16.msra.mxu0 %v1400
        %1643 = vmatprep.subr.bf16.mxu0 0
        %1644 = vmatpush1.bf16.msra.mxu0 %v1401
        %1645 = vmatprep.subr.bf16.mxu0 0
        %1646 = vmatpush1.bf16.msra.mxu0 %v1402
        %1647 = vmatprep.subr.bf16.mxu0 0
        %1648 = vmatpush1.bf16.msra.mxu0 %v1403
        %1649 = vmatprep.subr.bf16.mxu0 0
        %1650 = vmatpush1.bf16.msra.mxu0 %v1404
        %1651 = vmatprep.subr.bf16.mxu0 0
        %1652 = vmatpush1.bf16.msra.mxu0 %v1405
        %1653 = vmatprep.subr.bf16.mxu0 0
        %1654 = vmatpush1.bf16.msra.mxu0 %v1406
        %1655 = vmatprep.subr.bf16.mxu0 0
        %1656 = vmatpush1.bf16.msra.mxu0 0
        %1657 = vmatprep.subr.bf16.mxu0 0
        %1658 = vmatpush1.bf16.msra.mxu0 0
        %1659 = vmatprep.subr.bf16.mxu0 0
        %1660 = vmatpush1.bf16.msra.mxu0 0
        %1661 = vmatprep.subr.bf16.mxu0 0
        %1662 = vmatpush1.bf16.msra.mxu0 0
        %1663 = vmatprep.subr.bf16.mxu0 0
        %1664 = vmatpush1.bf16.msra.mxu0 0
        %1665 = vmatprep.subr.bf16.mxu0 0
        %1666 = vmatpush1.bf16.msra.mxu0 0
        %1667 = vmatprep.subr.bf16.mxu0 0
        %1668 = vmatpush1.bf16.msra.mxu0 0
        %1669 = vmatprep.subr.bf16.mxu0 0
        %1670 = vmatpush1.bf16.msra.mxu0 0
        %1671 = vmatprep.mubr.bf16.mxu0 0
        %1672 = vmatmul.mubr.bf16.gmra.mrb[0].mxu0 %v1037
        %v1673 = vpop.f32.mrb[0].mxu0
        %v1674 = vadd.f32 %v1634, %v1673
        %v1675 = vpop.f32.mrb[0].mxu0
        %v1676 = vpop.f32.mrb[0].mxu0
        %v1677 = vpop.f32.mrb[0].mxu0
        %1678 = vdwg.mxu0
        %v1679 = vmax.f32 %v1674, 0.0
        %v1680 = vpack.c.bf16 %v1679, %v1679
        %1681 = vst [vmem:[%s857] sm:$0xf] %v1680
        %p1682 = scmp.lt.s32.totalorder %s21, 0
        %s1683 = scalar_select %p1682, %s21, 0
        %p1684 = scmp.lt.s32.totalorder %s22, 1
        %s1685 = scalar_select %p1684, %s22, 1
        %s1686 = smul.addr %s1683, 2
        %s1687 = sadd.s32 %s1685, %s1686
        %s1688 = smul.addr %s1687, 4
        %s1689 = scalar_lea.vmem %s3, %s1688
        // Predicated region
        $region78: #{feed_forward_gaussian_splatting.6} parent=68 // pred_check
          %p1690 = pneg %p127
        $region79: #{feed_forward_gaussian_splatting.6} parent=68 // pred_check_branch
          %1692 = sbr.rel (%p1690) target = $region81
        $region80: #{feed_forward_gaussian_splatting.6} parent=68 // pred_region
          _
        $region81: #{feed_forward_gaussian_splatting.6} parent=68 // pred_fallthru
          _
      $region69: #{feed_forward_gaussian_splatting.6} parent=5 // pred_fallthru
        _
      %p1693 = scmp.le.s32.totalorder 2, %s12
      // Predicated region
      $region82: #{feed_forward_gaussian_splatting.6} parent=5 // pred_check
        %p1694 = pneg %p1693
      $region83: #{feed_forward_gaussian_splatting.6} parent=5 // pred_check_branch
        %1696 = sbr.rel (%p1694) target = $region85
      $region84: #{feed_forward_gaussian_splatting.6} parent=5 // pred_region
        %s1697 = ssub.s32 %s12, 2
        // Predicated region
        $region86: #{feed_forward_gaussian_splatting.6} parent=84 // pred_check
          %p1698 = pneg %p133
        $region87: #{feed_forward_gaussian_splatting.6} parent=84 // pred_check_branch
          %1700 = sbr.rel (%p1698) target = $region89
        $region88: #{feed_forward_gaussian_splatting.6} parent=84 // pred_region
          %p1701 = scmp.lt.s32.totalorder %s23, 0
          %s1702 = scalar_select %p1701, %s23, 0
          %p1703 = scmp.lt.s32.totalorder %s24, 1
          %s1704 = scalar_select %p1703, %s24, 1
          %s1705 = smul.addr %s1702, 2
          %s1706 = sadd.s32 %s1704, %s1705
          %s1707 = smul.addr %s1706, 4
          %s1708 = scalar_lea.vmem %s3, %s1707
        $region89: #{feed_forward_gaussian_splatting.6} parent=84 // pred_fallthru
          _
      $region85: #{feed_forward_gaussian_splatting.6} parent=5 // pred_fallthru
        _
    $region6: #{feed_forward_gaussian_splatting.6} parent=1 // loop_footer
      %s16 = sadd.s32 1, %s12
    $region7: #{feed_forward_gaussian_splatting.6} parent=1 // loop_footer_branch
      %11 = sbr.rel target = $region3
    $region8: #{feed_forward_gaussian_splatting.6} parent=1 // loop_exit
      _
    %1709 = vsyncpa [#allocation4], 1
    %s1710 = scalar_lea.sflag [#allocation4], 1
    %1711 = vsyncpa %s1710, 1

// kernel: feed_forward_gaussian_splatting.7
$region0: #{feed_forward_gaussian_splatting.7}
  #allocation0 [shape = 'u32[]', space=smem, size = 0x4, offset = 0x4, fixed_abs, tag = 'smem constant byte address 0x4 - core index']
  #allocation1 [shape = 'u32[144,128]{1,0:T(1,128)}', space=vmem, size = 0x12000, scoped, tag = 'internal scratch']
  %s0 = inlined_call_operand.vmem [shape: bf16[2,2304], index: 0, kind: input, shape index: {}]
  %s1 = inlined_call_operand.vmem [shape: bf16[2304,512], index: 1, kind: input, shape index: {}]
  %s2 = inlined_call_operand.vmem [shape: f32[1,512], index: 2, kind: input, shape index: {}]
  %s3 = inlined_call_operand.vmem [shape: bf16[512,32], index: 3, kind: input, shape index: {}]
  %s4 = inlined_call_operand.vmem [shape: f32[1,32], index: 4, kind: input, shape index: {}]
  %s5 = inlined_call_operand.hbm [shape: bf16[32,3072], index: 5, kind: input, shape index: {}]
  %s6 = inlined_call_operand.vmem [shape: f32[1,3072], index: 6, kind: input, shape index: {}]
  %s7 = inlined_call_operand.hbm [shape: bf16[512,1408], index: 7, kind: input, shape index: {}]
  %s8 = inlined_call_operand.vmem [shape: f32[1,1408], index: 8, kind: input, shape index: {}]
  %s9 = inlined_call_operand.vmem [shape: f32[2,1408], index: 9, kind: output, shape index: {}]
  %s10 = sld [smem:[#allocation0]]
  $region54: #{feed_forward_gaussian_splatting.7} parent=0
    _
  %s12 = ssub.s32 1, %s10
  %s13 = scalar_select 0, %s12, %s10
  $region1: #{feed_forward_gaussian_splatting.7} parent=0
    #allocation2 [shape = 'u8[196608]{0}', space=vmem, size = 0x30000, scoped, tag = 'input window, operand 5, single buffered']
    #allocation3 [shape = 's32[1]{0}', space=sflag, size = 0x4, scoped, tag = 'scoped memory for feed_forward_gaussian_splatting.7']
    #allocation4 [shape = 'u8[1441792]{0}', space=vmem, size = 0x160000, scoped, tag = 'input window, operand 7, single buffered']
    #allocation5 [shape = 's32[1]{0}', space=sflag, size = 0x4, scoped, tag = 'scoped memory for feed_forward_gaussian_splatting.7']
    %14 = vsyncpa [#allocation3], 0
    %15 = vsyncpa [#allocation5], 0
    // Predicated region
    $region2: #{feed_forward_gaussian_splatting.7} parent=1 // pred_check
      _
    $region3: #{feed_forward_gaussian_splatting.7} parent=1 // pred_check_branch
      %17 = sbr.rel (0) target = $region5
    $region4: #{feed_forward_gaussian_splatting.7} parent=1 // pred_region
      _
    $region5: #{feed_forward_gaussian_splatting.7} parent=1 // pred_fallthru
      _
    // Predicated region
    $region6: #{feed_forward_gaussian_splatting.7} parent=1 // pred_check
      _
    $region7: #{feed_forward_gaussian_splatting.7} parent=1 // pred_check_branch
      %19 = sbr.rel (0) target = $region9
    $region8: #{feed_forward_gaussian_splatting.7} parent=1 // pred_region
      _
    $region9: #{feed_forward_gaussian_splatting.7} parent=1 // pred_fallthru
      _
    // Predicated region
    $region10: #{feed_forward_gaussian_splatting.7} parent=1 // pred_check
      _
    $region11: #{feed_forward_gaussian_splatting.7} parent=1 // pred_check_branch
      %21 = sbr.rel (0) target = $region13
    $region12: #{feed_forward_gaussian_splatting.7} parent=1 // pred_region
      _
    $region13: #{feed_forward_gaussian_splatting.7} parent=1 // pred_fallthru
      _
    // Predicated region
    $region14: #{feed_forward_gaussian_splatting.7} parent=1 // pred_check
      _
    $region15: #{feed_forward_gaussian_splatting.7} parent=1 // pred_check_branch
      %23 = sbr.rel (0) target = $region17
    $region16: #{feed_forward_gaussian_splatting.7} parent=1 // pred_region
      _
    $region17: #{feed_forward_gaussian_splatting.7} parent=1 // pred_fallthru
      _
    // Predicated region
    $region18: #{feed_forward_gaussian_splatting.7} parent=1 // pred_check
      _
    $region19: #{feed_forward_gaussian_splatting.7} parent=1 // pred_check_branch
      %25 = sbr.rel (0) target = $region21
    $region20: #{feed_forward_gaussian_splatting.7} parent=1 // pred_region
      _
    $region21: #{feed_forward_gaussian_splatting.7} parent=1 // pred_fallthru
      _
    // Predicated region
    $region22: #{feed_forward_gaussian_splatting.7} parent=1 // pred_check
      _
    $region23: #{feed_forward_gaussian_splatting.7} parent=1 // pred_check_branch
      %27 = sbr.rel (0) target = $region25
    $region24: #{feed_forward_gaussian_splatting.7} parent=1 // pred_region
      %s29 = ssub.s32 6144, 6144
      %30 = vsyncadd [#allocation3], %s29
      %s31 = sshll.u32 [#allocation2], 4
      %s32 = int_to_ptr.vmem [resolvable:$true] %s31
      %37 = dma.hbm_to_vmem [thread:$0]  %s5, 6144, %s32, [#allocation3], 1536, 1536, 96
    $region25: #{feed_forward_gaussian_splatting.7} parent=1 // pred_fallthru
      _
    // Predicated region
    $region26: #{feed_forward_gaussian_splatting.7} parent=1 // pred_check
      _
    $region27: #{feed_forward_gaussian_splatting.7} parent=1 // pred_check_branch
      %39 = sbr.rel (0) target = $region29
    $region28: #{feed_forward_gaussian_splatting.7} parent=1 // pred_region
      _
    $region29: #{feed_forward_gaussian_splatting.7} parent=1 // pred_fallthru
      _
    // Predicated region
    $region30: #{feed_forward_gaussian_splatting.7} parent=1 // pred_check
      _
    $region31: #{feed_forward_gaussian_splatting.7} parent=1 // pred_check_branch
      %41 = sbr.rel (0) target = $region33
    $region32: #{feed_forward_gaussian_splatting.7} parent=1 // pred_region
      %s43 = ssub.s32 45056, 45056
      %44 = vsyncadd [#allocation5], %s43
      %s45 = sshll.u32 [#allocation4], 4
      %s46 = int_to_ptr.vmem [resolvable:$true] %s45
      %51 = dma.hbm_to_vmem [thread:$0]  %s7, 45056, %s46, [#allocation5], 704, 704, 44
    $region33: #{feed_forward_gaussian_splatting.7} parent=1 // pred_fallthru
      _
    // Predicated region
    $region34: #{feed_forward_gaussian_splatting.7} parent=1 // pred_check
      _
    $region35: #{feed_forward_gaussian_splatting.7} parent=1 // pred_check_branch
      %53 = sbr.rel (0) target = $region37
    $region36: #{feed_forward_gaussian_splatting.7} parent=1 // pred_region
      _
    $region37: #{feed_forward_gaussian_splatting.7} parent=1 // pred_fallthru
      _
    // Predicated region
    $region38: #{feed_forward_gaussian_splatting.7} parent=1 // pred_check
      _
    $region39: #{feed_forward_gaussian_splatting.7} parent=1 // pred_check_branch
      %55 = sbr.rel (0) target = $region41
    $region40: #{feed_forward_gaussian_splatting.7} parent=1 // pred_region
      %56 = dma.done [#allocation3], 6144
    $region41: #{feed_forward_gaussian_splatting.7} parent=1 // pred_fallthru
      _
    // Predicated region
    $region42: #{feed_forward_gaussian_splatting.7} parent=1 // pred_check
      _
    $region43: #{feed_forward_gaussian_splatting.7} parent=1 // pred_check_branch
      %58 = sbr.rel (0) target = $region45
    $region44: #{feed_forward_gaussian_splatting.7} parent=1 // pred_region
      %59 = dma.done [#allocation5], 45056
    $region45: #{feed_forward_gaussian_splatting.7} parent=1 // pred_fallthru
      _
    %v61 = vld [vmem:[%s0] sm:$0xff]
    %v62 = vld [vmem:[%s0 + $0x8] sm:$0xff]
    %v63 = vld [vmem:[%s0 + $0x10] sm:$0x3]
    %v64 = vld [vmem:[%s1] sm:$0xff]
    %v65 = vld [vmem:[%s1 + $0x8] sm:$0xff]
    %v66 = vld [vmem:[%s1 + $0x10] sm:$0xff]
    %v67 = vld [vmem:[%s1 + $0x18] sm:$0xff]
    %v68 = vld [vmem:[%s1 + $0x20] sm:$0xff]
    %v69 = vld [vmem:[%s1 + $0x28] sm:$0xff]
    %v70 = vld [vmem:[%s1 + $0x30] sm:$0xff]
    %v71 = vld [vmem:[%s1 + $0x38] sm:$0xff]
    %v72 = vld [vmem:[%s1 + $0x40] sm:$0xff]
    %v73 = vld [vmem:[%s1 + $0x48] sm:$0xff]
    %v74 = vld [vmem:[%s1 + $0x50] sm:$0xff]
    %v75 = vld [vmem:[%s1 + $0x58] sm:$0xff]
    %v76 = vld [vmem:[%s1 + $0x60] sm:$0xff]
    %v77 = vld [vmem:[%s1 + $0x68] sm:$0xff]
    %v78 = vld [vmem:[%s1 + $0x70] sm:$0xff]
    %v79 = vld [vmem:[%s1 + $0x78] sm:$0xff]
    %v80 = vld [vmem:[%s1 + $0x80] sm:$0xff]
    %v81 = vld [vmem:[%s1 + $0x88] sm:$0xff]
    %v82 = vld [vmem:[%s1 + $0x90] sm:$0xff]
    %v83 = vld [vmem:[%s1 + $0x98] sm:$0xff]
    %v84 = vld [vmem:[%s1 + $0xa0] sm:$0xff]
    %v85 = vld [vmem:[%s1 + $0xa8] sm:$0xff]
    %v86 = vld [vmem:[%s1 + $0xb0] sm:$0xff]
    %v87 = vld [vmem:[%s1 + $0xb8] sm:$0xff]
    %v88 = vld [vmem:[%s1 + $0xc0] sm:$0xff]
    %v89 = vld [vmem:[%s1 + $0xc8] sm:$0xff]
    %v90 = vld [vmem:[%s1 + $0xd0] sm:$0xff]
    %v91 = vld [vmem:[%s1 + $0xd8] sm:$0xff]
    %v92 = vld [vmem:[%s1 + $0xe0] sm:$0xff]
    %v93 = vld [vmem:[%s1 + $0xe8] sm:$0xff]
    %v94 = vld [vmem:[%s1 + $0xf0] sm:$0xff]
    %v95 = vld [vmem:[%s1 + $0xf8] sm:$0xff]
    %v96 = vld [vmem:[%s1 + $0x100] sm:$0xff]
    %v97 = vld [vmem:[%s1 + $0x108] sm:$0xff]
    %v98 = vld [vmem:[%s1 + $0x110] sm:$0xff]
    %v99 = vld [vmem:[%s1 + $0x118] sm:$0xff]
    %v100 = vld [vmem:[%s1 + $0x120] sm:$0xff]
    %v101 = vld [vmem:[%s1 + $0x128] sm:$0xff]
    %v102 = vld [vmem:[%s1 + $0x130] sm:$0xff]
    %v103 = vld [vmem:[%s1 + $0x138] sm:$0xff]
    %v104 = vld [vmem:[%s1 + $0x140] sm:$0xff]
    %v105 = vld [vmem:[%s1 + $0x148] sm:$0xff]
    %v106 = vld [vmem:[%s1 + $0x150] sm:$0xff]
    %v107 = vld [vmem:[%s1 + $0x158] sm:$0xff]
    %v108 = vld [vmem:[%s1 + $0x160] sm:$0xff]
    %v109 = vld [vmem:[%s1 + $0x168] sm:$0xff]
    %v110 = vld [vmem:[%s1 + $0x170] sm:$0xff]
    %v111 = vld [vmem:[%s1 + $0x178] sm:$0xff]
    %v112 = vld [vmem:[%s1 + $0x180] sm:$0xff]
    %v113 = vld [vmem:[%s1 + $0x188] sm:$0xff]
    %v114 = vld [vmem:[%s1 + $0x190] sm:$0xff]
    %v115 = vld [vmem:[%s1 + $0x198] sm:$0xff]
    %v116 = vld [vmem:[%s1 + $0x1a0] sm:$0xff]
    %v117 = vld [vmem:[%s1 + $0x1a8] sm:$0xff]
    %v118 = vld [vmem:[%s1 + $0x1b0] sm:$0xff]
    %v119 = vld [vmem:[%s1 + $0x1b8] sm:$0xff]
    %v120 = vld [vmem:[%s1 + $0x1c0] sm:$0xff]
    %v121 = vld [vmem:[%s1 + $0x1c8] sm:$0xff]
    %v122 = vld [vmem:[%s1 + $0x1d0] sm:$0xff]
    %v123 = vld [vmem:[%s1 + $0x1d8] sm:$0xff]
    %v124 = vld [vmem:[%s1 + $0x1e0] sm:$0xff]
    %v125 = vld [vmem:[%s1 + $0x1e8] sm:$0xff]
    %v126 = vld [vmem:[%s1 + $0x1f0] sm:$0xff]
    %v127 = vld [vmem:[%s1 + $0x1f8] sm:$0xff]
    %v128 = vld [vmem:[%s1 + $0x200] sm:$0xff]
    %v129 = vld [vmem:[%s1 + $0x208] sm:$0xff]
    %v130 = vld [vmem:[%s1 + $0x210] sm:$0xff]
    %v131 = vld [vmem:[%s1 + $0x218] sm:$0xff]
    %v132 = vld [vmem:[%s1 + $0x220] sm:$0xff]
    %v133 = vld [vmem:[%s1 + $0x228] sm:$0xff]
    %v134 = vld [vmem:[%s1 + $0x230] sm:$0xff]
    %v135 = vld [vmem:[%s1 + $0x238] sm:$0xff]
    %v136 = vld [vmem:[%s1 + $0x240] sm:$0xff]
    %v137 = vld [vmem:[%s1 + $0x248] sm:$0xff]
    %v138 = vld [vmem:[%s1 + $0x250] sm:$0xff]
    %v139 = vld [vmem:[%s1 + $0x258] sm:$0xff]
    %v140 = vld [vmem:[%s1 + $0x260] sm:$0xff]
    %v141 = vld [vmem:[%s1 + $0x268] sm:$0xff]
    %v142 = vld [vmem:[%s1 + $0x270] sm:$0xff]
    %v143 = vld [vmem:[%s1 + $0x278] sm:$0xff]
    %v144 = vld [vmem:[%s1 + $0x280] sm:$0xff]
    %v145 = vld [vmem:[%s1 + $0x288] sm:$0xff]
    %v146 = vld [vmem:[%s1 + $0x290] sm:$0xff]
    %v147 = vld [vmem:[%s1 + $0x298] sm:$0xff]
    %v148 = vld [vmem:[%s1 + $0x2a0] sm:$0xff]
    %v149 = vld [vmem:[%s1 + $0x2a8] sm:$0xff]
    %v150 = vld [vmem:[%s1 + $0x2b0] sm:$0xff]
    %v151 = vld [vmem:[%s1 + $0x2b8] sm:$0xff]
    %v152 = vld [vmem:[%s1 + $0x2c0] sm:$0xff]
    %v153 = vld [vmem:[%s1 + $0x2c8] sm:$0xff]
    %v154 = vld [vmem:[%s1 + $0x2d0] sm:$0xff]
    %v155 = vld [vmem:[%s1 + $0x2d8] sm:$0xff]
    %v156 = vld [vmem:[%s1 + $0x2e0] sm:$0xff]
    %v157 = vld [vmem:[%s1 + $0x2e8] sm:$0xff]
    %v158 = vld [vmem:[%s1 + $0x2f0] sm:$0xff]
    %v159 = vld [vmem:[%s1 + $0x2f8] sm:$0xff]
    %v160 = vld [vmem:[%s1 + $0x300] sm:$0xff]
    %v161 = vld [vmem:[%s1 + $0x308] sm:$0xff]
    %v162 = vld [vmem:[%s1 + $0x310] sm:$0xff]
    %v163 = vld [vmem:[%s1 + $0x318] sm:$0xff]
    %v164 = vld [vmem:[%s1 + $0x320] sm:$0xff]
    %v165 = vld [vmem:[%s1 + $0x328] sm:$0xff]
    %v166 = vld [vmem:[%s1 + $0x330] sm:$0xff]
    %v167 = vld [vmem:[%s1 + $0x338] sm:$0xff]
    %v168 = vld [vmem:[%s1 + $0x340] sm:$0xff]
    %v169 = vld [vmem:[%s1 + $0x348] sm:$0xff]
    %v170 = vld [vmem:[%s1 + $0x350] sm:$0xff]
    %v171 = vld [vmem:[%s1 + $0x358] sm:$0xff]
    %v172 = vld [vmem:[%s1 + $0x360] sm:$0xff]
    %v173 = vld [vmem:[%s1 + $0x368] sm:$0xff]
    %v174 = vld [vmem:[%s1 + $0x370] sm:$0xff]
    %v175 = vld [vmem:[%s1 + $0x378] sm:$0xff]
    %v176 = vld [vmem:[%s1 + $0x380] sm:$0xff]
    %v177 = vld [vmem:[%s1 + $0x388] sm:$0xff]
    %v178 = vld [vmem:[%s1 + $0x390] sm:$0xff]
    %v179 = vld [vmem:[%s1 + $0x398] sm:$0xff]
    %v180 = vld [vmem:[%s1 + $0x3a0] sm:$0xff]
    %v181 = vld [vmem:[%s1 + $0x3a8] sm:$0xff]
    %v182 = vld [vmem:[%s1 + $0x3b0] sm:$0xff]
    %v183 = vld [vmem:[%s1 + $0x3b8] sm:$0xff]
    %v184 = vld [vmem:[%s1 + $0x3c0] sm:$0xff]
    %v185 = vld [vmem:[%s1 + $0x3c8] sm:$0xff]
    %v186 = vld [vmem:[%s1 + $0x3d0] sm:$0xff]
    %v187 = vld [vmem:[%s1 + $0x3d8] sm:$0xff]
    %v188 = vld [vmem:[%s1 + $0x3e0] sm:$0xff]
    %v189 = vld [vmem:[%s1 + $0x3e8] sm:$0xff]
    %v190 = vld [vmem:[%s1 + $0x3f0] sm:$0xff]
    %v191 = vld [vmem:[%s1 + $0x3f8] sm:$0xff]
    %v192 = vld [vmem:[%s1 + $0x400] sm:$0xff]
    %v193 = vld [vmem:[%s1 + $0x408] sm:$0xff]
    %v194 = vld [vmem:[%s1 + $0x410] sm:$0xff]
    %v195 = vld [vmem:[%s1 + $0x418] sm:$0xff]
    %v196 = vld [vmem:[%s1 + $0x420] sm:$0xff]
    %v197 = vld [vmem:[%s1 + $0x428] sm:$0xff]
    %v198 = vld [vmem:[%s1 + $0x430] sm:$0xff]
    %v199 = vld [vmem:[%s1 + $0x438] sm:$0xff]
    %v200 = vld [vmem:[%s1 + $0x440] sm:$0xff]
    %v201 = vld [vmem:[%s1 + $0x448] sm:$0xff]
    %v202 = vld [vmem:[%s1 + $0x450] sm:$0xff]
    %v203 = vld [vmem:[%s1 + $0x458] sm:$0xff]
    %v204 = vld [vmem:[%s1 + $0x460] sm:$0xff]
    %v205 = vld [vmem:[%s1 + $0x468] sm:$0xff]
    %v206 = vld [vmem:[%s1 + $0x470] sm:$0xff]
    %v207 = vld [vmem:[%s1 + $0x478] sm:$0xff]
    %v208 = vld [vmem:[%s1 + $0x480] sm:$0xff]
    %v209 = vld [vmem:[%s1 + $0x488] sm:$0xff]
    %v210 = vld [vmem:[%s1 + $0x490] sm:$0xff]
    %v211 = vld [vmem:[%s1 + $0x498] sm:$0xff]
    %v212 = vld [vmem:[%s1 + $0x4a0] sm:$0xff]
    %v213 = vld [vmem:[%s1 + $0x4a8] sm:$0xff]
    %v214 = vld [vmem:[%s1 + $0x4b0] sm:$0xff]
    %v215 = vld [vmem:[%s1 + $0x4b8] sm:$0xff]
    %v216 = vld [vmem:[%s1 + $0x4c0] sm:$0xff]
    %v217 = vld [vmem:[%s1 + $0x4c8] sm:$0xff]
    %v218 = vld [vmem:[%s1 + $0x4d0] sm:$0xff]
    %v219 = vld [vmem:[%s1 + $0x4d8] sm:$0xff]
    %v220 = vld [vmem:[%s1 + $0x4e0] sm:$0xff]
    %v221 = vld [vmem:[%s1 + $0x4e8] sm:$0xff]
    %v222 = vld [vmem:[%s1 + $0x4f0] sm:$0xff]
    %v223 = vld [vmem:[%s1 + $0x4f8] sm:$0xff]
    %v224 = vld [vmem:[%s1 + $0x500] sm:$0xff]
    %v225 = vld [vmem:[%s1 + $0x508] sm:$0xff]
    %v226 = vld [vmem:[%s1 + $0x510] sm:$0xff]
    %v227 = vld [vmem:[%s1 + $0x518] sm:$0xff]
    %v228 = vld [vmem:[%s1 + $0x520] sm:$0xff]
    %v229 = vld [vmem:[%s1 + $0x528] sm:$0xff]
    %v230 = vld [vmem:[%s1 + $0x530] sm:$0xff]
    %v231 = vld [vmem:[%s1 + $0x538] sm:$0xff]
    %v232 = vld [vmem:[%s1 + $0x540] sm:$0xff]
    %v233 = vld [vmem:[%s1 + $0x548] sm:$0xff]
    %v234 = vld [vmem:[%s1 + $0x550] sm:$0xff]
    %v235 = vld [vmem:[%s1 + $0x558] sm:$0xff]
    %v236 = vld [vmem:[%s1 + $0x560] sm:$0xff]
    %v237 = vld [vmem:[%s1 + $0x568] sm:$0xff]
    %v238 = vld [vmem:[%s1 + $0x570] sm:$0xff]
    %v239 = vld [vmem:[%s1 + $0x578] sm:$0xff]
    %v240 = vld [vmem:[%s1 + $0x580] sm:$0xff]
    %v241 = vld [vmem:[%s1 + $0x588] sm:$0xff]
    %v242 = vld [vmem:[%s1 + $0x590] sm:$0xff]
    %v243 = vld [vmem:[%s1 + $0x598] sm:$0xff]
    %v244 = vld [vmem:[%s1 + $0x5a0] sm:$0xff]
    %v245 = vld [vmem:[%s1 + $0x5a8] sm:$0xff]
    %v246 = vld [vmem:[%s1 + $0x5b0] sm:$0xff]
    %v247 = vld [vmem:[%s1 + $0x5b8] sm:$0xff]
    %v248 = vld [vmem:[%s1 + $0x5c0] sm:$0xff]
    %v249 = vld [vmem:[%s1 + $0x5c8] sm:$0xff]
    %v250 = vld [vmem:[%s1 + $0x5d0] sm:$0xff]
    %v251 = vld [vmem:[%s1 + $0x5d8] sm:$0xff]
    %v252 = vld [vmem:[%s1 + $0x5e0] sm:$0xff]
    %v253 = vld [vmem:[%s1 + $0x5e8] sm:$0xff]
    %v254 = vld [vmem:[%s1 + $0x5f0] sm:$0xff]
    %v255 = vld [vmem:[%s1 + $0x5f8] sm:$0xff]
    %v256 = vld [vmem:[%s1 + $0x600] sm:$0xff]
    %v257 = vld [vmem:[%s1 + $0x608] sm:$0xff]
    %v258 = vld [vmem:[%s1 + $0x610] sm:$0xff]
    %v259 = vld [vmem:[%s1 + $0x618] sm:$0xff]
    %v260 = vld [vmem:[%s1 + $0x620] sm:$0xff]
    %v261 = vld [vmem:[%s1 + $0x628] sm:$0xff]
    %v262 = vld [vmem:[%s1 + $0x630] sm:$0xff]
    %v263 = vld [vmem:[%s1 + $0x638] sm:$0xff]
    %v264 = vld [vmem:[%s1 + $0x640] sm:$0xff]
    %v265 = vld [vmem:[%s1 + $0x648] sm:$0xff]
    %v266 = vld [vmem:[%s1 + $0x650] sm:$0xff]
    %v267 = vld [vmem:[%s1 + $0x658] sm:$0xff]
    %v268 = vld [vmem:[%s1 + $0x660] sm:$0xff]
    %v269 = vld [vmem:[%s1 + $0x668] sm:$0xff]
    %v270 = vld [vmem:[%s1 + $0x670] sm:$0xff]
    %v271 = vld [vmem:[%s1 + $0x678] sm:$0xff]
    %v272 = vld [vmem:[%s1 + $0x680] sm:$0xff]
    %v273 = vld [vmem:[%s1 + $0x688] sm:$0xff]
    %v274 = vld [vmem:[%s1 + $0x690] sm:$0xff]
    %v275 = vld [vmem:[%s1 + $0x698] sm:$0xff]
    %v276 = vld [vmem:[%s1 + $0x6a0] sm:$0xff]
    %v277 = vld [vmem:[%s1 + $0x6a8] sm:$0xff]
    %v278 = vld [vmem:[%s1 + $0x6b0] sm:$0xff]
    %v279 = vld [vmem:[%s1 + $0x6b8] sm:$0xff]
    %v280 = vld [vmem:[%s1 + $0x6c0] sm:$0xff]
    %v281 = vld [vmem:[%s1 + $0x6c8] sm:$0xff]
    %v282 = vld [vmem:[%s1 + $0x6d0] sm:$0xff]
    %v283 = vld [vmem:[%s1 + $0x6d8] sm:$0xff]
    %v284 = vld [vmem:[%s1 + $0x6e0] sm:$0xff]
    %v285 = vld [vmem:[%s1 + $0x6e8] sm:$0xff]
    %v286 = vld [vmem:[%s1 + $0x6f0] sm:$0xff]
    %v287 = vld [vmem:[%s1 + $0x6f8] sm:$0xff]
    %v288 = vld [vmem:[%s1 + $0x700] sm:$0xff]
    %v289 = vld [vmem:[%s1 + $0x708] sm:$0xff]
    %v290 = vld [vmem:[%s1 + $0x710] sm:$0xff]
    %v291 = vld [vmem:[%s1 + $0x718] sm:$0xff]
    %v292 = vld [vmem:[%s1 + $0x720] sm:$0xff]
    %v293 = vld [vmem:[%s1 + $0x728] sm:$0xff]
    %v294 = vld [vmem:[%s1 + $0x730] sm:$0xff]
    %v295 = vld [vmem:[%s1 + $0x738] sm:$0xff]
    %v296 = vld [vmem:[%s1 + $0x740] sm:$0xff]
    %v297 = vld [vmem:[%s1 + $0x748] sm:$0xff]
    %v298 = vld [vmem:[%s1 + $0x750] sm:$0xff]
    %v299 = vld [vmem:[%s1 + $0x758] sm:$0xff]
    %v300 = vld [vmem:[%s1 + $0x760] sm:$0xff]
    %v301 = vld [vmem:[%s1 + $0x768] sm:$0xff]
    %v302 = vld [vmem:[%s1 + $0x770] sm:$0xff]
    %v303 = vld [vmem:[%s1 + $0x778] sm:$0xff]
    %v304 = vld [vmem:[%s1 + $0x780] sm:$0xff]
    %v305 = vld [vmem:[%s1 + $0x788] sm:$0xff]
    %v306 = vld [vmem:[%s1 + $0x790] sm:$0xff]
    %v307 = vld [vmem:[%s1 + $0x798] sm:$0xff]
    %v308 = vld [vmem:[%s1 + $0x7a0] sm:$0xff]
    %v309 = vld [vmem:[%s1 + $0x7a8] sm:$0xff]
    %v310 = vld [vmem:[%s1 + $0x7b0] sm:$0xff]
    %v311 = vld [vmem:[%s1 + $0x7b8] sm:$0xff]
    %v312 = vld [vmem:[%s1 + $0x7c0] sm:$0xff]
    %v313 = vld [vmem:[%s1 + $0x7c8] sm:$0xff]
    %v314 = vld [vmem:[%s1 + $0x7d0] sm:$0xff]
    %v315 = vld [vmem:[%s1 + $0x7d8] sm:$0xff]
    %v316 = vld [vmem:[%s1 + $0x7e0] sm:$0xff]
    %v317 = vld [vmem:[%s1 + $0x7e8] sm:$0xff]
    %v318 = vld [vmem:[%s1 + $0x7f0] sm:$0xff]
    %v319 = vld [vmem:[%s1 + $0x7f8] sm:$0xff]
    %v320 = vld [vmem:[%s1 + $0x800] sm:$0xff]
    %v321 = vld [vmem:[%s1 + $0x808] sm:$0xff]
    %v322 = vld [vmem:[%s1 + $0x810] sm:$0xff]
    %v323 = vld [vmem:[%s1 + $0x818] sm:$0xff]
    %v324 = vld [vmem:[%s1 + $0x820] sm:$0xff]
    %v325 = vld [vmem:[%s1 + $0x828] sm:$0xff]
    %v326 = vld [vmem:[%s1 + $0x830] sm:$0xff]
    %v327 = vld [vmem:[%s1 + $0x838] sm:$0xff]
    %v328 = vld [vmem:[%s1 + $0x840] sm:$0xff]
    %v329 = vld [vmem:[%s1 + $0x848] sm:$0xff]
    %v330 = vld [vmem:[%s1 + $0x850] sm:$0xff]
    %v331 = vld [vmem:[%s1 + $0x858] sm:$0xff]
    %v332 = vld [vmem:[%s1 + $0x860] sm:$0xff]
    %v333 = vld [vmem:[%s1 + $0x868] sm:$0xff]
    %v334 = vld [vmem:[%s1 + $0x870] sm:$0xff]
    %v335 = vld [vmem:[%s1 + $0x878] sm:$0xff]
    %v336 = vld [vmem:[%s1 + $0x880] sm:$0xff]
    %v337 = vld [vmem:[%s1 + $0x888] sm:$0xff]
    %v338 = vld [vmem:[%s1 + $0x890] sm:$0xff]
    %v339 = vld [vmem:[%s1 + $0x898] sm:$0xff]
    %v340 = vld [vmem:[%s1 + $0x8a0] sm:$0xff]
    %v341 = vld [vmem:[%s1 + $0x8a8] sm:$0xff]
    %v342 = vld [vmem:[%s1 + $0x8b0] sm:$0xff]
    %v343 = vld [vmem:[%s1 + $0x8b8] sm:$0xff]
    %v344 = vld [vmem:[%s1 + $0x8c0] sm:$0xff]
    %v345 = vld [vmem:[%s1 + $0x8c8] sm:$0xff]
    %v346 = vld [vmem:[%s1 + $0x8d0] sm:$0xff]
    %v347 = vld [vmem:[%s1 + $0x8d8] sm:$0xff]
    %v348 = vld [vmem:[%s1 + $0x8e0] sm:$0xff]
    %v349 = vld [vmem:[%s1 + $0x8e8] sm:$0xff]
    %v350 = vld [vmem:[%s1 + $0x8f0] sm:$0xff]
    %v351 = vld [vmem:[%s1 + $0x8f8] sm:$0xff]
    %v352 = vld [vmem:[%s1 + $0x900] sm:$0xff]
    %v353 = vld [vmem:[%s1 + $0x908] sm:$0xff]
    %v354 = vld [vmem:[%s1 + $0x910] sm:$0xff]
    %v355 = vld [vmem:[%s1 + $0x918] sm:$0xff]
    %v356 = vld [vmem:[%s1 + $0x920] sm:$0xff]
    %v357 = vld [vmem:[%s1 + $0x928] sm:$0xff]
    %v358 = vld [vmem:[%s1 + $0x930] sm:$0xff]
    %v359 = vld [vmem:[%s1 + $0x938] sm:$0xff]
    %v360 = vld [vmem:[%s1 + $0x940] sm:$0xff]
    %v361 = vld [vmem:[%s1 + $0x948] sm:$0xff]
    %v362 = vld [vmem:[%s1 + $0x950] sm:$0xff]
    %v363 = vld [vmem:[%s1 + $0x958] sm:$0xff]
    %v364 = vld [vmem:[%s1 + $0x960] sm:$0xff]
    %v365 = vld [vmem:[%s1 + $0x968] sm:$0xff]
    %v366 = vld [vmem:[%s1 + $0x970] sm:$0xff]
    %v367 = vld [vmem:[%s1 + $0x978] sm:$0xff]
    %v368 = vld [vmem:[%s1 + $0x980] sm:$0xff]
    %v369 = vld [vmem:[%s1 + $0x988] sm:$0xff]
    %v370 = vld [vmem:[%s1 + $0x990] sm:$0xff]
    %v371 = vld [vmem:[%s1 + $0x998] sm:$0xff]
    %v372 = vld [vmem:[%s1 + $0x9a0] sm:$0xff]
    %v373 = vld [vmem:[%s1 + $0x9a8] sm:$0xff]
    %v374 = vld [vmem:[%s1 + $0x9b0] sm:$0xff]
    %v375 = vld [vmem:[%s1 + $0x9b8] sm:$0xff]
    %v376 = vld [vmem:[%s1 + $0x9c0] sm:$0xff]
    %v377 = vld [vmem:[%s1 + $0x9c8] sm:$0xff]
    %v378 = vld [vmem:[%s1 + $0x9d0] sm:$0xff]
    %v379 = vld [vmem:[%s1 + $0x9d8] sm:$0xff]
    %v380 = vld [vmem:[%s1 + $0x9e0] sm:$0xff]
    %v381 = vld [vmem:[%s1 + $0x9e8] sm:$0xff]
    %v382 = vld [vmem:[%s1 + $0x9f0] sm:$0xff]
    %v383 = vld [vmem:[%s1 + $0x9f8] sm:$0xff]
    %v384 = vld [vmem:[%s1 + $0xa00] sm:$0xff]
    %v385 = vld [vmem:[%s1 + $0xa08] sm:$0xff]
    %v386 = vld [vmem:[%s1 + $0xa10] sm:$0xff]
    %v387 = vld [vmem:[%s1 + $0xa18] sm:$0xff]
    %v388 = vld [vmem:[%s1 + $0xa20] sm:$0xff]
    %v389 = vld [vmem:[%s1 + $0xa28] sm:$0xff]
    %v390 = vld [vmem:[%s1 + $0xa30] sm:$0xff]
    %v391 = vld [vmem:[%s1 + $0xa38] sm:$0xff]
    %v392 = vld [vmem:[%s1 + $0xa40] sm:$0xff]
    %v393 = vld [vmem:[%s1 + $0xa48] sm:$0xff]
    %v394 = vld [vmem:[%s1 + $0xa50] sm:$0xff]
    %v395 = vld [vmem:[%s1 + $0xa58] sm:$0xff]
    %v396 = vld [vmem:[%s1 + $0xa60] sm:$0xff]
    %v397 = vld [vmem:[%s1 + $0xa68] sm:$0xff]
    %v398 = vld [vmem:[%s1 + $0xa70] sm:$0xff]
    %v399 = vld [vmem:[%s1 + $0xa78] sm:$0xff]
    %v400 = vld [vmem:[%s1 + $0xa80] sm:$0xff]
    %v401 = vld [vmem:[%s1 + $0xa88] sm:$0xff]
    %v402 = vld [vmem:[%s1 + $0xa90] sm:$0xff]
    %v403 = vld [vmem:[%s1 + $0xa98] sm:$0xff]
    %v404 = vld [vmem:[%s1 + $0xaa0] sm:$0xff]
    %v405 = vld [vmem:[%s1 + $0xaa8] sm:$0xff]
    %v406 = vld [vmem:[%s1 + $0xab0] sm:$0xff]
    %v407 = vld [vmem:[%s1 + $0xab8] sm:$0xff]
    %v408 = vld [vmem:[%s1 + $0xac0] sm:$0xff]
    %v409 = vld [vmem:[%s1 + $0xac8] sm:$0xff]
    %v410 = vld [vmem:[%s1 + $0xad0] sm:$0xff]
    %v411 = vld [vmem:[%s1 + $0xad8] sm:$0xff]
    %v412 = vld [vmem:[%s1 + $0xae0] sm:$0xff]
    %v413 = vld [vmem:[%s1 + $0xae8] sm:$0xff]
    %v414 = vld [vmem:[%s1 + $0xaf0] sm:$0xff]
    %v415 = vld [vmem:[%s1 + $0xaf8] sm:$0xff]
    %v416 = vld [vmem:[%s1 + $0xb00] sm:$0xff]
    %v417 = vld [vmem:[%s1 + $0xb08] sm:$0xff]
    %v418 = vld [vmem:[%s1 + $0xb10] sm:$0xff]
    %v419 = vld [vmem:[%s1 + $0xb18] sm:$0xff]
    %v420 = vld [vmem:[%s1 + $0xb20] sm:$0xff]
    %v421 = vld [vmem:[%s1 + $0xb28] sm:$0xff]
    %v422 = vld [vmem:[%s1 + $0xb30] sm:$0xff]
    %v423 = vld [vmem:[%s1 + $0xb38] sm:$0xff]
    %v424 = vld [vmem:[%s1 + $0xb40] sm:$0xff]
    %v425 = vld [vmem:[%s1 + $0xb48] sm:$0xff]
    %v426 = vld [vmem:[%s1 + $0xb50] sm:$0xff]
    %v427 = vld [vmem:[%s1 + $0xb58] sm:$0xff]
    %v428 = vld [vmem:[%s1 + $0xb60] sm:$0xff]
    %v429 = vld [vmem:[%s1 + $0xb68] sm:$0xff]
    %v430 = vld [vmem:[%s1 + $0xb70] sm:$0xff]
    %v431 = vld [vmem:[%s1 + $0xb78] sm:$0xff]
    %v432 = vld [vmem:[%s1 + $0xb80] sm:$0xff]
    %v433 = vld [vmem:[%s1 + $0xb88] sm:$0xff]
    %v434 = vld [vmem:[%s1 + $0xb90] sm:$0xff]
    %v435 = vld [vmem:[%s1 + $0xb98] sm:$0xff]
    %v436 = vld [vmem:[%s1 + $0xba0] sm:$0xff]
    %v437 = vld [vmem:[%s1 + $0xba8] sm:$0xff]
    %v438 = vld [vmem:[%s1 + $0xbb0] sm:$0xff]
    %v439 = vld [vmem:[%s1 + $0xbb8] sm:$0xff]
    %v440 = vld [vmem:[%s1 + $0xbc0] sm:$0xff]
    %v441 = vld [vmem:[%s1 + $0xbc8] sm:$0xff]
    %v442 = vld [vmem:[%s1 + $0xbd0] sm:$0xff]
    %v443 = vld [vmem:[%s1 + $0xbd8] sm:$0xff]
    %v444 = vld [vmem:[%s1 + $0xbe0] sm:$0xff]
    %v445 = vld [vmem:[%s1 + $0xbe8] sm:$0xff]
    %v446 = vld [vmem:[%s1 + $0xbf0] sm:$0xff]
    %v447 = vld [vmem:[%s1 + $0xbf8] sm:$0xff]
    %v448 = vld [vmem:[%s1 + $0xc00] sm:$0xff]
    %v449 = vld [vmem:[%s1 + $0xc08] sm:$0xff]
    %v450 = vld [vmem:[%s1 + $0xc10] sm:$0xff]
    %v451 = vld [vmem:[%s1 + $0xc18] sm:$0xff]
    %v452 = vld [vmem:[%s1 + $0xc20] sm:$0xff]
    %v453 = vld [vmem:[%s1 + $0xc28] sm:$0xff]
    %v454 = vld [vmem:[%s1 + $0xc30] sm:$0xff]
    %v455 = vld [vmem:[%s1 + $0xc38] sm:$0xff]
    %v456 = vld [vmem:[%s1 + $0xc40] sm:$0xff]
    %v457 = vld [vmem:[%s1 + $0xc48] sm:$0xff]
    %v458 = vld [vmem:[%s1 + $0xc50] sm:$0xff]
    %v459 = vld [vmem:[%s1 + $0xc58] sm:$0xff]
    %v460 = vld [vmem:[%s1 + $0xc60] sm:$0xff]
    %v461 = vld [vmem:[%s1 + $0xc68] sm:$0xff]
    %v462 = vld [vmem:[%s1 + $0xc70] sm:$0xff]
    %v463 = vld [vmem:[%s1 + $0xc78] sm:$0xff]
    %v464 = vld [vmem:[%s1 + $0xc80] sm:$0xff]
    %v465 = vld [vmem:[%s1 + $0xc88] sm:$0xff]
    %v466 = vld [vmem:[%s1 + $0xc90] sm:$0xff]
    %v467 = vld [vmem:[%s1 + $0xc98] sm:$0xff]
    %v468 = vld [vmem:[%s1 + $0xca0] sm:$0xff]
    %v469 = vld [vmem:[%s1 + $0xca8] sm:$0xff]
    %v470 = vld [vmem:[%s1 + $0xcb0] sm:$0xff]
    %v471 = vld [vmem:[%s1 + $0xcb8] sm:$0xff]
    %v472 = vld [vmem:[%s1 + $0xcc0] sm:$0xff]
    %v473 = vld [vmem:[%s1 + $0xcc8] sm:$0xff]
    %v474 = vld [vmem:[%s1 + $0xcd0] sm:$0xff]
    %v475 = vld [vmem:[%s1 + $0xcd8] sm:$0xff]
    %v476 = vld [vmem:[%s1 + $0xce0] sm:$0xff]
    %v477 = vld [vmem:[%s1 + $0xce8] sm:$0xff]
    %v478 = vld [vmem:[%s1 + $0xcf0] sm:$0xff]
    %v479 = vld [vmem:[%s1 + $0xcf8] sm:$0xff]
    %v480 = vld [vmem:[%s1 + $0xd00] sm:$0xff]
    %v481 = vld [vmem:[%s1 + $0xd08] sm:$0xff]
    %v482 = vld [vmem:[%s1 + $0xd10] sm:$0xff]
    %v483 = vld [vmem:[%s1 + $0xd18] sm:$0xff]
    %v484 = vld [vmem:[%s1 + $0xd20] sm:$0xff]
    %v485 = vld [vmem:[%s1 + $0xd28] sm:$0xff]
    %v486 = vld [vmem:[%s1 + $0xd30] sm:$0xff]
    %v487 = vld [vmem:[%s1 + $0xd38] sm:$0xff]
    %v488 = vld [vmem:[%s1 + $0xd40] sm:$0xff]
    %v489 = vld [vmem:[%s1 + $0xd48] sm:$0xff]
    %v490 = vld [vmem:[%s1 + $0xd50] sm:$0xff]
    %v491 = vld [vmem:[%s1 + $0xd58] sm:$0xff]
    %v492 = vld [vmem:[%s1 + $0xd60] sm:$0xff]
    %v493 = vld [vmem:[%s1 + $0xd68] sm:$0xff]
    %v494 = vld [vmem:[%s1 + $0xd70] sm:$0xff]
    %v495 = vld [vmem:[%s1 + $0xd78] sm:$0xff]
    %v496 = vld [vmem:[%s1 + $0xd80] sm:$0xff]
    %v497 = vld [vmem:[%s1 + $0xd88] sm:$0xff]
    %v498 = vld [vmem:[%s1 + $0xd90] sm:$0xff]
    %v499 = vld [vmem:[%s1 + $0xd98] sm:$0xff]
    %v500 = vld [vmem:[%s1 + $0xda0] sm:$0xff]
    %v501 = vld [vmem:[%s1 + $0xda8] sm:$0xff]
    %v502 = vld [vmem:[%s1 + $0xdb0] sm:$0xff]
    %v503 = vld [vmem:[%s1 + $0xdb8] sm:$0xff]
    %v504 = vld [vmem:[%s1 + $0xdc0] sm:$0xff]
    %v505 = vld [vmem:[%s1 + $0xdc8] sm:$0xff]
    %v506 = vld [vmem:[%s1 + $0xdd0] sm:$0xff]
    %v507 = vld [vmem:[%s1 + $0xdd8] sm:$0xff]
    %v508 = vld [vmem:[%s1 + $0xde0] sm:$0xff]
    %v509 = vld [vmem:[%s1 + $0xde8] sm:$0xff]
    %v510 = vld [vmem:[%s1 + $0xdf0] sm:$0xff]
    %v511 = vld [vmem:[%s1 + $0xdf8] sm:$0xff]
    %v512 = vld [vmem:[%s1 + $0xe00] sm:$0xff]
    %v513 = vld [vmem:[%s1 + $0xe08] sm:$0xff]
    %v514 = vld [vmem:[%s1 + $0xe10] sm:$0xff]
    %v515 = vld [vmem:[%s1 + $0xe18] sm:$0xff]
    %v516 = vld [vmem:[%s1 + $0xe20] sm:$0xff]
    %v517 = vld [vmem:[%s1 + $0xe28] sm:$0xff]
    %v518 = vld [vmem:[%s1 + $0xe30] sm:$0xff]
    %v519 = vld [vmem:[%s1 + $0xe38] sm:$0xff]
    %v520 = vld [vmem:[%s1 + $0xe40] sm:$0xff]
    %v521 = vld [vmem:[%s1 + $0xe48] sm:$0xff]
    %v522 = vld [vmem:[%s1 + $0xe50] sm:$0xff]
    %v523 = vld [vmem:[%s1 + $0xe58] sm:$0xff]
    %v524 = vld [vmem:[%s1 + $0xe60] sm:$0xff]
    %v525 = vld [vmem:[%s1 + $0xe68] sm:$0xff]
    %v526 = vld [vmem:[%s1 + $0xe70] sm:$0xff]
    %v527 = vld [vmem:[%s1 + $0xe78] sm:$0xff]
    %v528 = vld [vmem:[%s1 + $0xe80] sm:$0xff]
    %v529 = vld [vmem:[%s1 + $0xe88] sm:$0xff]
    %v530 = vld [vmem:[%s1 + $0xe90] sm:$0xff]
    %v531 = vld [vmem:[%s1 + $0xe98] sm:$0xff]
    %v532 = vld [vmem:[%s1 + $0xea0] sm:$0xff]
    %v533 = vld [vmem:[%s1 + $0xea8] sm:$0xff]
    %v534 = vld [vmem:[%s1 + $0xeb0] sm:$0xff]
    %v535 = vld [vmem:[%s1 + $0xeb8] sm:$0xff]
    %v536 = vld [vmem:[%s1 + $0xec0] sm:$0xff]
    %v537 = vld [vmem:[%s1 + $0xec8] sm:$0xff]
    %v538 = vld [vmem:[%s1 + $0xed0] sm:$0xff]
    %v539 = vld [vmem:[%s1 + $0xed8] sm:$0xff]
    %v540 = vld [vmem:[%s1 + $0xee0] sm:$0xff]
    %v541 = vld [vmem:[%s1 + $0xee8] sm:$0xff]
    %v542 = vld [vmem:[%s1 + $0xef0] sm:$0xff]
    %v543 = vld [vmem:[%s1 + $0xef8] sm:$0xff]
    %v544 = vld [vmem:[%s1 + $0xf00] sm:$0xff]
    %v545 = vld [vmem:[%s1 + $0xf08] sm:$0xff]
    %v546 = vld [vmem:[%s1 + $0xf10] sm:$0xff]
    %v547 = vld [vmem:[%s1 + $0xf18] sm:$0xff]
    %v548 = vld [vmem:[%s1 + $0xf20] sm:$0xff]
    %v549 = vld [vmem:[%s1 + $0xf28] sm:$0xff]
    %v550 = vld [vmem:[%s1 + $0xf30] sm:$0xff]
    %v551 = vld [vmem:[%s1 + $0xf38] sm:$0xff]
    %v552 = vld [vmem:[%s1 + $0xf40] sm:$0xff]
    %v553 = vld [vmem:[%s1 + $0xf48] sm:$0xff]
    %v554 = vld [vmem:[%s1 + $0xf50] sm:$0xff]
    %v555 = vld [vmem:[%s1 + $0xf58] sm:$0xff]
    %v556 = vld [vmem:[%s1 + $0xf60] sm:$0xff]
    %v557 = vld [vmem:[%s1 + $0xf68] sm:$0xff]
    %v558 = vld [vmem:[%s1 + $0xf70] sm:$0xff]
    %v559 = vld [vmem:[%s1 + $0xf78] sm:$0xff]
    %v560 = vld [vmem:[%s1 + $0xf80] sm:$0xff]
    %v561 = vld [vmem:[%s1 + $0xf88] sm:$0xff]
    %v562 = vld [vmem:[%s1 + $0xf90] sm:$0xff]
    %v563 = vld [vmem:[%s1 + $0xf98] sm:$0xff]
    %v564 = vld [vmem:[%s1 + $0xfa0] sm:$0xff]
    %v565 = vld [vmem:[%s1 + $0xfa8] sm:$0xff]
    %v566 = vld [vmem:[%s1 + $0xfb0] sm:$0xff]
    %v567 = vld [vmem:[%s1 + $0xfb8] sm:$0xff]
    %v568 = vld [vmem:[%s1 + $0xfc0] sm:$0xff]
    %v569 = vld [vmem:[%s1 + $0xfc8] sm:$0xff]
    %v570 = vld [vmem:[%s1 + $0xfd0] sm:$0xff]
    %v571 = vld [vmem:[%s1 + $0xfd8] sm:$0xff]
    %v572 = vld [vmem:[%s1 + $0xfe0] sm:$0xff]
    %v573 = vld [vmem:[%s1 + $0xfe8] sm:$0xff]
    %v574 = vld [vmem:[%s1 + $0xff0] sm:$0xff]
    %v575 = vld [vmem:[%s1 + $0xff8] sm:$0xff]
    %v576 = vld [vmem:[%s1 + $0x1000] sm:$0xff]
    %v577 = vld [vmem:[%s1 + $0x1008] sm:$0xff]
    %v578 = vld [vmem:[%s1 + $0x1010] sm:$0xff]
    %v579 = vld [vmem:[%s1 + $0x1018] sm:$0xff]
    %v580 = vld [vmem:[%s1 + $0x1020] sm:$0xff]
    %v581 = vld [vmem:[%s1 + $0x1028] sm:$0xff]
    %v582 = vld [vmem:[%s1 + $0x1030] sm:$0xff]
    %v583 = vld [vmem:[%s1 + $0x1038] sm:$0xff]
    %v584 = vld [vmem:[%s1 + $0x1040] sm:$0xff]
    %v585 = vld [vmem:[%s1 + $0x1048] sm:$0xff]
    %v586 = vld [vmem:[%s1 + $0x1050] sm:$0xff]
    %v587 = vld [vmem:[%s1 + $0x1058] sm:$0xff]
    %v588 = vld [vmem:[%s1 + $0x1060] sm:$0xff]
    %v589 = vld [vmem:[%s1 + $0x1068] sm:$0xff]
    %v590 = vld [vmem:[%s1 + $0x1070] sm:$0xff]
    %v591 = vld [vmem:[%s1 + $0x1078] sm:$0xff]
    %v592 = vld [vmem:[%s1 + $0x1080] sm:$0xff]
    %v593 = vld [vmem:[%s1 + $0x1088] sm:$0xff]
    %v594 = vld [vmem:[%s1 + $0x1090] sm:$0xff]
    %v595 = vld [vmem:[%s1 + $0x1098] sm:$0xff]
    %v596 = vld [vmem:[%s1 + $0x10a0] sm:$0xff]
    %v597 = vld [vmem:[%s1 + $0x10a8] sm:$0xff]
    %v598 = vld [vmem:[%s1 + $0x10b0] sm:$0xff]
    %v599 = vld [vmem:[%s1 + $0x10b8] sm:$0xff]
    %v600 = vld [vmem:[%s1 + $0x10c0] sm:$0xff]
    %v601 = vld [vmem:[%s1 + $0x10c8] sm:$0xff]
    %v602 = vld [vmem:[%s1 + $0x10d0] sm:$0xff]
    %v603 = vld [vmem:[%s1 + $0x10d8] sm:$0xff]
    %v604 = vld [vmem:[%s1 + $0x10e0] sm:$0xff]
    %v605 = vld [vmem:[%s1 + $0x10e8] sm:$0xff]
    %v606 = vld [vmem:[%s1 + $0x10f0] sm:$0xff]
    %v607 = vld [vmem:[%s1 + $0x10f8] sm:$0xff]
    %v608 = vld [vmem:[%s1 + $0x1100] sm:$0xff]
    %v609 = vld [vmem:[%s1 + $0x1108] sm:$0xff]
    %v610 = vld [vmem:[%s1 + $0x1110] sm:$0xff]
    %v611 = vld [vmem:[%s1 + $0x1118] sm:$0xff]
    %v612 = vld [vmem:[%s1 + $0x1120] sm:$0xff]
    %v613 = vld [vmem:[%s1 + $0x1128] sm:$0xff]
    %v614 = vld [vmem:[%s1 + $0x1130] sm:$0xff]
    %v615 = vld [vmem:[%s1 + $0x1138] sm:$0xff]
    %v616 = vld [vmem:[%s1 + $0x1140] sm:$0xff]
    %v617 = vld [vmem:[%s1 + $0x1148] sm:$0xff]
    %v618 = vld [vmem:[%s1 + $0x1150] sm:$0xff]
    %v619 = vld [vmem:[%s1 + $0x1158] sm:$0xff]
    %v620 = vld [vmem:[%s1 + $0x1160] sm:$0xff]
    %v621 = vld [vmem:[%s1 + $0x1168] sm:$0xff]
    %v622 = vld [vmem:[%s1 + $0x1170] sm:$0xff]
    %v623 = vld [vmem:[%s1 + $0x1178] sm:$0xff]
    %v624 = vld [vmem:[%s1 + $0x1180] sm:$0xff]
    %v625 = vld [vmem:[%s1 + $0x1188] sm:$0xff]
    %v626 = vld [vmem:[%s1 + $0x1190] sm:$0xff]
    %v627 = vld [vmem:[%s1 + $0x1198] sm:$0xff]
    %v628 = vld [vmem:[%s1 + $0x11a0] sm:$0xff]
    %v629 = vld [vmem:[%s1 + $0x11a8] sm:$0xff]
    %v630 = vld [vmem:[%s1 + $0x11b0] sm:$0xff]
    %v631 = vld [vmem:[%s1 + $0x11b8] sm:$0xff]
    %v632 = vld [vmem:[%s1 + $0x11c0] sm:$0xff]
    %v633 = vld [vmem:[%s1 + $0x11c8] sm:$0xff]
    %v634 = vld [vmem:[%s1 + $0x11d0] sm:$0xff]
    %v635 = vld [vmem:[%s1 + $0x11d8] sm:$0xff]
    %v636 = vld [vmem:[%s1 + $0x11e0] sm:$0xff]
    %v637 = vld [vmem:[%s1 + $0x11e8] sm:$0xff]
    %v638 = vld [vmem:[%s1 + $0x11f0] sm:$0xff]
    %v639 = vld [vmem:[%s1 + $0x11f8] sm:$0xff]
    %v640 = vld [vmem:[%s2] sm:$0xf]
    %v642 = vlaneseq
    %v643 = vshrl.u32 %v642, 7
    %v644 = vsub.s32 0, %v643
    %v645 = vrot.slane %v640, %v644
    %v646 = vlaneseq
    %v647 = vshrl.u32 %v646, 7
    %v648 = vsub.s32 1, %v647
    %v649 = vrot.slane %v640, %v648
    %v650 = vlaneseq
    %v651 = vshrl.u32 %v650, 7
    %v652 = vsub.s32 2, %v651
    %v653 = vrot.slane %v640, %v652
    %v654 = vlaneseq
    %v655 = vshrl.u32 %v654, 7
    %v656 = vsub.s32 3, %v655
    %v657 = vrot.slane %v640, %v656
    %v665 = vcombine.high %v61, %v61
    %v667 = vunpack.c.l.s4 1966171168
    %v668 = vunpack.c.0.s8 %v667
    %v669 = vlaneseq
    %v670 = vshrl.u32 %v669, 7
    %v671 = vsub.s32 %v668, %v670
    %v672 = vrot.slane %v61, %v671
    %v674 = vunpack.c.l.s4 1966171168
    %v675 = vunpack.c.0.s8 %v674
    %v676 = vlaneseq
    %v677 = vshrl.u32 %v676, 7
    %v678 = vsub.s32 %v675, %v677
    %v679 = vrot.slane %v665, %v678
    %v680 = vcombine.high %v672, %v672
    %v681 = vcombine.high %v679, %v679
    %v683 = vunpack.c.l.s4 1966171168
    %v684 = vunpack.c.0.s8 %v683
    %v685 = vlaneseq
    %v686 = vshrl.u32 %v685, 7
    %v687 = vsub.s32 %v684, %v686
    %v688 = vrot.slane %v672, %v687
    %v690 = vunpack.c.l.s4 1966171168
    %v691 = vunpack.c.0.s8 %v690
    %v692 = vlaneseq
    %v693 = vshrl.u32 %v692, 7
    %v694 = vsub.s32 %v691, %v693
    %v695 = vrot.slane %v679, %v694
    %v697 = vunpack.c.l.s4 1966171168
    %v698 = vunpack.c.0.s8 %v697
    %v699 = vlaneseq
    %v700 = vshrl.u32 %v699, 7
    %v701 = vsub.s32 %v698, %v700
    %v702 = vrot.slane %v680, %v701
    %v704 = vunpack.c.l.s4 1966171168
    %v705 = vunpack.c.0.s8 %v704
    %v706 = vlaneseq
    %v707 = vshrl.u32 %v706, 7
    %v708 = vsub.s32 %v705, %v707
    %v709 = vrot.slane %v681, %v708
    %v710 = vcombine.high %v688, %v688
    %v711 = vcombine.high %v695, %v695
    %v712 = vcombine.high %v702, %v702
    %v713 = vcombine.high %v709, %v709
    %v714 = vcombine.high %v62, %v62
    %v716 = vunpack.c.l.s4 1966171168
    %v717 = vunpack.c.0.s8 %v716
    %v718 = vlaneseq
    %v719 = vshrl.u32 %v718, 7
    %v720 = vsub.s32 %v717, %v719
    %v721 = vrot.slane %v62, %v720
    %v723 = vunpack.c.l.s4 1966171168
    %v724 = vunpack.c.0.s8 %v723
    %v725 = vlaneseq
    %v726 = vshrl.u32 %v725, 7
    %v727 = vsub.s32 %v724, %v726
    %v728 = vrot.slane %v714, %v727
    %v729 = vcombine.high %v721, %v721
    %v730 = vcombine.high %v728, %v728
    %v732 = vunpack.c.l.s4 1966171168
    %v733 = vunpack.c.0.s8 %v732
    %v734 = vlaneseq
    %v735 = vshrl.u32 %v734, 7
    %v736 = vsub.s32 %v733, %v735
    %v737 = vrot.slane %v721, %v736
    %v739 = vunpack.c.l.s4 1966171168
    %v740 = vunpack.c.0.s8 %v739
    %v741 = vlaneseq
    %v742 = vshrl.u32 %v741, 7
    %v743 = vsub.s32 %v740, %v742
    %v744 = vrot.slane %v728, %v743
    %v746 = vunpack.c.l.s4 1966171168
    %v747 = vunpack.c.0.s8 %v746
    %v748 = vlaneseq
    %v749 = vshrl.u32 %v748, 7
    %v750 = vsub.s32 %v747, %v749
    %v751 = vrot.slane %v729, %v750
    %v753 = vunpack.c.l.s4 1966171168
    %v754 = vunpack.c.0.s8 %v753
    %v755 = vlaneseq
    %v756 = vshrl.u32 %v755, 7
    %v757 = vsub.s32 %v754, %v756
    %v758 = vrot.slane %v730, %v757
    %v759 = vcombine.high %v737, %v737
    %v760 = vcombine.high %v744, %v744
    %v761 = vcombine.high %v751, %v751
    %v762 = vcombine.high %v758, %v758
    %v764 = vunpack.c.l.s4 1966171168
    %v765 = vunpack.c.0.s8 %v764
    %v766 = vlaneseq
    %v767 = vshrl.u32 %v766, 7
    %v768 = vsub.s32 %v765, %v767
    %v769 = vrot.slane %v63, %v768
    %v770 = vcombine.high %v769, %v769
    %v772 = vunpack.c.l.s4 1966171168
    %v773 = vunpack.c.0.s8 %v772
    %v774 = vlaneseq
    %v775 = vshrl.u32 %v774, 7
    %v776 = vsub.s32 %v773, %v775
    %v777 = vrot.slane %v769, %v776
    %v779 = vunpack.c.l.s4 1966171168
    %v780 = vunpack.c.0.s8 %v779
    %v781 = vlaneseq
    %v782 = vshrl.u32 %v781, 7
    %v783 = vsub.s32 %v780, %v782
    %v784 = vrot.slane %v770, %v783
    %v1379 = vunpack.c.l.b16 %v64
    %v1380 = vunpack.c.h.b16 %v64
    %v1381 = vunpack.c.l.b16 %v65
    %v1382 = vunpack.c.h.b16 %v65
    %v1383 = vunpack.c.l.b16 %v66
    %v1384 = vunpack.c.h.b16 %v66
    %v1385 = vunpack.c.l.b16 %v67
    %v1386 = vunpack.c.h.b16 %v67
    %v1387 = vunpack.c.l.b16 %v68
    %v1388 = vunpack.c.h.b16 %v68
    %v1389 = vunpack.c.l.b16 %v69
    %v1390 = vunpack.c.h.b16 %v69
    %v1391 = vunpack.c.l.b16 %v70
    %v1392 = vunpack.c.h.b16 %v70
    %v1393 = vunpack.c.l.b16 %v71
    %v1394 = vunpack.c.h.b16 %v71
    %v1395 = vunpack.c.l.b16 %v72
    %v1396 = vunpack.c.h.b16 %v72
    %v1397 = vunpack.c.l.b16 %v73
    %v1398 = vunpack.c.h.b16 %v73
    %v1399 = vunpack.c.l.b16 %v74
    %v1400 = vunpack.c.h.b16 %v74
    %v1401 = vunpack.c.l.b16 %v75
    %v1402 = vunpack.c.h.b16 %v75
    %v1403 = vunpack.c.l.b16 %v76
    %v1404 = vunpack.c.h.b16 %v76
    %v1405 = vunpack.c.l.b16 %v77
    %v1406 = vunpack.c.h.b16 %v77
    %v1407 = vunpack.c.l.b16 %v78
    %v1408 = vunpack.c.h.b16 %v78
    %v1409 = vunpack.c.l.b16 %v79
    %v1410 = vunpack.c.h.b16 %v79
    %v1411 = vunpack.c.l.b16 %v80
    %v1412 = vunpack.c.h.b16 %v80
    %v1413 = vunpack.c.l.b16 %v81
    %v1414 = vunpack.c.h.b16 %v81
    %v1415 = vunpack.c.l.b16 %v82
    %v1416 = vunpack.c.h.b16 %v82
    %v1417 = vunpack.c.l.b16 %v83
    %v1418 = vunpack.c.h.b16 %v83
    %v1419 = vunpack.c.l.b16 %v84
    %v1420 = vunpack.c.h.b16 %v84
    %v1421 = vunpack.c.l.b16 %v85
    %v1422 = vunpack.c.h.b16 %v85
    %v1423 = vunpack.c.l.b16 %v86
    %v1424 = vunpack.c.h.b16 %v86
    %v1425 = vunpack.c.l.b16 %v87
    %v1426 = vunpack.c.h.b16 %v87
    %v1427 = vunpack.c.l.b16 %v88
    %v1428 = vunpack.c.h.b16 %v88
    %v1429 = vunpack.c.l.b16 %v89
    %v1430 = vunpack.c.h.b16 %v89
    %v1431 = vunpack.c.l.b16 %v90
    %v1432 = vunpack.c.h.b16 %v90
    %v1433 = vunpack.c.l.b16 %v91
    %v1434 = vunpack.c.h.b16 %v91
    %v1435 = vunpack.c.l.b16 %v92
    %v1436 = vunpack.c.h.b16 %v92
    %v1437 = vunpack.c.l.b16 %v93
    %v1438 = vunpack.c.h.b16 %v93
    %v1439 = vunpack.c.l.b16 %v94
    %v1440 = vunpack.c.h.b16 %v94
    %v1441 = vunpack.c.l.b16 %v95
    %v1442 = vunpack.c.h.b16 %v95
    %v1443 = vunpack.c.l.b16 %v96
    %v1444 = vunpack.c.h.b16 %v96
    %v1445 = vunpack.c.l.b16 %v97
    %v1446 = vunpack.c.h.b16 %v97
    %v1447 = vunpack.c.l.b16 %v98
    %v1448 = vunpack.c.h.b16 %v98
    %v1449 = vunpack.c.l.b16 %v99
    %v1450 = vunpack.c.h.b16 %v99
    %v1451 = vunpack.c.l.b16 %v100
    %v1452 = vunpack.c.h.b16 %v100
    %v1453 = vunpack.c.l.b16 %v101
    %v1454 = vunpack.c.h.b16 %v101
    %v1455 = vunpack.c.l.b16 %v102
    %v1456 = vunpack.c.h.b16 %v102
    %v1457 = vunpack.c.l.b16 %v103
    %v1458 = vunpack.c.h.b16 %v103
    %v1459 = vunpack.c.l.b16 %v104
    %v1460 = vunpack.c.h.b16 %v104
    %v1461 = vunpack.c.l.b16 %v105
    %v1462 = vunpack.c.h.b16 %v105
    %v1463 = vunpack.c.l.b16 %v106
    %v1464 = vunpack.c.h.b16 %v106
    %v1465 = vunpack.c.l.b16 %v107
    %v1466 = vunpack.c.h.b16 %v107
    %v1467 = vunpack.c.l.b16 %v108
    %v1468 = vunpack.c.h.b16 %v108
    %v1469 = vunpack.c.l.b16 %v109
    %v1470 = vunpack.c.h.b16 %v109
    %v1471 = vunpack.c.l.b16 %v110
    %v1472 = vunpack.c.h.b16 %v110
    %v1473 = vunpack.c.l.b16 %v111
    %v1474 = vunpack.c.h.b16 %v111
    %v1475 = vunpack.c.l.b16 %v112
    %v1476 = vunpack.c.h.b16 %v112
    %v1477 = vunpack.c.l.b16 %v113
    %v1478 = vunpack.c.h.b16 %v113
    %v1479 = vunpack.c.l.b16 %v114
    %v1480 = vunpack.c.h.b16 %v114
    %v1481 = vunpack.c.l.b16 %v115
    %v1482 = vunpack.c.h.b16 %v115
    %v1483 = vunpack.c.l.b16 %v116
    %v1484 = vunpack.c.h.b16 %v116
    %v1485 = vunpack.c.l.b16 %v117
    %v1486 = vunpack.c.h.b16 %v117
    %v1487 = vunpack.c.l.b16 %v118
    %v1488 = vunpack.c.h.b16 %v118
    %v1489 = vunpack.c.l.b16 %v119
    %v1490 = vunpack.c.h.b16 %v119
    %v1491 = vunpack.c.l.b16 %v120
    %v1492 = vunpack.c.h.b16 %v120
    %v1493 = vunpack.c.l.b16 %v121
    %v1494 = vunpack.c.h.b16 %v121
    %v1495 = vunpack.c.l.b16 %v122
    %v1496 = vunpack.c.h.b16 %v122
    %v1497 = vunpack.c.l.b16 %v123
    %v1498 = vunpack.c.h.b16 %v123
    %v1499 = vunpack.c.l.b16 %v124
    %v1500 = vunpack.c.h.b16 %v124
    %v1501 = vunpack.c.l.b16 %v125
    %v1502 = vunpack.c.h.b16 %v125
    %v1503 = vunpack.c.l.b16 %v126
    %v1504 = vunpack.c.h.b16 %v126
    %v1505 = vunpack.c.l.b16 %v127
    %v1506 = vunpack.c.h.b16 %v127
    %v1507 = vunpack.c.l.b16 %v128
    %v1508 = vunpack.c.h.b16 %v128
    %v1509 = vunpack.c.l.b16 %v129
    %v1510 = vunpack.c.h.b16 %v129
    %v1511 = vunpack.c.l.b16 %v130
    %v1512 = vunpack.c.h.b16 %v130
    %v1513 = vunpack.c.l.b16 %v131
    %v1514 = vunpack.c.h.b16 %v131
    %v1515 = vunpack.c.l.b16 %v132
    %v1516 = vunpack.c.h.b16 %v132
    %v1517 = vunpack.c.l.b16 %v133
    %v1518 = vunpack.c.h.b16 %v133
    %v1519 = vunpack.c.l.b16 %v134
    %v1520 = vunpack.c.h.b16 %v134
    %v1521 = vunpack.c.l.b16 %v135
    %v1522 = vunpack.c.h.b16 %v135
    %v1523 = vunpack.c.l.b16 %v136
    %v1524 = vunpack.c.h.b16 %v136
    %v1525 = vunpack.c.l.b16 %v137
    %v1526 = vunpack.c.h.b16 %v137
    %v1527 = vunpack.c.l.b16 %v138
    %v1528 = vunpack.c.h.b16 %v138
    %v1529 = vunpack.c.l.b16 %v139
    %v1530 = vunpack.c.h.b16 %v139
    %v1531 = vunpack.c.l.b16 %v140
    %v1532 = vunpack.c.h.b16 %v140
    %v1533 = vunpack.c.l.b16 %v141
    %v1534 = vunpack.c.h.b16 %v141
    %v1535 = vunpack.c.l.b16 %v142
    %v1536 = vunpack.c.h.b16 %v142
    %v1537 = vunpack.c.l.b16 %v143
    %v1538 = vunpack.c.h.b16 %v143
    %v1539 = vunpack.c.l.b16 %v144
    %v1540 = vunpack.c.h.b16 %v144
    %v1541 = vunpack.c.l.b16 %v145
    %v1542 = vunpack.c.h.b16 %v145
    %v1543 = vunpack.c.l.b16 %v146
    %v1544 = vunpack.c.h.b16 %v146
    %v1545 = vunpack.c.l.b16 %v147
    %v1546 = vunpack.c.h.b16 %v147
    %v1547 = vunpack.c.l.b16 %v148
    %v1548 = vunpack.c.h.b16 %v148
    %v1549 = vunpack.c.l.b16 %v149
    %v1550 = vunpack.c.h.b16 %v149
    %v1551 = vunpack.c.l.b16 %v150
    %v1552 = vunpack.c.h.b16 %v150
    %v1553 = vunpack.c.l.b16 %v151
    %v1554 = vunpack.c.h.b16 %v151
    %v1555 = vunpack.c.l.b16 %v152
    %v1556 = vunpack.c.h.b16 %v152
    %v1557 = vunpack.c.l.b16 %v153
    %v1558 = vunpack.c.h.b16 %v153
    %v1559 = vunpack.c.l.b16 %v154
    %v1560 = vunpack.c.h.b16 %v154
    %v1561 = vunpack.c.l.b16 %v155
    %v1562 = vunpack.c.h.b16 %v155
    %v1563 = vunpack.c.l.b16 %v156
    %v1564 = vunpack.c.h.b16 %v156
    %v1565 = vunpack.c.l.b16 %v157
    %v1566 = vunpack.c.h.b16 %v157
    %v1567 = vunpack.c.l.b16 %v158
    %v1568 = vunpack.c.h.b16 %v158
    %v1569 = vunpack.c.l.b16 %v159
    %v1570 = vunpack.c.h.b16 %v159
    %v1571 = vunpack.c.l.b16 %v160
    %v1572 = vunpack.c.h.b16 %v160
    %v1573 = vunpack.c.l.b16 %v161
    %v1574 = vunpack.c.h.b16 %v161
    %v1575 = vunpack.c.l.b16 %v162
    %v1576 = vunpack.c.h.b16 %v162
    %v1577 = vunpack.c.l.b16 %v163
    %v1578 = vunpack.c.h.b16 %v163
    %v1579 = vunpack.c.l.b16 %v164
    %v1580 = vunpack.c.h.b16 %v164
    %v1581 = vunpack.c.l.b16 %v165
    %v1582 = vunpack.c.h.b16 %v165
    %v1583 = vunpack.c.l.b16 %v166
    %v1584 = vunpack.c.h.b16 %v166
    %v1585 = vunpack.c.l.b16 %v167
    %v1586 = vunpack.c.h.b16 %v167
    %v1587 = vunpack.c.l.b16 %v168
    %v1588 = vunpack.c.h.b16 %v168
    %v1589 = vunpack.c.l.b16 %v169
    %v1590 = vunpack.c.h.b16 %v169
    %v1591 = vunpack.c.l.b16 %v170
    %v1592 = vunpack.c.h.b16 %v170
    %v1593 = vunpack.c.l.b16 %v171
    %v1594 = vunpack.c.h.b16 %v171
    %v1595 = vunpack.c.l.b16 %v172
    %v1596 = vunpack.c.h.b16 %v172
    %v1597 = vunpack.c.l.b16 %v173
    %v1598 = vunpack.c.h.b16 %v173
    %v1599 = vunpack.c.l.b16 %v174
    %v1600 = vunpack.c.h.b16 %v174
    %v1601 = vunpack.c.l.b16 %v175
    %v1602 = vunpack.c.h.b16 %v175
    %v1603 = vunpack.c.l.b16 %v176
    %v1604 = vunpack.c.h.b16 %v176
    %v1605 = vunpack.c.l.b16 %v177
    %v1606 = vunpack.c.h.b16 %v177
    %v1607 = vunpack.c.l.b16 %v178
    %v1608 = vunpack.c.h.b16 %v178
    %v1609 = vunpack.c.l.b16 %v179
    %v1610 = vunpack.c.h.b16 %v179
    %v1611 = vunpack.c.l.b16 %v180
    %v1612 = vunpack.c.h.b16 %v180
    %v1613 = vunpack.c.l.b16 %v181
    %v1614 = vunpack.c.h.b16 %v181
    %v1615 = vunpack.c.l.b16 %v182
    %v1616 = vunpack.c.h.b16 %v182
    %v1617 = vunpack.c.l.b16 %v183
    %v1618 = vunpack.c.h.b16 %v183
    %v1619 = vunpack.c.l.b16 %v184
    %v1620 = vunpack.c.h.b16 %v184
    %v1621 = vunpack.c.l.b16 %v185
    %v1622 = vunpack.c.h.b16 %v185
    %v1623 = vunpack.c.l.b16 %v186
    %v1624 = vunpack.c.h.b16 %v186
    %v1625 = vunpack.c.l.b16 %v187
    %v1626 = vunpack.c.h.b16 %v187
    %v1627 = vunpack.c.l.b16 %v188
    %v1628 = vunpack.c.h.b16 %v188
    %v1629 = vunpack.c.l.b16 %v189
    %v1630 = vunpack.c.h.b16 %v189
    %v1631 = vunpack.c.l.b16 %v190
    %v1632 = vunpack.c.h.b16 %v190
    %v1633 = vunpack.c.l.b16 %v191
    %v1634 = vunpack.c.h.b16 %v191
    %v1635 = vunpack.c.l.b16 %v192
    %v1636 = vunpack.c.h.b16 %v192
    %v1637 = vunpack.c.l.b16 %v193
    %v1638 = vunpack.c.h.b16 %v193
    %v1639 = vunpack.c.l.b16 %v194
    %v1640 = vunpack.c.h.b16 %v194
    %v1641 = vunpack.c.l.b16 %v195
    %v1642 = vunpack.c.h.b16 %v195
    %v1643 = vunpack.c.l.b16 %v196
    %v1644 = vunpack.c.h.b16 %v196
    %v1645 = vunpack.c.l.b16 %v197
    %v1646 = vunpack.c.h.b16 %v197
    %v1647 = vunpack.c.l.b16 %v198
    %v1648 = vunpack.c.h.b16 %v198
    %v1649 = vunpack.c.l.b16 %v199
    %v1650 = vunpack.c.h.b16 %v199
    %v1651 = vunpack.c.l.b16 %v200
    %v1652 = vunpack.c.h.b16 %v200
    %v1653 = vunpack.c.l.b16 %v201
    %v1654 = vunpack.c.h.b16 %v201
    %v1655 = vunpack.c.l.b16 %v202
    %v1656 = vunpack.c.h.b16 %v202
    %v1657 = vunpack.c.l.b16 %v203
    %v1658 = vunpack.c.h.b16 %v203
    %v1659 = vunpack.c.l.b16 %v204
    %v1660 = vunpack.c.h.b16 %v204
    %v1661 = vunpack.c.l.b16 %v205
    %v1662 = vunpack.c.h.b16 %v205
    %v1663 = vunpack.c.l.b16 %v206
    %v1664 = vunpack.c.h.b16 %v206
    %v1665 = vunpack.c.l.b16 %v207
    %v1666 = vunpack.c.h.b16 %v207
    %v1667 = vunpack.c.l.b16 %v208
    %v1668 = vunpack.c.h.b16 %v208
    %v1669 = vunpack.c.l.b16 %v209
    %v1670 = vunpack.c.h.b16 %v209
    %v1671 = vunpack.c.l.b16 %v210
    %v1672 = vunpack.c.h.b16 %v210
    %v1673 = vunpack.c.l.b16 %v211
    %v1674 = vunpack.c.h.b16 %v211
    %v1675 = vunpack.c.l.b16 %v212
    %v1676 = vunpack.c.h.b16 %v212
    %v1677 = vunpack.c.l.b16 %v213
    %v1678 = vunpack.c.h.b16 %v213
    %v1679 = vunpack.c.l.b16 %v214
    %v1680 = vunpack.c.h.b16 %v214
    %v1681 = vunpack.c.l.b16 %v215
    %v1682 = vunpack.c.h.b16 %v215
    %v1683 = vunpack.c.l.b16 %v216
    %v1684 = vunpack.c.h.b16 %v216
    %v1685 = vunpack.c.l.b16 %v217
    %v1686 = vunpack.c.h.b16 %v217
    %v1687 = vunpack.c.l.b16 %v218
    %v1688 = vunpack.c.h.b16 %v218
    %v1689 = vunpack.c.l.b16 %v219
    %v1690 = vunpack.c.h.b16 %v219
    %v1691 = vunpack.c.l.b16 %v220
    %v1692 = vunpack.c.h.b16 %v220
    %v1693 = vunpack.c.l.b16 %v221
    %v1694 = vunpack.c.h.b16 %v221
    %v1695 = vunpack.c.l.b16 %v222
    %v1696 = vunpack.c.h.b16 %v222
    %v1697 = vunpack.c.l.b16 %v223
    %v1698 = vunpack.c.h.b16 %v223
    %v1699 = vunpack.c.l.b16 %v224
    %v1700 = vunpack.c.h.b16 %v224
    %v1701 = vunpack.c.l.b16 %v225
    %v1702 = vunpack.c.h.b16 %v225
    %v1703 = vunpack.c.l.b16 %v226
    %v1704 = vunpack.c.h.b16 %v226
    %v1705 = vunpack.c.l.b16 %v227
    %v1706 = vunpack.c.h.b16 %v227
    %v1707 = vunpack.c.l.b16 %v228
    %v1708 = vunpack.c.h.b16 %v228
    %v1709 = vunpack.c.l.b16 %v229
    %v1710 = vunpack.c.h.b16 %v229
    %v1711 = vunpack.c.l.b16 %v230
    %v1712 = vunpack.c.h.b16 %v230
    %v1713 = vunpack.c.l.b16 %v231
    %v1714 = vunpack.c.h.b16 %v231
    %v1715 = vunpack.c.l.b16 %v232
    %v1716 = vunpack.c.h.b16 %v232
    %v1717 = vunpack.c.l.b16 %v233
    %v1718 = vunpack.c.h.b16 %v233
    %v1719 = vunpack.c.l.b16 %v234
    %v1720 = vunpack.c.h.b16 %v234
    %v1721 = vunpack.c.l.b16 %v235
    %v1722 = vunpack.c.h.b16 %v235
    %v1723 = vunpack.c.l.b16 %v236
    %v1724 = vunpack.c.h.b16 %v236
    %v1725 = vunpack.c.l.b16 %v237
    %v1726 = vunpack.c.h.b16 %v237
    %v1727 = vunpack.c.l.b16 %v238
    %v1728 = vunpack.c.h.b16 %v238
    %v1729 = vunpack.c.l.b16 %v239
    %v1730 = vunpack.c.h.b16 %v239
    %v1731 = vunpack.c.l.b16 %v240
    %v1732 = vunpack.c.h.b16 %v240
    %v1733 = vunpack.c.l.b16 %v241
    %v1734 = vunpack.c.h.b16 %v241
    %v1735 = vunpack.c.l.b16 %v242
    %v1736 = vunpack.c.h.b16 %v242
    %v1737 = vunpack.c.l.b16 %v243
    %v1738 = vunpack.c.h.b16 %v243
    %v1739 = vunpack.c.l.b16 %v244
    %v1740 = vunpack.c.h.b16 %v244
    %v1741 = vunpack.c.l.b16 %v245
    %v1742 = vunpack.c.h.b16 %v245
    %v1743 = vunpack.c.l.b16 %v246
    %v1744 = vunpack.c.h.b16 %v246
    %v1745 = vunpack.c.l.b16 %v247
    %v1746 = vunpack.c.h.b16 %v247
    %v1747 = vunpack.c.l.b16 %v248
    %v1748 = vunpack.c.h.b16 %v248
    %v1749 = vunpack.c.l.b16 %v249
    %v1750 = vunpack.c.h.b16 %v249
    %v1751 = vunpack.c.l.b16 %v250
    %v1752 = vunpack.c.h.b16 %v250
    %v1753 = vunpack.c.l.b16 %v251
    %v1754 = vunpack.c.h.b16 %v251
    %v1755 = vunpack.c.l.b16 %v252
    %v1756 = vunpack.c.h.b16 %v252
    %v1757 = vunpack.c.l.b16 %v253
    %v1758 = vunpack.c.h.b16 %v253
    %v1759 = vunpack.c.l.b16 %v254
    %v1760 = vunpack.c.h.b16 %v254
    %v1761 = vunpack.c.l.b16 %v255
    %v1762 = vunpack.c.h.b16 %v255
    %v1763 = vunpack.c.l.b16 %v256
    %v1764 = vunpack.c.h.b16 %v256
    %v1765 = vunpack.c.l.b16 %v257
    %v1766 = vunpack.c.h.b16 %v257
    %v1767 = vunpack.c.l.b16 %v258
    %v1768 = vunpack.c.h.b16 %v258
    %v1769 = vunpack.c.l.b16 %v259
    %v1770 = vunpack.c.h.b16 %v259
    %v1771 = vunpack.c.l.b16 %v260
    %v1772 = vunpack.c.h.b16 %v260
    %v1773 = vunpack.c.l.b16 %v261
    %v1774 = vunpack.c.h.b16 %v261
    %v1775 = vunpack.c.l.b16 %v262
    %v1776 = vunpack.c.h.b16 %v262
    %v1777 = vunpack.c.l.b16 %v263
    %v1778 = vunpack.c.h.b16 %v263
    %v1779 = vunpack.c.l.b16 %v264
    %v1780 = vunpack.c.h.b16 %v264
    %v1781 = vunpack.c.l.b16 %v265
    %v1782 = vunpack.c.h.b16 %v265
    %v1783 = vunpack.c.l.b16 %v266
    %v1784 = vunpack.c.h.b16 %v266
    %v1785 = vunpack.c.l.b16 %v267
    %v1786 = vunpack.c.h.b16 %v267
    %v1787 = vunpack.c.l.b16 %v268
    %v1788 = vunpack.c.h.b16 %v268
    %v1789 = vunpack.c.l.b16 %v269
    %v1790 = vunpack.c.h.b16 %v269
    %v1791 = vunpack.c.l.b16 %v270
    %v1792 = vunpack.c.h.b16 %v270
    %v1793 = vunpack.c.l.b16 %v271
    %v1794 = vunpack.c.h.b16 %v271
    %v1795 = vunpack.c.l.b16 %v272
    %v1796 = vunpack.c.h.b16 %v272
    %v1797 = vunpack.c.l.b16 %v273
    %v1798 = vunpack.c.h.b16 %v273
    %v1799 = vunpack.c.l.b16 %v274
    %v1800 = vunpack.c.h.b16 %v274
    %v1801 = vunpack.c.l.b16 %v275
    %v1802 = vunpack.c.h.b16 %v275
    %v1803 = vunpack.c.l.b16 %v276
    %v1804 = vunpack.c.h.b16 %v276
    %v1805 = vunpack.c.l.b16 %v277
    %v1806 = vunpack.c.h.b16 %v277
    %v1807 = vunpack.c.l.b16 %v278
    %v1808 = vunpack.c.h.b16 %v278
    %v1809 = vunpack.c.l.b16 %v279
    %v1810 = vunpack.c.h.b16 %v279
    %v1811 = vunpack.c.l.b16 %v280
    %v1812 = vunpack.c.h.b16 %v280
    %v1813 = vunpack.c.l.b16 %v281
    %v1814 = vunpack.c.h.b16 %v281
    %v1815 = vunpack.c.l.b16 %v282
    %v1816 = vunpack.c.h.b16 %v282
    %v1817 = vunpack.c.l.b16 %v283
    %v1818 = vunpack.c.h.b16 %v283
    %v1819 = vunpack.c.l.b16 %v284
    %v1820 = vunpack.c.h.b16 %v284
    %v1821 = vunpack.c.l.b16 %v285
    %v1822 = vunpack.c.h.b16 %v285
    %v1823 = vunpack.c.l.b16 %v286
    %v1824 = vunpack.c.h.b16 %v286
    %v1825 = vunpack.c.l.b16 %v287
    %v1826 = vunpack.c.h.b16 %v287
    %v1827 = vunpack.c.l.b16 %v288
    %v1828 = vunpack.c.h.b16 %v288
    %v1829 = vunpack.c.l.b16 %v289
    %v1830 = vunpack.c.h.b16 %v289
    %v1831 = vunpack.c.l.b16 %v290
    %v1832 = vunpack.c.h.b16 %v290
    %v1833 = vunpack.c.l.b16 %v291
    %v1834 = vunpack.c.h.b16 %v291
    %v1835 = vunpack.c.l.b16 %v292
    %v1836 = vunpack.c.h.b16 %v292
    %v1837 = vunpack.c.l.b16 %v293
    %v1838 = vunpack.c.h.b16 %v293
    %v1839 = vunpack.c.l.b16 %v294
    %v1840 = vunpack.c.h.b16 %v294
    %v1841 = vunpack.c.l.b16 %v295
    %v1842 = vunpack.c.h.b16 %v295
    %v1843 = vunpack.c.l.b16 %v296
    %v1844 = vunpack.c.h.b16 %v296
    %v1845 = vunpack.c.l.b16 %v297
    %v1846 = vunpack.c.h.b16 %v297
    %v1847 = vunpack.c.l.b16 %v298
    %v1848 = vunpack.c.h.b16 %v298
    %v1849 = vunpack.c.l.b16 %v299
    %v1850 = vunpack.c.h.b16 %v299
    %v1851 = vunpack.c.l.b16 %v300
    %v1852 = vunpack.c.h.b16 %v300
    %v1853 = vunpack.c.l.b16 %v301
    %v1854 = vunpack.c.h.b16 %v301
    %v1855 = vunpack.c.l.b16 %v302
    %v1856 = vunpack.c.h.b16 %v302
    %v1857 = vunpack.c.l.b16 %v303
    %v1858 = vunpack.c.h.b16 %v303
    %v1859 = vunpack.c.l.b16 %v304
    %v1860 = vunpack.c.h.b16 %v304
    %v1861 = vunpack.c.l.b16 %v305
    %v1862 = vunpack.c.h.b16 %v305
    %v1863 = vunpack.c.l.b16 %v306
    %v1864 = vunpack.c.h.b16 %v306
    %v1865 = vunpack.c.l.b16 %v307
    %v1866 = vunpack.c.h.b16 %v307
    %v1867 = vunpack.c.l.b16 %v308
    %v1868 = vunpack.c.h.b16 %v308
    %v1869 = vunpack.c.l.b16 %v309
    %v1870 = vunpack.c.h.b16 %v309
    %v1871 = vunpack.c.l.b16 %v310
    %v1872 = vunpack.c.h.b16 %v310
    %v1873 = vunpack.c.l.b16 %v311
    %v1874 = vunpack.c.h.b16 %v311
    %v1875 = vunpack.c.l.b16 %v312
    %v1876 = vunpack.c.h.b16 %v312
    %v1877 = vunpack.c.l.b16 %v313
    %v1878 = vunpack.c.h.b16 %v313
    %v1879 = vunpack.c.l.b16 %v314
    %v1880 = vunpack.c.h.b16 %v314
    %v1881 = vunpack.c.l.b16 %v315
    %v1882 = vunpack.c.h.b16 %v315
    %v1883 = vunpack.c.l.b16 %v316
    %v1884 = vunpack.c.h.b16 %v316
    %v1885 = vunpack.c.l.b16 %v317
    %v1886 = vunpack.c.h.b16 %v317
    %v1887 = vunpack.c.l.b16 %v318
    %v1888 = vunpack.c.h.b16 %v318
    %v1889 = vunpack.c.l.b16 %v319
    %v1890 = vunpack.c.h.b16 %v319
    %v1891 = vunpack.c.l.b16 %v320
    %v1892 = vunpack.c.h.b16 %v320
    %v1893 = vunpack.c.l.b16 %v321
    %v1894 = vunpack.c.h.b16 %v321
    %v1895 = vunpack.c.l.b16 %v322
    %v1896 = vunpack.c.h.b16 %v322
    %v1897 = vunpack.c.l.b16 %v323
    %v1898 = vunpack.c.h.b16 %v323
    %v1899 = vunpack.c.l.b16 %v324
    %v1900 = vunpack.c.h.b16 %v324
    %v1901 = vunpack.c.l.b16 %v325
    %v1902 = vunpack.c.h.b16 %v325
    %v1903 = vunpack.c.l.b16 %v326
    %v1904 = vunpack.c.h.b16 %v326
    %v1905 = vunpack.c.l.b16 %v327
    %v1906 = vunpack.c.h.b16 %v327
    %v1907 = vunpack.c.l.b16 %v328
    %v1908 = vunpack.c.h.b16 %v328
    %v1909 = vunpack.c.l.b16 %v329
    %v1910 = vunpack.c.h.b16 %v329
    %v1911 = vunpack.c.l.b16 %v330
    %v1912 = vunpack.c.h.b16 %v330
    %v1913 = vunpack.c.l.b16 %v331
    %v1914 = vunpack.c.h.b16 %v331
    %v1915 = vunpack.c.l.b16 %v332
    %v1916 = vunpack.c.h.b16 %v332
    %v1917 = vunpack.c.l.b16 %v333
    %v1918 = vunpack.c.h.b16 %v333
    %v1919 = vunpack.c.l.b16 %v334
    %v1920 = vunpack.c.h.b16 %v334
    %v1921 = vunpack.c.l.b16 %v335
    %v1922 = vunpack.c.h.b16 %v335
    %v1923 = vunpack.c.l.b16 %v336
    %v1924 = vunpack.c.h.b16 %v336
    %v1925 = vunpack.c.l.b16 %v337
    %v1926 = vunpack.c.h.b16 %v337
    %v1927 = vunpack.c.l.b16 %v338
    %v1928 = vunpack.c.h.b16 %v338
    %v1929 = vunpack.c.l.b16 %v339
    %v1930 = vunpack.c.h.b16 %v339
    %v1931 = vunpack.c.l.b16 %v340
    %v1932 = vunpack.c.h.b16 %v340
    %v1933 = vunpack.c.l.b16 %v341
    %v1934 = vunpack.c.h.b16 %v341
    %v1935 = vunpack.c.l.b16 %v342
    %v1936 = vunpack.c.h.b16 %v342
    %v1937 = vunpack.c.l.b16 %v343
    %v1938 = vunpack.c.h.b16 %v343
    %v1939 = vunpack.c.l.b16 %v344
    %v1940 = vunpack.c.h.b16 %v344
    %v1941 = vunpack.c.l.b16 %v345
    %v1942 = vunpack.c.h.b16 %v345
    %v1943 = vunpack.c.l.b16 %v346
    %v1944 = vunpack.c.h.b16 %v346
    %v1945 = vunpack.c.l.b16 %v347
    %v1946 = vunpack.c.h.b16 %v347
    %v1947 = vunpack.c.l.b16 %v348
    %v1948 = vunpack.c.h.b16 %v348
    %v1949 = vunpack.c.l.b16 %v349
    %v1950 = vunpack.c.h.b16 %v349
    %v1951 = vunpack.c.l.b16 %v350
    %v1952 = vunpack.c.h.b16 %v350
    %v1953 = vunpack.c.l.b16 %v351
    %v1954 = vunpack.c.h.b16 %v351
    %v1955 = vunpack.c.l.b16 %v352
    %v1956 = vunpack.c.h.b16 %v352
    %v1957 = vunpack.c.l.b16 %v353
    %v1958 = vunpack.c.h.b16 %v353
    %v1959 = vunpack.c.l.b16 %v354
    %v1960 = vunpack.c.h.b16 %v354
    %v1961 = vunpack.c.l.b16 %v355
    %v1962 = vunpack.c.h.b16 %v355
    %v1963 = vunpack.c.l.b16 %v356
    %v1964 = vunpack.c.h.b16 %v356
    %v1965 = vunpack.c.l.b16 %v357
    %v1966 = vunpack.c.h.b16 %v357
    %v1967 = vunpack.c.l.b16 %v358
    %v1968 = vunpack.c.h.b16 %v358
    %v1969 = vunpack.c.l.b16 %v359
    %v1970 = vunpack.c.h.b16 %v359
    %v1971 = vunpack.c.l.b16 %v360
    %v1972 = vunpack.c.h.b16 %v360
    %v1973 = vunpack.c.l.b16 %v361
    %v1974 = vunpack.c.h.b16 %v361
    %v1975 = vunpack.c.l.b16 %v362
    %v1976 = vunpack.c.h.b16 %v362
    %v1977 = vunpack.c.l.b16 %v363
    %v1978 = vunpack.c.h.b16 %v363
    %v1979 = vunpack.c.l.b16 %v364
    %v1980 = vunpack.c.h.b16 %v364
    %v1981 = vunpack.c.l.b16 %v365
    %v1982 = vunpack.c.h.b16 %v365
    %v1983 = vunpack.c.l.b16 %v366
    %v1984 = vunpack.c.h.b16 %v366
    %v1985 = vunpack.c.l.b16 %v367
    %v1986 = vunpack.c.h.b16 %v367
    %v1987 = vunpack.c.l.b16 %v368
    %v1988 = vunpack.c.h.b16 %v368
    %v1989 = vunpack.c.l.b16 %v369
    %v1990 = vunpack.c.h.b16 %v369
    %v1991 = vunpack.c.l.b16 %v370
    %v1992 = vunpack.c.h.b16 %v370
    %v1993 = vunpack.c.l.b16 %v371
    %v1994 = vunpack.c.h.b16 %v371
    %v1995 = vunpack.c.l.b16 %v372
    %v1996 = vunpack.c.h.b16 %v372
    %v1997 = vunpack.c.l.b16 %v373
    %v1998 = vunpack.c.h.b16 %v373
    %v1999 = vunpack.c.l.b16 %v374
    %v2000 = vunpack.c.h.b16 %v374
    %v2001 = vunpack.c.l.b16 %v375
    %v2002 = vunpack.c.h.b16 %v375
    %v2003 = vunpack.c.l.b16 %v376
    %v2004 = vunpack.c.h.b16 %v376
    %v2005 = vunpack.c.l.b16 %v377
    %v2006 = vunpack.c.h.b16 %v377
    %v2007 = vunpack.c.l.b16 %v378
    %v2008 = vunpack.c.h.b16 %v378
    %v2009 = vunpack.c.l.b16 %v379
    %v2010 = vunpack.c.h.b16 %v379
    %v2011 = vunpack.c.l.b16 %v380
    %v2012 = vunpack.c.h.b16 %v380
    %v2013 = vunpack.c.l.b16 %v381
    %v2014 = vunpack.c.h.b16 %v381
    %v2015 = vunpack.c.l.b16 %v382
    %v2016 = vunpack.c.h.b16 %v382
    %v2017 = vunpack.c.l.b16 %v383
    %v2018 = vunpack.c.h.b16 %v383
    %v2019 = vunpack.c.l.b16 %v384
    %v2020 = vunpack.c.h.b16 %v384
    %v2021 = vunpack.c.l.b16 %v385
    %v2022 = vunpack.c.h.b16 %v385
    %v2023 = vunpack.c.l.b16 %v386
    %v2024 = vunpack.c.h.b16 %v386
    %v2025 = vunpack.c.l.b16 %v387
    %v2026 = vunpack.c.h.b16 %v387
    %v2027 = vunpack.c.l.b16 %v388
    %v2028 = vunpack.c.h.b16 %v388
    %v2029 = vunpack.c.l.b16 %v389
    %v2030 = vunpack.c.h.b16 %v389
    %v2031 = vunpack.c.l.b16 %v390
    %v2032 = vunpack.c.h.b16 %v390
    %v2033 = vunpack.c.l.b16 %v391
    %v2034 = vunpack.c.h.b16 %v391
    %v2035 = vunpack.c.l.b16 %v392
    %v2036 = vunpack.c.h.b16 %v392
    %v2037 = vunpack.c.l.b16 %v393
    %v2038 = vunpack.c.h.b16 %v393
    %v2039 = vunpack.c.l.b16 %v394
    %v2040 = vunpack.c.h.b16 %v394
    %v2041 = vunpack.c.l.b16 %v395
    %v2042 = vunpack.c.h.b16 %v395
    %v2043 = vunpack.c.l.b16 %v396
    %v2044 = vunpack.c.h.b16 %v396
    %v2045 = vunpack.c.l.b16 %v397
    %v2046 = vunpack.c.h.b16 %v397
    %v2047 = vunpack.c.l.b16 %v398
    %v2048 = vunpack.c.h.b16 %v398
    %v2049 = vunpack.c.l.b16 %v399
    %v2050 = vunpack.c.h.b16 %v399
    %v2051 = vunpack.c.l.b16 %v400
    %v2052 = vunpack.c.h.b16 %v400
    %v2053 = vunpack.c.l.b16 %v401
    %v2054 = vunpack.c.h.b16 %v401
    %v2055 = vunpack.c.l.b16 %v402
    %v2056 = vunpack.c.h.b16 %v402
    %v2057 = vunpack.c.l.b16 %v403
    %v2058 = vunpack.c.h.b16 %v403
    %v2059 = vunpack.c.l.b16 %v404
    %v2060 = vunpack.c.h.b16 %v404
    %v2061 = vunpack.c.l.b16 %v405
    %v2062 = vunpack.c.h.b16 %v405
    %v2063 = vunpack.c.l.b16 %v406
    %v2064 = vunpack.c.h.b16 %v406
    %v2065 = vunpack.c.l.b16 %v407
    %v2066 = vunpack.c.h.b16 %v407
    %v2067 = vunpack.c.l.b16 %v408
    %v2068 = vunpack.c.h.b16 %v408
    %v2069 = vunpack.c.l.b16 %v409
    %v2070 = vunpack.c.h.b16 %v409
    %v2071 = vunpack.c.l.b16 %v410
    %v2072 = vunpack.c.h.b16 %v410
    %v2073 = vunpack.c.l.b16 %v411
    %v2074 = vunpack.c.h.b16 %v411
    %v2075 = vunpack.c.l.b16 %v412
    %v2076 = vunpack.c.h.b16 %v412
    %v2077 = vunpack.c.l.b16 %v413
    %v2078 = vunpack.c.h.b16 %v413
    %v2079 = vunpack.c.l.b16 %v414
    %v2080 = vunpack.c.h.b16 %v414
    %v2081 = vunpack.c.l.b16 %v415
    %v2082 = vunpack.c.h.b16 %v415
    %v2083 = vunpack.c.l.b16 %v416
    %v2084 = vunpack.c.h.b16 %v416
    %v2085 = vunpack.c.l.b16 %v417
    %v2086 = vunpack.c.h.b16 %v417
    %v2087 = vunpack.c.l.b16 %v418
    %v2088 = vunpack.c.h.b16 %v418
    %v2089 = vunpack.c.l.b16 %v419
    %v2090 = vunpack.c.h.b16 %v419
    %v2091 = vunpack.c.l.b16 %v420
    %v2092 = vunpack.c.h.b16 %v420
    %v2093 = vunpack.c.l.b16 %v421
    %v2094 = vunpack.c.h.b16 %v421
    %v2095 = vunpack.c.l.b16 %v422
    %v2096 = vunpack.c.h.b16 %v422
    %v2097 = vunpack.c.l.b16 %v423
    %v2098 = vunpack.c.h.b16 %v423
    %v2099 = vunpack.c.l.b16 %v424
    %v2100 = vunpack.c.h.b16 %v424
    %v2101 = vunpack.c.l.b16 %v425
    %v2102 = vunpack.c.h.b16 %v425
    %v2103 = vunpack.c.l.b16 %v426
    %v2104 = vunpack.c.h.b16 %v426
    %v2105 = vunpack.c.l.b16 %v427
    %v2106 = vunpack.c.h.b16 %v427
    %v2107 = vunpack.c.l.b16 %v428
    %v2108 = vunpack.c.h.b16 %v428
    %v2109 = vunpack.c.l.b16 %v429
    %v2110 = vunpack.c.h.b16 %v429
    %v2111 = vunpack.c.l.b16 %v430
    %v2112 = vunpack.c.h.b16 %v430
    %v2113 = vunpack.c.l.b16 %v431
    %v2114 = vunpack.c.h.b16 %v431
    %v2115 = vunpack.c.l.b16 %v432
    %v2116 = vunpack.c.h.b16 %v432
    %v2117 = vunpack.c.l.b16 %v433
    %v2118 = vunpack.c.h.b16 %v433
    %v2119 = vunpack.c.l.b16 %v434
    %v2120 = vunpack.c.h.b16 %v434
    %v2121 = vunpack.c.l.b16 %v435
    %v2122 = vunpack.c.h.b16 %v435
    %v2123 = vunpack.c.l.b16 %v436
    %v2124 = vunpack.c.h.b16 %v436
    %v2125 = vunpack.c.l.b16 %v437
    %v2126 = vunpack.c.h.b16 %v437
    %v2127 = vunpack.c.l.b16 %v438
    %v2128 = vunpack.c.h.b16 %v438
    %v2129 = vunpack.c.l.b16 %v439
    %v2130 = vunpack.c.h.b16 %v439
    %v2131 = vunpack.c.l.b16 %v440
    %v2132 = vunpack.c.h.b16 %v440
    %v2133 = vunpack.c.l.b16 %v441
    %v2134 = vunpack.c.h.b16 %v441
    %v2135 = vunpack.c.l.b16 %v442
    %v2136 = vunpack.c.h.b16 %v442
    %v2137 = vunpack.c.l.b16 %v443
    %v2138 = vunpack.c.h.b16 %v443
    %v2139 = vunpack.c.l.b16 %v444
    %v2140 = vunpack.c.h.b16 %v444
    %v2141 = vunpack.c.l.b16 %v445
    %v2142 = vunpack.c.h.b16 %v445
    %v2143 = vunpack.c.l.b16 %v446
    %v2144 = vunpack.c.h.b16 %v446
    %v2145 = vunpack.c.l.b16 %v447
    %v2146 = vunpack.c.h.b16 %v447
    %v2147 = vunpack.c.l.b16 %v448
    %v2148 = vunpack.c.h.b16 %v448
    %v2149 = vunpack.c.l.b16 %v449
    %v2150 = vunpack.c.h.b16 %v449
    %v2151 = vunpack.c.l.b16 %v450
    %v2152 = vunpack.c.h.b16 %v450
    %v2153 = vunpack.c.l.b16 %v451
    %v2154 = vunpack.c.h.b16 %v451
    %v2155 = vunpack.c.l.b16 %v452
    %v2156 = vunpack.c.h.b16 %v452
    %v2157 = vunpack.c.l.b16 %v453
    %v2158 = vunpack.c.h.b16 %v453
    %v2159 = vunpack.c.l.b16 %v454
    %v2160 = vunpack.c.h.b16 %v454
    %v2161 = vunpack.c.l.b16 %v455
    %v2162 = vunpack.c.h.b16 %v455
    %v2163 = vunpack.c.l.b16 %v456
    %v2164 = vunpack.c.h.b16 %v456
    %v2165 = vunpack.c.l.b16 %v457
    %v2166 = vunpack.c.h.b16 %v457
    %v2167 = vunpack.c.l.b16 %v458
    %v2168 = vunpack.c.h.b16 %v458
    %v2169 = vunpack.c.l.b16 %v459
    %v2170 = vunpack.c.h.b16 %v459
    %v2171 = vunpack.c.l.b16 %v460
    %v2172 = vunpack.c.h.b16 %v460
    %v2173 = vunpack.c.l.b16 %v461
    %v2174 = vunpack.c.h.b16 %v461
    %v2175 = vunpack.c.l.b16 %v462
    %v2176 = vunpack.c.h.b16 %v462
    %v2177 = vunpack.c.l.b16 %v463
    %v2178 = vunpack.c.h.b16 %v463
    %v2179 = vunpack.c.l.b16 %v464
    %v2180 = vunpack.c.h.b16 %v464
    %v2181 = vunpack.c.l.b16 %v465
    %v2182 = vunpack.c.h.b16 %v465
    %v2183 = vunpack.c.l.b16 %v466
    %v2184 = vunpack.c.h.b16 %v466
    %v2185 = vunpack.c.l.b16 %v467
    %v2186 = vunpack.c.h.b16 %v467
    %v2187 = vunpack.c.l.b16 %v468
    %v2188 = vunpack.c.h.b16 %v468
    %v2189 = vunpack.c.l.b16 %v469
    %v2190 = vunpack.c.h.b16 %v469
    %v2191 = vunpack.c.l.b16 %v470
    %v2192 = vunpack.c.h.b16 %v470
    %v2193 = vunpack.c.l.b16 %v471
    %v2194 = vunpack.c.h.b16 %v471
    %v2195 = vunpack.c.l.b16 %v472
    %v2196 = vunpack.c.h.b16 %v472
    %v2197 = vunpack.c.l.b16 %v473
    %v2198 = vunpack.c.h.b16 %v473
    %v2199 = vunpack.c.l.b16 %v474
    %v2200 = vunpack.c.h.b16 %v474
    %v2201 = vunpack.c.l.b16 %v475
    %v2202 = vunpack.c.h.b16 %v475
    %v2203 = vunpack.c.l.b16 %v476
    %v2204 = vunpack.c.h.b16 %v476
    %v2205 = vunpack.c.l.b16 %v477
    %v2206 = vunpack.c.h.b16 %v477
    %v2207 = vunpack.c.l.b16 %v478
    %v2208 = vunpack.c.h.b16 %v478
    %v2209 = vunpack.c.l.b16 %v479
    %v2210 = vunpack.c.h.b16 %v479
    %v2211 = vunpack.c.l.b16 %v480
    %v2212 = vunpack.c.h.b16 %v480
    %v2213 = vunpack.c.l.b16 %v481
    %v2214 = vunpack.c.h.b16 %v481
    %v2215 = vunpack.c.l.b16 %v482
    %v2216 = vunpack.c.h.b16 %v482
    %v2217 = vunpack.c.l.b16 %v483
    %v2218 = vunpack.c.h.b16 %v483
    %v2219 = vunpack.c.l.b16 %v484
    %v2220 = vunpack.c.h.b16 %v484
    %v2221 = vunpack.c.l.b16 %v485
    %v2222 = vunpack.c.h.b16 %v485
    %v2223 = vunpack.c.l.b16 %v486
    %v2224 = vunpack.c.h.b16 %v486
    %v2225 = vunpack.c.l.b16 %v487
    %v2226 = vunpack.c.h.b16 %v487
    %v2227 = vunpack.c.l.b16 %v488
    %v2228 = vunpack.c.h.b16 %v488
    %v2229 = vunpack.c.l.b16 %v489
    %v2230 = vunpack.c.h.b16 %v489
    %v2231 = vunpack.c.l.b16 %v490
    %v2232 = vunpack.c.h.b16 %v490
    %v2233 = vunpack.c.l.b16 %v491
    %v2234 = vunpack.c.h.b16 %v491
    %v2235 = vunpack.c.l.b16 %v492
    %v2236 = vunpack.c.h.b16 %v492
    %v2237 = vunpack.c.l.b16 %v493
    %v2238 = vunpack.c.h.b16 %v493
    %v2239 = vunpack.c.l.b16 %v494
    %v2240 = vunpack.c.h.b16 %v494
    %v2241 = vunpack.c.l.b16 %v495
    %v2242 = vunpack.c.h.b16 %v495
    %v2243 = vunpack.c.l.b16 %v496
    %v2244 = vunpack.c.h.b16 %v496
    %v2245 = vunpack.c.l.b16 %v497
    %v2246 = vunpack.c.h.b16 %v497
    %v2247 = vunpack.c.l.b16 %v498
    %v2248 = vunpack.c.h.b16 %v498
    %v2249 = vunpack.c.l.b16 %v499
    %v2250 = vunpack.c.h.b16 %v499
    %v2251 = vunpack.c.l.b16 %v500
    %v2252 = vunpack.c.h.b16 %v500
    %v2253 = vunpack.c.l.b16 %v501
    %v2254 = vunpack.c.h.b16 %v501
    %v2255 = vunpack.c.l.b16 %v502
    %v2256 = vunpack.c.h.b16 %v502
    %v2257 = vunpack.c.l.b16 %v503
    %v2258 = vunpack.c.h.b16 %v503
    %v2259 = vunpack.c.l.b16 %v504
    %v2260 = vunpack.c.h.b16 %v504
    %v2261 = vunpack.c.l.b16 %v505
    %v2262 = vunpack.c.h.b16 %v505
    %v2263 = vunpack.c.l.b16 %v506
    %v2264 = vunpack.c.h.b16 %v506
    %v2265 = vunpack.c.l.b16 %v507
    %v2266 = vunpack.c.h.b16 %v507
    %v2267 = vunpack.c.l.b16 %v508
    %v2268 = vunpack.c.h.b16 %v508
    %v2269 = vunpack.c.l.b16 %v509
    %v2270 = vunpack.c.h.b16 %v509
    %v2271 = vunpack.c.l.b16 %v510
    %v2272 = vunpack.c.h.b16 %v510
    %v2273 = vunpack.c.l.b16 %v511
    %v2274 = vunpack.c.h.b16 %v511
    %v2275 = vunpack.c.l.b16 %v512
    %v2276 = vunpack.c.h.b16 %v512
    %v2277 = vunpack.c.l.b16 %v513
    %v2278 = vunpack.c.h.b16 %v513
    %v2279 = vunpack.c.l.b16 %v514
    %v2280 = vunpack.c.h.b16 %v514
    %v2281 = vunpack.c.l.b16 %v515
    %v2282 = vunpack.c.h.b16 %v515
    %v2283 = vunpack.c.l.b16 %v516
    %v2284 = vunpack.c.h.b16 %v516
    %v2285 = vunpack.c.l.b16 %v517
    %v2286 = vunpack.c.h.b16 %v517
    %v2287 = vunpack.c.l.b16 %v518
    %v2288 = vunpack.c.h.b16 %v518
    %v2289 = vunpack.c.l.b16 %v519
    %v2290 = vunpack.c.h.b16 %v519
    %v2291 = vunpack.c.l.b16 %v520
    %v2292 = vunpack.c.h.b16 %v520
    %v2293 = vunpack.c.l.b16 %v521
    %v2294 = vunpack.c.h.b16 %v521
    %v2295 = vunpack.c.l.b16 %v522
    %v2296 = vunpack.c.h.b16 %v522
    %v2297 = vunpack.c.l.b16 %v523
    %v2298 = vunpack.c.h.b16 %v523
    %v2299 = vunpack.c.l.b16 %v524
    %v2300 = vunpack.c.h.b16 %v524
    %v2301 = vunpack.c.l.b16 %v525
    %v2302 = vunpack.c.h.b16 %v525
    %v2303 = vunpack.c.l.b16 %v526
    %v2304 = vunpack.c.h.b16 %v526
    %v2305 = vunpack.c.l.b16 %v527
    %v2306 = vunpack.c.h.b16 %v527
    %v2307 = vunpack.c.l.b16 %v528
    %v2308 = vunpack.c.h.b16 %v528
    %v2309 = vunpack.c.l.b16 %v529
    %v2310 = vunpack.c.h.b16 %v529
    %v2311 = vunpack.c.l.b16 %v530
    %v2312 = vunpack.c.h.b16 %v530
    %v2313 = vunpack.c.l.b16 %v531
    %v2314 = vunpack.c.h.b16 %v531
    %v2315 = vunpack.c.l.b16 %v532
    %v2316 = vunpack.c.h.b16 %v532
    %v2317 = vunpack.c.l.b16 %v533
    %v2318 = vunpack.c.h.b16 %v533
    %v2319 = vunpack.c.l.b16 %v534
    %v2320 = vunpack.c.h.b16 %v534
    %v2321 = vunpack.c.l.b16 %v535
    %v2322 = vunpack.c.h.b16 %v535
    %v2323 = vunpack.c.l.b16 %v536
    %v2324 = vunpack.c.h.b16 %v536
    %v2325 = vunpack.c.l.b16 %v537
    %v2326 = vunpack.c.h.b16 %v537
    %v2327 = vunpack.c.l.b16 %v538
    %v2328 = vunpack.c.h.b16 %v538
    %v2329 = vunpack.c.l.b16 %v539
    %v2330 = vunpack.c.h.b16 %v539
    %v2331 = vunpack.c.l.b16 %v540
    %v2332 = vunpack.c.h.b16 %v540
    %v2333 = vunpack.c.l.b16 %v541
    %v2334 = vunpack.c.h.b16 %v541
    %v2335 = vunpack.c.l.b16 %v542
    %v2336 = vunpack.c.h.b16 %v542
    %v2337 = vunpack.c.l.b16 %v543
    %v2338 = vunpack.c.h.b16 %v543
    %v2339 = vunpack.c.l.b16 %v544
    %v2340 = vunpack.c.h.b16 %v544
    %v2341 = vunpack.c.l.b16 %v545
    %v2342 = vunpack.c.h.b16 %v545
    %v2343 = vunpack.c.l.b16 %v546
    %v2344 = vunpack.c.h.b16 %v546
    %v2345 = vunpack.c.l.b16 %v547
    %v2346 = vunpack.c.h.b16 %v547
    %v2347 = vunpack.c.l.b16 %v548
    %v2348 = vunpack.c.h.b16 %v548
    %v2349 = vunpack.c.l.b16 %v549
    %v2350 = vunpack.c.h.b16 %v549
    %v2351 = vunpack.c.l.b16 %v550
    %v2352 = vunpack.c.h.b16 %v550
    %v2353 = vunpack.c.l.b16 %v551
    %v2354 = vunpack.c.h.b16 %v551
    %v2355 = vunpack.c.l.b16 %v552
    %v2356 = vunpack.c.h.b16 %v552
    %v2357 = vunpack.c.l.b16 %v553
    %v2358 = vunpack.c.h.b16 %v553
    %v2359 = vunpack.c.l.b16 %v554
    %v2360 = vunpack.c.h.b16 %v554
    %v2361 = vunpack.c.l.b16 %v555
    %v2362 = vunpack.c.h.b16 %v555
    %v2363 = vunpack.c.l.b16 %v556
    %v2364 = vunpack.c.h.b16 %v556
    %v2365 = vunpack.c.l.b16 %v557
    %v2366 = vunpack.c.h.b16 %v557
    %v2367 = vunpack.c.l.b16 %v558
    %v2368 = vunpack.c.h.b16 %v558
    %v2369 = vunpack.c.l.b16 %v559
    %v2370 = vunpack.c.h.b16 %v559
    %v2371 = vunpack.c.l.b16 %v560
    %v2372 = vunpack.c.h.b16 %v560
    %v2373 = vunpack.c.l.b16 %v561
    %v2374 = vunpack.c.h.b16 %v561
    %v2375 = vunpack.c.l.b16 %v562
    %v2376 = vunpack.c.h.b16 %v562
    %v2377 = vunpack.c.l.b16 %v563
    %v2378 = vunpack.c.h.b16 %v563
    %v2379 = vunpack.c.l.b16 %v564
    %v2380 = vunpack.c.h.b16 %v564
    %v2381 = vunpack.c.l.b16 %v565
    %v2382 = vunpack.c.h.b16 %v565
    %v2383 = vunpack.c.l.b16 %v566
    %v2384 = vunpack.c.h.b16 %v566
    %v2385 = vunpack.c.l.b16 %v567
    %v2386 = vunpack.c.h.b16 %v567
    %v2387 = vunpack.c.l.b16 %v568
    %v2388 = vunpack.c.h.b16 %v568
    %v2389 = vunpack.c.l.b16 %v569
    %v2390 = vunpack.c.h.b16 %v569
    %v2391 = vunpack.c.l.b16 %v570
    %v2392 = vunpack.c.h.b16 %v570
    %v2393 = vunpack.c.l.b16 %v571
    %v2394 = vunpack.c.h.b16 %v571
    %v2395 = vunpack.c.l.b16 %v572
    %v2396 = vunpack.c.h.b16 %v572
    %v2397 = vunpack.c.l.b16 %v573
    %v2398 = vunpack.c.h.b16 %v573
    %v2399 = vunpack.c.l.b16 %v574
    %v2400 = vunpack.c.h.b16 %v574
    %v2401 = vunpack.c.l.b16 %v575
    %v2402 = vunpack.c.h.b16 %v575
    %v2403 = vunpack.c.l.b16 %v576
    %v2404 = vunpack.c.h.b16 %v576
    %v2405 = vunpack.c.l.b16 %v577
    %v2406 = vunpack.c.h.b16 %v577
    %v2407 = vunpack.c.l.b16 %v578
    %v2408 = vunpack.c.h.b16 %v578
    %v2409 = vunpack.c.l.b16 %v579
    %v2410 = vunpack.c.h.b16 %v579
    %v2411 = vunpack.c.l.b16 %v580
    %v2412 = vunpack.c.h.b16 %v580
    %v2413 = vunpack.c.l.b16 %v581
    %v2414 = vunpack.c.h.b16 %v581
    %v2415 = vunpack.c.l.b16 %v582
    %v2416 = vunpack.c.h.b16 %v582
    %v2417 = vunpack.c.l.b16 %v583
    %v2418 = vunpack.c.h.b16 %v583
    %v2419 = vunpack.c.l.b16 %v584
    %v2420 = vunpack.c.h.b16 %v584
    %v2421 = vunpack.c.l.b16 %v585
    %v2422 = vunpack.c.h.b16 %v585
    %v2423 = vunpack.c.l.b16 %v586
    %v2424 = vunpack.c.h.b16 %v586
    %v2425 = vunpack.c.l.b16 %v587
    %v2426 = vunpack.c.h.b16 %v587
    %v2427 = vunpack.c.l.b16 %v588
    %v2428 = vunpack.c.h.b16 %v588
    %v2429 = vunpack.c.l.b16 %v589
    %v2430 = vunpack.c.h.b16 %v589
    %v2431 = vunpack.c.l.b16 %v590
    %v2432 = vunpack.c.h.b16 %v590
    %v2433 = vunpack.c.l.b16 %v591
    %v2434 = vunpack.c.h.b16 %v591
    %v2435 = vunpack.c.l.b16 %v592
    %v2436 = vunpack.c.h.b16 %v592
    %v2437 = vunpack.c.l.b16 %v593
    %v2438 = vunpack.c.h.b16 %v593
    %v2439 = vunpack.c.l.b16 %v594
    %v2440 = vunpack.c.h.b16 %v594
    %v2441 = vunpack.c.l.b16 %v595
    %v2442 = vunpack.c.h.b16 %v595
    %v2443 = vunpack.c.l.b16 %v596
    %v2444 = vunpack.c.h.b16 %v596
    %v2445 = vunpack.c.l.b16 %v597
    %v2446 = vunpack.c.h.b16 %v597
    %v2447 = vunpack.c.l.b16 %v598
    %v2448 = vunpack.c.h.b16 %v598
    %v2449 = vunpack.c.l.b16 %v599
    %v2450 = vunpack.c.h.b16 %v599
    %v2451 = vunpack.c.l.b16 %v600
    %v2452 = vunpack.c.h.b16 %v600
    %v2453 = vunpack.c.l.b16 %v601
    %v2454 = vunpack.c.h.b16 %v601
    %v2455 = vunpack.c.l.b16 %v602
    %v2456 = vunpack.c.h.b16 %v602
    %v2457 = vunpack.c.l.b16 %v603
    %v2458 = vunpack.c.h.b16 %v603
    %v2459 = vunpack.c.l.b16 %v604
    %v2460 = vunpack.c.h.b16 %v604
    %v2461 = vunpack.c.l.b16 %v605
    %v2462 = vunpack.c.h.b16 %v605
    %v2463 = vunpack.c.l.b16 %v606
    %v2464 = vunpack.c.h.b16 %v606
    %v2465 = vunpack.c.l.b16 %v607
    %v2466 = vunpack.c.h.b16 %v607
    %v2467 = vunpack.c.l.b16 %v608
    %v2468 = vunpack.c.h.b16 %v608
    %v2469 = vunpack.c.l.b16 %v609
    %v2470 = vunpack.c.h.b16 %v609
    %v2471 = vunpack.c.l.b16 %v610
    %v2472 = vunpack.c.h.b16 %v610
    %v2473 = vunpack.c.l.b16 %v611
    %v2474 = vunpack.c.h.b16 %v611
    %v2475 = vunpack.c.l.b16 %v612
    %v2476 = vunpack.c.h.b16 %v612
    %v2477 = vunpack.c.l.b16 %v613
    %v2478 = vunpack.c.h.b16 %v613
    %v2479 = vunpack.c.l.b16 %v614
    %v2480 = vunpack.c.h.b16 %v614
    %v2481 = vunpack.c.l.b16 %v615
    %v2482 = vunpack.c.h.b16 %v615
    %v2483 = vunpack.c.l.b16 %v616
    %v2484 = vunpack.c.h.b16 %v616
    %v2485 = vunpack.c.l.b16 %v617
    %v2486 = vunpack.c.h.b16 %v617
    %v2487 = vunpack.c.l.b16 %v618
    %v2488 = vunpack.c.h.b16 %v618
    %v2489 = vunpack.c.l.b16 %v619
    %v2490 = vunpack.c.h.b16 %v619
    %v2491 = vunpack.c.l.b16 %v620
    %v2492 = vunpack.c.h.b16 %v620
    %v2493 = vunpack.c.l.b16 %v621
    %v2494 = vunpack.c.h.b16 %v621
    %v2495 = vunpack.c.l.b16 %v622
    %v2496 = vunpack.c.h.b16 %v622
    %v2497 = vunpack.c.l.b16 %v623
    %v2498 = vunpack.c.h.b16 %v623
    %v2499 = vunpack.c.l.b16 %v624
    %v2500 = vunpack.c.h.b16 %v624
    %v2501 = vunpack.c.l.b16 %v625
    %v2502 = vunpack.c.h.b16 %v625
    %v2503 = vunpack.c.l.b16 %v626
    %v2504 = vunpack.c.h.b16 %v626
    %v2505 = vunpack.c.l.b16 %v627
    %v2506 = vunpack.c.h.b16 %v627
    %v2507 = vunpack.c.l.b16 %v628
    %v2508 = vunpack.c.h.b16 %v628
    %v2509 = vunpack.c.l.b16 %v629
    %v2510 = vunpack.c.h.b16 %v629
    %v2511 = vunpack.c.l.b16 %v630
    %v2512 = vunpack.c.h.b16 %v630
    %v2513 = vunpack.c.l.b16 %v631
    %v2514 = vunpack.c.h.b16 %v631
    %v2515 = vunpack.c.l.b16 %v632
    %v2516 = vunpack.c.h.b16 %v632
    %v2517 = vunpack.c.l.b16 %v633
    %v2518 = vunpack.c.h.b16 %v633
    %v2519 = vunpack.c.l.b16 %v634
    %v2520 = vunpack.c.h.b16 %v634
    %v2521 = vunpack.c.l.b16 %v635
    %v2522 = vunpack.c.h.b16 %v635
    %v2523 = vunpack.c.l.b16 %v636
    %v2524 = vunpack.c.h.b16 %v636
    %v2525 = vunpack.c.l.b16 %v637
    %v2526 = vunpack.c.h.b16 %v637
    %v2527 = vunpack.c.l.b16 %v638
    %v2528 = vunpack.c.h.b16 %v638
    %v2529 = vunpack.c.l.b16 %v639
    %v2530 = vunpack.c.h.b16 %v639
    %v2531 = vpack.c.b16 %v1383, %v1379
    %v2532 = vpack.c.b16 %v1384, %v1380
    %v2533 = vpack.c.b16 %v1385, %v1381
    %v2534 = vpack.c.b16 %v1386, %v1382
    %v2535 = vpack.c.b16 %v1391, %v1387
    %v2536 = vpack.c.b16 %v1392, %v1388
    %v2537 = vpack.c.b16 %v1393, %v1389
    %v2538 = vpack.c.b16 %v1394, %v1390
    %v2539 = vpack.c.b16 %v1399, %v1395
    %v2540 = vpack.c.b16 %v1400, %v1396
    %v2541 = vpack.c.b16 %v1401, %v1397
    %v2542 = vpack.c.b16 %v1402, %v1398
    %v2543 = vpack.c.b16 %v1407, %v1403
    %v2544 = vpack.c.b16 %v1408, %v1404
    %v2545 = vpack.c.b16 %v1409, %v1405
    %v2546 = vpack.c.b16 %v1410, %v1406
    %v2547 = vpack.c.b16 %v1415, %v1411
    %v2548 = vpack.c.b16 %v1416, %v1412
    %v2549 = vpack.c.b16 %v1417, %v1413
    %v2550 = vpack.c.b16 %v1418, %v1414
    %v2551 = vpack.c.b16 %v1423, %v1419
    %v2552 = vpack.c.b16 %v1424, %v1420
    %v2553 = vpack.c.b16 %v1425, %v1421
    %v2554 = vpack.c.b16 %v1426, %v1422
    %v2555 = vpack.c.b16 %v1431, %v1427
    %v2556 = vpack.c.b16 %v1432, %v1428
    %v2557 = vpack.c.b16 %v1433, %v1429
    %v2558 = vpack.c.b16 %v1434, %v1430
    %v2559 = vpack.c.b16 %v1439, %v1435
    %v2560 = vpack.c.b16 %v1440, %v1436
    %v2561 = vpack.c.b16 %v1441, %v1437
    %v2562 = vpack.c.b16 %v1442, %v1438
    %v2563 = vpack.c.b16 %v1447, %v1443
    %v2564 = vpack.c.b16 %v1448, %v1444
    %v2565 = vpack.c.b16 %v1449, %v1445
    %v2566 = vpack.c.b16 %v1450, %v1446
    %v2567 = vpack.c.b16 %v1455, %v1451
    %v2568 = vpack.c.b16 %v1456, %v1452
    %v2569 = vpack.c.b16 %v1457, %v1453
    %v2570 = vpack.c.b16 %v1458, %v1454
    %v2571 = vpack.c.b16 %v1463, %v1459
    %v2572 = vpack.c.b16 %v1464, %v1460
    %v2573 = vpack.c.b16 %v1465, %v1461
    %v2574 = vpack.c.b16 %v1466, %v1462
    %v2575 = vpack.c.b16 %v1471, %v1467
    %v2576 = vpack.c.b16 %v1472, %v1468
    %v2577 = vpack.c.b16 %v1473, %v1469
    %v2578 = vpack.c.b16 %v1474, %v1470
    %v2579 = vpack.c.b16 %v1479, %v1475
    %v2580 = vpack.c.b16 %v1480, %v1476
    %v2581 = vpack.c.b16 %v1481, %v1477
    %v2582 = vpack.c.b16 %v1482, %v1478
    %v2583 = vpack.c.b16 %v1487, %v1483
    %v2584 = vpack.c.b16 %v1488, %v1484
    %v2585 = vpack.c.b16 %v1489, %v1485
    %v2586 = vpack.c.b16 %v1490, %v1486
    %v2587 = vpack.c.b16 %v1495, %v1491
    %v2588 = vpack.c.b16 %v1496, %v1492
    %v2589 = vpack.c.b16 %v1497, %v1493
    %v2590 = vpack.c.b16 %v1498, %v1494
    %v2591 = vpack.c.b16 %v1503, %v1499
    %v2592 = vpack.c.b16 %v1504, %v1500
    %v2593 = vpack.c.b16 %v1505, %v1501
    %v2594 = vpack.c.b16 %v1506, %v1502
    %v2595 = vpack.c.b16 %v1511, %v1507
    %v2596 = vpack.c.b16 %v1512, %v1508
    %v2597 = vpack.c.b16 %v1513, %v1509
    %v2598 = vpack.c.b16 %v1514, %v1510
    %v2599 = vpack.c.b16 %v1519, %v1515
    %v2600 = vpack.c.b16 %v1520, %v1516
    %v2601 = vpack.c.b16 %v1521, %v1517
    %v2602 = vpack.c.b16 %v1522, %v1518
    %v2603 = vpack.c.b16 %v1527, %v1523
    %v2604 = vpack.c.b16 %v1528, %v1524
    %v2605 = vpack.c.b16 %v1529, %v1525
    %v2606 = vpack.c.b16 %v1530, %v1526
    %v2607 = vpack.c.b16 %v1535, %v1531
    %v2608 = vpack.c.b16 %v1536, %v1532
    %v2609 = vpack.c.b16 %v1537, %v1533
    %v2610 = vpack.c.b16 %v1538, %v1534
    %v2611 = vpack.c.b16 %v1543, %v1539
    %v2612 = vpack.c.b16 %v1544, %v1540
    %v2613 = vpack.c.b16 %v1545, %v1541
    %v2614 = vpack.c.b16 %v1546, %v1542
    %v2615 = vpack.c.b16 %v1551, %v1547
    %v2616 = vpack.c.b16 %v1552, %v1548
    %v2617 = vpack.c.b16 %v1553, %v1549
    %v2618 = vpack.c.b16 %v1554, %v1550
    %v2619 = vpack.c.b16 %v1559, %v1555
    %v2620 = vpack.c.b16 %v1560, %v1556
    %v2621 = vpack.c.b16 %v1561, %v1557
    %v2622 = vpack.c.b16 %v1562, %v1558
    %v2623 = vpack.c.b16 %v1567, %v1563
    %v2624 = vpack.c.b16 %v1568, %v1564
    %v2625 = vpack.c.b16 %v1569, %v1565
    %v2626 = vpack.c.b16 %v1570, %v1566
    %v2627 = vpack.c.b16 %v1575, %v1571
    %v2628 = vpack.c.b16 %v1576, %v1572
    %v2629 = vpack.c.b16 %v1577, %v1573
    %v2630 = vpack.c.b16 %v1578, %v1574
    %v2631 = vpack.c.b16 %v1583, %v1579
    %v2632 = vpack.c.b16 %v1584, %v1580
    %v2633 = vpack.c.b16 %v1585, %v1581
    %v2634 = vpack.c.b16 %v1586, %v1582
    %v2635 = vpack.c.b16 %v1591, %v1587
    %v2636 = vpack.c.b16 %v1592, %v1588
    %v2637 = vpack.c.b16 %v1593, %v1589
    %v2638 = vpack.c.b16 %v1594, %v1590
    %v2639 = vpack.c.b16 %v1599, %v1595
    %v2640 = vpack.c.b16 %v1600, %v1596
    %v2641 = vpack.c.b16 %v1601, %v1597
    %v2642 = vpack.c.b16 %v1602, %v1598
    %v2643 = vpack.c.b16 %v1607, %v1603
    %v2644 = vpack.c.b16 %v1608, %v1604
    %v2645 = vpack.c.b16 %v1609, %v1605
    %v2646 = vpack.c.b16 %v1610, %v1606
    %v2647 = vpack.c.b16 %v1615, %v1611
    %v2648 = vpack.c.b16 %v1616, %v1612
    %v2649 = vpack.c.b16 %v1617, %v1613
    %v2650 = vpack.c.b16 %v1618, %v1614
    %v2651 = vpack.c.b16 %v1623, %v1619
    %v2652 = vpack.c.b16 %v1624, %v1620
    %v2653 = vpack.c.b16 %v1625, %v1621
    %v2654 = vpack.c.b16 %v1626, %v1622
    %v2655 = vpack.c.b16 %v1631, %v1627
    %v2656 = vpack.c.b16 %v1632, %v1628
    %v2657 = vpack.c.b16 %v1633, %v1629
    %v2658 = vpack.c.b16 %v1634, %v1630
    %v2659 = vpack.c.b16 %v1639, %v1635
    %v2660 = vpack.c.b16 %v1640, %v1636
    %v2661 = vpack.c.b16 %v1641, %v1637
    %v2662 = vpack.c.b16 %v1642, %v1638
    %v2663 = vpack.c.b16 %v1647, %v1643
    %v2664 = vpack.c.b16 %v1648, %v1644
    %v2665 = vpack.c.b16 %v1649, %v1645
    %v2666 = vpack.c.b16 %v1650, %v1646
    %v2667 = vpack.c.b16 %v1655, %v1651
    %v2668 = vpack.c.b16 %v1656, %v1652
    %v2669 = vpack.c.b16 %v1657, %v1653
    %v2670 = vpack.c.b16 %v1658, %v1654
    %v2671 = vpack.c.b16 %v1663, %v1659
    %v2672 = vpack.c.b16 %v1664, %v1660
    %v2673 = vpack.c.b16 %v1665, %v1661
    %v2674 = vpack.c.b16 %v1666, %v1662
    %v2675 = vpack.c.b16 %v1671, %v1667
    %v2676 = vpack.c.b16 %v1672, %v1668
    %v2677 = vpack.c.b16 %v1673, %v1669
    %v2678 = vpack.c.b16 %v1674, %v1670
    %v2679 = vpack.c.b16 %v1679, %v1675
    %v2680 = vpack.c.b16 %v1680, %v1676
    %v2681 = vpack.c.b16 %v1681, %v1677
    %v2682 = vpack.c.b16 %v1682, %v1678
    %v2683 = vpack.c.b16 %v1687, %v1683
    %v2684 = vpack.c.b16 %v1688, %v1684
    %v2685 = vpack.c.b16 %v1689, %v1685
    %v2686 = vpack.c.b16 %v1690, %v1686
    %v2687 = vpack.c.b16 %v1695, %v1691
    %v2688 = vpack.c.b16 %v1696, %v1692
    %v2689 = vpack.c.b16 %v1697, %v1693
    %v2690 = vpack.c.b16 %v1698, %v1694
    %v2691 = vpack.c.b16 %v1703, %v1699
    %v2692 = vpack.c.b16 %v1704, %v1700
    %v2693 = vpack.c.b16 %v1705, %v1701
    %v2694 = vpack.c.b16 %v1706, %v1702
    %v2695 = vpack.c.b16 %v1711, %v1707
    %v2696 = vpack.c.b16 %v1712, %v1708
    %v2697 = vpack.c.b16 %v1713, %v1709
    %v2698 = vpack.c.b16 %v1714, %v1710
    %v2699 = vpack.c.b16 %v1719, %v1715
    %v2700 = vpack.c.b16 %v1720, %v1716
    %v2701 = vpack.c.b16 %v1721, %v1717
    %v2702 = vpack.c.b16 %v1722, %v1718
    %v2703 = vpack.c.b16 %v1727, %v1723
    %v2704 = vpack.c.b16 %v1728, %v1724
    %v2705 = vpack.c.b16 %v1729, %v1725
    %v2706 = vpack.c.b16 %v1730, %v1726
    %v2707 = vpack.c.b16 %v1735, %v1731
    %v2708 = vpack.c.b16 %v1736, %v1732
    %v2709 = vpack.c.b16 %v1737, %v1733
    %v2710 = vpack.c.b16 %v1738, %v1734
    %v2711 = vpack.c.b16 %v1743, %v1739
    %v2712 = vpack.c.b16 %v1744, %v1740
    %v2713 = vpack.c.b16 %v1745, %v1741
    %v2714 = vpack.c.b16 %v1746, %v1742
    %v2715 = vpack.c.b16 %v1751, %v1747
    %v2716 = vpack.c.b16 %v1752, %v1748
    %v2717 = vpack.c.b16 %v1753, %v1749
    %v2718 = vpack.c.b16 %v1754, %v1750
    %v2719 = vpack.c.b16 %v1759, %v1755
    %v2720 = vpack.c.b16 %v1760, %v1756
    %v2721 = vpack.c.b16 %v1761, %v1757
    %v2722 = vpack.c.b16 %v1762, %v1758
    %v2723 = vpack.c.b16 %v1767, %v1763
    %v2724 = vpack.c.b16 %v1768, %v1764
    %v2725 = vpack.c.b16 %v1769, %v1765
    %v2726 = vpack.c.b16 %v1770, %v1766
    %v2727 = vpack.c.b16 %v1775, %v1771
    %v2728 = vpack.c.b16 %v1776, %v1772
    %v2729 = vpack.c.b16 %v1777, %v1773
    %v2730 = vpack.c.b16 %v1778, %v1774
    %v2731 = vpack.c.b16 %v1783, %v1779
    %v2732 = vpack.c.b16 %v1784, %v1780
    %v2733 = vpack.c.b16 %v1785, %v1781
    %v2734 = vpack.c.b16 %v1786, %v1782
    %v2735 = vpack.c.b16 %v1791, %v1787
    %v2736 = vpack.c.b16 %v1792, %v1788
    %v2737 = vpack.c.b16 %v1793, %v1789
    %v2738 = vpack.c.b16 %v1794, %v1790
    %v2739 = vpack.c.b16 %v1799, %v1795
    %v2740 = vpack.c.b16 %v1800, %v1796
    %v2741 = vpack.c.b16 %v1801, %v1797
    %v2742 = vpack.c.b16 %v1802, %v1798
    %v2743 = vpack.c.b16 %v1807, %v1803
    %v2744 = vpack.c.b16 %v1808, %v1804
    %v2745 = vpack.c.b16 %v1809, %v1805
    %v2746 = vpack.c.b16 %v1810, %v1806
    %v2747 = vpack.c.b16 %v1815, %v1811
    %v2748 = vpack.c.b16 %v1816, %v1812
    %v2749 = vpack.c.b16 %v1817, %v1813
    %v2750 = vpack.c.b16 %v1818, %v1814
    %v2751 = vpack.c.b16 %v1823, %v1819
    %v2752 = vpack.c.b16 %v1824, %v1820
    %v2753 = vpack.c.b16 %v1825, %v1821
    %v2754 = vpack.c.b16 %v1826, %v1822
    %v2755 = vpack.c.b16 %v1831, %v1827
    %v2756 = vpack.c.b16 %v1832, %v1828
    %v2757 = vpack.c.b16 %v1833, %v1829
    %v2758 = vpack.c.b16 %v1834, %v1830
    %v2759 = vpack.c.b16 %v1839, %v1835
    %v2760 = vpack.c.b16 %v1840, %v1836
    %v2761 = vpack.c.b16 %v1841, %v1837
    %v2762 = vpack.c.b16 %v1842, %v1838
    %v2763 = vpack.c.b16 %v1847, %v1843
    %v2764 = vpack.c.b16 %v1848, %v1844
    %v2765 = vpack.c.b16 %v1849, %v1845
    %v2766 = vpack.c.b16 %v1850, %v1846
    %v2767 = vpack.c.b16 %v1855, %v1851
    %v2768 = vpack.c.b16 %v1856, %v1852
    %v2769 = vpack.c.b16 %v1857, %v1853
    %v2770 = vpack.c.b16 %v1858, %v1854
    %v2771 = vpack.c.b16 %v1863, %v1859
    %v2772 = vpack.c.b16 %v1864, %v1860
    %v2773 = vpack.c.b16 %v1865, %v1861
    %v2774 = vpack.c.b16 %v1866, %v1862
    %v2775 = vpack.c.b16 %v1871, %v1867
    %v2776 = vpack.c.b16 %v1872, %v1868
    %v2777 = vpack.c.b16 %v1873, %v1869
    %v2778 = vpack.c.b16 %v1874, %v1870
    %v2779 = vpack.c.b16 %v1879, %v1875
    %v2780 = vpack.c.b16 %v1880, %v1876
    %v2781 = vpack.c.b16 %v1881, %v1877
    %v2782 = vpack.c.b16 %v1882, %v1878
    %v2783 = vpack.c.b16 %v1887, %v1883
    %v2784 = vpack.c.b16 %v1888, %v1884
    %v2785 = vpack.c.b16 %v1889, %v1885
    %v2786 = vpack.c.b16 %v1890, %v1886
    %v2787 = vpack.c.b16 %v1895, %v1891
    %v2788 = vpack.c.b16 %v1896, %v1892
    %v2789 = vpack.c.b16 %v1897, %v1893
    %v2790 = vpack.c.b16 %v1898, %v1894
    %v2791 = vpack.c.b16 %v1903, %v1899
    %v2792 = vpack.c.b16 %v1904, %v1900
    %v2793 = vpack.c.b16 %v1905, %v1901
    %v2794 = vpack.c.b16 %v1906, %v1902
    %v2795 = vpack.c.b16 %v1911, %v1907
    %v2796 = vpack.c.b16 %v1912, %v1908
    %v2797 = vpack.c.b16 %v1913, %v1909
    %v2798 = vpack.c.b16 %v1914, %v1910
    %v2799 = vpack.c.b16 %v1919, %v1915
    %v2800 = vpack.c.b16 %v1920, %v1916
    %v2801 = vpack.c.b16 %v1921, %v1917
    %v2802 = vpack.c.b16 %v1922, %v1918
    %v2803 = vpack.c.b16 %v1927, %v1923
    %v2804 = vpack.c.b16 %v1928, %v1924
    %v2805 = vpack.c.b16 %v1929, %v1925
    %v2806 = vpack.c.b16 %v1930, %v1926
    %v2807 = vpack.c.b16 %v1935, %v1931
    %v2808 = vpack.c.b16 %v1936, %v1932
    %v2809 = vpack.c.b16 %v1937, %v1933
    %v2810 = vpack.c.b16 %v1938, %v1934
    %v2811 = vpack.c.b16 %v1943, %v1939
    %v2812 = vpack.c.b16 %v1944, %v1940
    %v2813 = vpack.c.b16 %v1945, %v1941
    %v2814 = vpack.c.b16 %v1946, %v1942
    %v2815 = vpack.c.b16 %v1951, %v1947
    %v2816 = vpack.c.b16 %v1952, %v1948
    %v2817 = vpack.c.b16 %v1953, %v1949
    %v2818 = vpack.c.b16 %v1954, %v1950
    %v2819 = vpack.c.b16 %v1959, %v1955
    %v2820 = vpack.c.b16 %v1960, %v1956
    %v2821 = vpack.c.b16 %v1961, %v1957
    %v2822 = vpack.c.b16 %v1962, %v1958
    %v2823 = vpack.c.b16 %v1967, %v1963
    %v2824 = vpack.c.b16 %v1968, %v1964
    %v2825 = vpack.c.b16 %v1969, %v1965
    %v2826 = vpack.c.b16 %v1970, %v1966
    %v2827 = vpack.c.b16 %v1975, %v1971
    %v2828 = vpack.c.b16 %v1976, %v1972
    %v2829 = vpack.c.b16 %v1977, %v1973
    %v2830 = vpack.c.b16 %v1978, %v1974
    %v2831 = vpack.c.b16 %v1983, %v1979
    %v2832 = vpack.c.b16 %v1984, %v1980
    %v2833 = vpack.c.b16 %v1985, %v1981
    %v2834 = vpack.c.b16 %v1986, %v1982
    %v2835 = vpack.c.b16 %v1991, %v1987
    %v2836 = vpack.c.b16 %v1992, %v1988
    %v2837 = vpack.c.b16 %v1993, %v1989
    %v2838 = vpack.c.b16 %v1994, %v1990
    %v2839 = vpack.c.b16 %v1999, %v1995
    %v2840 = vpack.c.b16 %v2000, %v1996
    %v2841 = vpack.c.b16 %v2001, %v1997
    %v2842 = vpack.c.b16 %v2002, %v1998
    %v2843 = vpack.c.b16 %v2007, %v2003
    %v2844 = vpack.c.b16 %v2008, %v2004
    %v2845 = vpack.c.b16 %v2009, %v2005
    %v2846 = vpack.c.b16 %v2010, %v2006
    %v2847 = vpack.c.b16 %v2015, %v2011
    %v2848 = vpack.c.b16 %v2016, %v2012
    %v2849 = vpack.c.b16 %v2017, %v2013
    %v2850 = vpack.c.b16 %v2018, %v2014
    %v2851 = vpack.c.b16 %v2023, %v2019
    %v2852 = vpack.c.b16 %v2024, %v2020
    %v2853 = vpack.c.b16 %v2025, %v2021
    %v2854 = vpack.c.b16 %v2026, %v2022
    %v2855 = vpack.c.b16 %v2031, %v2027
    %v2856 = vpack.c.b16 %v2032, %v2028
    %v2857 = vpack.c.b16 %v2033, %v2029
    %v2858 = vpack.c.b16 %v2034, %v2030
    %v2859 = vpack.c.b16 %v2039, %v2035
    %v2860 = vpack.c.b16 %v2040, %v2036
    %v2861 = vpack.c.b16 %v2041, %v2037
    %v2862 = vpack.c.b16 %v2042, %v2038
    %v2863 = vpack.c.b16 %v2047, %v2043
    %v2864 = vpack.c.b16 %v2048, %v2044
    %v2865 = vpack.c.b16 %v2049, %v2045
    %v2866 = vpack.c.b16 %v2050, %v2046
    %v2867 = vpack.c.b16 %v2055, %v2051
    %v2868 = vpack.c.b16 %v2056, %v2052
    %v2869 = vpack.c.b16 %v2057, %v2053
    %v2870 = vpack.c.b16 %v2058, %v2054
    %v2871 = vpack.c.b16 %v2063, %v2059
    %v2872 = vpack.c.b16 %v2064, %v2060
    %v2873 = vpack.c.b16 %v2065, %v2061
    %v2874 = vpack.c.b16 %v2066, %v2062
    %v2875 = vpack.c.b16 %v2071, %v2067
    %v2876 = vpack.c.b16 %v2072, %v2068
    %v2877 = vpack.c.b16 %v2073, %v2069
    %v2878 = vpack.c.b16 %v2074, %v2070
    %v2879 = vpack.c.b16 %v2079, %v2075
    %v2880 = vpack.c.b16 %v2080, %v2076
    %v2881 = vpack.c.b16 %v2081, %v2077
    %v2882 = vpack.c.b16 %v2082, %v2078
    %v2883 = vpack.c.b16 %v2087, %v2083
    %v2884 = vpack.c.b16 %v2088, %v2084
    %v2885 = vpack.c.b16 %v2089, %v2085
    %v2886 = vpack.c.b16 %v2090, %v2086
    %v2887 = vpack.c.b16 %v2095, %v2091
    %v2888 = vpack.c.b16 %v2096, %v2092
    %v2889 = vpack.c.b16 %v2097, %v2093
    %v2890 = vpack.c.b16 %v2098, %v2094
    %v2891 = vpack.c.b16 %v2103, %v2099
    %v2892 = vpack.c.b16 %v2104, %v2100
    %v2893 = vpack.c.b16 %v2105, %v2101
    %v2894 = vpack.c.b16 %v2106, %v2102
    %v2895 = vpack.c.b16 %v2111, %v2107
    %v2896 = vpack.c.b16 %v2112, %v2108
    %v2897 = vpack.c.b16 %v2113, %v2109
    %v2898 = vpack.c.b16 %v2114, %v2110
    %v2899 = vpack.c.b16 %v2119, %v2115
    %v2900 = vpack.c.b16 %v2120, %v2116
    %v2901 = vpack.c.b16 %v2121, %v2117
    %v2902 = vpack.c.b16 %v2122, %v2118
    %v2903 = vpack.c.b16 %v2127, %v2123
    %v2904 = vpack.c.b16 %v2128, %v2124
    %v2905 = vpack.c.b16 %v2129, %v2125
    %v2906 = vpack.c.b16 %v2130, %v2126
    %v2907 = vpack.c.b16 %v2135, %v2131
    %v2908 = vpack.c.b16 %v2136, %v2132
    %v2909 = vpack.c.b16 %v2137, %v2133
    %v2910 = vpack.c.b16 %v2138, %v2134
    %v2911 = vpack.c.b16 %v2143, %v2139
    %v2912 = vpack.c.b16 %v2144, %v2140
    %v2913 = vpack.c.b16 %v2145, %v2141
    %v2914 = vpack.c.b16 %v2146, %v2142
    %v2915 = vpack.c.b16 %v2151, %v2147
    %v2916 = vpack.c.b16 %v2152, %v2148
    %v2917 = vpack.c.b16 %v2153, %v2149
    %v2918 = vpack.c.b16 %v2154, %v2150
    %v2919 = vpack.c.b16 %v2159, %v2155
    %v2920 = vpack.c.b16 %v2160, %v2156
    %v2921 = vpack.c.b16 %v2161, %v2157
    %v2922 = vpack.c.b16 %v2162, %v2158
    %v2923 = vpack.c.b16 %v2167, %v2163
    %v2924 = vpack.c.b16 %v2168, %v2164
    %v2925 = vpack.c.b16 %v2169, %v2165
    %v2926 = vpack.c.b16 %v2170, %v2166
    %v2927 = vpack.c.b16 %v2175, %v2171
    %v2928 = vpack.c.b16 %v2176, %v2172
    %v2929 = vpack.c.b16 %v2177, %v2173
    %v2930 = vpack.c.b16 %v2178, %v2174
    %v2931 = vpack.c.b16 %v2183, %v2179
    %v2932 = vpack.c.b16 %v2184, %v2180
    %v2933 = vpack.c.b16 %v2185, %v2181
    %v2934 = vpack.c.b16 %v2186, %v2182
    %v2935 = vpack.c.b16 %v2191, %v2187
    %v2936 = vpack.c.b16 %v2192, %v2188
    %v2937 = vpack.c.b16 %v2193, %v2189
    %v2938 = vpack.c.b16 %v2194, %v2190
    %v2939 = vpack.c.b16 %v2199, %v2195
    %v2940 = vpack.c.b16 %v2200, %v2196
    %v2941 = vpack.c.b16 %v2201, %v2197
    %v2942 = vpack.c.b16 %v2202, %v2198
    %v2943 = vpack.c.b16 %v2207, %v2203
    %v2944 = vpack.c.b16 %v2208, %v2204
    %v2945 = vpack.c.b16 %v2209, %v2205
    %v2946 = vpack.c.b16 %v2210, %v2206
    %v2947 = vpack.c.b16 %v2215, %v2211
    %v2948 = vpack.c.b16 %v2216, %v2212
    %v2949 = vpack.c.b16 %v2217, %v2213
    %v2950 = vpack.c.b16 %v2218, %v2214
    %v2951 = vpack.c.b16 %v2223, %v2219
    %v2952 = vpack.c.b16 %v2224, %v2220
    %v2953 = vpack.c.b16 %v2225, %v2221
    %v2954 = vpack.c.b16 %v2226, %v2222
    %v2955 = vpack.c.b16 %v2231, %v2227
    %v2956 = vpack.c.b16 %v2232, %v2228
    %v2957 = vpack.c.b16 %v2233, %v2229
    %v2958 = vpack.c.b16 %v2234, %v2230
    %v2959 = vpack.c.b16 %v2239, %v2235
    %v2960 = vpack.c.b16 %v2240, %v2236
    %v2961 = vpack.c.b16 %v2241, %v2237
    %v2962 = vpack.c.b16 %v2242, %v2238
    %v2963 = vpack.c.b16 %v2247, %v2243
    %v2964 = vpack.c.b16 %v2248, %v2244
    %v2965 = vpack.c.b16 %v2249, %v2245
    %v2966 = vpack.c.b16 %v2250, %v2246
    %v2967 = vpack.c.b16 %v2255, %v2251
    %v2968 = vpack.c.b16 %v2256, %v2252
    %v2969 = vpack.c.b16 %v2257, %v2253
    %v2970 = vpack.c.b16 %v2258, %v2254
    %v2971 = vpack.c.b16 %v2263, %v2259
    %v2972 = vpack.c.b16 %v2264, %v2260
    %v2973 = vpack.c.b16 %v2265, %v2261
    %v2974 = vpack.c.b16 %v2266, %v2262
    %v2975 = vpack.c.b16 %v2271, %v2267
    %v2976 = vpack.c.b16 %v2272, %v2268
    %v2977 = vpack.c.b16 %v2273, %v2269
    %v2978 = vpack.c.b16 %v2274, %v2270
    %v2979 = vpack.c.b16 %v2279, %v2275
    %v2980 = vpack.c.b16 %v2280, %v2276
    %v2981 = vpack.c.b16 %v2281, %v2277
    %v2982 = vpack.c.b16 %v2282, %v2278
    %v2983 = vpack.c.b16 %v2287, %v2283
    %v2984 = vpack.c.b16 %v2288, %v2284
    %v2985 = vpack.c.b16 %v2289, %v2285
    %v2986 = vpack.c.b16 %v2290, %v2286
    %v2987 = vpack.c.b16 %v2295, %v2291
    %v2988 = vpack.c.b16 %v2296, %v2292
    %v2989 = vpack.c.b16 %v2297, %v2293
    %v2990 = vpack.c.b16 %v2298, %v2294
    %v2991 = vpack.c.b16 %v2303, %v2299
    %v2992 = vpack.c.b16 %v2304, %v2300
    %v2993 = vpack.c.b16 %v2305, %v2301
    %v2994 = vpack.c.b16 %v2306, %v2302
    %v2995 = vpack.c.b16 %v2311, %v2307
    %v2996 = vpack.c.b16 %v2312, %v2308
    %v2997 = vpack.c.b16 %v2313, %v2309
    %v2998 = vpack.c.b16 %v2314, %v2310
    %v2999 = vpack.c.b16 %v2319, %v2315
    %v3000 = vpack.c.b16 %v2320, %v2316
    %v3001 = vpack.c.b16 %v2321, %v2317
    %v3002 = vpack.c.b16 %v2322, %v2318
    %v3003 = vpack.c.b16 %v2327, %v2323
    %v3004 = vpack.c.b16 %v2328, %v2324
    %v3005 = vpack.c.b16 %v2329, %v2325
    %v3006 = vpack.c.b16 %v2330, %v2326
    %v3007 = vpack.c.b16 %v2335, %v2331
    %v3008 = vpack.c.b16 %v2336, %v2332
    %v3009 = vpack.c.b16 %v2337, %v2333
    %v3010 = vpack.c.b16 %v2338, %v2334
    %v3011 = vpack.c.b16 %v2343, %v2339
    %v3012 = vpack.c.b16 %v2344, %v2340
    %v3013 = vpack.c.b16 %v2345, %v2341
    %v3014 = vpack.c.b16 %v2346, %v2342
    %v3015 = vpack.c.b16 %v2351, %v2347
    %v3016 = vpack.c.b16 %v2352, %v2348
    %v3017 = vpack.c.b16 %v2353, %v2349
    %v3018 = vpack.c.b16 %v2354, %v2350
    %v3019 = vpack.c.b16 %v2359, %v2355
    %v3020 = vpack.c.b16 %v2360, %v2356
    %v3021 = vpack.c.b16 %v2361, %v2357
    %v3022 = vpack.c.b16 %v2362, %v2358
    %v3023 = vpack.c.b16 %v2367, %v2363
    %v3024 = vpack.c.b16 %v2368, %v2364
    %v3025 = vpack.c.b16 %v2369, %v2365
    %v3026 = vpack.c.b16 %v2370, %v2366
    %v3027 = vpack.c.b16 %v2375, %v2371
    %v3028 = vpack.c.b16 %v2376, %v2372
    %v3029 = vpack.c.b16 %v2377, %v2373
    %v3030 = vpack.c.b16 %v2378, %v2374
    %v3031 = vpack.c.b16 %v2383, %v2379
    %v3032 = vpack.c.b16 %v2384, %v2380
    %v3033 = vpack.c.b16 %v2385, %v2381
    %v3034 = vpack.c.b16 %v2386, %v2382
    %v3035 = vpack.c.b16 %v2391, %v2387
    %v3036 = vpack.c.b16 %v2392, %v2388
    %v3037 = vpack.c.b16 %v2393, %v2389
    %v3038 = vpack.c.b16 %v2394, %v2390
    %v3039 = vpack.c.b16 %v2399, %v2395
    %v3040 = vpack.c.b16 %v2400, %v2396
    %v3041 = vpack.c.b16 %v2401, %v2397
    %v3042 = vpack.c.b16 %v2402, %v2398
    %v3043 = vpack.c.b16 %v2407, %v2403
    %v3044 = vpack.c.b16 %v2408, %v2404
    %v3045 = vpack.c.b16 %v2409, %v2405
    %v3046 = vpack.c.b16 %v2410, %v2406
    %v3047 = vpack.c.b16 %v2415, %v2411
    %v3048 = vpack.c.b16 %v2416, %v2412
    %v3049 = vpack.c.b16 %v2417, %v2413
    %v3050 = vpack.c.b16 %v2418, %v2414
    %v3051 = vpack.c.b16 %v2423, %v2419
    %v3052 = vpack.c.b16 %v2424, %v2420
    %v3053 = vpack.c.b16 %v2425, %v2421
    %v3054 = vpack.c.b16 %v2426, %v2422
    %v3055 = vpack.c.b16 %v2431, %v2427
    %v3056 = vpack.c.b16 %v2432, %v2428
    %v3057 = vpack.c.b16 %v2433, %v2429
    %v3058 = vpack.c.b16 %v2434, %v2430
    %v3059 = vpack.c.b16 %v2439, %v2435
    %v3060 = vpack.c.b16 %v2440, %v2436
    %v3061 = vpack.c.b16 %v2441, %v2437
    %v3062 = vpack.c.b16 %v2442, %v2438
    %v3063 = vpack.c.b16 %v2447, %v2443
    %v3064 = vpack.c.b16 %v2448, %v2444
    %v3065 = vpack.c.b16 %v2449, %v2445
    %v3066 = vpack.c.b16 %v2450, %v2446
    %v3067 = vpack.c.b16 %v2455, %v2451
    %v3068 = vpack.c.b16 %v2456, %v2452
    %v3069 = vpack.c.b16 %v2457, %v2453
    %v3070 = vpack.c.b16 %v2458, %v2454
    %v3071 = vpack.c.b16 %v2463, %v2459
    %v3072 = vpack.c.b16 %v2464, %v2460
    %v3073 = vpack.c.b16 %v2465, %v2461
    %v3074 = vpack.c.b16 %v2466, %v2462
    %v3075 = vpack.c.b16 %v2471, %v2467
    %v3076 = vpack.c.b16 %v2472, %v2468
    %v3077 = vpack.c.b16 %v2473, %v2469
    %v3078 = vpack.c.b16 %v2474, %v2470
    %v3079 = vpack.c.b16 %v2479, %v2475
    %v3080 = vpack.c.b16 %v2480, %v2476
    %v3081 = vpack.c.b16 %v2481, %v2477
    %v3082 = vpack.c.b16 %v2482, %v2478
    %v3083 = vpack.c.b16 %v2487, %v2483
    %v3084 = vpack.c.b16 %v2488, %v2484
    %v3085 = vpack.c.b16 %v2489, %v2485
    %v3086 = vpack.c.b16 %v2490, %v2486
    %v3087 = vpack.c.b16 %v2495, %v2491
    %v3088 = vpack.c.b16 %v2496, %v2492
    %v3089 = vpack.c.b16 %v2497, %v2493
    %v3090 = vpack.c.b16 %v2498, %v2494
    %v3091 = vpack.c.b16 %v2503, %v2499
    %v3092 = vpack.c.b16 %v2504, %v2500
    %v3093 = vpack.c.b16 %v2505, %v2501
    %v3094 = vpack.c.b16 %v2506, %v2502
    %v3095 = vpack.c.b16 %v2511, %v2507
    %v3096 = vpack.c.b16 %v2512, %v2508
    %v3097 = vpack.c.b16 %v2513, %v2509
    %v3098 = vpack.c.b16 %v2514, %v2510
    %v3099 = vpack.c.b16 %v2519, %v2515
    %v3100 = vpack.c.b16 %v2520, %v2516
    %v3101 = vpack.c.b16 %v2521, %v2517
    %v3102 = vpack.c.b16 %v2522, %v2518
    %v3103 = vpack.c.b16 %v2527, %v2523
    %v3104 = vpack.c.b16 %v2528, %v2524
    %v3105 = vpack.c.b16 %v2529, %v2525
    %v3106 = vpack.c.b16 %v2530, %v2526
    %3683 = vmatprep.subr.bf16.mxu0 %v2532
    %3684 = vmatpush1.bf16.msra.mxu0 %v2531
    %3685 = vmatprep.subr.bf16.mxu0 %v2536
    %3686 = vmatpush1.bf16.msra.mxu0 %v2535
    %3687 = vmatprep.subr.bf16.mxu0 %v2540
    %3688 = vmatpush1.bf16.msra.mxu0 %v2539
    %3689 = vmatprep.subr.bf16.mxu0 %v2544
    %3690 = vmatpush1.bf16.msra.mxu0 %v2543
    %3691 = vmatprep.subr.bf16.mxu0 %v2548
    %3692 = vmatpush1.bf16.msra.mxu0 %v2547
    %3693 = vmatprep.subr.bf16.mxu0 %v2552
    %3694 = vmatpush1.bf16.msra.mxu0 %v2551
    %3695 = vmatprep.subr.bf16.mxu0 %v2556
    %3696 = vmatpush1.bf16.msra.mxu0 %v2555
    %3697 = vmatprep.subr.bf16.mxu0 %v2560
    %3698 = vmatpush1.bf16.msra.mxu0 %v2559
    %3699 = vmatprep.subr.bf16.mxu0 %v2564
    %3700 = vmatpush1.bf16.msra.mxu0 %v2563
    %3701 = vmatprep.subr.bf16.mxu0 %v2568
    %3702 = vmatpush1.bf16.msra.mxu0 %v2567
    %3703 = vmatprep.subr.bf16.mxu0 %v2572
    %3704 = vmatpush1.bf16.msra.mxu0 %v2571
    %3705 = vmatprep.subr.bf16.mxu0 %v2576
    %3706 = vmatpush1.bf16.msra.mxu0 %v2575
    %3707 = vmatprep.subr.bf16.mxu0 %v2580
    %3708 = vmatpush1.bf16.msra.mxu0 %v2579
    %3709 = vmatprep.subr.bf16.mxu0 %v2584
    %3710 = vmatpush1.bf16.msra.mxu0 %v2583
    %3711 = vmatprep.subr.bf16.mxu0 %v2588
    %3712 = vmatpush1.bf16.msra.mxu0 %v2587
    %3713 = vmatprep.subr.bf16.mxu0 %v2592
    %3714 = vmatpush1.bf16.msra.mxu0 %v2591
    %3715 = vmatprep.mubr.bf16.mxu0 %v702
    %3716 = vmatmul.mubr.bf16.gmra.mrb[0].mxu0 %v688
    %v3717 = vpop.f32.mrb[0].mxu0
    %v3718 = vadd.f32 %v645, %v3717
    %v3719 = vpop.f32.mrb[0].mxu0
    %v3720 = vadd.f32 %v649, %v3719
    %v3721 = vpop.f32.mrb[0].mxu0
    %v3722 = vpop.f32.mrb[0].mxu0
    %3723 = vdwg.mxu0
    %3724 = vmatprep.subr.bf16.mxu0 %v2596
    %3725 = vmatpush1.bf16.msra.mxu0 %v2595
    %3726 = vmatprep.subr.bf16.mxu0 %v2600
    %3727 = vmatpush1.bf16.msra.mxu0 %v2599
    %3728 = vmatprep.subr.bf16.mxu0 %v2604
    %3729 = vmatpush1.bf16.msra.mxu0 %v2603
    %3730 = vmatprep.subr.bf16.mxu0 %v2608
    %3731 = vmatpush1.bf16.msra.mxu0 %v2607
    %3732 = vmatprep.subr.bf16.mxu0 %v2612
    %3733 = vmatpush1.bf16.msra.mxu0 %v2611
    %3734 = vmatprep.subr.bf16.mxu0 %v2616
    %3735 = vmatpush1.bf16.msra.mxu0 %v2615
    %3736 = vmatprep.subr.bf16.mxu0 %v2620
    %3737 = vmatpush1.bf16.msra.mxu0 %v2619
    %3738 = vmatprep.subr.bf16.mxu0 %v2624
    %3739 = vmatpush1.bf16.msra.mxu0 %v2623
    %3740 = vmatprep.subr.bf16.mxu0 %v2628
    %3741 = vmatpush1.bf16.msra.mxu0 %v2627
    %3742 = vmatprep.subr.bf16.mxu0 %v2632
    %3743 = vmatpush1.bf16.msra.mxu0 %v2631
    %3744 = vmatprep.subr.bf16.mxu0 %v2636
    %3745 = vmatpush1.bf16.msra.mxu0 %v2635
    %3746 = vmatprep.subr.bf16.mxu0 %v2640
    %3747 = vmatpush1.bf16.msra.mxu0 %v2639
    %3748 = vmatprep.subr.bf16.mxu0 %v2644
    %3749 = vmatpush1.bf16.msra.mxu0 %v2643
    %3750 = vmatprep.subr.bf16.mxu0 %v2648
    %3751 = vmatpush1.bf16.msra.mxu0 %v2647
    %3752 = vmatprep.subr.bf16.mxu0 %v2652
    %3753 = vmatpush1.bf16.msra.mxu0 %v2651
    %3754 = vmatprep.subr.bf16.mxu0 %v2656
    %3755 = vmatpush1.bf16.msra.mxu0 %v2655
    %3756 = vmatprep.mubr.bf16.mxu0 %v712
    %3757 = vmatmul.mubr.bf16.gmra.mrb[0].mxu0 %v710
    %v3758 = vpop.f32.mrb[0].mxu0
    %v3759 = vadd.f32 %v3718, %v3758
    %v3760 = vpop.f32.mrb[0].mxu0
    %v3761 = vadd.f32 %v3720, %v3760
    %v3762 = vpop.f32.mrb[0].mxu0
    %v3763 = vpop.f32.mrb[0].mxu0
    %3764 = vdwg.mxu0
    %3765 = vmatprep.subr.bf16.mxu0 %v2660
    %3766 = vmatpush1.bf16.msra.mxu0 %v2659
    %3767 = vmatprep.subr.bf16.mxu0 %v2664
    %3768 = vmatpush1.bf16.msra.mxu0 %v2663
    %3769 = vmatprep.subr.bf16.mxu0 %v2668
    %3770 = vmatpush1.bf16.msra.mxu0 %v2667
    %3771 = vmatprep.subr.bf16.mxu0 %v2672
    %3772 = vmatpush1.bf16.msra.mxu0 %v2671
    %3773 = vmatprep.subr.bf16.mxu0 %v2676
    %3774 = vmatpush1.bf16.msra.mxu0 %v2675
    %3775 = vmatprep.subr.bf16.mxu0 %v2680
    %3776 = vmatpush1.bf16.msra.mxu0 %v2679
    %3777 = vmatprep.subr.bf16.mxu0 %v2684
    %3778 = vmatpush1.bf16.msra.mxu0 %v2683
    %3779 = vmatprep.subr.bf16.mxu0 %v2688
    %3780 = vmatpush1.bf16.msra.mxu0 %v2687
    %3781 = vmatprep.subr.bf16.mxu0 %v2692
    %3782 = vmatpush1.bf16.msra.mxu0 %v2691
    %3783 = vmatprep.subr.bf16.mxu0 %v2696
    %3784 = vmatpush1.bf16.msra.mxu0 %v2695
    %3785 = vmatprep.subr.bf16.mxu0 %v2700
    %3786 = vmatpush1.bf16.msra.mxu0 %v2699
    %3787 = vmatprep.subr.bf16.mxu0 %v2704
    %3788 = vmatpush1.bf16.msra.mxu0 %v2703
    %3789 = vmatprep.subr.bf16.mxu0 %v2708
    %3790 = vmatpush1.bf16.msra.mxu0 %v2707
    %3791 = vmatprep.subr.bf16.mxu0 %v2712
    %3792 = vmatpush1.bf16.msra.mxu0 %v2711
    %3793 = vmatprep.subr.bf16.mxu0 %v2716
    %3794 = vmatpush1.bf16.msra.mxu0 %v2715
    %3795 = vmatprep.subr.bf16.mxu0 %v2720
    %3796 = vmatpush1.bf16.msra.mxu0 %v2719
    %3797 = vmatprep.mubr.bf16.mxu0 %v709
    %3798 = vmatmul.mubr.bf16.gmra.mrb[0].mxu0 %v695
    %v3799 = vpop.f32.mrb[0].mxu0
    %v3800 = vadd.f32 %v3759, %v3799
    %v3801 = vpop.f32.mrb[0].mxu0
    %v3802 = vadd.f32 %v3761, %v3801
    %v3803 = vpop.f32.mrb[0].mxu0
    %v3804 = vpop.f32.mrb[0].mxu0
    %3805 = vdwg.mxu0
    %3806 = vmatprep.subr.bf16.mxu0 %v2724
    %3807 = vmatpush1.bf16.msra.mxu0 %v2723
    %3808 = vmatprep.subr.bf16.mxu0 %v2728
    %3809 = vmatpush1.bf16.msra.mxu0 %v2727
    %3810 = vmatprep.subr.bf16.mxu0 %v2732
    %3811 = vmatpush1.bf16.msra.mxu0 %v2731
    %3812 = vmatprep.subr.bf16.mxu0 %v2736
    %3813 = vmatpush1.bf16.msra.mxu0 %v2735
    %3814 = vmatprep.subr.bf16.mxu0 %v2740
    %3815 = vmatpush1.bf16.msra.mxu0 %v2739
    %3816 = vmatprep.subr.bf16.mxu0 %v2744
    %3817 = vmatpush1.bf16.msra.mxu0 %v2743
    %3818 = vmatprep.subr.bf16.mxu0 %v2748
    %3819 = vmatpush1.bf16.msra.mxu0 %v2747
    %3820 = vmatprep.subr.bf16.mxu0 %v2752
    %3821 = vmatpush1.bf16.msra.mxu0 %v2751
    %3822 = vmatprep.subr.bf16.mxu0 %v2756
    %3823 = vmatpush1.bf16.msra.mxu0 %v2755
    %3824 = vmatprep.subr.bf16.mxu0 %v2760
    %3825 = vmatpush1.bf16.msra.mxu0 %v2759
    %3826 = vmatprep.subr.bf16.mxu0 %v2764
    %3827 = vmatpush1.bf16.msra.mxu0 %v2763
    %3828 = vmatprep.subr.bf16.mxu0 %v2768
    %3829 = vmatpush1.bf16.msra.mxu0 %v2767
    %3830 = vmatprep.subr.bf16.mxu0 %v2772
    %3831 = vmatpush1.bf16.msra.mxu0 %v2771
    %3832 = vmatprep.subr.bf16.mxu0 %v2776
    %3833 = vmatpush1.bf16.msra.mxu0 %v2775
    %3834 = vmatprep.subr.bf16.mxu0 %v2780
    %3835 = vmatpush1.bf16.msra.mxu0 %v2779
    %3836 = vmatprep.subr.bf16.mxu0 %v2784
    %3837 = vmatpush1.bf16.msra.mxu0 %v2783
    %3838 = vmatprep.mubr.bf16.mxu0 %v713
    %3839 = vmatmul.mubr.bf16.gmra.mrb[0].mxu0 %v711
    %v3840 = vpop.f32.mrb[0].mxu0
    %v3841 = vadd.f32 %v3800, %v3840
    %v3842 = vpop.f32.mrb[0].mxu0
    %v3843 = vadd.f32 %v3802, %v3842
    %v3844 = vpop.f32.mrb[0].mxu0
    %v3845 = vpop.f32.mrb[0].mxu0
    %3846 = vdwg.mxu0
    %3847 = vmatprep.subr.bf16.mxu0 %v2788
    %3848 = vmatpush1.bf16.msra.mxu0 %v2787
    %3849 = vmatprep.subr.bf16.mxu0 %v2792
    %3850 = vmatpush1.bf16.msra.mxu0 %v2791
    %3851 = vmatprep.subr.bf16.mxu0 %v2796
    %3852 = vmatpush1.bf16.msra.mxu0 %v2795
    %3853 = vmatprep.subr.bf16.mxu0 %v2800
    %3854 = vmatpush1.bf16.msra.mxu0 %v2799
    %3855 = vmatprep.subr.bf16.mxu0 %v2804
    %3856 = vmatpush1.bf16.msra.mxu0 %v2803
    %3857 = vmatprep.subr.bf16.mxu0 %v2808
    %3858 = vmatpush1.bf16.msra.mxu0 %v2807
    %3859 = vmatprep.subr.bf16.mxu0 %v2812
    %3860 = vmatpush1.bf16.msra.mxu0 %v2811
    %3861 = vmatprep.subr.bf16.mxu0 %v2816
    %3862 = vmatpush1.bf16.msra.mxu0 %v2815
    %3863 = vmatprep.subr.bf16.mxu0 %v2820
    %3864 = vmatpush1.bf16.msra.mxu0 %v2819
    %3865 = vmatprep.subr.bf16.mxu0 %v2824
    %3866 = vmatpush1.bf16.msra.mxu0 %v2823
    %3867 = vmatprep.subr.bf16.mxu0 %v2828
    %3868 = vmatpush1.bf16.msra.mxu0 %v2827
    %3869 = vmatprep.subr.bf16.mxu0 %v2832
    %3870 = vmatpush1.bf16.msra.mxu0 %v2831
    %3871 = vmatprep.subr.bf16.mxu0 %v2836
    %3872 = vmatpush1.bf16.msra.mxu0 %v2835
    %3873 = vmatprep.subr.bf16.mxu0 %v2840
    %3874 = vmatpush1.bf16.msra.mxu0 %v2839
    %3875 = vmatprep.subr.bf16.mxu0 %v2844
    %3876 = vmatpush1.bf16.msra.mxu0 %v2843
    %3877 = vmatprep.subr.bf16.mxu0 %v2848
    %3878 = vmatpush1.bf16.msra.mxu0 %v2847
    %3879 = vmatprep.mubr.bf16.mxu0 %v751
    %3880 = vmatmul.mubr.bf16.gmra.mrb[0].mxu0 %v737
    %v3881 = vpop.f32.mrb[0].mxu0
    %v3882 = vadd.f32 %v3841, %v3881
    %v3883 = vpop.f32.mrb[0].mxu0
    %v3884 = vadd.f32 %v3843, %v3883
    %v3885 = vpop.f32.mrb[0].mxu0
    %v3886 = vpop.f32.mrb[0].mxu0
    %3887 = vdwg.mxu0
    %3888 = vmatprep.subr.bf16.mxu0 %v2852
    %3889 = vmatpush1.bf16.msra.mxu0 %v2851
    %3890 = vmatprep.subr.bf16.mxu0 %v2856
    %3891 = vmatpush1.bf16.msra.mxu0 %v2855
    %3892 = vmatprep.subr.bf16.mxu0 %v2860
    %3893 = vmatpush1.bf16.msra.mxu0 %v2859
    %3894 = vmatprep.subr.bf16.mxu0 %v2864
    %3895 = vmatpush1.bf16.msra.mxu0 %v2863
    %3896 = vmatprep.subr.bf16.mxu0 %v2868
    %3897 = vmatpush1.bf16.msra.mxu0 %v2867
    %3898 = vmatprep.subr.bf16.mxu0 %v2872
    %3899 = vmatpush1.bf16.msra.mxu0 %v2871
    %3900 = vmatprep.subr.bf16.mxu0 %v2876
    %3901 = vmatpush1.bf16.msra.mxu0 %v2875
    %3902 = vmatprep.subr.bf16.mxu0 %v2880
    %3903 = vmatpush1.bf16.msra.mxu0 %v2879
    %3904 = vmatprep.subr.bf16.mxu0 %v2884
    %3905 = vmatpush1.bf16.msra.mxu0 %v2883
    %3906 = vmatprep.subr.bf16.mxu0 %v2888
    %3907 = vmatpush1.bf16.msra.mxu0 %v2887
    %3908 = vmatprep.subr.bf16.mxu0 %v2892
    %3909 = vmatpush1.bf16.msra.mxu0 %v2891
    %3910 = vmatprep.subr.bf16.mxu0 %v2896
    %3911 = vmatpush1.bf16.msra.mxu0 %v2895
    %3912 = vmatprep.subr.bf16.mxu0 %v2900
    %3913 = vmatpush1.bf16.msra.mxu0 %v2899
    %3914 = vmatprep.subr.bf16.mxu0 %v2904
    %3915 = vmatpush1.bf16.msra.mxu0 %v2903
    %3916 = vmatprep.subr.bf16.mxu0 %v2908
    %3917 = vmatpush1.bf16.msra.mxu0 %v2907
    %3918 = vmatprep.subr.bf16.mxu0 %v2912
    %3919 = vmatpush1.bf16.msra.mxu0 %v2911
    %3920 = vmatprep.mubr.bf16.mxu0 %v761
    %3921 = vmatmul.mubr.bf16.gmra.mrb[0].mxu0 %v759
    %v3922 = vpop.f32.mrb[0].mxu0
    %v3923 = vadd.f32 %v3882, %v3922
    %v3924 = vpop.f32.mrb[0].mxu0
    %v3925 = vadd.f32 %v3884, %v3924
    %v3926 = vpop.f32.mrb[0].mxu0
    %v3927 = vpop.f32.mrb[0].mxu0
    %3928 = vdwg.mxu0
    %3929 = vmatprep.subr.bf16.mxu0 %v2916
    %3930 = vmatpush1.bf16.msra.mxu0 %v2915
    %3931 = vmatprep.subr.bf16.mxu0 %v2920
    %3932 = vmatpush1.bf16.msra.mxu0 %v2919
    %3933 = vmatprep.subr.bf16.mxu0 %v2924
    %3934 = vmatpush1.bf16.msra.mxu0 %v2923
    %3935 = vmatprep.subr.bf16.mxu0 %v2928
    %3936 = vmatpush1.bf16.msra.mxu0 %v2927
    %3937 = vmatprep.subr.bf16.mxu0 %v2932
    %3938 = vmatpush1.bf16.msra.mxu0 %v2931
    %3939 = vmatprep.subr.bf16.mxu0 %v2936
    %3940 = vmatpush1.bf16.msra.mxu0 %v2935
    %3941 = vmatprep.subr.bf16.mxu0 %v2940
    %3942 = vmatpush1.bf16.msra.mxu0 %v2939
    %3943 = vmatprep.subr.bf16.mxu0 %v2944
    %3944 = vmatpush1.bf16.msra.mxu0 %v2943
    %3945 = vmatprep.subr.bf16.mxu0 %v2948
    %3946 = vmatpush1.bf16.msra.mxu0 %v2947
    %3947 = vmatprep.subr.bf16.mxu0 %v2952
    %3948 = vmatpush1.bf16.msra.mxu0 %v2951
    %3949 = vmatprep.subr.bf16.mxu0 %v2956
    %3950 = vmatpush1.bf16.msra.mxu0 %v2955
    %3951 = vmatprep.subr.bf16.mxu0 %v2960
    %3952 = vmatpush1.bf16.msra.mxu0 %v2959
    %3953 = vmatprep.subr.bf16.mxu0 %v2964
    %3954 = vmatpush1.bf16.msra.mxu0 %v2963
    %3955 = vmatprep.subr.bf16.mxu0 %v2968
    %3956 = vmatpush1.bf16.msra.mxu0 %v2967
    %3957 = vmatprep.subr.bf16.mxu0 %v2972
    %3958 = vmatpush1.bf16.msra.mxu0 %v2971
    %3959 = vmatprep.subr.bf16.mxu0 %v2976
    %3960 = vmatpush1.bf16.msra.mxu0 %v2975
    %3961 = vmatprep.mubr.bf16.mxu0 %v758
    %3962 = vmatmul.mubr.bf16.gmra.mrb[0].mxu0 %v744
    %v3963 = vpop.f32.mrb[0].mxu0
    %v3964 = vadd.f32 %v3923, %v3963
    %v3965 = vpop.f32.mrb[0].mxu0
    %v3966 = vadd.f32 %v3925, %v3965
    %v3967 = vpop.f32.mrb[0].mxu0
    %v3968 = vpop.f32.mrb[0].mxu0
    %3969 = vdwg.mxu0
    %3970 = vmatprep.subr.bf16.mxu0 %v2980
    %3971 = vmatpush1.bf16.msra.mxu0 %v2979
    %3972 = vmatprep.subr.bf16.mxu0 %v2984
    %3973 = vmatpush1.bf16.msra.mxu0 %v2983
    %3974 = vmatprep.subr.bf16.mxu0 %v2988
    %3975 = vmatpush1.bf16.msra.mxu0 %v2987
    %3976 = vmatprep.subr.bf16.mxu0 %v2992
    %3977 = vmatpush1.bf16.msra.mxu0 %v2991
    %3978 = vmatprep.subr.bf16.mxu0 %v2996
    %3979 = vmatpush1.bf16.msra.mxu0 %v2995
    %3980 = vmatprep.subr.bf16.mxu0 %v3000
    %3981 = vmatpush1.bf16.msra.mxu0 %v2999
    %3982 = vmatprep.subr.bf16.mxu0 %v3004
    %3983 = vmatpush1.bf16.msra.mxu0 %v3003
    %3984 = vmatprep.subr.bf16.mxu0 %v3008
    %3985 = vmatpush1.bf16.msra.mxu0 %v3007
    %3986 = vmatprep.subr.bf16.mxu0 %v3012
    %3987 = vmatpush1.bf16.msra.mxu0 %v3011
    %3988 = vmatprep.subr.bf16.mxu0 %v3016
    %3989 = vmatpush1.bf16.msra.mxu0 %v3015
    %3990 = vmatprep.subr.bf16.mxu0 %v3020
    %3991 = vmatpush1.bf16.msra.mxu0 %v3019
    %3992 = vmatprep.subr.bf16.mxu0 %v3024
    %3993 = vmatpush1.bf16.msra.mxu0 %v3023
    %3994 = vmatprep.subr.bf16.mxu0 %v3028
    %3995 = vmatpush1.bf16.msra.mxu0 %v3027
    %3996 = vmatprep.subr.bf16.mxu0 %v3032
    %3997 = vmatpush1.bf16.msra.mxu0 %v3031
    %3998 = vmatprep.subr.bf16.mxu0 %v3036
    %3999 = vmatpush1.bf16.msra.mxu0 %v3035
    %4000 = vmatprep.subr.bf16.mxu0 %v3040
    %4001 = vmatpush1.bf16.msra.mxu0 %v3039
    %4002 = vmatprep.mubr.bf16.mxu0 %v762
    %4003 = vmatmul.mubr.bf16.gmra.mrb[0].mxu0 %v760
    %v4004 = vpop.f32.mrb[0].mxu0
    %v4005 = vadd.f32 %v3964, %v4004
    %v4006 = vpop.f32.mrb[0].mxu0
    %v4007 = vadd.f32 %v3966, %v4006
    %v4008 = vpop.f32.mrb[0].mxu0
    %v4009 = vpop.f32.mrb[0].mxu0
    %4010 = vdwg.mxu0
    %4011 = vmatprep.subr.bf16.mxu0 %v3044
    %4012 = vmatpush1.bf16.msra.mxu0 %v3043
    %4013 = vmatprep.subr.bf16.mxu0 %v3048
    %4014 = vmatpush1.bf16.msra.mxu0 %v3047
    %4015 = vmatprep.subr.bf16.mxu0 %v3052
    %4016 = vmatpush1.bf16.msra.mxu0 %v3051
    %4017 = vmatprep.subr.bf16.mxu0 %v3056
    %4018 = vmatpush1.bf16.msra.mxu0 %v3055
    %4019 = vmatprep.subr.bf16.mxu0 %v3060
    %4020 = vmatpush1.bf16.msra.mxu0 %v3059
    %4021 = vmatprep.subr.bf16.mxu0 %v3064
    %4022 = vmatpush1.bf16.msra.mxu0 %v3063
    %4023 = vmatprep.subr.bf16.mxu0 %v3068
    %4024 = vmatpush1.bf16.msra.mxu0 %v3067
    %4025 = vmatprep.subr.bf16.mxu0 %v3072
    %4026 = vmatpush1.bf16.msra.mxu0 %v3071
    %4027 = vmatprep.subr.bf16.mxu0 %v3076
    %4028 = vmatpush1.bf16.msra.mxu0 %v3075
    %4029 = vmatprep.subr.bf16.mxu0 %v3080
    %4030 = vmatpush1.bf16.msra.mxu0 %v3079
    %4031 = vmatprep.subr.bf16.mxu0 %v3084
    %4032 = vmatpush1.bf16.msra.mxu0 %v3083
    %4033 = vmatprep.subr.bf16.mxu0 %v3088
    %4034 = vmatpush1.bf16.msra.mxu0 %v3087
    %4035 = vmatprep.subr.bf16.mxu0 %v3092
    %4036 = vmatpush1.bf16.msra.mxu0 %v3091
    %4037 = vmatprep.subr.bf16.mxu0 %v3096
    %4038 = vmatpush1.bf16.msra.mxu0 %v3095
    %4039 = vmatprep.subr.bf16.mxu0 %v3100
    %4040 = vmatpush1.bf16.msra.mxu0 %v3099
    %4041 = vmatprep.subr.bf16.mxu0 %v3104
    %4042 = vmatpush1.bf16.msra.mxu0 %v3103
    %4043 = vmatprep.mubr.bf16.mxu0 %v784
    %4044 = vmatmul.mubr.bf16.gmra.mrb[0].mxu0 %v777
    %v4045 = vpop.f32.mrb[0].mxu0
    %v4046 = vadd.f32 %v4005, %v4045
    %v4047 = vpop.f32.mrb[0].mxu0
    %v4048 = vadd.f32 %v4007, %v4047
    %v4049 = vpop.f32.mrb[0].mxu0
    %v4050 = vpop.f32.mrb[0].mxu0
    %4051 = vdwg.mxu0
    %4052 = vmatprep.subr.bf16.mxu0 %v2534
    %4053 = vmatpush1.bf16.msra.mxu0 %v2533
    %4054 = vmatprep.subr.bf16.mxu0 %v2538
    %4055 = vmatpush1.bf16.msra.mxu0 %v2537
    %4056 = vmatprep.subr.bf16.mxu0 %v2542
    %4057 = vmatpush1.bf16.msra.mxu0 %v2541
    %4058 = vmatprep.subr.bf16.mxu0 %v2546
    %4059 = vmatpush1.bf16.msra.mxu0 %v2545
    %4060 = vmatprep.subr.bf16.mxu0 %v2550
    %4061 = vmatpush1.bf16.msra.mxu0 %v2549
    %4062 = vmatprep.subr.bf16.mxu0 %v2554
    %4063 = vmatpush1.bf16.msra.mxu0 %v2553
    %4064 = vmatprep.subr.bf16.mxu0 %v2558
    %4065 = vmatpush1.bf16.msra.mxu0 %v2557
    %4066 = vmatprep.subr.bf16.mxu0 %v2562
    %4067 = vmatpush1.bf16.msra.mxu0 %v2561
    %4068 = vmatprep.subr.bf16.mxu0 %v2566
    %4069 = vmatpush1.bf16.msra.mxu0 %v2565
    %4070 = vmatprep.subr.bf16.mxu0 %v2570
    %4071 = vmatpush1.bf16.msra.mxu0 %v2569
    %4072 = vmatprep.subr.bf16.mxu0 %v2574
    %4073 = vmatpush1.bf16.msra.mxu0 %v2573
    %4074 = vmatprep.subr.bf16.mxu0 %v2578
    %4075 = vmatpush1.bf16.msra.mxu0 %v2577
    %4076 = vmatprep.subr.bf16.mxu0 %v2582
    %4077 = vmatpush1.bf16.msra.mxu0 %v2581
    %4078 = vmatprep.subr.bf16.mxu0 %v2586
    %4079 = vmatpush1.bf16.msra.mxu0 %v2585
    %4080 = vmatprep.subr.bf16.mxu0 %v2590
    %4081 = vmatpush1.bf16.msra.mxu0 %v2589
    %4082 = vmatprep.subr.bf16.mxu0 %v2594
    %4083 = vmatpush1.bf16.msra.mxu0 %v2593
    %4084 = vmatprep.mubr.bf16.mxu0 %v702
    %4085 = vmatmul.mubr.bf16.gmra.mrb[0].mxu0 %v688
    %v4086 = vpop.f32.mrb[0].mxu0
    %v4087 = vadd.f32 %v653, %v4086
    %v4088 = vpop.f32.mrb[0].mxu0
    %v4089 = vadd.f32 %v657, %v4088
    %v4090 = vpop.f32.mrb[0].mxu0
    %v4091 = vpop.f32.mrb[0].mxu0
    %4092 = vdwg.mxu0
    %4093 = vmatprep.subr.bf16.mxu0 %v2598
    %4094 = vmatpush1.bf16.msra.mxu0 %v2597
    %4095 = vmatprep.subr.bf16.mxu0 %v2602
    %4096 = vmatpush1.bf16.msra.mxu0 %v2601
    %4097 = vmatprep.subr.bf16.mxu0 %v2606
    %4098 = vmatpush1.bf16.msra.mxu0 %v2605
    %4099 = vmatprep.subr.bf16.mxu0 %v2610
    %4100 = vmatpush1.bf16.msra.mxu0 %v2609
    %4101 = vmatprep.subr.bf16.mxu0 %v2614
    %4102 = vmatpush1.bf16.msra.mxu0 %v2613
    %4103 = vmatprep.subr.bf16.mxu0 %v2618
    %4104 = vmatpush1.bf16.msra.mxu0 %v2617
    %4105 = vmatprep.subr.bf16.mxu0 %v2622
    %4106 = vmatpush1.bf16.msra.mxu0 %v2621
    %4107 = vmatprep.subr.bf16.mxu0 %v2626
    %4108 = vmatpush1.bf16.msra.mxu0 %v2625
    %4109 = vmatprep.subr.bf16.mxu0 %v2630
    %4110 = vmatpush1.bf16.msra.mxu0 %v2629
    %4111 = vmatprep.subr.bf16.mxu0 %v2634
    %4112 = vmatpush1.bf16.msra.mxu0 %v2633
    %4113 = vmatprep.subr.bf16.mxu0 %v2638
    %4114 = vmatpush1.bf16.msra.mxu0 %v2637
    %4115 = vmatprep.subr.bf16.mxu0 %v2642
    %4116 = vmatpush1.bf16.msra.mxu0 %v2641
    %4117 = vmatprep.subr.bf16.mxu0 %v2646
    %4118 = vmatpush1.bf16.msra.mxu0 %v2645
    %4119 = vmatprep.subr.bf16.mxu0 %v2650
    %4120 = vmatpush1.bf16.msra.mxu0 %v2649
    %4121 = vmatprep.subr.bf16.mxu0 %v2654
    %4122 = vmatpush1.bf16.msra.mxu0 %v2653
    %4123 = vmatprep.subr.bf16.mxu0 %v2658
    %4124 = vmatpush1.bf16.msra.mxu0 %v2657
    %4125 = vmatprep.mubr.bf16.mxu0 %v712
    %4126 = vmatmul.mubr.bf16.gmra.mrb[0].mxu0 %v710
    %v4127 = vpop.f32.mrb[0].mxu0
    %v4128 = vadd.f32 %v4087, %v4127
    %v4129 = vpop.f32.mrb[0].mxu0
    %v4130 = vadd.f32 %v4089, %v4129
    %v4131 = vpop.f32.mrb[0].mxu0
    %v4132 = vpop.f32.mrb[0].mxu0
    %4133 = vdwg.mxu0
    %4134 = vmatprep.subr.bf16.mxu0 %v2662
    %4135 = vmatpush1.bf16.msra.mxu0 %v2661
    %4136 = vmatprep.subr.bf16.mxu0 %v2666
    %4137 = vmatpush1.bf16.msra.mxu0 %v2665
    %4138 = vmatprep.subr.bf16.mxu0 %v2670
    %4139 = vmatpush1.bf16.msra.mxu0 %v2669
    %4140 = vmatprep.subr.bf16.mxu0 %v2674
    %4141 = vmatpush1.bf16.msra.mxu0 %v2673
    %4142 = vmatprep.subr.bf16.mxu0 %v2678
    %4143 = vmatpush1.bf16.msra.mxu0 %v2677
    %4144 = vmatprep.subr.bf16.mxu0 %v2682
    %4145 = vmatpush1.bf16.msra.mxu0 %v2681
    %4146 = vmatprep.subr.bf16.mxu0 %v2686
    %4147 = vmatpush1.bf16.msra.mxu0 %v2685
    %4148 = vmatprep.subr.bf16.mxu0 %v2690
    %4149 = vmatpush1.bf16.msra.mxu0 %v2689
    %4150 = vmatprep.subr.bf16.mxu0 %v2694
    %4151 = vmatpush1.bf16.msra.mxu0 %v2693
    %4152 = vmatprep.subr.bf16.mxu0 %v2698
    %4153 = vmatpush1.bf16.msra.mxu0 %v2697
    %4154 = vmatprep.subr.bf16.mxu0 %v2702
    %4155 = vmatpush1.bf16.msra.mxu0 %v2701
    %4156 = vmatprep.subr.bf16.mxu0 %v2706
    %4157 = vmatpush1.bf16.msra.mxu0 %v2705
    %4158 = vmatprep.subr.bf16.mxu0 %v2710
    %4159 = vmatpush1.bf16.msra.mxu0 %v2709
    %4160 = vmatprep.subr.bf16.mxu0 %v2714
    %4161 = vmatpush1.bf16.msra.mxu0 %v2713
    %4162 = vmatprep.subr.bf16.mxu0 %v2718
    %4163 = vmatpush1.bf16.msra.mxu0 %v2717
    %4164 = vmatprep.subr.bf16.mxu0 %v2722
    %4165 = vmatpush1.bf16.msra.mxu0 %v2721
    %4166 = vmatprep.mubr.bf16.mxu0 %v709
    %4167 = vmatmul.mubr.bf16.gmra.mrb[0].mxu0 %v695
    %v4168 = vpop.f32.mrb[0].mxu0
    %v4169 = vadd.f32 %v4128, %v4168
    %v4170 = vpop.f32.mrb[0].mxu0
    %v4171 = vadd.f32 %v4130, %v4170
    %v4172 = vpop.f32.mrb[0].mxu0
    %v4173 = vpop.f32.mrb[0].mxu0
    %4174 = vdwg.mxu0
    %4175 = vmatprep.subr.bf16.mxu0 %v2726
    %4176 = vmatpush1.bf16.msra.mxu0 %v2725
    %4177 = vmatprep.subr.bf16.mxu0 %v2730
    %4178 = vmatpush1.bf16.msra.mxu0 %v2729
    %4179 = vmatprep.subr.bf16.mxu0 %v2734
    %4180 = vmatpush1.bf16.msra.mxu0 %v2733
    %4181 = vmatprep.subr.bf16.mxu0 %v2738
    %4182 = vmatpush1.bf16.msra.mxu0 %v2737
    %4183 = vmatprep.subr.bf16.mxu0 %v2742
    %4184 = vmatpush1.bf16.msra.mxu0 %v2741
    %4185 = vmatprep.subr.bf16.mxu0 %v2746
    %4186 = vmatpush1.bf16.msra.mxu0 %v2745
    %4187 = vmatprep.subr.bf16.mxu0 %v2750
    %4188 = vmatpush1.bf16.msra.mxu0 %v2749
    %4189 = vmatprep.subr.bf16.mxu0 %v2754
    %4190 = vmatpush1.bf16.msra.mxu0 %v2753
    %4191 = vmatprep.subr.bf16.mxu0 %v2758
    %4192 = vmatpush1.bf16.msra.mxu0 %v2757
    %4193 = vmatprep.subr.bf16.mxu0 %v2762
    %4194 = vmatpush1.bf16.msra.mxu0 %v2761
    %4195 = vmatprep.subr.bf16.mxu0 %v2766
    %4196 = vmatpush1.bf16.msra.mxu0 %v2765
    %4197 = vmatprep.subr.bf16.mxu0 %v2770
    %4198 = vmatpush1.bf16.msra.mxu0 %v2769
    %4199 = vmatprep.subr.bf16.mxu0 %v2774
    %4200 = vmatpush1.bf16.msra.mxu0 %v2773
    %4201 = vmatprep.subr.bf16.mxu0 %v2778
    %4202 = vmatpush1.bf16.msra.mxu0 %v2777
    %4203 = vmatprep.subr.bf16.mxu0 %v2782
    %4204 = vmatpush1.bf16.msra.mxu0 %v2781
    %4205 = vmatprep.subr.bf16.mxu0 %v2786
    %4206 = vmatpush1.bf16.msra.mxu0 %v2785
    %4207 = vmatprep.mubr.bf16.mxu0 %v713
    %4208 = vmatmul.mubr.bf16.gmra.mrb[0].mxu0 %v711
    %v4209 = vpop.f32.mrb[0].mxu0
    %v4210 = vadd.f32 %v4169, %v4209
    %v4211 = vpop.f32.mrb[0].mxu0
    %v4212 = vadd.f32 %v4171, %v4211
    %v4213 = vpop.f32.mrb[0].mxu0
    %v4214 = vpop.f32.mrb[0].mxu0
    %4215 = vdwg.mxu0
    %4216 = vmatprep.subr.bf16.mxu0 %v2790
    %4217 = vmatpush1.bf16.msra.mxu0 %v2789
    %4218 = vmatprep.subr.bf16.mxu0 %v2794
    %4219 = vmatpush1.bf16.msra.mxu0 %v2793
    %4220 = vmatprep.subr.bf16.mxu0 %v2798
    %4221 = vmatpush1.bf16.msra.mxu0 %v2797
    %4222 = vmatprep.subr.bf16.mxu0 %v2802
    %4223 = vmatpush1.bf16.msra.mxu0 %v2801
    %4224 = vmatprep.subr.bf16.mxu0 %v2806
    %4225 = vmatpush1.bf16.msra.mxu0 %v2805
    %4226 = vmatprep.subr.bf16.mxu0 %v2810
    %4227 = vmatpush1.bf16.msra.mxu0 %v2809
    %4228 = vmatprep.subr.bf16.mxu0 %v2814
    %4229 = vmatpush1.bf16.msra.mxu0 %v2813
    %4230 = vmatprep.subr.bf16.mxu0 %v2818
    %4231 = vmatpush1.bf16.msra.mxu0 %v2817
    %4232 = vmatprep.subr.bf16.mxu0 %v2822
    %4233 = vmatpush1.bf16.msra.mxu0 %v2821
    %4234 = vmatprep.subr.bf16.mxu0 %v2826
    %4235 = vmatpush1.bf16.msra.mxu0 %v2825
    %4236 = vmatprep.subr.bf16.mxu0 %v2830
    %4237 = vmatpush1.bf16.msra.mxu0 %v2829
    %4238 = vmatprep.subr.bf16.mxu0 %v2834
    %4239 = vmatpush1.bf16.msra.mxu0 %v2833
    %4240 = vmatprep.subr.bf16.mxu0 %v2838
    %4241 = vmatpush1.bf16.msra.mxu0 %v2837
    %4242 = vmatprep.subr.bf16.mxu0 %v2842
    %4243 = vmatpush1.bf16.msra.mxu0 %v2841
    %4244 = vmatprep.subr.bf16.mxu0 %v2846
    %4245 = vmatpush1.bf16.msra.mxu0 %v2845
    %4246 = vmatprep.subr.bf16.mxu0 %v2850
    %4247 = vmatpush1.bf16.msra.mxu0 %v2849
    %4248 = vmatprep.mubr.bf16.mxu0 %v751
    %4249 = vmatmul.mubr.bf16.gmra.mrb[0].mxu0 %v737
    %v4250 = vpop.f32.mrb[0].mxu0
    %v4251 = vadd.f32 %v4210, %v4250
    %v4252 = vpop.f32.mrb[0].mxu0
    %v4253 = vadd.f32 %v4212, %v4252
    %v4254 = vpop.f32.mrb[0].mxu0
    %v4255 = vpop.f32.mrb[0].mxu0
    %4256 = vdwg.mxu0
    %4257 = vmatprep.subr.bf16.mxu0 %v2854
    %4258 = vmatpush1.bf16.msra.mxu0 %v2853
    %4259 = vmatprep.subr.bf16.mxu0 %v2858
    %4260 = vmatpush1.bf16.msra.mxu0 %v2857
    %4261 = vmatprep.subr.bf16.mxu0 %v2862
    %4262 = vmatpush1.bf16.msra.mxu0 %v2861
    %4263 = vmatprep.subr.bf16.mxu0 %v2866
    %4264 = vmatpush1.bf16.msra.mxu0 %v2865
    %4265 = vmatprep.subr.bf16.mxu0 %v2870
    %4266 = vmatpush1.bf16.msra.mxu0 %v2869
    %4267 = vmatprep.subr.bf16.mxu0 %v2874
    %4268 = vmatpush1.bf16.msra.mxu0 %v2873
    %4269 = vmatprep.subr.bf16.mxu0 %v2878
    %4270 = vmatpush1.bf16.msra.mxu0 %v2877
    %4271 = vmatprep.subr.bf16.mxu0 %v2882
    %4272 = vmatpush1.bf16.msra.mxu0 %v2881
    %4273 = vmatprep.subr.bf16.mxu0 %v2886
    %4274 = vmatpush1.bf16.msra.mxu0 %v2885
    %4275 = vmatprep.subr.bf16.mxu0 %v2890
    %4276 = vmatpush1.bf16.msra.mxu0 %v2889
    %4277 = vmatprep.subr.bf16.mxu0 %v2894
    %4278 = vmatpush1.bf16.msra.mxu0 %v2893
    %4279 = vmatprep.subr.bf16.mxu0 %v2898
    %4280 = vmatpush1.bf16.msra.mxu0 %v2897
    %4281 = vmatprep.subr.bf16.mxu0 %v2902
    %4282 = vmatpush1.bf16.msra.mxu0 %v2901
    %4283 = vmatprep.subr.bf16.mxu0 %v2906
    %4284 = vmatpush1.bf16.msra.mxu0 %v2905
    %4285 = vmatprep.subr.bf16.mxu0 %v2910
    %4286 = vmatpush1.bf16.msra.mxu0 %v2909
    %4287 = vmatprep.subr.bf16.mxu0 %v2914
    %4288 = vmatpush1.bf16.msra.mxu0 %v2913
    %4289 = vmatprep.mubr.bf16.mxu0 %v761
    %4290 = vmatmul.mubr.bf16.gmra.mrb[0].mxu0 %v759
    %v4291 = vpop.f32.mrb[0].mxu0
    %v4292 = vadd.f32 %v4251, %v4291
    %v4293 = vpop.f32.mrb[0].mxu0
    %v4294 = vadd.f32 %v4253, %v4293
    %v4295 = vpop.f32.mrb[0].mxu0
    %v4296 = vpop.f32.mrb[0].mxu0
    %4297 = vdwg.mxu0
    %4298 = vmatprep.subr.bf16.mxu0 %v2918
    %4299 = vmatpush1.bf16.msra.mxu0 %v2917
    %4300 = vmatprep.subr.bf16.mxu0 %v2922
    %4301 = vmatpush1.bf16.msra.mxu0 %v2921
    %4302 = vmatprep.subr.bf16.mxu0 %v2926
    %4303 = vmatpush1.bf16.msra.mxu0 %v2925
    %4304 = vmatprep.subr.bf16.mxu0 %v2930
    %4305 = vmatpush1.bf16.msra.mxu0 %v2929
    %4306 = vmatprep.subr.bf16.mxu0 %v2934
    %4307 = vmatpush1.bf16.msra.mxu0 %v2933
    %4308 = vmatprep.subr.bf16.mxu0 %v2938
    %4309 = vmatpush1.bf16.msra.mxu0 %v2937
    %4310 = vmatprep.subr.bf16.mxu0 %v2942
    %4311 = vmatpush1.bf16.msra.mxu0 %v2941
    %4312 = vmatprep.subr.bf16.mxu0 %v2946
    %4313 = vmatpush1.bf16.msra.mxu0 %v2945
    %4314 = vmatprep.subr.bf16.mxu0 %v2950
    %4315 = vmatpush1.bf16.msra.mxu0 %v2949
    %4316 = vmatprep.subr.bf16.mxu0 %v2954
    %4317 = vmatpush1.bf16.msra.mxu0 %v2953
    %4318 = vmatprep.subr.bf16.mxu0 %v2958
    %4319 = vmatpush1.bf16.msra.mxu0 %v2957
    %4320 = vmatprep.subr.bf16.mxu0 %v2962
    %4321 = vmatpush1.bf16.msra.mxu0 %v2961
    %4322 = vmatprep.subr.bf16.mxu0 %v2966
    %4323 = vmatpush1.bf16.msra.mxu0 %v2965
    %4324 = vmatprep.subr.bf16.mxu0 %v2970
    %4325 = vmatpush1.bf16.msra.mxu0 %v2969
    %4326 = vmatprep.subr.bf16.mxu0 %v2974
    %4327 = vmatpush1.bf16.msra.mxu0 %v2973
    %4328 = vmatprep.subr.bf16.mxu0 %v2978
    %4329 = vmatpush1.bf16.msra.mxu0 %v2977
    %4330 = vmatprep.mubr.bf16.mxu0 %v758
    %4331 = vmatmul.mubr.bf16.gmra.mrb[0].mxu0 %v744
    %v4332 = vpop.f32.mrb[0].mxu0
    %v4333 = vadd.f32 %v4292, %v4332
    %v4334 = vpop.f32.mrb[0].mxu0
    %v4335 = vadd.f32 %v4294, %v4334
    %v4336 = vpop.f32.mrb[0].mxu0
    %v4337 = vpop.f32.mrb[0].mxu0
    %4338 = vdwg.mxu0
    %4339 = vmatprep.subr.bf16.mxu0 %v2982
    %4340 = vmatpush1.bf16.msra.mxu0 %v2981
    %4341 = vmatprep.subr.bf16.mxu0 %v2986
    %4342 = vmatpush1.bf16.msra.mxu0 %v2985
    %4343 = vmatprep.subr.bf16.mxu0 %v2990
    %4344 = vmatpush1.bf16.msra.mxu0 %v2989
    %4345 = vmatprep.subr.bf16.mxu0 %v2994
    %4346 = vmatpush1.bf16.msra.mxu0 %v2993
    %4347 = vmatprep.subr.bf16.mxu0 %v2998
    %4348 = vmatpush1.bf16.msra.mxu0 %v2997
    %4349 = vmatprep.subr.bf16.mxu0 %v3002
    %4350 = vmatpush1.bf16.msra.mxu0 %v3001
    %4351 = vmatprep.subr.bf16.mxu0 %v3006
    %4352 = vmatpush1.bf16.msra.mxu0 %v3005
    %4353 = vmatprep.subr.bf16.mxu0 %v3010
    %4354 = vmatpush1.bf16.msra.mxu0 %v3009
    %4355 = vmatprep.subr.bf16.mxu0 %v3014
    %4356 = vmatpush1.bf16.msra.mxu0 %v3013
    %4357 = vmatprep.subr.bf16.mxu0 %v3018
    %4358 = vmatpush1.bf16.msra.mxu0 %v3017
    %4359 = vmatprep.subr.bf16.mxu0 %v3022
    %4360 = vmatpush1.bf16.msra.mxu0 %v3021
    %4361 = vmatprep.subr.bf16.mxu0 %v3026
    %4362 = vmatpush1.bf16.msra.mxu0 %v3025
    %4363 = vmatprep.subr.bf16.mxu0 %v3030
    %4364 = vmatpush1.bf16.msra.mxu0 %v3029
    %4365 = vmatprep.subr.bf16.mxu0 %v3034
    %4366 = vmatpush1.bf16.msra.mxu0 %v3033
    %4367 = vmatprep.subr.bf16.mxu0 %v3038
    %4368 = vmatpush1.bf16.msra.mxu0 %v3037
    %4369 = vmatprep.subr.bf16.mxu0 %v3042
    %4370 = vmatpush1.bf16.msra.mxu0 %v3041
    %4371 = vmatprep.mubr.bf16.mxu0 %v762
    %4372 = vmatmul.mubr.bf16.gmra.mrb[0].mxu0 %v760
    %v4373 = vpop.f32.mrb[0].mxu0
    %v4374 = vadd.f32 %v4333, %v4373
    %v4375 = vpop.f32.mrb[0].mxu0
    %v4376 = vadd.f32 %v4335, %v4375
    %v4377 = vpop.f32.mrb[0].mxu0
    %v4378 = vpop.f32.mrb[0].mxu0
    %4379 = vdwg.mxu0
    %4380 = vmatprep.subr.bf16.mxu0 %v3046
    %4381 = vmatpush1.bf16.msra.mxu0 %v3045
    %4382 = vmatprep.subr.bf16.mxu0 %v3050
    %4383 = vmatpush1.bf16.msra.mxu0 %v3049
    %4384 = vmatprep.subr.bf16.mxu0 %v3054
    %4385 = vmatpush1.bf16.msra.mxu0 %v3053
    %4386 = vmatprep.subr.bf16.mxu0 %v3058
    %4387 = vmatpush1.bf16.msra.mxu0 %v3057
    %4388 = vmatprep.subr.bf16.mxu0 %v3062
    %4389 = vmatpush1.bf16.msra.mxu0 %v3061
    %4390 = vmatprep.subr.bf16.mxu0 %v3066
    %4391 = vmatpush1.bf16.msra.mxu0 %v3065
    %4392 = vmatprep.subr.bf16.mxu0 %v3070
    %4393 = vmatpush1.bf16.msra.mxu0 %v3069
    %4394 = vmatprep.subr.bf16.mxu0 %v3074
    %4395 = vmatpush1.bf16.msra.mxu0 %v3073
    %4396 = vmatprep.subr.bf16.mxu0 %v3078
    %4397 = vmatpush1.bf16.msra.mxu0 %v3077
    %4398 = vmatprep.subr.bf16.mxu0 %v3082
    %4399 = vmatpush1.bf16.msra.mxu0 %v3081
    %4400 = vmatprep.subr.bf16.mxu0 %v3086
    %4401 = vmatpush1.bf16.msra.mxu0 %v3085
    %4402 = vmatprep.subr.bf16.mxu0 %v3090
    %4403 = vmatpush1.bf16.msra.mxu0 %v3089
    %4404 = vmatprep.subr.bf16.mxu0 %v3094
    %4405 = vmatpush1.bf16.msra.mxu0 %v3093
    %4406 = vmatprep.subr.bf16.mxu0 %v3098
    %4407 = vmatpush1.bf16.msra.mxu0 %v3097
    %4408 = vmatprep.subr.bf16.mxu0 %v3102
    %4409 = vmatpush1.bf16.msra.mxu0 %v3101
    %4410 = vmatprep.subr.bf16.mxu0 %v3106
    %4411 = vmatpush1.bf16.msra.mxu0 %v3105
    %4412 = vmatprep.mubr.bf16.mxu0 %v784
    %4413 = vmatmul.mubr.bf16.gmra.mrb[0].mxu0 %v777
    %v4414 = vpop.f32.mrb[0].mxu0
    %v4415 = vadd.f32 %v4374, %v4414
    %v4416 = vpop.f32.mrb[0].mxu0
    %v4417 = vadd.f32 %v4376, %v4416
    %v4418 = vpop.f32.mrb[0].mxu0
    %v4419 = vpop.f32.mrb[0].mxu0
    %4420 = vdwg.mxu0
    %v4421 = vmax.f32 %v4046, 0.0
    %v4422 = vmax.f32 %v4048, 0.0
    %v4423 = vmax.f32 %v4415, 0.0
    %v4424 = vmax.f32 %v4417, 0.0
    %v4425 = vpack.c.bf16 %v4421, %v4421
    %v4426 = vpack.c.bf16 %v4422, %v4422
    %v4427 = vpack.c.bf16 %v4423, %v4423
    %v4428 = vpack.c.bf16 %v4424, %v4424
    %v4429 = vld [vmem:[%s3] sm:$0xf]
    %v4430 = vld [vmem:[%s3 + $0x4] sm:$0xf]
    %v4431 = vld [vmem:[%s3 + $0x8] sm:$0xf]
    %v4432 = vld [vmem:[%s3 + $0xc] sm:$0xf]
    %v4433 = vld [vmem:[%s3 + $0x10] sm:$0xf]
    %v4434 = vld [vmem:[%s3 + $0x14] sm:$0xf]
    %v4435 = vld [vmem:[%s3 + $0x18] sm:$0xf]
    %v4436 = vld [vmem:[%s3 + $0x1c] sm:$0xf]
    %v4437 = vld [vmem:[%s3 + $0x20] sm:$0xf]
    %v4438 = vld [vmem:[%s3 + $0x24] sm:$0xf]
    %v4439 = vld [vmem:[%s3 + $0x28] sm:$0xf]
    %v4440 = vld [vmem:[%s3 + $0x2c] sm:$0xf]
    %v4441 = vld [vmem:[%s3 + $0x30] sm:$0xf]
    %v4442 = vld [vmem:[%s3 + $0x34] sm:$0xf]
    %v4443 = vld [vmem:[%s3 + $0x38] sm:$0xf]
    %v4444 = vld [vmem:[%s3 + $0x3c] sm:$0xf]
    %v4445 = vld [vmem:[%s3 + $0x40] sm:$0xf]
    %v4446 = vld [vmem:[%s3 + $0x44] sm:$0xf]
    %v4447 = vld [vmem:[%s3 + $0x48] sm:$0xf]
    %v4448 = vld [vmem:[%s3 + $0x4c] sm:$0xf]
    %v4449 = vld [vmem:[%s3 + $0x50] sm:$0xf]
    %v4450 = vld [vmem:[%s3 + $0x54] sm:$0xf]
    %v4451 = vld [vmem:[%s3 + $0x58] sm:$0xf]
    %v4452 = vld [vmem:[%s3 + $0x5c] sm:$0xf]
    %v4453 = vld [vmem:[%s3 + $0x60] sm:$0xf]
    %v4454 = vld [vmem:[%s3 + $0x64] sm:$0xf]
    %v4455 = vld [vmem:[%s3 + $0x68] sm:$0xf]
    %v4456 = vld [vmem:[%s3 + $0x6c] sm:$0xf]
    %v4457 = vld [vmem:[%s3 + $0x70] sm:$0xf]
    %v4458 = vld [vmem:[%s3 + $0x74] sm:$0xf]
    %v4459 = vld [vmem:[%s3 + $0x78] sm:$0xf]
    %v4460 = vld [vmem:[%s3 + $0x7c] sm:$0xf]
    %v4461 = vld [vmem:[%s3 + $0x80] sm:$0xf]
    %v4462 = vld [vmem:[%s3 + $0x84] sm:$0xf]
    %v4463 = vld [vmem:[%s3 + $0x88] sm:$0xf]
    %v4464 = vld [vmem:[%s3 + $0x8c] sm:$0xf]
    %v4465 = vld [vmem:[%s3 + $0x90] sm:$0xf]
    %v4466 = vld [vmem:[%s3 + $0x94] sm:$0xf]
    %v4467 = vld [vmem:[%s3 + $0x98] sm:$0xf]
    %v4468 = vld [vmem:[%s3 + $0x9c] sm:$0xf]
    %v4469 = vld [vmem:[%s3 + $0xa0] sm:$0xf]
    %v4470 = vld [vmem:[%s3 + $0xa4] sm:$0xf]
    %v4471 = vld [vmem:[%s3 + $0xa8] sm:$0xf]
    %v4472 = vld [vmem:[%s3 + $0xac] sm:$0xf]
    %v4473 = vld [vmem:[%s3 + $0xb0] sm:$0xf]
    %v4474 = vld [vmem:[%s3 + $0xb4] sm:$0xf]
    %v4475 = vld [vmem:[%s3 + $0xb8] sm:$0xf]
    %v4476 = vld [vmem:[%s3 + $0xbc] sm:$0xf]
    %v4477 = vld [vmem:[%s3 + $0xc0] sm:$0xf]
    %v4478 = vld [vmem:[%s3 + $0xc4] sm:$0xf]
    %v4479 = vld [vmem:[%s3 + $0xc8] sm:$0xf]
    %v4480 = vld [vmem:[%s3 + $0xcc] sm:$0xf]
    %v4481 = vld [vmem:[%s3 + $0xd0] sm:$0xf]
    %v4482 = vld [vmem:[%s3 + $0xd4] sm:$0xf]
    %v4483 = vld [vmem:[%s3 + $0xd8] sm:$0xf]
    %v4484 = vld [vmem:[%s3 + $0xdc] sm:$0xf]
    %v4485 = vld [vmem:[%s3 + $0xe0] sm:$0xf]
    %v4486 = vld [vmem:[%s3 + $0xe4] sm:$0xf]
    %v4487 = vld [vmem:[%s3 + $0xe8] sm:$0xf]
    %v4488 = vld [vmem:[%s3 + $0xec] sm:$0xf]
    %v4489 = vld [vmem:[%s3 + $0xf0] sm:$0xf]
    %v4490 = vld [vmem:[%s3 + $0xf4] sm:$0xf]
    %v4491 = vld [vmem:[%s3 + $0xf8] sm:$0xf]
    %v4492 = vld [vmem:[%s3 + $0xfc] sm:$0xf]
    %v4493 = vld [vmem:[%s4] sm:$0x1]
    %v4495 = vlaneseq
    %v4496 = vshrl.u32 %v4495, 7
    %v4497 = vsub.s32 0, %v4496
    %v4498 = vrot.slane %v4493, %v4497
    %v4564 = vunpack.c.l.b16 %v4429
    %v4565 = vunpack.c.l.b16 %v4430
    %v4566 = vunpack.c.l.b16 %v4431
    %v4567 = vunpack.c.l.b16 %v4432
    %v4568 = vunpack.c.l.b16 %v4433
    %v4569 = vunpack.c.l.b16 %v4434
    %v4570 = vunpack.c.l.b16 %v4435
    %v4571 = vunpack.c.l.b16 %v4436
    %v4572 = vunpack.c.l.b16 %v4437
    %v4573 = vunpack.c.l.b16 %v4438
    %v4574 = vunpack.c.l.b16 %v4439
    %v4575 = vunpack.c.l.b16 %v4440
    %v4576 = vunpack.c.l.b16 %v4441
    %v4577 = vunpack.c.l.b16 %v4442
    %v4578 = vunpack.c.l.b16 %v4443
    %v4579 = vunpack.c.l.b16 %v4444
    %v4580 = vunpack.c.l.b16 %v4445
    %v4581 = vunpack.c.l.b16 %v4446
    %v4582 = vunpack.c.l.b16 %v4447
    %v4583 = vunpack.c.l.b16 %v4448
    %v4584 = vunpack.c.l.b16 %v4449
    %v4585 = vunpack.c.l.b16 %v4450
    %v4586 = vunpack.c.l.b16 %v4451
    %v4587 = vunpack.c.l.b16 %v4452
    %v4588 = vunpack.c.l.b16 %v4453
    %v4589 = vunpack.c.l.b16 %v4454
    %v4590 = vunpack.c.l.b16 %v4455
    %v4591 = vunpack.c.l.b16 %v4456
    %v4592 = vunpack.c.l.b16 %v4457
    %v4593 = vunpack.c.l.b16 %v4458
    %v4594 = vunpack.c.l.b16 %v4459
    %v4595 = vunpack.c.l.b16 %v4460
    %v4596 = vunpack.c.l.b16 %v4461
    %v4597 = vunpack.c.l.b16 %v4462
    %v4598 = vunpack.c.l.b16 %v4463
    %v4599 = vunpack.c.l.b16 %v4464
    %v4600 = vunpack.c.l.b16 %v4465
    %v4601 = vunpack.c.l.b16 %v4466
    %v4602 = vunpack.c.l.b16 %v4467
    %v4603 = vunpack.c.l.b16 %v4468
    %v4604 = vunpack.c.l.b16 %v4469
    %v4605 = vunpack.c.l.b16 %v4470
    %v4606 = vunpack.c.l.b16 %v4471
    %v4607 = vunpack.c.l.b16 %v4472
    %v4608 = vunpack.c.l.b16 %v4473
    %v4609 = vunpack.c.l.b16 %v4474
    %v4610 = vunpack.c.l.b16 %v4475
    %v4611 = vunpack.c.l.b16 %v4476
    %v4612 = vunpack.c.l.b16 %v4477
    %v4613 = vunpack.c.l.b16 %v4478
    %v4614 = vunpack.c.l.b16 %v4479
    %v4615 = vunpack.c.l.b16 %v4480
    %v4616 = vunpack.c.l.b16 %v4481
    %v4617 = vunpack.c.l.b16 %v4482
    %v4618 = vunpack.c.l.b16 %v4483
    %v4619 = vunpack.c.l.b16 %v4484
    %v4620 = vunpack.c.l.b16 %v4485
    %v4621 = vunpack.c.l.b16 %v4486
    %v4622 = vunpack.c.l.b16 %v4487
    %v4623 = vunpack.c.l.b16 %v4488
    %v4624 = vunpack.c.l.b16 %v4489
    %v4625 = vunpack.c.l.b16 %v4490
    %v4626 = vunpack.c.l.b16 %v4491
    %v4627 = vunpack.c.l.b16 %v4492
    %v4628 = vpack.c.b16 %v4565, %v4564
    %v4629 = vpack.c.b16 %v4567, %v4566
    %v4630 = vpack.c.b16 %v4569, %v4568
    %v4631 = vpack.c.b16 %v4571, %v4570
    %v4632 = vpack.c.b16 %v4573, %v4572
    %v4633 = vpack.c.b16 %v4575, %v4574
    %v4634 = vpack.c.b16 %v4577, %v4576
    %v4635 = vpack.c.b16 %v4579, %v4578
    %v4636 = vpack.c.b16 %v4581, %v4580
    %v4637 = vpack.c.b16 %v4583, %v4582
    %v4638 = vpack.c.b16 %v4585, %v4584
    %v4639 = vpack.c.b16 %v4587, %v4586
    %v4640 = vpack.c.b16 %v4589, %v4588
    %v4641 = vpack.c.b16 %v4591, %v4590
    %v4642 = vpack.c.b16 %v4593, %v4592
    %v4643 = vpack.c.b16 %v4595, %v4594
    %v4644 = vpack.c.b16 %v4597, %v4596
    %v4645 = vpack.c.b16 %v4599, %v4598
    %v4646 = vpack.c.b16 %v4601, %v4600
    %v4647 = vpack.c.b16 %v4603, %v4602
    %v4648 = vpack.c.b16 %v4605, %v4604
    %v4649 = vpack.c.b16 %v4607, %v4606
    %v4650 = vpack.c.b16 %v4609, %v4608
    %v4651 = vpack.c.b16 %v4611, %v4610
    %v4652 = vpack.c.b16 %v4613, %v4612
    %v4653 = vpack.c.b16 %v4615, %v4614
    %v4654 = vpack.c.b16 %v4617, %v4616
    %v4655 = vpack.c.b16 %v4619, %v4618
    %v4656 = vpack.c.b16 %v4621, %v4620
    %v4657 = vpack.c.b16 %v4623, %v4622
    %v4658 = vpack.c.b16 %v4625, %v4624
    %v4659 = vpack.c.b16 %v4627, %v4626
    %4692 = vmatprep.subr.bf16.mxu0 0
    %4693 = vmatpush1.bf16.msra.mxu0 %v4628
    %4694 = vmatprep.subr.bf16.mxu0 0
    %4695 = vmatpush1.bf16.msra.mxu0 %v4629
    %4696 = vmatprep.subr.bf16.mxu0 0
    %4697 = vmatpush1.bf16.msra.mxu0 %v4630
    %4698 = vmatprep.subr.bf16.mxu0 0
    %4699 = vmatpush1.bf16.msra.mxu0 %v4631
    %4700 = vmatprep.subr.bf16.mxu0 0
    %4701 = vmatpush1.bf16.msra.mxu0 %v4632
    %4702 = vmatprep.subr.bf16.mxu0 0
    %4703 = vmatpush1.bf16.msra.mxu0 %v4633
    %4704 = vmatprep.subr.bf16.mxu0 0
    %4705 = vmatpush1.bf16.msra.mxu0 %v4634
    %4706 = vmatprep.subr.bf16.mxu0 0
    %4707 = vmatpush1.bf16.msra.mxu0 %v4635
    %4708 = vmatprep.subr.bf16.mxu0 0
    %4709 = vmatpush1.bf16.msra.mxu0 %v4636
    %4710 = vmatprep.subr.bf16.mxu0 0
    %4711 = vmatpush1.bf16.msra.mxu0 %v4637
    %4712 = vmatprep.subr.bf16.mxu0 0
    %4713 = vmatpush1.bf16.msra.mxu0 %v4638
    %4714 = vmatprep.subr.bf16.mxu0 0
    %4715 = vmatpush1.bf16.msra.mxu0 %v4639
    %4716 = vmatprep.subr.bf16.mxu0 0
    %4717 = vmatpush1.bf16.msra.mxu0 %v4640
    %4718 = vmatprep.subr.bf16.mxu0 0
    %4719 = vmatpush1.bf16.msra.mxu0 %v4641
    %4720 = vmatprep.subr.bf16.mxu0 0
    %4721 = vmatpush1.bf16.msra.mxu0 %v4642
    %4722 = vmatprep.subr.bf16.mxu0 0
    %4723 = vmatpush1.bf16.msra.mxu0 %v4643
    %4724 = vmatprep.mubr.bf16.mxu0 %v4426
    %4725 = vmatmul.mubr.bf16.gmra.mrb[0].mxu0 %v4425
    %v4726 = vpop.f32.mrb[0].mxu0
    %v4727 = vadd.f32 %v4498, %v4726
    %v4728 = vpop.f32.mrb[0].mxu0
    %v4729 = vpop.f32.mrb[0].mxu0
    %v4730 = vpop.f32.mrb[0].mxu0
    %4731 = vdwg.mxu0
    %4732 = vmatprep.subr.bf16.mxu0 0
    %4733 = vmatpush1.bf16.msra.mxu0 %v4644
    %4734 = vmatprep.subr.bf16.mxu0 0
    %4735 = vmatpush1.bf16.msra.mxu0 %v4645
    %4736 = vmatprep.subr.bf16.mxu0 0
    %4737 = vmatpush1.bf16.msra.mxu0 %v4646
    %4738 = vmatprep.subr.bf16.mxu0 0
    %4739 = vmatpush1.bf16.msra.mxu0 %v4647
    %4740 = vmatprep.subr.bf16.mxu0 0
    %4741 = vmatpush1.bf16.msra.mxu0 %v4648
    %4742 = vmatprep.subr.bf16.mxu0 0
    %4743 = vmatpush1.bf16.msra.mxu0 %v4649
    %4744 = vmatprep.subr.bf16.mxu0 0
    %4745 = vmatpush1.bf16.msra.mxu0 %v4650
    %4746 = vmatprep.subr.bf16.mxu0 0
    %4747 = vmatpush1.bf16.msra.mxu0 %v4651
    %4748 = vmatprep.subr.bf16.mxu0 0
    %4749 = vmatpush1.bf16.msra.mxu0 %v4652
    %4750 = vmatprep.subr.bf16.mxu0 0
    %4751 = vmatpush1.bf16.msra.mxu0 %v4653
    %4752 = vmatprep.subr.bf16.mxu0 0
    %4753 = vmatpush1.bf16.msra.mxu0 %v4654
    %4754 = vmatprep.subr.bf16.mxu0 0
    %4755 = vmatpush1.bf16.msra.mxu0 %v4655
    %4756 = vmatprep.subr.bf16.mxu0 0
    %4757 = vmatpush1.bf16.msra.mxu0 %v4656
    %4758 = vmatprep.subr.bf16.mxu0 0
    %4759 = vmatpush1.bf16.msra.mxu0 %v4657
    %4760 = vmatprep.subr.bf16.mxu0 0
    %4761 = vmatpush1.bf16.msra.mxu0 %v4658
    %4762 = vmatprep.subr.bf16.mxu0 0
    %4763 = vmatpush1.bf16.msra.mxu0 %v4659
    %4764 = vmatprep.mubr.bf16.mxu0 %v4428
    %4765 = vmatmul.mubr.bf16.gmra.mrb[0].mxu0 %v4427
    %v4766 = vpop.f32.mrb[0].mxu0
    %v4767 = vadd.f32 %v4727, %v4766
    %v4768 = vpop.f32.mrb[0].mxu0
    %v4769 = vpop.f32.mrb[0].mxu0
    %v4770 = vpop.f32.mrb[0].mxu0
    %4771 = vdwg.mxu0
    %v4772 = vmax.f32 %v4767, 0.0
    %v4773 = vpack.c.bf16 %v4772, %v4772
    %v4774 = vld [vmem:[#allocation2] sm:$0xff]
    %v4775 = vld [vmem:[#allocation2 + $0x8] sm:$0xff]
    %v4776 = vld [vmem:[#allocation2 + $0x10] sm:$0xff]
    %v4777 = vld [vmem:[#allocation2 + $0x18] sm:$0xff]
    %v4778 = vld [vmem:[#allocation2 + $0x20] sm:$0xff]
    %v4779 = vld [vmem:[#allocation2 + $0x28] sm:$0xff]
    %v4780 = vld [vmem:[#allocation2 + $0x30] sm:$0xff]
    %v4781 = vld [vmem:[#allocation2 + $0x38] sm:$0xff]
    %v4782 = vld [vmem:[#allocation2 + $0x40] sm:$0xff]
    %v4783 = vld [vmem:[#allocation2 + $0x48] sm:$0xff]
    %v4784 = vld [vmem:[#allocation2 + $0x50] sm:$0xff]
    %v4785 = vld [vmem:[#allocation2 + $0x58] sm:$0xff]
    %v4786 = vld [vmem:[#allocation2 + $0x60] sm:$0xff]
    %v4787 = vld [vmem:[#allocation2 + $0x68] sm:$0xff]
    %v4788 = vld [vmem:[#allocation2 + $0x70] sm:$0xff]
    %v4789 = vld [vmem:[#allocation2 + $0x78] sm:$0xff]
    %v4790 = vld [vmem:[#allocation2 + $0x80] sm:$0xff]
    %v4791 = vld [vmem:[#allocation2 + $0x88] sm:$0xff]
    %v4792 = vld [vmem:[#allocation2 + $0x90] sm:$0xff]
    %v4793 = vld [vmem:[#allocation2 + $0x98] sm:$0xff]
    %v4794 = vld [vmem:[#allocation2 + $0xa0] sm:$0xff]
    %v4795 = vld [vmem:[#allocation2 + $0xa8] sm:$0xff]
    %v4796 = vld [vmem:[#allocation2 + $0xb0] sm:$0xff]
    %v4797 = vld [vmem:[#allocation2 + $0xb8] sm:$0xff]
    %v4798 = vld [vmem:[#allocation2 + $0xc0] sm:$0xff]
    %v4799 = vld [vmem:[#allocation2 + $0xc8] sm:$0xff]
    %v4800 = vld [vmem:[#allocation2 + $0xd0] sm:$0xff]
    %v4801 = vld [vmem:[#allocation2 + $0xd8] sm:$0xff]
    %v4802 = vld [vmem:[#allocation2 + $0xe0] sm:$0xff]
    %v4803 = vld [vmem:[#allocation2 + $0xe8] sm:$0xff]
    %v4804 = vld [vmem:[#allocation2 + $0xf0] sm:$0xff]
    %v4805 = vld [vmem:[#allocation2 + $0xf8] sm:$0xff]
    %v4806 = vld [vmem:[#allocation2 + $0x100] sm:$0xff]
    %v4807 = vld [vmem:[#allocation2 + $0x108] sm:$0xff]
    %v4808 = vld [vmem:[#allocation2 + $0x110] sm:$0xff]
    %v4809 = vld [vmem:[#allocation2 + $0x118] sm:$0xff]
    %v4810 = vld [vmem:[#allocation2 + $0x120] sm:$0xff]
    %v4811 = vld [vmem:[#allocation2 + $0x128] sm:$0xff]
    %v4812 = vld [vmem:[#allocation2 + $0x130] sm:$0xff]
    %v4813 = vld [vmem:[#allocation2 + $0x138] sm:$0xff]
    %v4814 = vld [vmem:[#allocation2 + $0x140] sm:$0xff]
    %v4815 = vld [vmem:[#allocation2 + $0x148] sm:$0xff]
    %v4816 = vld [vmem:[#allocation2 + $0x150] sm:$0xff]
    %v4817 = vld [vmem:[#allocation2 + $0x158] sm:$0xff]
    %v4818 = vld [vmem:[#allocation2 + $0x160] sm:$0xff]
    %v4819 = vld [vmem:[#allocation2 + $0x168] sm:$0xff]
    %v4820 = vld [vmem:[#allocation2 + $0x170] sm:$0xff]
    %v4821 = vld [vmem:[#allocation2 + $0x178] sm:$0xff]
    %v4822 = vld [vmem:[%s6] sm:$0xff]
    %v4823 = vld [vmem:[%s6 + $0x8] sm:$0xff]
    %v4824 = vld [vmem:[%s6 + $0x10] sm:$0xff]
    %v4828 = vlaneseq
    %v4829 = vshrl.u32 %v4828, 7
    %v4830 = vsub.s32 0, %v4829
    %v4831 = vrot.slane %v4822, %v4830
    %v4832 = vlaneseq
    %v4833 = vshrl.u32 %v4832, 7
    %v4834 = vsub.s32 1, %v4833
    %v4835 = vrot.slane %v4822, %v4834
    %v4836 = vlaneseq
    %v4837 = vshrl.u32 %v4836, 7
    %v4838 = vsub.s32 2, %v4837
    %v4839 = vrot.slane %v4822, %v4838
    %v4840 = vlaneseq
    %v4841 = vshrl.u32 %v4840, 7
    %v4842 = vsub.s32 3, %v4841
    %v4843 = vrot.slane %v4822, %v4842
    %v4844 = vlaneseq
    %v4845 = vshrl.u32 %v4844, 7
    %v4846 = vsub.s32 4, %v4845
    %v4847 = vrot.slane %v4822, %v4846
    %v4848 = vlaneseq
    %v4849 = vshrl.u32 %v4848, 7
    %v4850 = vsub.s32 5, %v4849
    %v4851 = vrot.slane %v4822, %v4850
    %v4852 = vlaneseq
    %v4853 = vshrl.u32 %v4852, 7
    %v4854 = vsub.s32 6, %v4853
    %v4855 = vrot.slane %v4822, %v4854
    %v4856 = vlaneseq
    %v4857 = vshrl.u32 %v4856, 7
    %v4858 = vsub.s32 7, %v4857
    %v4859 = vrot.slane %v4822, %v4858
    %v4860 = vlaneseq
    %v4861 = vshrl.u32 %v4860, 7
    %v4862 = vsub.s32 0, %v4861
    %v4863 = vrot.slane %v4823, %v4862
    %v4864 = vlaneseq
    %v4865 = vshrl.u32 %v4864, 7
    %v4866 = vsub.s32 1, %v4865
    %v4867 = vrot.slane %v4823, %v4866
    %v4868 = vlaneseq
    %v4869 = vshrl.u32 %v4868, 7
    %v4870 = vsub.s32 2, %v4869
    %v4871 = vrot.slane %v4823, %v4870
    %v4872 = vlaneseq
    %v4873 = vshrl.u32 %v4872, 7
    %v4874 = vsub.s32 3, %v4873
    %v4875 = vrot.slane %v4823, %v4874
    %v4876 = vlaneseq
    %v4877 = vshrl.u32 %v4876, 7
    %v4878 = vsub.s32 4, %v4877
    %v4879 = vrot.slane %v4823, %v4878
    %v4880 = vlaneseq
    %v4881 = vshrl.u32 %v4880, 7
    %v4882 = vsub.s32 5, %v4881
    %v4883 = vrot.slane %v4823, %v4882
    %v4884 = vlaneseq
    %v4885 = vshrl.u32 %v4884, 7
    %v4886 = vsub.s32 6, %v4885
    %v4887 = vrot.slane %v4823, %v4886
    %v4888 = vlaneseq
    %v4889 = vshrl.u32 %v4888, 7
    %v4890 = vsub.s32 7, %v4889
    %v4891 = vrot.slane %v4823, %v4890
    %v4892 = vlaneseq
    %v4893 = vshrl.u32 %v4892, 7
    %v4894 = vsub.s32 0, %v4893
    %v4895 = vrot.slane %v4824, %v4894
    %v4896 = vlaneseq
    %v4897 = vshrl.u32 %v4896, 7
    %v4898 = vsub.s32 1, %v4897
    %v4899 = vrot.slane %v4824, %v4898
    %v4900 = vlaneseq
    %v4901 = vshrl.u32 %v4900, 7
    %v4902 = vsub.s32 2, %v4901
    %v4903 = vrot.slane %v4824, %v4902
    %v4904 = vlaneseq
    %v4905 = vshrl.u32 %v4904, 7
    %v4906 = vsub.s32 3, %v4905
    %v4907 = vrot.slane %v4824, %v4906
    %v4908 = vlaneseq
    %v4909 = vshrl.u32 %v4908, 7
    %v4910 = vsub.s32 4, %v4909
    %v4911 = vrot.slane %v4824, %v4910
    %v4912 = vlaneseq
    %v4913 = vshrl.u32 %v4912, 7
    %v4914 = vsub.s32 5, %v4913
    %v4915 = vrot.slane %v4824, %v4914
    %v4916 = vlaneseq
    %v4917 = vshrl.u32 %v4916, 7
    %v4918 = vsub.s32 6, %v4917
    %v4919 = vrot.slane %v4824, %v4918
    %v4920 = vlaneseq
    %v4921 = vshrl.u32 %v4920, 7
    %v4922 = vsub.s32 7, %v4921
    %v4923 = vrot.slane %v4824, %v4922
    %v4996 = vunpack.c.l.b16 %v4774
    %v4997 = vunpack.c.h.b16 %v4774
    %v4998 = vunpack.c.l.b16 %v4775
    %v4999 = vunpack.c.h.b16 %v4775
    %v5000 = vunpack.c.l.b16 %v4776
    %v5001 = vunpack.c.h.b16 %v4776
    %v5002 = vunpack.c.l.b16 %v4777
    %v5003 = vunpack.c.h.b16 %v4777
    %v5004 = vunpack.c.l.b16 %v4778
    %v5005 = vunpack.c.h.b16 %v4778
    %v5006 = vunpack.c.l.b16 %v4779
    %v5007 = vunpack.c.h.b16 %v4779
    %v5008 = vunpack.c.l.b16 %v4780
    %v5009 = vunpack.c.h.b16 %v4780
    %v5010 = vunpack.c.l.b16 %v4781
    %v5011 = vunpack.c.h.b16 %v4781
    %v5012 = vunpack.c.l.b16 %v4782
    %v5013 = vunpack.c.h.b16 %v4782
    %v5014 = vunpack.c.l.b16 %v4783
    %v5015 = vunpack.c.h.b16 %v4783
    %v5016 = vunpack.c.l.b16 %v4784
    %v5017 = vunpack.c.h.b16 %v4784
    %v5018 = vunpack.c.l.b16 %v4785
    %v5019 = vunpack.c.h.b16 %v4785
    %v5020 = vunpack.c.l.b16 %v4786
    %v5021 = vunpack.c.h.b16 %v4786
    %v5022 = vunpack.c.l.b16 %v4787
    %v5023 = vunpack.c.h.b16 %v4787
    %v5024 = vunpack.c.l.b16 %v4788
    %v5025 = vunpack.c.h.b16 %v4788
    %v5026 = vunpack.c.l.b16 %v4789
    %v5027 = vunpack.c.h.b16 %v4789
    %v5028 = vunpack.c.l.b16 %v4790
    %v5029 = vunpack.c.h.b16 %v4790
    %v5030 = vunpack.c.l.b16 %v4791
    %v5031 = vunpack.c.h.b16 %v4791
    %v5032 = vunpack.c.l.b16 %v4792
    %v5033 = vunpack.c.h.b16 %v4792
    %v5034 = vunpack.c.l.b16 %v4793
    %v5035 = vunpack.c.h.b16 %v4793
    %v5036 = vunpack.c.l.b16 %v4794
    %v5037 = vunpack.c.h.b16 %v4794
    %v5038 = vunpack.c.l.b16 %v4795
    %v5039 = vunpack.c.h.b16 %v4795
    %v5040 = vunpack.c.l.b16 %v4796
    %v5041 = vunpack.c.h.b16 %v4796
    %v5042 = vunpack.c.l.b16 %v4797
    %v5043 = vunpack.c.h.b16 %v4797
    %v5044 = vunpack.c.l.b16 %v4798
    %v5045 = vunpack.c.h.b16 %v4798
    %v5046 = vunpack.c.l.b16 %v4799
    %v5047 = vunpack.c.h.b16 %v4799
    %v5048 = vunpack.c.l.b16 %v4800
    %v5049 = vunpack.c.h.b16 %v4800
    %v5050 = vunpack.c.l.b16 %v4801
    %v5051 = vunpack.c.h.b16 %v4801
    %v5052 = vunpack.c.l.b16 %v4802
    %v5053 = vunpack.c.h.b16 %v4802
    %v5054 = vunpack.c.l.b16 %v4803
    %v5055 = vunpack.c.h.b16 %v4803
    %v5056 = vunpack.c.l.b16 %v4804
    %v5057 = vunpack.c.h.b16 %v4804
    %v5058 = vunpack.c.l.b16 %v4805
    %v5059 = vunpack.c.h.b16 %v4805
    %v5060 = vunpack.c.l.b16 %v4806
    %v5061 = vunpack.c.h.b16 %v4806
    %v5062 = vunpack.c.l.b16 %v4807
    %v5063 = vunpack.c.h.b16 %v4807
    %v5064 = vunpack.c.l.b16 %v4808
    %v5065 = vunpack.c.h.b16 %v4808
    %v5066 = vunpack.c.l.b16 %v4809
    %v5067 = vunpack.c.h.b16 %v4809
    %v5068 = vunpack.c.l.b16 %v4810
    %v5069 = vunpack.c.h.b16 %v4810
    %v5070 = vunpack.c.l.b16 %v4811
    %v5071 = vunpack.c.h.b16 %v4811
    %v5072 = vunpack.c.l.b16 %v4812
    %v5073 = vunpack.c.h.b16 %v4812
    %v5074 = vunpack.c.l.b16 %v4813
    %v5075 = vunpack.c.h.b16 %v4813
    %v5076 = vunpack.c.l.b16 %v4814
    %v5077 = vunpack.c.h.b16 %v4814
    %v5078 = vunpack.c.l.b16 %v4815
    %v5079 = vunpack.c.h.b16 %v4815
    %v5080 = vunpack.c.l.b16 %v4816
    %v5081 = vunpack.c.h.b16 %v4816
    %v5082 = vunpack.c.l.b16 %v4817
    %v5083 = vunpack.c.h.b16 %v4817
    %v5084 = vunpack.c.l.b16 %v4818
    %v5085 = vunpack.c.h.b16 %v4818
    %v5086 = vunpack.c.l.b16 %v4819
    %v5087 = vunpack.c.h.b16 %v4819
    %v5088 = vunpack.c.l.b16 %v4820
    %v5089 = vunpack.c.h.b16 %v4820
    %v5090 = vunpack.c.l.b16 %v4821
    %v5091 = vunpack.c.h.b16 %v4821
    %v5092 = vpack.c.b16 %v5020, %v4996
    %v5093 = vpack.c.b16 %v5021, %v4997
    %v5094 = vpack.c.b16 %v5022, %v4998
    %v5095 = vpack.c.b16 %v5023, %v4999
    %v5096 = vpack.c.b16 %v5024, %v5000
    %v5097 = vpack.c.b16 %v5025, %v5001
    %v5098 = vpack.c.b16 %v5026, %v5002
    %v5099 = vpack.c.b16 %v5027, %v5003
    %v5100 = vpack.c.b16 %v5028, %v5004
    %v5101 = vpack.c.b16 %v5029, %v5005
    %v5102 = vpack.c.b16 %v5030, %v5006
    %v5103 = vpack.c.b16 %v5031, %v5007
    %v5104 = vpack.c.b16 %v5032, %v5008
    %v5105 = vpack.c.b16 %v5033, %v5009
    %v5106 = vpack.c.b16 %v5034, %v5010
    %v5107 = vpack.c.b16 %v5035, %v5011
    %v5108 = vpack.c.b16 %v5036, %v5012
    %v5109 = vpack.c.b16 %v5037, %v5013
    %v5110 = vpack.c.b16 %v5038, %v5014
    %v5111 = vpack.c.b16 %v5039, %v5015
    %v5112 = vpack.c.b16 %v5040, %v5016
    %v5113 = vpack.c.b16 %v5041, %v5017
    %v5114 = vpack.c.b16 %v5042, %v5018
    %v5115 = vpack.c.b16 %v5043, %v5019
    %v5116 = vpack.c.b16 %v5068, %v5044
    %v5117 = vpack.c.b16 %v5069, %v5045
    %v5118 = vpack.c.b16 %v5070, %v5046
    %v5119 = vpack.c.b16 %v5071, %v5047
    %v5120 = vpack.c.b16 %v5072, %v5048
    %v5121 = vpack.c.b16 %v5073, %v5049
    %v5122 = vpack.c.b16 %v5074, %v5050
    %v5123 = vpack.c.b16 %v5075, %v5051
    %v5124 = vpack.c.b16 %v5076, %v5052
    %v5125 = vpack.c.b16 %v5077, %v5053
    %v5126 = vpack.c.b16 %v5078, %v5054
    %v5127 = vpack.c.b16 %v5079, %v5055
    %v5128 = vpack.c.b16 %v5080, %v5056
    %v5129 = vpack.c.b16 %v5081, %v5057
    %v5130 = vpack.c.b16 %v5082, %v5058
    %v5131 = vpack.c.b16 %v5083, %v5059
    %v5132 = vpack.c.b16 %v5084, %v5060
    %v5133 = vpack.c.b16 %v5085, %v5061
    %v5134 = vpack.c.b16 %v5086, %v5062
    %v5135 = vpack.c.b16 %v5087, %v5063
    %v5136 = vpack.c.b16 %v5088, %v5064
    %v5137 = vpack.c.b16 %v5089, %v5065
    %v5138 = vpack.c.b16 %v5090, %v5066
    %v5139 = vpack.c.b16 %v5091, %v5067
    %vm5188 = vcmask 261120
    %v5190 = vsel %vm5188, %v4773, 0
    %5192 = vmatprep.subr.bf16.mxu0 %v5093
    %5193 = vmatpush1.bf16.msra.mxu0 %v5092
    %5194 = vmatprep.subr.bf16.mxu0 %v5117
    %5195 = vmatpush1.bf16.msra.mxu0 %v5116
    %5196 = vmatprep.subr.bf16.mxu0 0
    %5197 = vmatpush1.bf16.msra.mxu0 0
    %5198 = vmatprep.subr.bf16.mxu0 0
    %5199 = vmatpush1.bf16.msra.mxu0 0
    %5200 = vmatprep.subr.bf16.mxu0 0
    %5201 = vmatpush1.bf16.msra.mxu0 0
    %5202 = vmatprep.subr.bf16.mxu0 0
    %5203 = vmatpush1.bf16.msra.mxu0 0
    %5204 = vmatprep.subr.bf16.mxu0 0
    %5205 = vmatpush1.bf16.msra.mxu0 0
    %5206 = vmatprep.subr.bf16.mxu0 0
    %5207 = vmatpush1.bf16.msra.mxu0 0
    %5208 = vmatprep.subr.bf16.mxu0 0
    %5209 = vmatpush1.bf16.msra.mxu0 0
    %5210 = vmatprep.subr.bf16.mxu0 0
    %5211 = vmatpush1.bf16.msra.mxu0 0
    %5212 = vmatprep.subr.bf16.mxu0 0
    %5213 = vmatpush1.bf16.msra.mxu0 0
    %5214 = vmatprep.subr.bf16.mxu0 0
    %5215 = vmatpush1.bf16.msra.mxu0 0
    %5216 = vmatprep.subr.bf16.mxu0 0
    %5217 = vmatpush1.bf16.msra.mxu0 0
    %5218 = vmatprep.subr.bf16.mxu0 0
    %5219 = vmatpush1.bf16.msra.mxu0 0
    %5220 = vmatprep.subr.bf16.mxu0 0
    %5221 = vmatpush1.bf16.msra.mxu0 0
    %5222 = vmatprep.subr.bf16.mxu0 0
    %5223 = vmatpush1.bf16.msra.mxu0 0
    %5224 = vmatprep.mubr.bf16.mxu0 0
    %5225 = vmatmul.mubr.bf16.gmra.mrb[0].mxu0 %v5190
    %v5226 = vpop.f32.mrb[0].mxu0
    %v5227 = vadd.f32 %v4831, %v5226
    %v5228 = vpop.f32.mrb[0].mxu0
    %v5229 = vadd.f32 %v4835, %v5228
    %v5230 = vpop.f32.mrb[0].mxu0
    %v5231 = vpop.f32.mrb[0].mxu0
    %5232 = vdwg.mxu0
    %5233 = vmatprep.subr.bf16.mxu0 %v5095
    %5234 = vmatpush1.bf16.msra.mxu0 %v5094
    %5235 = vmatprep.subr.bf16.mxu0 %v5119
    %5236 = vmatpush1.bf16.msra.mxu0 %v5118
    %5237 = vmatprep.subr.bf16.mxu0 0
    %5238 = vmatpush1.bf16.msra.mxu0 0
    %5239 = vmatprep.subr.bf16.mxu0 0
    %5240 = vmatpush1.bf16.msra.mxu0 0
    %5241 = vmatprep.subr.bf16.mxu0 0
    %5242 = vmatpush1.bf16.msra.mxu0 0
    %5243 = vmatprep.subr.bf16.mxu0 0
    %5244 = vmatpush1.bf16.msra.mxu0 0
    %5245 = vmatprep.subr.bf16.mxu0 0
    %5246 = vmatpush1.bf16.msra.mxu0 0
    %5247 = vmatprep.subr.bf16.mxu0 0
    %5248 = vmatpush1.bf16.msra.mxu0 0
    %5249 = vmatprep.subr.bf16.mxu0 0
    %5250 = vmatpush1.bf16.msra.mxu0 0
    %5251 = vmatprep.subr.bf16.mxu0 0
    %5252 = vmatpush1.bf16.msra.mxu0 0
    %5253 = vmatprep.subr.bf16.mxu0 0
    %5254 = vmatpush1.bf16.msra.mxu0 0
    %5255 = vmatprep.subr.bf16.mxu0 0
    %5256 = vmatpush1.bf16.msra.mxu0 0
    %5257 = vmatprep.subr.bf16.mxu0 0
    %5258 = vmatpush1.bf16.msra.mxu0 0
    %5259 = vmatprep.subr.bf16.mxu0 0
    %5260 = vmatpush1.bf16.msra.mxu0 0
    %5261 = vmatprep.subr.bf16.mxu0 0
    %5262 = vmatpush1.bf16.msra.mxu0 0
    %5263 = vmatprep.subr.bf16.mxu0 0
    %5264 = vmatpush1.bf16.msra.mxu0 0
    %5265 = vmatprep.mubr.bf16.mxu0 0
    %5266 = vmatmul.mubr.bf16.gmra.mrb[0].mxu0 %v5190
    %v5267 = vpop.f32.mrb[0].mxu0
    %v5268 = vadd.f32 %v4839, %v5267
    %v5269 = vpop.f32.mrb[0].mxu0
    %v5270 = vadd.f32 %v4843, %v5269
    %v5271 = vpop.f32.mrb[0].mxu0
    %v5272 = vpop.f32.mrb[0].mxu0
    %5273 = vdwg.mxu0
    %5274 = vmatprep.subr.bf16.mxu0 %v5097
    %5275 = vmatpush1.bf16.msra.mxu0 %v5096
    %5276 = vmatprep.subr.bf16.mxu0 %v5121
    %5277 = vmatpush1.bf16.msra.mxu0 %v5120
    %5278 = vmatprep.subr.bf16.mxu0 0
    %5279 = vmatpush1.bf16.msra.mxu0 0
    %5280 = vmatprep.subr.bf16.mxu0 0
    %5281 = vmatpush1.bf16.msra.mxu0 0
    %5282 = vmatprep.subr.bf16.mxu0 0
    %5283 = vmatpush1.bf16.msra.mxu0 0
    %5284 = vmatprep.subr.bf16.mxu0 0
    %5285 = vmatpush1.bf16.msra.mxu0 0
    %5286 = vmatprep.subr.bf16.mxu0 0
    %5287 = vmatpush1.bf16.msra.mxu0 0
    %5288 = vmatprep.subr.bf16.mxu0 0
    %5289 = vmatpush1.bf16.msra.mxu0 0
    %5290 = vmatprep.subr.bf16.mxu0 0
    %5291 = vmatpush1.bf16.msra.mxu0 0
    %5292 = vmatprep.subr.bf16.mxu0 0
    %5293 = vmatpush1.bf16.msra.mxu0 0
    %5294 = vmatprep.subr.bf16.mxu0 0
    %5295 = vmatpush1.bf16.msra.mxu0 0
    %5296 = vmatprep.subr.bf16.mxu0 0
    %5297 = vmatpush1.bf16.msra.mxu0 0
    %5298 = vmatprep.subr.bf16.mxu0 0
    %5299 = vmatpush1.bf16.msra.mxu0 0
    %5300 = vmatprep.subr.bf16.mxu0 0
    %5301 = vmatpush1.bf16.msra.mxu0 0
    %5302 = vmatprep.subr.bf16.mxu0 0
    %5303 = vmatpush1.bf16.msra.mxu0 0
    %5304 = vmatprep.subr.bf16.mxu0 0
    %5305 = vmatpush1.bf16.msra.mxu0 0
    %5306 = vmatprep.mubr.bf16.mxu0 0
    %5307 = vmatmul.mubr.bf16.gmra.mrb[0].mxu0 %v5190
    %v5308 = vpop.f32.mrb[0].mxu0
    %v5309 = vadd.f32 %v4847, %v5308
    %v5310 = vpop.f32.mrb[0].mxu0
    %v5311 = vadd.f32 %v4851, %v5310
    %v5312 = vpop.f32.mrb[0].mxu0
    %v5313 = vpop.f32.mrb[0].mxu0
    %5314 = vdwg.mxu0
    %5315 = vmatprep.subr.bf16.mxu0 %v5099
    %5316 = vmatpush1.bf16.msra.mxu0 %v5098
    %5317 = vmatprep.subr.bf16.mxu0 %v5123
    %5318 = vmatpush1.bf16.msra.mxu0 %v5122
    %5319 = vmatprep.subr.bf16.mxu0 0
    %5320 = vmatpush1.bf16.msra.mxu0 0
    %5321 = vmatprep.subr.bf16.mxu0 0
    %5322 = vmatpush1.bf16.msra.mxu0 0
    %5323 = vmatprep.subr.bf16.mxu0 0
    %5324 = vmatpush1.bf16.msra.mxu0 0
    %5325 = vmatprep.subr.bf16.mxu0 0
    %5326 = vmatpush1.bf16.msra.mxu0 0
    %5327 = vmatprep.subr.bf16.mxu0 0
    %5328 = vmatpush1.bf16.msra.mxu0 0
    %5329 = vmatprep.subr.bf16.mxu0 0
    %5330 = vmatpush1.bf16.msra.mxu0 0
    %5331 = vmatprep.subr.bf16.mxu0 0
    %5332 = vmatpush1.bf16.msra.mxu0 0
    %5333 = vmatprep.subr.bf16.mxu0 0
    %5334 = vmatpush1.bf16.msra.mxu0 0
    %5335 = vmatprep.subr.bf16.mxu0 0
    %5336 = vmatpush1.bf16.msra.mxu0 0
    %5337 = vmatprep.subr.bf16.mxu0 0
    %5338 = vmatpush1.bf16.msra.mxu0 0
    %5339 = vmatprep.subr.bf16.mxu0 0
    %5340 = vmatpush1.bf16.msra.mxu0 0
    %5341 = vmatprep.subr.bf16.mxu0 0
    %5342 = vmatpush1.bf16.msra.mxu0 0
    %5343 = vmatprep.subr.bf16.mxu0 0
    %5344 = vmatpush1.bf16.msra.mxu0 0
    %5345 = vmatprep.subr.bf16.mxu0 0
    %5346 = vmatpush1.bf16.msra.mxu0 0
    %5347 = vmatprep.mubr.bf16.mxu0 0
    %5348 = vmatmul.mubr.bf16.gmra.mrb[0].mxu0 %v5190
    %v5349 = vpop.f32.mrb[0].mxu0
    %v5350 = vadd.f32 %v4855, %v5349
    %v5351 = vpop.f32.mrb[0].mxu0
    %v5352 = vadd.f32 %v4859, %v5351
    %v5353 = vpop.f32.mrb[0].mxu0
    %v5354 = vpop.f32.mrb[0].mxu0
    %5355 = vdwg.mxu0
    %5356 = vmatprep.subr.bf16.mxu0 %v5101
    %5357 = vmatpush1.bf16.msra.mxu0 %v5100
    %5358 = vmatprep.subr.bf16.mxu0 %v5125
    %5359 = vmatpush1.bf16.msra.mxu0 %v5124
    %5360 = vmatprep.subr.bf16.mxu0 0
    %5361 = vmatpush1.bf16.msra.mxu0 0
    %5362 = vmatprep.subr.bf16.mxu0 0
    %5363 = vmatpush1.bf16.msra.mxu0 0
    %5364 = vmatprep.subr.bf16.mxu0 0
    %5365 = vmatpush1.bf16.msra.mxu0 0
    %5366 = vmatprep.subr.bf16.mxu0 0
    %5367 = vmatpush1.bf16.msra.mxu0 0
    %5368 = vmatprep.subr.bf16.mxu0 0
    %5369 = vmatpush1.bf16.msra.mxu0 0
    %5370 = vmatprep.subr.bf16.mxu0 0
    %5371 = vmatpush1.bf16.msra.mxu0 0
    %5372 = vmatprep.subr.bf16.mxu0 0
    %5373 = vmatpush1.bf16.msra.mxu0 0
    %5374 = vmatprep.subr.bf16.mxu0 0
    %5375 = vmatpush1.bf16.msra.mxu0 0
    %5376 = vmatprep.subr.bf16.mxu0 0
    %5377 = vmatpush1.bf16.msra.mxu0 0
    %5378 = vmatprep.subr.bf16.mxu0 0
    %5379 = vmatpush1.bf16.msra.mxu0 0
    %5380 = vmatprep.subr.bf16.mxu0 0
    %5381 = vmatpush1.bf16.msra.mxu0 0
    %5382 = vmatprep.subr.bf16.mxu0 0
    %5383 = vmatpush1.bf16.msra.mxu0 0
    %5384 = vmatprep.subr.bf16.mxu0 0
    %5385 = vmatpush1.bf16.msra.mxu0 0
    %5386 = vmatprep.subr.bf16.mxu0 0
    %5387 = vmatpush1.bf16.msra.mxu0 0
    %5388 = vmatprep.mubr.bf16.mxu0 0
    %5389 = vmatmul.mubr.bf16.gmra.mrb[0].mxu0 %v5190
    %v5390 = vpop.f32.mrb[0].mxu0
    %v5391 = vadd.f32 %v4863, %v5390
    %v5392 = vpop.f32.mrb[0].mxu0
    %v5393 = vadd.f32 %v4867, %v5392
    %v5394 = vpop.f32.mrb[0].mxu0
    %v5395 = vpop.f32.mrb[0].mxu0
    %5396 = vdwg.mxu0
    %5397 = vmatprep.subr.bf16.mxu0 %v5103
    %5398 = vmatpush1.bf16.msra.mxu0 %v5102
    %5399 = vmatprep.subr.bf16.mxu0 %v5127
    %5400 = vmatpush1.bf16.msra.mxu0 %v5126
    %5401 = vmatprep.subr.bf16.mxu0 0
    %5402 = vmatpush1.bf16.msra.mxu0 0
    %5403 = vmatprep.subr.bf16.mxu0 0
    %5404 = vmatpush1.bf16.msra.mxu0 0
    %5405 = vmatprep.subr.bf16.mxu0 0
    %5406 = vmatpush1.bf16.msra.mxu0 0
    %5407 = vmatprep.subr.bf16.mxu0 0
    %5408 = vmatpush1.bf16.msra.mxu0 0
    %5409 = vmatprep.subr.bf16.mxu0 0
    %5410 = vmatpush1.bf16.msra.mxu0 0
    %5411 = vmatprep.subr.bf16.mxu0 0
    %5412 = vmatpush1.bf16.msra.mxu0 0
    %5413 = vmatprep.subr.bf16.mxu0 0
    %5414 = vmatpush1.bf16.msra.mxu0 0
    %5415 = vmatprep.subr.bf16.mxu0 0
    %5416 = vmatpush1.bf16.msra.mxu0 0
    %5417 = vmatprep.subr.bf16.mxu0 0
    %5418 = vmatpush1.bf16.msra.mxu0 0
    %5419 = vmatprep.subr.bf16.mxu0 0
    %5420 = vmatpush1.bf16.msra.mxu0 0
    %5421 = vmatprep.subr.bf16.mxu0 0
    %5422 = vmatpush1.bf16.msra.mxu0 0
    %5423 = vmatprep.subr.bf16.mxu0 0
    %5424 = vmatpush1.bf16.msra.mxu0 0
    %5425 = vmatprep.subr.bf16.mxu0 0
    %5426 = vmatpush1.bf16.msra.mxu0 0
    %5427 = vmatprep.subr.bf16.mxu0 0
    %5428 = vmatpush1.bf16.msra.mxu0 0
    %5429 = vmatprep.mubr.bf16.mxu0 0
    %5430 = vmatmul.mubr.bf16.gmra.mrb[0].mxu0 %v5190
    %v5431 = vpop.f32.mrb[0].mxu0
    %v5432 = vadd.f32 %v4871, %v5431
    %v5433 = vpop.f32.mrb[0].mxu0
    %v5434 = vadd.f32 %v4875, %v5433
    %v5435 = vpop.f32.mrb[0].mxu0
    %v5436 = vpop.f32.mrb[0].mxu0
    %5437 = vdwg.mxu0
    %5438 = vmatprep.subr.bf16.mxu0 %v5105
    %5439 = vmatpush1.bf16.msra.mxu0 %v5104
    %5440 = vmatprep.subr.bf16.mxu0 %v5129
    %5441 = vmatpush1.bf16.msra.mxu0 %v5128
    %5442 = vmatprep.subr.bf16.mxu0 0
    %5443 = vmatpush1.bf16.msra.mxu0 0
    %5444 = vmatprep.subr.bf16.mxu0 0
    %5445 = vmatpush1.bf16.msra.mxu0 0
    %5446 = vmatprep.subr.bf16.mxu0 0
    %5447 = vmatpush1.bf16.msra.mxu0 0
    %5448 = vmatprep.subr.bf16.mxu0 0
    %5449 = vmatpush1.bf16.msra.mxu0 0
    %5450 = vmatprep.subr.bf16.mxu0 0
    %5451 = vmatpush1.bf16.msra.mxu0 0
    %5452 = vmatprep.subr.bf16.mxu0 0
    %5453 = vmatpush1.bf16.msra.mxu0 0
    %5454 = vmatprep.subr.bf16.mxu0 0
    %5455 = vmatpush1.bf16.msra.mxu0 0
    %5456 = vmatprep.subr.bf16.mxu0 0
    %5457 = vmatpush1.bf16.msra.mxu0 0
    %5458 = vmatprep.subr.bf16.mxu0 0
    %5459 = vmatpush1.bf16.msra.mxu0 0
    %5460 = vmatprep.subr.bf16.mxu0 0
    %5461 = vmatpush1.bf16.msra.mxu0 0
    %5462 = vmatprep.subr.bf16.mxu0 0
    %5463 = vmatpush1.bf16.msra.mxu0 0
    %5464 = vmatprep.subr.bf16.mxu0 0
    %5465 = vmatpush1.bf16.msra.mxu0 0
    %5466 = vmatprep.subr.bf16.mxu0 0
    %5467 = vmatpush1.bf16.msra.mxu0 0
    %5468 = vmatprep.subr.bf16.mxu0 0
    %5469 = vmatpush1.bf16.msra.mxu0 0
    %5470 = vmatprep.mubr.bf16.mxu0 0
    %5471 = vmatmul.mubr.bf16.gmra.mrb[0].mxu0 %v5190
    %v5472 = vpop.f32.mrb[0].mxu0
    %v5473 = vadd.f32 %v4879, %v5472
    %v5474 = vpop.f32.mrb[0].mxu0
    %v5475 = vadd.f32 %v4883, %v5474
    %v5476 = vpop.f32.mrb[0].mxu0
    %v5477 = vpop.f32.mrb[0].mxu0
    %5478 = vdwg.mxu0
    %5479 = vmatprep.subr.bf16.mxu0 %v5107
    %5480 = vmatpush1.bf16.msra.mxu0 %v5106
    %5481 = vmatprep.subr.bf16.mxu0 %v5131
    %5482 = vmatpush1.bf16.msra.mxu0 %v5130
    %5483 = vmatprep.subr.bf16.mxu0 0
    %5484 = vmatpush1.bf16.msra.mxu0 0
    %5485 = vmatprep.subr.bf16.mxu0 0
    %5486 = vmatpush1.bf16.msra.mxu0 0
    %5487 = vmatprep.subr.bf16.mxu0 0
    %5488 = vmatpush1.bf16.msra.mxu0 0
    %5489 = vmatprep.subr.bf16.mxu0 0
    %5490 = vmatpush1.bf16.msra.mxu0 0
    %5491 = vmatprep.subr.bf16.mxu0 0
    %5492 = vmatpush1.bf16.msra.mxu0 0
    %5493 = vmatprep.subr.bf16.mxu0 0
    %5494 = vmatpush1.bf16.msra.mxu0 0
    %5495 = vmatprep.subr.bf16.mxu0 0
    %5496 = vmatpush1.bf16.msra.mxu0 0
    %5497 = vmatprep.subr.bf16.mxu0 0
    %5498 = vmatpush1.bf16.msra.mxu0 0
    %5499 = vmatprep.subr.bf16.mxu0 0
    %5500 = vmatpush1.bf16.msra.mxu0 0
    %5501 = vmatprep.subr.bf16.mxu0 0
    %5502 = vmatpush1.bf16.msra.mxu0 0
    %5503 = vmatprep.subr.bf16.mxu0 0
    %5504 = vmatpush1.bf16.msra.mxu0 0
    %5505 = vmatprep.subr.bf16.mxu0 0
    %5506 = vmatpush1.bf16.msra.mxu0 0
    %5507 = vmatprep.subr.bf16.mxu0 0
    %5508 = vmatpush1.bf16.msra.mxu0 0
    %5509 = vmatprep.subr.bf16.mxu0 0
    %5510 = vmatpush1.bf16.msra.mxu0 0
    %5511 = vmatprep.mubr.bf16.mxu0 0
    %5512 = vmatmul.mubr.bf16.gmra.mrb[0].mxu0 %v5190
    %v5513 = vpop.f32.mrb[0].mxu0
    %v5514 = vadd.f32 %v4887, %v5513
    %v5515 = vpop.f32.mrb[0].mxu0
    %v5516 = vadd.f32 %v4891, %v5515
    %v5517 = vpop.f32.mrb[0].mxu0
    %v5518 = vpop.f32.mrb[0].mxu0
    %5519 = vdwg.mxu0
    %5520 = vmatprep.subr.bf16.mxu0 %v5109
    %5521 = vmatpush1.bf16.msra.mxu0 %v5108
    %5522 = vmatprep.subr.bf16.mxu0 %v5133
    %5523 = vmatpush1.bf16.msra.mxu0 %v5132
    %5524 = vmatprep.subr.bf16.mxu0 0
    %5525 = vmatpush1.bf16.msra.mxu0 0
    %5526 = vmatprep.subr.bf16.mxu0 0
    %5527 = vmatpush1.bf16.msra.mxu0 0
    %5528 = vmatprep.subr.bf16.mxu0 0
    %5529 = vmatpush1.bf16.msra.mxu0 0
    %5530 = vmatprep.subr.bf16.mxu0 0
    %5531 = vmatpush1.bf16.msra.mxu0 0
    %5532 = vmatprep.subr.bf16.mxu0 0
    %5533 = vmatpush1.bf16.msra.mxu0 0
    %5534 = vmatprep.subr.bf16.mxu0 0
    %5535 = vmatpush1.bf16.msra.mxu0 0
    %5536 = vmatprep.subr.bf16.mxu0 0
    %5537 = vmatpush1.bf16.msra.mxu0 0
    %5538 = vmatprep.subr.bf16.mxu0 0
    %5539 = vmatpush1.bf16.msra.mxu0 0
    %5540 = vmatprep.subr.bf16.mxu0 0
    %5541 = vmatpush1.bf16.msra.mxu0 0
    %5542 = vmatprep.subr.bf16.mxu0 0
    %5543 = vmatpush1.bf16.msra.mxu0 0
    %5544 = vmatprep.subr.bf16.mxu0 0
    %5545 = vmatpush1.bf16.msra.mxu0 0
    %5546 = vmatprep.subr.bf16.mxu0 0
    %5547 = vmatpush1.bf16.msra.mxu0 0
    %5548 = vmatprep.subr.bf16.mxu0 0
    %5549 = vmatpush1.bf16.msra.mxu0 0
    %5550 = vmatprep.subr.bf16.mxu0 0
    %5551 = vmatpush1.bf16.msra.mxu0 0
    %5552 = vmatprep.mubr.bf16.mxu0 0
    %5553 = vmatmul.mubr.bf16.gmra.mrb[0].mxu0 %v5190
    %v5554 = vpop.f32.mrb[0].mxu0
    %v5555 = vadd.f32 %v4895, %v5554
    %v5556 = vpop.f32.mrb[0].mxu0
    %v5557 = vadd.f32 %v4899, %v5556
    %v5558 = vpop.f32.mrb[0].mxu0
    %v5559 = vpop.f32.mrb[0].mxu0
    %5560 = vdwg.mxu0
    %5561 = vmatprep.subr.bf16.mxu0 %v5111
    %5562 = vmatpush1.bf16.msra.mxu0 %v5110
    %5563 = vmatprep.subr.bf16.mxu0 %v5135
    %5564 = vmatpush1.bf16.msra.mxu0 %v5134
    %5565 = vmatprep.subr.bf16.mxu0 0
    %5566 = vmatpush1.bf16.msra.mxu0 0
    %5567 = vmatprep.subr.bf16.mxu0 0
    %5568 = vmatpush1.bf16.msra.mxu0 0
    %5569 = vmatprep.subr.bf16.mxu0 0
    %5570 = vmatpush1.bf16.msra.mxu0 0
    %5571 = vmatprep.subr.bf16.mxu0 0
    %5572 = vmatpush1.bf16.msra.mxu0 0
    %5573 = vmatprep.subr.bf16.mxu0 0
    %5574 = vmatpush1.bf16.msra.mxu0 0
    %5575 = vmatprep.subr.bf16.mxu0 0
    %5576 = vmatpush1.bf16.msra.mxu0 0
    %5577 = vmatprep.subr.bf16.mxu0 0
    %5578 = vmatpush1.bf16.msra.mxu0 0
    %5579 = vmatprep.subr.bf16.mxu0 0
    %5580 = vmatpush1.bf16.msra.mxu0 0
    %5581 = vmatprep.subr.bf16.mxu0 0
    %5582 = vmatpush1.bf16.msra.mxu0 0
    %5583 = vmatprep.subr.bf16.mxu0 0
    %5584 = vmatpush1.bf16.msra.mxu0 0
    %5585 = vmatprep.subr.bf16.mxu0 0
    %5586 = vmatpush1.bf16.msra.mxu0 0
    %5587 = vmatprep.subr.bf16.mxu0 0
    %5588 = vmatpush1.bf16.msra.mxu0 0
    %5589 = vmatprep.subr.bf16.mxu0 0
    %5590 = vmatpush1.bf16.msra.mxu0 0
    %5591 = vmatprep.subr.bf16.mxu0 0
    %5592 = vmatpush1.bf16.msra.mxu0 0
    %5593 = vmatprep.mubr.bf16.mxu0 0
    %5594 = vmatmul.mubr.bf16.gmra.mrb[0].mxu0 %v5190
    %v5595 = vpop.f32.mrb[0].mxu0
    %v5596 = vadd.f32 %v4903, %v5595
    %v5597 = vpop.f32.mrb[0].mxu0
    %v5598 = vadd.f32 %v4907, %v5597
    %v5599 = vpop.f32.mrb[0].mxu0
    %v5600 = vpop.f32.mrb[0].mxu0
    %5601 = vdwg.mxu0
    %5602 = vmatprep.subr.bf16.mxu0 %v5113
    %5603 = vmatpush1.bf16.msra.mxu0 %v5112
    %5604 = vmatprep.subr.bf16.mxu0 %v5137
    %5605 = vmatpush1.bf16.msra.mxu0 %v5136
    %5606 = vmatprep.subr.bf16.mxu0 0
    %5607 = vmatpush1.bf16.msra.mxu0 0
    %5608 = vmatprep.subr.bf16.mxu0 0
    %5609 = vmatpush1.bf16.msra.mxu0 0
    %5610 = vmatprep.subr.bf16.mxu0 0
    %5611 = vmatpush1.bf16.msra.mxu0 0
    %5612 = vmatprep.subr.bf16.mxu0 0
    %5613 = vmatpush1.bf16.msra.mxu0 0
    %5614 = vmatprep.subr.bf16.mxu0 0
    %5615 = vmatpush1.bf16.msra.mxu0 0
    %5616 = vmatprep.subr.bf16.mxu0 0
    %5617 = vmatpush1.bf16.msra.mxu0 0
    %5618 = vmatprep.subr.bf16.mxu0 0
    %5619 = vmatpush1.bf16.msra.mxu0 0
    %5620 = vmatprep.subr.bf16.mxu0 0
    %5621 = vmatpush1.bf16.msra.mxu0 0
    %5622 = vmatprep.subr.bf16.mxu0 0
    %5623 = vmatpush1.bf16.msra.mxu0 0
    %5624 = vmatprep.subr.bf16.mxu0 0
    %5625 = vmatpush1.bf16.msra.mxu0 0
    %5626 = vmatprep.subr.bf16.mxu0 0
    %5627 = vmatpush1.bf16.msra.mxu0 0
    %5628 = vmatprep.subr.bf16.mxu0 0
    %5629 = vmatpush1.bf16.msra.mxu0 0
    %5630 = vmatprep.subr.bf16.mxu0 0
    %5631 = vmatpush1.bf16.msra.mxu0 0
    %5632 = vmatprep.subr.bf16.mxu0 0
    %5633 = vmatpush1.bf16.msra.mxu0 0
    %5634 = vmatprep.mubr.bf16.mxu0 0
    %5635 = vmatmul.mubr.bf16.gmra.mrb[0].mxu0 %v5190
    %v5636 = vpop.f32.mrb[0].mxu0
    %v5637 = vadd.f32 %v4911, %v5636
    %v5638 = vpop.f32.mrb[0].mxu0
    %v5639 = vadd.f32 %v4915, %v5638
    %v5640 = vpop.f32.mrb[0].mxu0
    %v5641 = vpop.f32.mrb[0].mxu0
    %5642 = vdwg.mxu0
    %5643 = vmatprep.subr.bf16.mxu0 %v5115
    %5644 = vmatpush1.bf16.msra.mxu0 %v5114
    %5645 = vmatprep.subr.bf16.mxu0 %v5139
    %5646 = vmatpush1.bf16.msra.mxu0 %v5138
    %5647 = vmatprep.subr.bf16.mxu0 0
    %5648 = vmatpush1.bf16.msra.mxu0 0
    %5649 = vmatprep.subr.bf16.mxu0 0
    %5650 = vmatpush1.bf16.msra.mxu0 0
    %5651 = vmatprep.subr.bf16.mxu0 0
    %5652 = vmatpush1.bf16.msra.mxu0 0
    %5653 = vmatprep.subr.bf16.mxu0 0
    %5654 = vmatpush1.bf16.msra.mxu0 0
    %5655 = vmatprep.subr.bf16.mxu0 0
    %5656 = vmatpush1.bf16.msra.mxu0 0
    %5657 = vmatprep.subr.bf16.mxu0 0
    %5658 = vmatpush1.bf16.msra.mxu0 0
    %5659 = vmatprep.subr.bf16.mxu0 0
    %5660 = vmatpush1.bf16.msra.mxu0 0
    %5661 = vmatprep.subr.bf16.mxu0 0
    %5662 = vmatpush1.bf16.msra.mxu0 0
    %5663 = vmatprep.subr.bf16.mxu0 0
    %5664 = vmatpush1.bf16.msra.mxu0 0
    %5665 = vmatprep.subr.bf16.mxu0 0
    %5666 = vmatpush1.bf16.msra.mxu0 0
    %5667 = vmatprep.subr.bf16.mxu0 0
    %5668 = vmatpush1.bf16.msra.mxu0 0
    %5669 = vmatprep.subr.bf16.mxu0 0
    %5670 = vmatpush1.bf16.msra.mxu0 0
    %5671 = vmatprep.subr.bf16.mxu0 0
    %5672 = vmatpush1.bf16.msra.mxu0 0
    %5673 = vmatprep.subr.bf16.mxu0 0
    %5674 = vmatpush1.bf16.msra.mxu0 0
    %5675 = vmatprep.mubr.bf16.mxu0 0
    %5676 = vmatmul.mubr.bf16.gmra.mrb[0].mxu0 %v5190
    %v5677 = vpop.f32.mrb[0].mxu0
    %v5678 = vadd.f32 %v4919, %v5677
    %v5679 = vpop.f32.mrb[0].mxu0
    %v5680 = vadd.f32 %v4923, %v5679
    %v5681 = vpop.f32.mrb[0].mxu0
    %v5682 = vpop.f32.mrb[0].mxu0
    %5683 = vdwg.mxu0
    %v5684 = vmax.f32 %v5227, 0.0
    %v5685 = vmax.f32 %v5229, 0.0
    %v5686 = vmax.f32 %v5268, 0.0
    %v5687 = vmax.f32 %v5270, 0.0
    %v5688 = vmax.f32 %v5309, 0.0
    %v5689 = vmax.f32 %v5311, 0.0
    %v5690 = vmax.f32 %v5350, 0.0
    %v5691 = vmax.f32 %v5352, 0.0
    %v5692 = vmax.f32 %v5391, 0.0
    %v5693 = vmax.f32 %v5393, 0.0
    %v5694 = vmax.f32 %v5432, 0.0
    %v5695 = vmax.f32 %v5434, 0.0
    %v5696 = vmax.f32 %v5473, 0.0
    %v5697 = vmax.f32 %v5475, 0.0
    %v5698 = vmax.f32 %v5514, 0.0
    %v5699 = vmax.f32 %v5516, 0.0
    %v5700 = vmax.f32 %v5555, 0.0
    %v5701 = vmax.f32 %v5557, 0.0
    %v5702 = vmax.f32 %v5596, 0.0
    %v5703 = vmax.f32 %v5598, 0.0
    %v5704 = vmax.f32 %v5637, 0.0
    %v5705 = vmax.f32 %v5639, 0.0
    %v5706 = vmax.f32 %v5678, 0.0
    %v5707 = vmax.f32 %v5680, 0.0
    %v5708 = vpack.c.bf16 %v5684, %v5684
    %v5709 = vpack.c.bf16 %v5685, %v5685
    %v5710 = vpack.c.bf16 %v5686, %v5686
    %v5711 = vpack.c.bf16 %v5687, %v5687
    %v5712 = vpack.c.bf16 %v5688, %v5688
    %v5713 = vpack.c.bf16 %v5689, %v5689
    %v5714 = vpack.c.bf16 %v5690, %v5690
    %v5715 = vpack.c.bf16 %v5691, %v5691
    %v5716 = vpack.c.bf16 %v5692, %v5692
    %v5717 = vpack.c.bf16 %v5693, %v5693
    %v5718 = vpack.c.bf16 %v5694, %v5694
    %v5719 = vpack.c.bf16 %v5695, %v5695
    %v5720 = vpack.c.bf16 %v5696, %v5696
    %v5721 = vpack.c.bf16 %v5697, %v5697
    %v5722 = vpack.c.bf16 %v5698, %v5698
    %v5723 = vpack.c.bf16 %v5699, %v5699
    %v5724 = vpack.c.bf16 %v5700, %v5700
    %v5725 = vpack.c.bf16 %v5701, %v5701
    %v5726 = vpack.c.bf16 %v5702, %v5702
    %v5727 = vpack.c.bf16 %v5703, %v5703
    %v5728 = vpack.c.bf16 %v5704, %v5704
    %v5729 = vpack.c.bf16 %v5705, %v5705
    %v5730 = vpack.c.bf16 %v5706, %v5706
    %v5731 = vpack.c.bf16 %v5707, %v5707
    %v5732 = vld [vmem:[#allocation4] sm:$0xf]
    %v5733 = vld [vmem:[#allocation4 + $0x2c] sm:$0xf]
    %v5734 = vld [vmem:[#allocation4 + $0x58] sm:$0xf]
    %v5735 = vld [vmem:[#allocation4 + $0x84] sm:$0xf]
    %v5736 = vld [vmem:[#allocation4 + $0xb0] sm:$0xf]
    %v5737 = vld [vmem:[#allocation4 + $0xdc] sm:$0xf]
    %v5738 = vld [vmem:[#allocation4 + $0x108] sm:$0xf]
    %v5739 = vld [vmem:[#allocation4 + $0x134] sm:$0xf]
    %v5740 = vld [vmem:[#allocation4 + $0x160] sm:$0xf]
    %v5741 = vld [vmem:[#allocation4 + $0x18c] sm:$0xf]
    %v5742 = vld [vmem:[#allocation4 + $0x1b8] sm:$0xf]
    %v5743 = vld [vmem:[#allocation4 + $0x1e4] sm:$0xf]
    %v5744 = vld [vmem:[#allocation4 + $0x210] sm:$0xf]
    %v5745 = vld [vmem:[#allocation4 + $0x23c] sm:$0xf]
    %v5746 = vld [vmem:[#allocation4 + $0x268] sm:$0xf]
    %v5747 = vld [vmem:[#allocation4 + $0x294] sm:$0xf]
    %v5748 = vld [vmem:[#allocation4 + $0x2c0] sm:$0xf]
    %v5749 = vld [vmem:[#allocation4 + $0x2ec] sm:$0xf]
    %v5750 = vld [vmem:[#allocation4 + $0x318] sm:$0xf]
    %v5751 = vld [vmem:[#allocation4 + $0x344] sm:$0xf]
    %v5752 = vld [vmem:[#allocation4 + $0x370] sm:$0xf]
    %v5753 = vld [vmem:[#allocation4 + $0x39c] sm:$0xf]
    %v5754 = vld [vmem:[#allocation4 + $0x3c8] sm:$0xf]
    %v5755 = vld [vmem:[#allocation4 + $0x3f4] sm:$0xf]
    %v5756 = vld [vmem:[#allocation4 + $0x420] sm:$0xf]
    %v5757 = vld [vmem:[#allocation4 + $0x44c] sm:$0xf]
    %v5758 = vld [vmem:[#allocation4 + $0x478] sm:$0xf]
    %v5759 = vld [vmem:[#allocation4 + $0x4a4] sm:$0xf]
    %v5760 = vld [vmem:[#allocation4 + $0x4d0] sm:$0xf]
    %v5761 = vld [vmem:[#allocation4 + $0x4fc] sm:$0xf]
    %v5762 = vld [vmem:[#allocation4 + $0x528] sm:$0xf]
    %v5763 = vld [vmem:[#allocation4 + $0x554] sm:$0xf]
    %v5764 = vld [vmem:[#allocation4 + $0x580] sm:$0xf]
    %v5765 = vld [vmem:[#allocation4 + $0x5ac] sm:$0xf]
    %v5766 = vld [vmem:[#allocation4 + $0x5d8] sm:$0xf]
    %v5767 = vld [vmem:[#allocation4 + $0x604] sm:$0xf]
    %v5768 = vld [vmem:[#allocation4 + $0x630] sm:$0xf]
    %v5769 = vld [vmem:[#allocation4 + $0x65c] sm:$0xf]
    %v5770 = vld [vmem:[#allocation4 + $0x688] sm:$0xf]
    %v5771 = vld [vmem:[#allocation4 + $0x6b4] sm:$0xf]
    %v5772 = vld [vmem:[#allocation4 + $0x6e0] sm:$0xf]
    %v5773 = vld [vmem:[#allocation4 + $0x70c] sm:$0xf]
    %v5774 = vld [vmem:[#allocation4 + $0x738] sm:$0xf]
    %v5775 = vld [vmem:[#allocation4 + $0x764] sm:$0xf]
    %v5776 = vld [vmem:[#allocation4 + $0x790] sm:$0xf]
    %v5777 = vld [vmem:[#allocation4 + $0x7bc] sm:$0xf]
    %v5778 = vld [vmem:[#allocation4 + $0x7e8] sm:$0xf]
    %v5779 = vld [vmem:[#allocation4 + $0x814] sm:$0xf]
    %v5780 = vld [vmem:[#allocation4 + $0x840] sm:$0xf]
    %v5781 = vld [vmem:[#allocation4 + $0x86c] sm:$0xf]
    %v5782 = vld [vmem:[#allocation4 + $0x898] sm:$0xf]
    %v5783 = vld [vmem:[#allocation4 + $0x8c4] sm:$0xf]
    %v5784 = vld [vmem:[#allocation4 + $0x8f0] sm:$0xf]
    %v5785 = vld [vmem:[#allocation4 + $0x91c] sm:$0xf]
    %v5786 = vld [vmem:[#allocation4 + $0x948] sm:$0xf]
    %v5787 = vld [vmem:[#allocation4 + $0x974] sm:$0xf]
    %v5788 = vld [vmem:[#allocation4 + $0x9a0] sm:$0xf]
    %v5789 = vld [vmem:[#allocation4 + $0x9cc] sm:$0xf]
    %v5790 = vld [vmem:[#allocation4 + $0x9f8] sm:$0xf]
    %v5791 = vld [vmem:[#allocation4 + $0xa24] sm:$0xf]
    %v5792 = vld [vmem:[#allocation4 + $0xa50] sm:$0xf]
    %v5793 = vld [vmem:[#allocation4 + $0xa7c] sm:$0xf]
    %v5794 = vld [vmem:[#allocation4 + $0xaa8] sm:$0xf]
    %v5795 = vld [vmem:[#allocation4 + $0xad4] sm:$0xf]
    %v5796 = vld [vmem:[%s8] sm:$0x1]
    %v5798 = vlaneseq
    %v5799 = vshrl.u32 %v5798, 7
    %v5800 = vsub.s32 0, %v5799
    %v5801 = vrot.slane %v5796, %v5800
    %v5867 = vunpack.c.l.b16 %v5732
    %v5868 = vunpack.c.l.b16 %v5733
    %v5869 = vunpack.c.l.b16 %v5734
    %v5870 = vunpack.c.l.b16 %v5735
    %v5871 = vunpack.c.l.b16 %v5736
    %v5872 = vunpack.c.l.b16 %v5737
    %v5873 = vunpack.c.l.b16 %v5738
    %v5874 = vunpack.c.l.b16 %v5739
    %v5875 = vunpack.c.l.b16 %v5740
    %v5876 = vunpack.c.l.b16 %v5741
    %v5877 = vunpack.c.l.b16 %v5742
    %v5878 = vunpack.c.l.b16 %v5743
    %v5879 = vunpack.c.l.b16 %v5744
    %v5880 = vunpack.c.l.b16 %v5745
    %v5881 = vunpack.c.l.b16 %v5746
    %v5882 = vunpack.c.l.b16 %v5747
    %v5883 = vunpack.c.l.b16 %v5748
    %v5884 = vunpack.c.l.b16 %v5749
    %v5885 = vunpack.c.l.b16 %v5750
    %v5886 = vunpack.c.l.b16 %v5751
    %v5887 = vunpack.c.l.b16 %v5752
    %v5888 = vunpack.c.l.b16 %v5753
    %v5889 = vunpack.c.l.b16 %v5754
    %v5890 = vunpack.c.l.b16 %v5755
    %v5891 = vunpack.c.l.b16 %v5756
    %v5892 = vunpack.c.l.b16 %v5757
    %v5893 = vunpack.c.l.b16 %v5758
    %v5894 = vunpack.c.l.b16 %v5759
    %v5895 = vunpack.c.l.b16 %v5760
    %v5896 = vunpack.c.l.b16 %v5761
    %v5897 = vunpack.c.l.b16 %v5762
    %v5898 = vunpack.c.l.b16 %v5763
    %v5899 = vunpack.c.l.b16 %v5764
    %v5900 = vunpack.c.l.b16 %v5765
    %v5901 = vunpack.c.l.b16 %v5766
    %v5902 = vunpack.c.l.b16 %v5767
    %v5903 = vunpack.c.l.b16 %v5768
    %v5904 = vunpack.c.l.b16 %v5769
    %v5905 = vunpack.c.l.b16 %v5770
    %v5906 = vunpack.c.l.b16 %v5771
    %v5907 = vunpack.c.l.b16 %v5772
    %v5908 = vunpack.c.l.b16 %v5773
    %v5909 = vunpack.c.l.b16 %v5774
    %v5910 = vunpack.c.l.b16 %v5775
    %v5911 = vunpack.c.l.b16 %v5776
    %v5912 = vunpack.c.l.b16 %v5777
    %v5913 = vunpack.c.l.b16 %v5778
    %v5914 = vunpack.c.l.b16 %v5779
    %v5915 = vunpack.c.l.b16 %v5780
    %v5916 = vunpack.c.l.b16 %v5781
    %v5917 = vunpack.c.l.b16 %v5782
    %v5918 = vunpack.c.l.b16 %v5783
    %v5919 = vunpack.c.l.b16 %v5784
    %v5920 = vunpack.c.l.b16 %v5785
    %v5921 = vunpack.c.l.b16 %v5786
    %v5922 = vunpack.c.l.b16 %v5787
    %v5923 = vunpack.c.l.b16 %v5788
    %v5924 = vunpack.c.l.b16 %v5789
    %v5925 = vunpack.c.l.b16 %v5790
    %v5926 = vunpack.c.l.b16 %v5791
    %v5927 = vunpack.c.l.b16 %v5792
    %v5928 = vunpack.c.l.b16 %v5793
    %v5929 = vunpack.c.l.b16 %v5794
    %v5930 = vunpack.c.l.b16 %v5795
    %v5931 = vpack.c.b16 %v5868, %v5867
    %v5932 = vpack.c.b16 %v5870, %v5869
    %v5933 = vpack.c.b16 %v5872, %v5871
    %v5934 = vpack.c.b16 %v5874, %v5873
    %v5935 = vpack.c.b16 %v5876, %v5875
    %v5936 = vpack.c.b16 %v5878, %v5877
    %v5937 = vpack.c.b16 %v5880, %v5879
    %v5938 = vpack.c.b16 %v5882, %v5881
    %v5939 = vpack.c.b16 %v5884, %v5883
    %v5940 = vpack.c.b16 %v5886, %v5885
    %v5941 = vpack.c.b16 %v5888, %v5887
    %v5942 = vpack.c.b16 %v5890, %v5889
    %v5943 = vpack.c.b16 %v5892, %v5891
    %v5944 = vpack.c.b16 %v5894, %v5893
    %v5945 = vpack.c.b16 %v5896, %v5895
    %v5946 = vpack.c.b16 %v5898, %v5897
    %v5947 = vpack.c.b16 %v5900, %v5899
    %v5948 = vpack.c.b16 %v5902, %v5901
    %v5949 = vpack.c.b16 %v5904, %v5903
    %v5950 = vpack.c.b16 %v5906, %v5905
    %v5951 = vpack.c.b16 %v5908, %v5907
    %v5952 = vpack.c.b16 %v5910, %v5909
    %v5953 = vpack.c.b16 %v5912, %v5911
    %v5954 = vpack.c.b16 %v5914, %v5913
    %v5955 = vpack.c.b16 %v5916, %v5915
    %v5956 = vpack.c.b16 %v5918, %v5917
    %v5957 = vpack.c.b16 %v5920, %v5919
    %v5958 = vpack.c.b16 %v5922, %v5921
    %v5959 = vpack.c.b16 %v5924, %v5923
    %v5960 = vpack.c.b16 %v5926, %v5925
    %v5961 = vpack.c.b16 %v5928, %v5927
    %v5962 = vpack.c.b16 %v5930, %v5929
    %5995 = vmatprep.subr.bf16.mxu0 0
    %5996 = vmatpush1.bf16.msra.mxu0 %v5931
    %5997 = vmatprep.subr.bf16.mxu0 0
    %5998 = vmatpush1.bf16.msra.mxu0 %v5932
    %5999 = vmatprep.subr.bf16.mxu0 0
    %6000 = vmatpush1.bf16.msra.mxu0 %v5933
    %6001 = vmatprep.subr.bf16.mxu0 0
    %6002 = vmatpush1.bf16.msra.mxu0 %v5934
    %6003 = vmatprep.subr.bf16.mxu0 0
    %6004 = vmatpush1.bf16.msra.mxu0 %v5935
    %6005 = vmatprep.subr.bf16.mxu0 0
    %6006 = vmatpush1.bf16.msra.mxu0 %v5936
    %6007 = vmatprep.subr.bf16.mxu0 0
    %6008 = vmatpush1.bf16.msra.mxu0 %v5937
    %6009 = vmatprep.subr.bf16.mxu0 0
    %6010 = vmatpush1.bf16.msra.mxu0 %v5938
    %6011 = vmatprep.subr.bf16.mxu0 0
    %6012 = vmatpush1.bf16.msra.mxu0 %v5939
    %6013 = vmatprep.subr.bf16.mxu0 0
    %6014 = vmatpush1.bf16.msra.mxu0 %v5940
    %6015 = vmatprep.subr.bf16.mxu0 0
    %6016 = vmatpush1.bf16.msra.mxu0 %v5941
    %6017 = vmatprep.subr.bf16.mxu0 0
    %6018 = vmatpush1.bf16.msra.mxu0 %v5942
    %6019 = vmatprep.subr.bf16.mxu0 0
    %6020 = vmatpush1.bf16.msra.mxu0 %v5943
    %6021 = vmatprep.subr.bf16.mxu0 0
    %6022 = vmatpush1.bf16.msra.mxu0 %v5944
    %6023 = vmatprep.subr.bf16.mxu0 0
    %6024 = vmatpush1.bf16.msra.mxu0 %v5945
    %6025 = vmatprep.subr.bf16.mxu0 0
    %6026 = vmatpush1.bf16.msra.mxu0 %v5946
    %6027 = vmatprep.mubr.bf16.mxu0 %v5709
    %6028 = vmatmul.mubr.bf16.gmra.mrb[0].mxu0 %v5708
    %v6029 = vpop.f32.mrb[0].mxu0
    %v6030 = vadd.f32 %v5801, %v6029
    %v6031 = vpop.f32.mrb[0].mxu0
    %v6032 = vpop.f32.mrb[0].mxu0
    %v6033 = vpop.f32.mrb[0].mxu0
    %6034 = vdwg.mxu0
    %6035 = vmatprep.subr.bf16.mxu0 0
    %6036 = vmatpush1.bf16.msra.mxu0 %v5947
    %6037 = vmatprep.subr.bf16.mxu0 0
    %6038 = vmatpush1.bf16.msra.mxu0 %v5948
    %6039 = vmatprep.subr.bf16.mxu0 0
    %6040 = vmatpush1.bf16.msra.mxu0 %v5949
    %6041 = vmatprep.subr.bf16.mxu0 0
    %6042 = vmatpush1.bf16.msra.mxu0 %v5950
    %6043 = vmatprep.subr.bf16.mxu0 0
    %6044 = vmatpush1.bf16.msra.mxu0 %v5951
    %6045 = vmatprep.subr.bf16.mxu0 0
    %6046 = vmatpush1.bf16.msra.mxu0 %v5952
    %6047 = vmatprep.subr.bf16.mxu0 0
    %6048 = vmatpush1.bf16.msra.mxu0 %v5953
    %6049 = vmatprep.subr.bf16.mxu0 0
    %6050 = vmatpush1.bf16.msra.mxu0 %v5954
    %6051 = vmatprep.subr.bf16.mxu0 0
    %6052 = vmatpush1.bf16.msra.mxu0 %v5955
    %6053 = vmatprep.subr.bf16.mxu0 0
    %6054 = vmatpush1.bf16.msra.mxu0 %v5956
    %6055 = vmatprep.subr.bf16.mxu0 0
    %6056 = vmatpush1.bf16.msra.mxu0 %v5957
    %6057 = vmatprep.subr.bf16.mxu0 0
    %6058 = vmatpush1.bf16.msra.mxu0 %v5958
    %6059 = vmatprep.subr.bf16.mxu0 0
    %6060 = vmatpush1.bf16.msra.mxu0 %v5959
    %6061 = vmatprep.subr.bf16.mxu0 0
    %6062 = vmatpush1.bf16.msra.mxu0 %v5960
    %6063 = vmatprep.subr.bf16.mxu0 0
    %6064 = vmatpush1.bf16.msra.mxu0 %v5961
    %6065 = vmatprep.subr.bf16.mxu0 0
    %6066 = vmatpush1.bf16.msra.mxu0 %v5962
    %6067 = vmatprep.mubr.bf16.mxu0 %v5711
    %6068 = vmatmul.mubr.bf16.gmra.mrb[0].mxu0 %v5710
    %v6069 = vpop.f32.mrb[0].mxu0
    %v6070 = vadd.f32 %v6030, %v6069
    %v6071 = vpop.f32.mrb[0].mxu0
    %v6072 = vpop.f32.mrb[0].mxu0
    %v6073 = vpop.f32.mrb[0].mxu0
    %6074 = vdwg.mxu0
    %6075 = vst [vmem:[%s9] sm:$0x3] %v6070
    %v6076 = vld [vmem:[#allocation4 + $0x4] sm:$0xf]
    %v6077 = vld [vmem:[#allocation4 + $0x30] sm:$0xf]
    %v6078 = vld [vmem:[#allocation4 + $0x5c] sm:$0xf]
    %v6079 = vld [vmem:[#allocation4 + $0x88] sm:$0xf]
    %v6080 = vld [vmem:[#allocation4 + $0xb4] sm:$0xf]
    %v6081 = vld [vmem:[#allocation4 + $0xe0] sm:$0xf]
    %v6082 = vld [vmem:[#allocation4 + $0x10c] sm:$0xf]
    %v6083 = vld [vmem:[#allocation4 + $0x138] sm:$0xf]
    %v6084 = vld [vmem:[#allocation4 + $0x164] sm:$0xf]
    %v6085 = vld [vmem:[#allocation4 + $0x190] sm:$0xf]
    %v6086 = vld [vmem:[#allocation4 + $0x1bc] sm:$0xf]
    %v6087 = vld [vmem:[#allocation4 + $0x1e8] sm:$0xf]
    %v6088 = vld [vmem:[#allocation4 + $0x214] sm:$0xf]
    %v6089 = vld [vmem:[#allocation4 + $0x240] sm:$0xf]
    %v6090 = vld [vmem:[#allocation4 + $0x26c] sm:$0xf]
    %v6091 = vld [vmem:[#allocation4 + $0x298] sm:$0xf]
    %v6092 = vld [vmem:[#allocation4 + $0x2c4] sm:$0xf]
    %v6093 = vld [vmem:[#allocation4 + $0x2f0] sm:$0xf]
    %v6094 = vld [vmem:[#allocation4 + $0x31c] sm:$0xf]
    %v6095 = vld [vmem:[#allocation4 + $0x348] sm:$0xf]
    %v6096 = vld [vmem:[#allocation4 + $0x374] sm:$0xf]
    %v6097 = vld [vmem:[#allocation4 + $0x3a0] sm:$0xf]
    %v6098 = vld [vmem:[#allocation4 + $0x3cc] sm:$0xf]
    %v6099 = vld [vmem:[#allocation4 + $0x3f8] sm:$0xf]
    %v6100 = vld [vmem:[#allocation4 + $0x424] sm:$0xf]
    %v6101 = vld [vmem:[#allocation4 + $0x450] sm:$0xf]
    %v6102 = vld [vmem:[#allocation4 + $0x47c] sm:$0xf]
    %v6103 = vld [vmem:[#allocation4 + $0x4a8] sm:$0xf]
    %v6104 = vld [vmem:[#allocation4 + $0x4d4] sm:$0xf]
    %v6105 = vld [vmem:[#allocation4 + $0x500] sm:$0xf]
    %v6106 = vld [vmem:[#allocation4 + $0x52c] sm:$0xf]
    %v6107 = vld [vmem:[#allocation4 + $0x558] sm:$0xf]
    %v6108 = vld [vmem:[#allocation4 + $0x584] sm:$0xf]
    %v6109 = vld [vmem:[#allocation4 + $0x5b0] sm:$0xf]
    %v6110 = vld [vmem:[#allocation4 + $0x5dc] sm:$0xf]
    %v6111 = vld [vmem:[#allocation4 + $0x608] sm:$0xf]
    %v6112 = vld [vmem:[#allocation4 + $0x634] sm:$0xf]
    %v6113 = vld [vmem:[#allocation4 + $0x660] sm:$0xf]
    %v6114 = vld [vmem:[#allocation4 + $0x68c] sm:$0xf]
    %v6115 = vld [vmem:[#allocation4 + $0x6b8] sm:$0xf]
    %v6116 = vld [vmem:[#allocation4 + $0x6e4] sm:$0xf]
    %v6117 = vld [vmem:[#allocation4 + $0x710] sm:$0xf]
    %v6118 = vld [vmem:[#allocation4 + $0x73c] sm:$0xf]
    %v6119 = vld [vmem:[#allocation4 + $0x768] sm:$0xf]
    %v6120 = vld [vmem:[#allocation4 + $0x794] sm:$0xf]
    %v6121 = vld [vmem:[#allocation4 + $0x7c0] sm:$0xf]
    %v6122 = vld [vmem:[#allocation4 + $0x7ec] sm:$0xf]
    %v6123 = vld [vmem:[#allocation4 + $0x818] sm:$0xf]
    %v6124 = vld [vmem:[#allocation4 + $0x844] sm:$0xf]
    %v6125 = vld [vmem:[#allocation4 + $0x870] sm:$0xf]
    %v6126 = vld [vmem:[#allocation4 + $0x89c] sm:$0xf]
    %v6127 = vld [vmem:[#allocation4 + $0x8c8] sm:$0xf]
    %v6128 = vld [vmem:[#allocation4 + $0x8f4] sm:$0xf]
    %v6129 = vld [vmem:[#allocation4 + $0x920] sm:$0xf]
    %v6130 = vld [vmem:[#allocation4 + $0x94c] sm:$0xf]
    %v6131 = vld [vmem:[#allocation4 + $0x978] sm:$0xf]
    %v6132 = vld [vmem:[#allocation4 + $0x9a4] sm:$0xf]
    %v6133 = vld [vmem:[#allocation4 + $0x9d0] sm:$0xf]
    %v6134 = vld [vmem:[#allocation4 + $0x9fc] sm:$0xf]
    %v6135 = vld [vmem:[#allocation4 + $0xa28] sm:$0xf]
    %v6136 = vld [vmem:[#allocation4 + $0xa54] sm:$0xf]
    %v6137 = vld [vmem:[#allocation4 + $0xa80] sm:$0xf]
    %v6138 = vld [vmem:[#allocation4 + $0xaac] sm:$0xf]
    %v6139 = vld [vmem:[#allocation4 + $0xad8] sm:$0xf]
    %v6140 = vld [vmem:[%s8 + $0x1] sm:$0x1]
    %v6142 = vlaneseq
    %v6143 = vshrl.u32 %v6142, 7
    %v6144 = vsub.s32 0, %v6143
    %v6145 = vrot.slane %v6140, %v6144
    %v6211 = vunpack.c.l.b16 %v6076
    %v6212 = vunpack.c.l.b16 %v6077
    %v6213 = vunpack.c.l.b16 %v6078
    %v6214 = vunpack.c.l.b16 %v6079
    %v6215 = vunpack.c.l.b16 %v6080
    %v6216 = vunpack.c.l.b16 %v6081
    %v6217 = vunpack.c.l.b16 %v6082
    %v6218 = vunpack.c.l.b16 %v6083
    %v6219 = vunpack.c.l.b16 %v6084
    %v6220 = vunpack.c.l.b16 %v6085
    %v6221 = vunpack.c.l.b16 %v6086
    %v6222 = vunpack.c.l.b16 %v6087
    %v6223 = vunpack.c.l.b16 %v6088
    %v6224 = vunpack.c.l.b16 %v6089
    %v6225 = vunpack.c.l.b16 %v6090
    %v6226 = vunpack.c.l.b16 %v6091
    %v6227 = vunpack.c.l.b16 %v6092
    %v6228 = vunpack.c.l.b16 %v6093
    %v6229 = vunpack.c.l.b16 %v6094
    %v6230 = vunpack.c.l.b16 %v6095
    %v6231 = vunpack.c.l.b16 %v6096
    %v6232 = vunpack.c.l.b16 %v6097
    %v6233 = vunpack.c.l.b16 %v6098
    %v6234 = vunpack.c.l.b16 %v6099
    %v6235 = vunpack.c.l.b16 %v6100
    %v6236 = vunpack.c.l.b16 %v6101
    %v6237 = vunpack.c.l.b16 %v6102
    %v6238 = vunpack.c.l.b16 %v6103
    %v6239 = vunpack.c.l.b16 %v6104
    %v6240 = vunpack.c.l.b16 %v6105
    %v6241 = vunpack.c.l.b16 %v6106
    %v6242 = vunpack.c.l.b16 %v6107
    %v6243 = vunpack.c.l.b16 %v6108
    %v6244 = vunpack.c.l.b16 %v6109
    %v6245 = vunpack.c.l.b16 %v6110
    %v6246 = vunpack.c.l.b16 %v6111
    %v6247 = vunpack.c.l.b16 %v6112
    %v6248 = vunpack.c.l.b16 %v6113
    %v6249 = vunpack.c.l.b16 %v6114
    %v6250 = vunpack.c.l.b16 %v6115
    %v6251 = vunpack.c.l.b16 %v6116
    %v6252 = vunpack.c.l.b16 %v6117
    %v6253 = vunpack.c.l.b16 %v6118
    %v6254 = vunpack.c.l.b16 %v6119
    %v6255 = vunpack.c.l.b16 %v6120
    %v6256 = vunpack.c.l.b16 %v6121
    %v6257 = vunpack.c.l.b16 %v6122
    %v6258 = vunpack.c.l.b16 %v6123
    %v6259 = vunpack.c.l.b16 %v6124
    %v6260 = vunpack.c.l.b16 %v6125
    %v6261 = vunpack.c.l.b16 %v6126
    %v6262 = vunpack.c.l.b16 %v6127
    %v6263 = vunpack.c.l.b16 %v6128
    %v6264 = vunpack.c.l.b16 %v6129
    %v6265 = vunpack.c.l.b16 %v6130
    %v6266 = vunpack.c.l.b16 %v6131
    %v6267 = vunpack.c.l.b16 %v6132
    %v6268 = vunpack.c.l.b16 %v6133
    %v6269 = vunpack.c.l.b16 %v6134
    %v6270 = vunpack.c.l.b16 %v6135
    %v6271 = vunpack.c.l.b16 %v6136
    %v6272 = vunpack.c.l.b16 %v6137
    %v6273 = vunpack.c.l.b16 %v6138
    %v6274 = vunpack.c.l.b16 %v6139
    %v6275 = vpack.c.b16 %v6212, %v6211
    %v6276 = vpack.c.b16 %v6214, %v6213
    %v6277 = vpack.c.b16 %v6216, %v6215
    %v6278 = vpack.c.b16 %v6218, %v6217
    %v6279 = vpack.c.b16 %v6220, %v6219
    %v6280 = vpack.c.b16 %v6222, %v6221
    %v6281 = vpack.c.b16 %v6224, %v6223
    %v6282 = vpack.c.b16 %v6226, %v6225
    %v6283 = vpack.c.b16 %v6228, %v6227
    %v6284 = vpack.c.b16 %v6230, %v6229
    %v6285 = vpack.c.b16 %v6232, %v6231
    %v6286 = vpack.c.b16 %v6234, %v6233
    %v6287 = vpack.c.b16 %v6236, %v6235
    %v6288 = vpack.c.b16 %v6238, %v6237
    %v6289 = vpack.c.b16 %v6240, %v6239
    %v6290 = vpack.c.b16 %v6242, %v6241
    %v6291 = vpack.c.b16 %v6244, %v6243
    %v6292 = vpack.c.b16 %v6246, %v6245
    %v6293 = vpack.c.b16 %v6248, %v6247
    %v6294 = vpack.c.b16 %v6250, %v6249
    %v6295 = vpack.c.b16 %v6252, %v6251
    %v6296 = vpack.c.b16 %v6254, %v6253
    %v6297 = vpack.c.b16 %v6256, %v6255
    %v6298 = vpack.c.b16 %v6258, %v6257
    %v6299 = vpack.c.b16 %v6260, %v6259
    %v6300 = vpack.c.b16 %v6262, %v6261
    %v6301 = vpack.c.b16 %v6264, %v6263
    %v6302 = vpack.c.b16 %v6266, %v6265
    %v6303 = vpack.c.b16 %v6268, %v6267
    %v6304 = vpack.c.b16 %v6270, %v6269
    %v6305 = vpack.c.b16 %v6272, %v6271
    %v6306 = vpack.c.b16 %v6274, %v6273
    %6339 = vmatprep.subr.bf16.mxu0 0
    %6340 = vmatpush1.bf16.msra.mxu0 %v6275
    %6341 = vmatprep.subr.bf16.mxu0 0
    %6342 = vmatpush1.bf16.msra.mxu0 %v6276
    %6343 = vmatprep.subr.bf16.mxu0 0
    %6344 = vmatpush1.bf16.msra.mxu0 %v6277
    %6345 = vmatprep.subr.bf16.mxu0 0
    %6346 = vmatpush1.bf16.msra.mxu0 %v6278
    %6347 = vmatprep.subr.bf16.mxu0 0
    %6348 = vmatpush1.bf16.msra.mxu0 %v6279
    %6349 = vmatprep.subr.bf16.mxu0 0
    %6350 = vmatpush1.bf16.msra.mxu0 %v6280
    %6351 = vmatprep.subr.bf16.mxu0 0
    %6352 = vmatpush1.bf16.msra.mxu0 %v6281
    %6353 = vmatprep.subr.bf16.mxu0 0
    %6354 = vmatpush1.bf16.msra.mxu0 %v6282
    %6355 = vmatprep.subr.bf16.mxu0 0
    %6356 = vmatpush1.bf16.msra.mxu0 %v6283
    %6357 = vmatprep.subr.bf16.mxu0 0
    %6358 = vmatpush1.bf16.msra.mxu0 %v6284
    %6359 = vmatprep.subr.bf16.mxu0 0
    %6360 = vmatpush1.bf16.msra.mxu0 %v6285
    %6361 = vmatprep.subr.bf16.mxu0 0
    %6362 = vmatpush1.bf16.msra.mxu0 %v6286
    %6363 = vmatprep.subr.bf16.mxu0 0
    %6364 = vmatpush1.bf16.msra.mxu0 %v6287
    %6365 = vmatprep.subr.bf16.mxu0 0
    %6366 = vmatpush1.bf16.msra.mxu0 %v6288
    %6367 = vmatprep.subr.bf16.mxu0 0
    %6368 = vmatpush1.bf16.msra.mxu0 %v6289
    %6369 = vmatprep.subr.bf16.mxu0 0
    %6370 = vmatpush1.bf16.msra.mxu0 %v6290
    %6371 = vmatprep.mubr.bf16.mxu0 %v5713
    %6372 = vmatmul.mubr.bf16.gmra.mrb[0].mxu0 %v5712
    %v6373 = vpop.f32.mrb[0].mxu0
    %v6374 = vadd.f32 %v6145, %v6373
    %v6375 = vpop.f32.mrb[0].mxu0
    %v6376 = vpop.f32.mrb[0].mxu0
    %v6377 = vpop.f32.mrb[0].mxu0
    %6378 = vdwg.mxu0
    %6379 = vmatprep.subr.bf16.mxu0 0
    %6380 = vmatpush1.bf16.msra.mxu0 %v6291
    %6381 = vmatprep.subr.bf16.mxu0 0
    %6382 = vmatpush1.bf16.msra.mxu0 %v6292
    %6383 = vmatprep.subr.bf16.mxu0 0
    %6384 = vmatpush1.bf16.msra.mxu0 %v6293
    %6385 = vmatprep.subr.bf16.mxu0 0
    %6386 = vmatpush1.bf16.msra.mxu0 %v6294
    %6387 = vmatprep.subr.bf16.mxu0 0
    %6388 = vmatpush1.bf16.msra.mxu0 %v6295
    %6389 = vmatprep.subr.bf16.mxu0 0
    %6390 = vmatpush1.bf16.msra.mxu0 %v6296
    %6391 = vmatprep.subr.bf16.mxu0 0
    %6392 = vmatpush1.bf16.msra.mxu0 %v6297
    %6393 = vmatprep.subr.bf16.mxu0 0
    %6394 = vmatpush1.bf16.msra.mxu0 %v6298
    %6395 = vmatprep.subr.bf16.mxu0 0
    %6396 = vmatpush1.bf16.msra.mxu0 %v6299
    %6397 = vmatprep.subr.bf16.mxu0 0
    %6398 = vmatpush1.bf16.msra.mxu0 %v6300
    %6399 = vmatprep.subr.bf16.mxu0 0
    %6400 = vmatpush1.bf16.msra.mxu0 %v6301
    %6401 = vmatprep.subr.bf16.mxu0 0
    %6402 = vmatpush1.bf16.msra.mxu0 %v6302
    %6403 = vmatprep.subr.bf16.mxu0 0
    %6404 = vmatpush1.bf16.msra.mxu0 %v6303
    %6405 = vmatprep.subr.bf16.mxu0 0
    %6406 = vmatpush1.bf16.msra.mxu0 %v6304
    %6407 = vmatprep.subr.bf16.mxu0 0
    %6408 = vmatpush1.bf16.msra.mxu0 %v6305
    %6409 = vmatprep.subr.bf16.mxu0 0
    %6410 = vmatpush1.bf16.msra.mxu0 %v6306
    %6411 = vmatprep.mubr.bf16.mxu0 %v5715
    %6412 = vmatmul.mubr.bf16.gmra.mrb[0].mxu0 %v5714
    %v6413 = vpop.f32.mrb[0].mxu0
    %v6414 = vadd.f32 %v6374, %v6413
    %v6415 = vpop.f32.mrb[0].mxu0
    %v6416 = vpop.f32.mrb[0].mxu0
    %v6417 = vpop.f32.mrb[0].mxu0
    %6418 = vdwg.mxu0
    %6419 = vst [vmem:[%s9 + $0x2] sm:$0x3] %v6414
    %v6420 = vld [vmem:[#allocation4 + $0x8] sm:$0xf]
    %v6421 = vld [vmem:[#allocation4 + $0x34] sm:$0xf]
    %v6422 = vld [vmem:[#allocation4 + $0x60] sm:$0xf]
    %v6423 = vld [vmem:[#allocation4 + $0x8c] sm:$0xf]
    %v6424 = vld [vmem:[#allocation4 + $0xb8] sm:$0xf]
    %v6425 = vld [vmem:[#allocation4 + $0xe4] sm:$0xf]
    %v6426 = vld [vmem:[#allocation4 + $0x110] sm:$0xf]
    %v6427 = vld [vmem:[#allocation4 + $0x13c] sm:$0xf]
    %v6428 = vld [vmem:[#allocation4 + $0x168] sm:$0xf]
    %v6429 = vld [vmem:[#allocation4 + $0x194] sm:$0xf]
    %v6430 = vld [vmem:[#allocation4 + $0x1c0] sm:$0xf]
    %v6431 = vld [vmem:[#allocation4 + $0x1ec] sm:$0xf]
    %v6432 = vld [vmem:[#allocation4 + $0x218] sm:$0xf]
    %v6433 = vld [vmem:[#allocation4 + $0x244] sm:$0xf]
    %v6434 = vld [vmem:[#allocation4 + $0x270] sm:$0xf]
    %v6435 = vld [vmem:[#allocation4 + $0x29c] sm:$0xf]
    %v6436 = vld [vmem:[#allocation4 + $0x2c8] sm:$0xf]
    %v6437 = vld [vmem:[#allocation4 + $0x2f4] sm:$0xf]
    %v6438 = vld [vmem:[#allocation4 + $0x320] sm:$0xf]
    %v6439 = vld [vmem:[#allocation4 + $0x34c] sm:$0xf]
    %v6440 = vld [vmem:[#allocation4 + $0x378] sm:$0xf]
    %v6441 = vld [vmem:[#allocation4 + $0x3a4] sm:$0xf]
    %v6442 = vld [vmem:[#allocation4 + $0x3d0] sm:$0xf]
    %v6443 = vld [vmem:[#allocation4 + $0x3fc] sm:$0xf]
    %v6444 = vld [vmem:[#allocation4 + $0x428] sm:$0xf]
    %v6445 = vld [vmem:[#allocation4 + $0x454] sm:$0xf]
    %v6446 = vld [vmem:[#allocation4 + $0x480] sm:$0xf]
    %v6447 = vld [vmem:[#allocation4 + $0x4ac] sm:$0xf]
    %v6448 = vld [vmem:[#allocation4 + $0x4d8] sm:$0xf]
    %v6449 = vld [vmem:[#allocation4 + $0x504] sm:$0xf]
    %v6450 = vld [vmem:[#allocation4 + $0x530] sm:$0xf]
    %v6451 = vld [vmem:[#allocation4 + $0x55c] sm:$0xf]
    %v6452 = vld [vmem:[#allocation4 + $0x588] sm:$0xf]
    %v6453 = vld [vmem:[#allocation4 + $0x5b4] sm:$0xf]
    %v6454 = vld [vmem:[#allocation4 + $0x5e0] sm:$0xf]
    %v6455 = vld [vmem:[#allocation4 + $0x60c] sm:$0xf]
    %v6456 = vld [vmem:[#allocation4 + $0x638] sm:$0xf]
    %v6457 = vld [vmem:[#allocation4 + $0x664] sm:$0xf]
    %v6458 = vld [vmem:[#allocation4 + $0x690] sm:$0xf]
    %v6459 = vld [vmem:[#allocation4 + $0x6bc] sm:$0xf]
    %v6460 = vld [vmem:[#allocation4 + $0x6e8] sm:$0xf]
    %v6461 = vld [vmem:[#allocation4 + $0x714] sm:$0xf]
    %v6462 = vld [vmem:[#allocation4 + $0x740] sm:$0xf]
    %v6463 = vld [vmem:[#allocation4 + $0x76c] sm:$0xf]
    %v6464 = vld [vmem:[#allocation4 + $0x798] sm:$0xf]
    %v6465 = vld [vmem:[#allocation4 + $0x7c4] sm:$0xf]
    %v6466 = vld [vmem:[#allocation4 + $0x7f0] sm:$0xf]
    %v6467 = vld [vmem:[#allocation4 + $0x81c] sm:$0xf]
    %v6468 = vld [vmem:[#allocation4 + $0x848] sm:$0xf]
    %v6469 = vld [vmem:[#allocation4 + $0x874] sm:$0xf]
    %v6470 = vld [vmem:[#allocation4 + $0x8a0] sm:$0xf]
    %v6471 = vld [vmem:[#allocation4 + $0x8cc] sm:$0xf]
    %v6472 = vld [vmem:[#allocation4 + $0x8f8] sm:$0xf]
    %v6473 = vld [vmem:[#allocation4 + $0x924] sm:$0xf]
    %v6474 = vld [vmem:[#allocation4 + $0x950] sm:$0xf]
    %v6475 = vld [vmem:[#allocation4 + $0x97c] sm:$0xf]
    %v6476 = vld [vmem:[#allocation4 + $0x9a8] sm:$0xf]
    %v6477 = vld [vmem:[#allocation4 + $0x9d4] sm:$0xf]
    %v6478 = vld [vmem:[#allocation4 + $0xa00] sm:$0xf]
    %v6479 = vld [vmem:[#allocation4 + $0xa2c] sm:$0xf]
    %v6480 = vld [vmem:[#allocation4 + $0xa58] sm:$0xf]
    %v6481 = vld [vmem:[#allocation4 + $0xa84] sm:$0xf]
    %v6482 = vld [vmem:[#allocation4 + $0xab0] sm:$0xf]
    %v6483 = vld [vmem:[#allocation4 + $0xadc] sm:$0xf]
    %v6484 = vld [vmem:[%s8 + $0x2] sm:$0x1]
    %v6486 = vlaneseq
    %v6487 = vshrl.u32 %v6486, 7
    %v6488 = vsub.s32 0, %v6487
    %v6489 = vrot.slane %v6484, %v6488
    %v6555 = vunpack.c.l.b16 %v6420
    %v6556 = vunpack.c.l.b16 %v6421
    %v6557 = vunpack.c.l.b16 %v6422
    %v6558 = vunpack.c.l.b16 %v6423
    %v6559 = vunpack.c.l.b16 %v6424
    %v6560 = vunpack.c.l.b16 %v6425
    %v6561 = vunpack.c.l.b16 %v6426
    %v6562 = vunpack.c.l.b16 %v6427
    %v6563 = vunpack.c.l.b16 %v6428
    %v6564 = vunpack.c.l.b16 %v6429
    %v6565 = vunpack.c.l.b16 %v6430
    %v6566 = vunpack.c.l.b16 %v6431
    %v6567 = vunpack.c.l.b16 %v6432
    %v6568 = vunpack.c.l.b16 %v6433
    %v6569 = vunpack.c.l.b16 %v6434
    %v6570 = vunpack.c.l.b16 %v6435
    %v6571 = vunpack.c.l.b16 %v6436
    %v6572 = vunpack.c.l.b16 %v6437
    %v6573 = vunpack.c.l.b16 %v6438
    %v6574 = vunpack.c.l.b16 %v6439
    %v6575 = vunpack.c.l.b16 %v6440
    %v6576 = vunpack.c.l.b16 %v6441
    %v6577 = vunpack.c.l.b16 %v6442
    %v6578 = vunpack.c.l.b16 %v6443
    %v6579 = vunpack.c.l.b16 %v6444
    %v6580 = vunpack.c.l.b16 %v6445
    %v6581 = vunpack.c.l.b16 %v6446
    %v6582 = vunpack.c.l.b16 %v6447
    %v6583 = vunpack.c.l.b16 %v6448
    %v6584 = vunpack.c.l.b16 %v6449
    %v6585 = vunpack.c.l.b16 %v6450
    %v6586 = vunpack.c.l.b16 %v6451
    %v6587 = vunpack.c.l.b16 %v6452
    %v6588 = vunpack.c.l.b16 %v6453
    %v6589 = vunpack.c.l.b16 %v6454
    %v6590 = vunpack.c.l.b16 %v6455
    %v6591 = vunpack.c.l.b16 %v6456
    %v6592 = vunpack.c.l.b16 %v6457
    %v6593 = vunpack.c.l.b16 %v6458
    %v6594 = vunpack.c.l.b16 %v6459
    %v6595 = vunpack.c.l.b16 %v6460
    %v6596 = vunpack.c.l.b16 %v6461
    %v6597 = vunpack.c.l.b16 %v6462
    %v6598 = vunpack.c.l.b16 %v6463
    %v6599 = vunpack.c.l.b16 %v6464
    %v6600 = vunpack.c.l.b16 %v6465
    %v6601 = vunpack.c.l.b16 %v6466
    %v6602 = vunpack.c.l.b16 %v6467
    %v6603 = vunpack.c.l.b16 %v6468
    %v6604 = vunpack.c.l.b16 %v6469
    %v6605 = vunpack.c.l.b16 %v6470
    %v6606 = vunpack.c.l.b16 %v6471
    %v6607 = vunpack.c.l.b16 %v6472
    %v6608 = vunpack.c.l.b16 %v6473
    %v6609 = vunpack.c.l.b16 %v6474
    %v6610 = vunpack.c.l.b16 %v6475
    %v6611 = vunpack.c.l.b16 %v6476
    %v6612 = vunpack.c.l.b16 %v6477
    %v6613 = vunpack.c.l.b16 %v6478
    %v6614 = vunpack.c.l.b16 %v6479
    %v6615 = vunpack.c.l.b16 %v6480
    %v6616 = vunpack.c.l.b16 %v6481
    %v6617 = vunpack.c.l.b16 %v6482
    %v6618 = vunpack.c.l.b16 %v6483
    %v6619 = vpack.c.b16 %v6556, %v6555
    %v6620 = vpack.c.b16 %v6558, %v6557
    %v6621 = vpack.c.b16 %v6560, %v6559
    %v6622 = vpack.c.b16 %v6562, %v6561
    %v6623 = vpack.c.b16 %v6564, %v6563
    %v6624 = vpack.c.b16 %v6566, %v6565
    %v6625 = vpack.c.b16 %v6568, %v6567
    %v6626 = vpack.c.b16 %v6570, %v6569
    %v6627 = vpack.c.b16 %v6572, %v6571
    %v6628 = vpack.c.b16 %v6574, %v6573
    %v6629 = vpack.c.b16 %v6576, %v6575
    %v6630 = vpack.c.b16 %v6578, %v6577
    %v6631 = vpack.c.b16 %v6580, %v6579
    %v6632 = vpack.c.b16 %v6582, %v6581
    %v6633 = vpack.c.b16 %v6584, %v6583
    %v6634 = vpack.c.b16 %v6586, %v6585
    %v6635 = vpack.c.b16 %v6588, %v6587
    %v6636 = vpack.c.b16 %v6590, %v6589
    %v6637 = vpack.c.b16 %v6592, %v6591
    %v6638 = vpack.c.b16 %v6594, %v6593
    %v6639 = vpack.c.b16 %v6596, %v6595
    %v6640 = vpack.c.b16 %v6598, %v6597
    %v6641 = vpack.c.b16 %v6600, %v6599
    %v6642 = vpack.c.b16 %v6602, %v6601
    %v6643 = vpack.c.b16 %v6604, %v6603
    %v6644 = vpack.c.b16 %v6606, %v6605
    %v6645 = vpack.c.b16 %v6608, %v6607
    %v6646 = vpack.c.b16 %v6610, %v6609
    %v6647 = vpack.c.b16 %v6612, %v6611
    %v6648 = vpack.c.b16 %v6614, %v6613
    %v6649 = vpack.c.b16 %v6616, %v6615
    %v6650 = vpack.c.b16 %v6618, %v6617
    %6683 = vmatprep.subr.bf16.mxu0 0
    %6684 = vmatpush1.bf16.msra.mxu0 %v6619
    %6685 = vmatprep.subr.bf16.mxu0 0
    %6686 = vmatpush1.bf16.msra.mxu0 %v6620
    %6687 = vmatprep.subr.bf16.mxu0 0
    %6688 = vmatpush1.bf16.msra.mxu0 %v6621
    %6689 = vmatprep.subr.bf16.mxu0 0
    %6690 = vmatpush1.bf16.msra.mxu0 %v6622
    %6691 = vmatprep.subr.bf16.mxu0 0
    %6692 = vmatpush1.bf16.msra.mxu0 %v6623
    %6693 = vmatprep.subr.bf16.mxu0 0
    %6694 = vmatpush1.bf16.msra.mxu0 %v6624
    %6695 = vmatprep.subr.bf16.mxu0 0
    %6696 = vmatpush1.bf16.msra.mxu0 %v6625
    %6697 = vmatprep.subr.bf16.mxu0 0
    %6698 = vmatpush1.bf16.msra.mxu0 %v6626
    %6699 = vmatprep.subr.bf16.mxu0 0
    %6700 = vmatpush1.bf16.msra.mxu0 %v6627
    %6701 = vmatprep.subr.bf16.mxu0 0
    %6702 = vmatpush1.bf16.msra.mxu0 %v6628
    %6703 = vmatprep.subr.bf16.mxu0 0
    %6704 = vmatpush1.bf16.msra.mxu0 %v6629
    %6705 = vmatprep.subr.bf16.mxu0 0
    %6706 = vmatpush1.bf16.msra.mxu0 %v6630
    %6707 = vmatprep.subr.bf16.mxu0 0
    %6708 = vmatpush1.bf16.msra.mxu0 %v6631
    %6709 = vmatprep.subr.bf16.mxu0 0
    %6710 = vmatpush1.bf16.msra.mxu0 %v6632
    %6711 = vmatprep.subr.bf16.mxu0 0
    %6712 = vmatpush1.bf16.msra.mxu0 %v6633
    %6713 = vmatprep.subr.bf16.mxu0 0
    %6714 = vmatpush1.bf16.msra.mxu0 %v6634
    %6715 = vmatprep.mubr.bf16.mxu0 %v5717
    %6716 = vmatmul.mubr.bf16.gmra.mrb[0].mxu0 %v5716
    %v6717 = vpop.f32.mrb[0].mxu0
    %v6718 = vadd.f32 %v6489, %v6717
    %v6719 = vpop.f32.mrb[0].mxu0
    %v6720 = vpop.f32.mrb[0].mxu0
    %v6721 = vpop.f32.mrb[0].mxu0
    %6722 = vdwg.mxu0
    %6723 = vmatprep.subr.bf16.mxu0 0
    %6724 = vmatpush1.bf16.msra.mxu0 %v6635
    %6725 = vmatprep.subr.bf16.mxu0 0
    %6726 = vmatpush1.bf16.msra.mxu0 %v6636
    %6727 = vmatprep.subr.bf16.mxu0 0
    %6728 = vmatpush1.bf16.msra.mxu0 %v6637
    %6729 = vmatprep.subr.bf16.mxu0 0
    %6730 = vmatpush1.bf16.msra.mxu0 %v6638
    %6731 = vmatprep.subr.bf16.mxu0 0
    %6732 = vmatpush1.bf16.msra.mxu0 %v6639
    %6733 = vmatprep.subr.bf16.mxu0 0
    %6734 = vmatpush1.bf16.msra.mxu0 %v6640
    %6735 = vmatprep.subr.bf16.mxu0 0
    %6736 = vmatpush1.bf16.msra.mxu0 %v6641
    %6737 = vmatprep.subr.bf16.mxu0 0
    %6738 = vmatpush1.bf16.msra.mxu0 %v6642
    %6739 = vmatprep.subr.bf16.mxu0 0
    %6740 = vmatpush1.bf16.msra.mxu0 %v6643
    %6741 = vmatprep.subr.bf16.mxu0 0
    %6742 = vmatpush1.bf16.msra.mxu0 %v6644
    %6743 = vmatprep.subr.bf16.mxu0 0
    %6744 = vmatpush1.bf16.msra.mxu0 %v6645
    %6745 = vmatprep.subr.bf16.mxu0 0
    %6746 = vmatpush1.bf16.msra.mxu0 %v6646
    %6747 = vmatprep.subr.bf16.mxu0 0
    %6748 = vmatpush1.bf16.msra.mxu0 %v6647
    %6749 = vmatprep.subr.bf16.mxu0 0
    %6750 = vmatpush1.bf16.msra.mxu0 %v6648
    %6751 = vmatprep.subr.bf16.mxu0 0
    %6752 = vmatpush1.bf16.msra.mxu0 %v6649
    %6753 = vmatprep.subr.bf16.mxu0 0
    %6754 = vmatpush1.bf16.msra.mxu0 %v6650
    %6755 = vmatprep.mubr.bf16.mxu0 %v5719
    %6756 = vmatmul.mubr.bf16.gmra.mrb[0].mxu0 %v5718
    %v6757 = vpop.f32.mrb[0].mxu0
    %v6758 = vadd.f32 %v6718, %v6757
    %v6759 = vpop.f32.mrb[0].mxu0
    %v6760 = vpop.f32.mrb[0].mxu0
    %v6761 = vpop.f32.mrb[0].mxu0
    %6762 = vdwg.mxu0
    %6763 = vst [vmem:[%s9 + $0x4] sm:$0x3] %v6758
    %v6764 = vld [vmem:[#allocation4 + $0xc] sm:$0xf]
    %v6765 = vld [vmem:[#allocation4 + $0x38] sm:$0xf]
    %v6766 = vld [vmem:[#allocation4 + $0x64] sm:$0xf]
    %v6767 = vld [vmem:[#allocation4 + $0x90] sm:$0xf]
    %v6768 = vld [vmem:[#allocation4 + $0xbc] sm:$0xf]
    %v6769 = vld [vmem:[#allocation4 + $0xe8] sm:$0xf]
    %v6770 = vld [vmem:[#allocation4 + $0x114] sm:$0xf]
    %v6771 = vld [vmem:[#allocation4 + $0x140] sm:$0xf]
    %v6772 = vld [vmem:[#allocation4 + $0x16c] sm:$0xf]
    %v6773 = vld [vmem:[#allocation4 + $0x198] sm:$0xf]
    %v6774 = vld [vmem:[#allocation4 + $0x1c4] sm:$0xf]
    %v6775 = vld [vmem:[#allocation4 + $0x1f0] sm:$0xf]
    %v6776 = vld [vmem:[#allocation4 + $0x21c] sm:$0xf]
    %v6777 = vld [vmem:[#allocation4 + $0x248] sm:$0xf]
    %v6778 = vld [vmem:[#allocation4 + $0x274] sm:$0xf]
    %v6779 = vld [vmem:[#allocation4 + $0x2a0] sm:$0xf]
    %v6780 = vld [vmem:[#allocation4 + $0x2cc] sm:$0xf]
    %v6781 = vld [vmem:[#allocation4 + $0x2f8] sm:$0xf]
    %v6782 = vld [vmem:[#allocation4 + $0x324] sm:$0xf]
    %v6783 = vld [vmem:[#allocation4 + $0x350] sm:$0xf]
    %v6784 = vld [vmem:[#allocation4 + $0x37c] sm:$0xf]
    %v6785 = vld [vmem:[#allocation4 + $0x3a8] sm:$0xf]
    %v6786 = vld [vmem:[#allocation4 + $0x3d4] sm:$0xf]
    %v6787 = vld [vmem:[#allocation4 + $0x400] sm:$0xf]
    %v6788 = vld [vmem:[#allocation4 + $0x42c] sm:$0xf]
    %v6789 = vld [vmem:[#allocation4 + $0x458] sm:$0xf]
    %v6790 = vld [vmem:[#allocation4 + $0x484] sm:$0xf]
    %v6791 = vld [vmem:[#allocation4 + $0x4b0] sm:$0xf]
    %v6792 = vld [vmem:[#allocation4 + $0x4dc] sm:$0xf]
    %v6793 = vld [vmem:[#allocation4 + $0x508] sm:$0xf]
    %v6794 = vld [vmem:[#allocation4 + $0x534] sm:$0xf]
    %v6795 = vld [vmem:[#allocation4 + $0x560] sm:$0xf]
    %v6796 = vld [vmem:[#allocation4 + $0x58c] sm:$0xf]
    %v6797 = vld [vmem:[#allocation4 + $0x5b8] sm:$0xf]
    %v6798 = vld [vmem:[#allocation4 + $0x5e4] sm:$0xf]
    %v6799 = vld [vmem:[#allocation4 + $0x610] sm:$0xf]
    %v6800 = vld [vmem:[#allocation4 + $0x63c] sm:$0xf]
    %v6801 = vld [vmem:[#allocation4 + $0x668] sm:$0xf]
    %v6802 = vld [vmem:[#allocation4 + $0x694] sm:$0xf]
    %v6803 = vld [vmem:[#allocation4 + $0x6c0] sm:$0xf]
    %v6804 = vld [vmem:[#allocation4 + $0x6ec] sm:$0xf]
    %v6805 = vld [vmem:[#allocation4 + $0x718] sm:$0xf]
    %v6806 = vld [vmem:[#allocation4 + $0x744] sm:$0xf]
    %v6807 = vld [vmem:[#allocation4 + $0x770] sm:$0xf]
    %v6808 = vld [vmem:[#allocation4 + $0x79c] sm:$0xf]
    %v6809 = vld [vmem:[#allocation4 + $0x7c8] sm:$0xf]
    %v6810 = vld [vmem:[#allocation4 + $0x7f4] sm:$0xf]
    %v6811 = vld [vmem:[#allocation4 + $0x820] sm:$0xf]
    %v6812 = vld [vmem:[#allocation4 + $0x84c] sm:$0xf]
    %v6813 = vld [vmem:[#allocation4 + $0x878] sm:$0xf]
    %v6814 = vld [vmem:[#allocation4 + $0x8a4] sm:$0xf]
    %v6815 = vld [vmem:[#allocation4 + $0x8d0] sm:$0xf]
    %v6816 = vld [vmem:[#allocation4 + $0x8fc] sm:$0xf]
    %v6817 = vld [vmem:[#allocation4 + $0x928] sm:$0xf]
    %v6818 = vld [vmem:[#allocation4 + $0x954] sm:$0xf]
    %v6819 = vld [vmem:[#allocation4 + $0x980] sm:$0xf]
    %v6820 = vld [vmem:[#allocation4 + $0x9ac] sm:$0xf]
    %v6821 = vld [vmem:[#allocation4 + $0x9d8] sm:$0xf]
    %v6822 = vld [vmem:[#allocation4 + $0xa04] sm:$0xf]
    %v6823 = vld [vmem:[#allocation4 + $0xa30] sm:$0xf]
    %v6824 = vld [vmem:[#allocation4 + $0xa5c] sm:$0xf]
    %v6825 = vld [vmem:[#allocation4 + $0xa88] sm:$0xf]
    %v6826 = vld [vmem:[#allocation4 + $0xab4] sm:$0xf]
    %v6827 = vld [vmem:[#allocation4 + $0xae0] sm:$0xf]
    %v6828 = vld [vmem:[%s8 + $0x3] sm:$0x1]
    %v6830 = vlaneseq
    %v6831 = vshrl.u32 %v6830, 7
    %v6832 = vsub.s32 0, %v6831
    %v6833 = vrot.slane %v6828, %v6832
    %v6899 = vunpack.c.l.b16 %v6764
    %v6900 = vunpack.c.l.b16 %v6765
    %v6901 = vunpack.c.l.b16 %v6766
    %v6902 = vunpack.c.l.b16 %v6767
    %v6903 = vunpack.c.l.b16 %v6768
    %v6904 = vunpack.c.l.b16 %v6769
    %v6905 = vunpack.c.l.b16 %v6770
    %v6906 = vunpack.c.l.b16 %v6771
    %v6907 = vunpack.c.l.b16 %v6772
    %v6908 = vunpack.c.l.b16 %v6773
    %v6909 = vunpack.c.l.b16 %v6774
    %v6910 = vunpack.c.l.b16 %v6775
    %v6911 = vunpack.c.l.b16 %v6776
    %v6912 = vunpack.c.l.b16 %v6777
    %v6913 = vunpack.c.l.b16 %v6778
    %v6914 = vunpack.c.l.b16 %v6779
    %v6915 = vunpack.c.l.b16 %v6780
    %v6916 = vunpack.c.l.b16 %v6781
    %v6917 = vunpack.c.l.b16 %v6782
    %v6918 = vunpack.c.l.b16 %v6783
    %v6919 = vunpack.c.l.b16 %v6784
    %v6920 = vunpack.c.l.b16 %v6785
    %v6921 = vunpack.c.l.b16 %v6786
    %v6922 = vunpack.c.l.b16 %v6787
    %v6923 = vunpack.c.l.b16 %v6788
    %v6924 = vunpack.c.l.b16 %v6789
    %v6925 = vunpack.c.l.b16 %v6790
    %v6926 = vunpack.c.l.b16 %v6791
    %v6927 = vunpack.c.l.b16 %v6792
    %v6928 = vunpack.c.l.b16 %v6793
    %v6929 = vunpack.c.l.b16 %v6794
    %v6930 = vunpack.c.l.b16 %v6795
    %v6931 = vunpack.c.l.b16 %v6796
    %v6932 = vunpack.c.l.b16 %v6797
    %v6933 = vunpack.c.l.b16 %v6798
    %v6934 = vunpack.c.l.b16 %v6799
    %v6935 = vunpack.c.l.b16 %v6800
    %v6936 = vunpack.c.l.b16 %v6801
    %v6937 = vunpack.c.l.b16 %v6802
    %v6938 = vunpack.c.l.b16 %v6803
    %v6939 = vunpack.c.l.b16 %v6804
    %v6940 = vunpack.c.l.b16 %v6805
    %v6941 = vunpack.c.l.b16 %v6806
    %v6942 = vunpack.c.l.b16 %v6807
    %v6943 = vunpack.c.l.b16 %v6808
    %v6944 = vunpack.c.l.b16 %v6809
    %v6945 = vunpack.c.l.b16 %v6810
    %v6946 = vunpack.c.l.b16 %v6811
    %v6947 = vunpack.c.l.b16 %v6812
    %v6948 = vunpack.c.l.b16 %v6813
    %v6949 = vunpack.c.l.b16 %v6814
    %v6950 = vunpack.c.l.b16 %v6815
    %v6951 = vunpack.c.l.b16 %v6816
    %v6952 = vunpack.c.l.b16 %v6817
    %v6953 = vunpack.c.l.b16 %v6818
    %v6954 = vunpack.c.l.b16 %v6819
    %v6955 = vunpack.c.l.b16 %v6820
    %v6956 = vunpack.c.l.b16 %v6821
    %v6957 = vunpack.c.l.b16 %v6822
    %v6958 = vunpack.c.l.b16 %v6823
    %v6959 = vunpack.c.l.b16 %v6824
    %v6960 = vunpack.c.l.b16 %v6825
    %v6961 = vunpack.c.l.b16 %v6826
    %v6962 = vunpack.c.l.b16 %v6827
    %v6963 = vpack.c.b16 %v6900, %v6899
    %v6964 = vpack.c.b16 %v6902, %v6901
    %v6965 = vpack.c.b16 %v6904, %v6903
    %v6966 = vpack.c.b16 %v6906, %v6905
    %v6967 = vpack.c.b16 %v6908, %v6907
    %v6968 = vpack.c.b16 %v6910, %v6909
    %v6969 = vpack.c.b16 %v6912, %v6911
    %v6970 = vpack.c.b16 %v6914, %v6913
    %v6971 = vpack.c.b16 %v6916, %v6915
    %v6972 = vpack.c.b16 %v6918, %v6917
    %v6973 = vpack.c.b16 %v6920, %v6919
    %v6974 = vpack.c.b16 %v6922, %v6921
    %v6975 = vpack.c.b16 %v6924, %v6923
    %v6976 = vpack.c.b16 %v6926, %v6925
    %v6977 = vpack.c.b16 %v6928, %v6927
    %v6978 = vpack.c.b16 %v6930, %v6929
    %v6979 = vpack.c.b16 %v6932, %v6931
    %v6980 = vpack.c.b16 %v6934, %v6933
    %v6981 = vpack.c.b16 %v6936, %v6935
    %v6982 = vpack.c.b16 %v6938, %v6937
    %v6983 = vpack.c.b16 %v6940, %v6939
    %v6984 = vpack.c.b16 %v6942, %v6941
    %v6985 = vpack.c.b16 %v6944, %v6943
    %v6986 = vpack.c.b16 %v6946, %v6945
    %v6987 = vpack.c.b16 %v6948, %v6947
    %v6988 = vpack.c.b16 %v6950, %v6949
    %v6989 = vpack.c.b16 %v6952, %v6951
    %v6990 = vpack.c.b16 %v6954, %v6953
    %v6991 = vpack.c.b16 %v6956, %v6955
    %v6992 = vpack.c.b16 %v6958, %v6957
    %v6993 = vpack.c.b16 %v6960, %v6959
    %v6994 = vpack.c.b16 %v6962, %v6961
    %7027 = vmatprep.subr.bf16.mxu0 0
    %7028 = vmatpush1.bf16.msra.mxu0 %v6963
    %7029 = vmatprep.subr.bf16.mxu0 0
    %7030 = vmatpush1.bf16.msra.mxu0 %v6964
    %7031 = vmatprep.subr.bf16.mxu0 0
    %7032 = vmatpush1.bf16.msra.mxu0 %v6965
    %7033 = vmatprep.subr.bf16.mxu0 0
    %7034 = vmatpush1.bf16.msra.mxu0 %v6966
    %7035 = vmatprep.subr.bf16.mxu0 0
    %7036 = vmatpush1.bf16.msra.mxu0 %v6967
    %7037 = vmatprep.subr.bf16.mxu0 0
    %7038 = vmatpush1.bf16.msra.mxu0 %v6968
    %7039 = vmatprep.subr.bf16.mxu0 0
    %7040 = vmatpush1.bf16.msra.mxu0 %v6969
    %7041 = vmatprep.subr.bf16.mxu0 0
    %7042 = vmatpush1.bf16.msra.mxu0 %v6970
    %7043 = vmatprep.subr.bf16.mxu0 0
    %7044 = vmatpush1.bf16.msra.mxu0 %v6971
    %7045 = vmatprep.subr.bf16.mxu0 0
    %7046 = vmatpush1.bf16.msra.mxu0 %v6972
    %7047 = vmatprep.subr.bf16.mxu0 0
    %7048 = vmatpush1.bf16.msra.mxu0 %v6973
    %7049 = vmatprep.subr.bf16.mxu0 0
    %7050 = vmatpush1.bf16.msra.mxu0 %v6974
    %7051 = vmatprep.subr.bf16.mxu0 0
    %7052 = vmatpush1.bf16.msra.mxu0 %v6975
    %7053 = vmatprep.subr.bf16.mxu0 0
    %7054 = vmatpush1.bf16.msra.mxu0 %v6976
    %7055 = vmatprep.subr.bf16.mxu0 0
    %7056 = vmatpush1.bf16.msra.mxu0 %v6977
    %7057 = vmatprep.subr.bf16.mxu0 0
    %7058 = vmatpush1.bf16.msra.mxu0 %v6978
    %7059 = vmatprep.mubr.bf16.mxu0 %v5721
    %7060 = vmatmul.mubr.bf16.gmra.mrb[0].mxu0 %v5720
    %v7061 = vpop.f32.mrb[0].mxu0
    %v7062 = vadd.f32 %v6833, %v7061
    %v7063 = vpop.f32.mrb[0].mxu0
    %v7064 = vpop.f32.mrb[0].mxu0
    %v7065 = vpop.f32.mrb[0].mxu0
    %7066 = vdwg.mxu0
    %7067 = vmatprep.subr.bf16.mxu0 0
    %7068 = vmatpush1.bf16.msra.mxu0 %v6979
    %7069 = vmatprep.subr.bf16.mxu0 0
    %7070 = vmatpush1.bf16.msra.mxu0 %v6980
    %7071 = vmatprep.subr.bf16.mxu0 0
    %7072 = vmatpush1.bf16.msra.mxu0 %v6981
    %7073 = vmatprep.subr.bf16.mxu0 0
    %7074 = vmatpush1.bf16.msra.mxu0 %v6982
    %7075 = vmatprep.subr.bf16.mxu0 0
    %7076 = vmatpush1.bf16.msra.mxu0 %v6983
    %7077 = vmatprep.subr.bf16.mxu0 0
    %7078 = vmatpush1.bf16.msra.mxu0 %v6984
    %7079 = vmatprep.subr.bf16.mxu0 0
    %7080 = vmatpush1.bf16.msra.mxu0 %v6985
    %7081 = vmatprep.subr.bf16.mxu0 0
    %7082 = vmatpush1.bf16.msra.mxu0 %v6986
    %7083 = vmatprep.subr.bf16.mxu0 0
    %7084 = vmatpush1.bf16.msra.mxu0 %v6987
    %7085 = vmatprep.subr.bf16.mxu0 0
    %7086 = vmatpush1.bf16.msra.mxu0 %v6988
    %7087 = vmatprep.subr.bf16.mxu0 0
    %7088 = vmatpush1.bf16.msra.mxu0 %v6989
    %7089 = vmatprep.subr.bf16.mxu0 0
    %7090 = vmatpush1.bf16.msra.mxu0 %v6990
    %7091 = vmatprep.subr.bf16.mxu0 0
    %7092 = vmatpush1.bf16.msra.mxu0 %v6991
    %7093 = vmatprep.subr.bf16.mxu0 0
    %7094 = vmatpush1.bf16.msra.mxu0 %v6992
    %7095 = vmatprep.subr.bf16.mxu0 0
    %7096 = vmatpush1.bf16.msra.mxu0 %v6993
    %7097 = vmatprep.subr.bf16.mxu0 0
    %7098 = vmatpush1.bf16.msra.mxu0 %v6994
    %7099 = vmatprep.mubr.bf16.mxu0 %v5723
    %7100 = vmatmul.mubr.bf16.gmra.mrb[0].mxu0 %v5722
    %v7101 = vpop.f32.mrb[0].mxu0
    %v7102 = vadd.f32 %v7062, %v7101
    %v7103 = vpop.f32.mrb[0].mxu0
    %v7104 = vpop.f32.mrb[0].mxu0
    %v7105 = vpop.f32.mrb[0].mxu0
    %7106 = vdwg.mxu0
    %7107 = vst [vmem:[%s9 + $0x6] sm:$0x3] %v7102
    %v7108 = vld [vmem:[#allocation4 + $0x10] sm:$0xf]
    %v7109 = vld [vmem:[#allocation4 + $0x3c] sm:$0xf]
    %v7110 = vld [vmem:[#allocation4 + $0x68] sm:$0xf]
    %v7111 = vld [vmem:[#allocation4 + $0x94] sm:$0xf]
    %v7112 = vld [vmem:[#allocation4 + $0xc0] sm:$0xf]
    %v7113 = vld [vmem:[#allocation4 + $0xec] sm:$0xf]
    %v7114 = vld [vmem:[#allocation4 + $0x118] sm:$0xf]
    %v7115 = vld [vmem:[#allocation4 + $0x144] sm:$0xf]
    %v7116 = vld [vmem:[#allocation4 + $0x170] sm:$0xf]
    %v7117 = vld [vmem:[#allocation4 + $0x19c] sm:$0xf]
    %v7118 = vld [vmem:[#allocation4 + $0x1c8] sm:$0xf]
    %v7119 = vld [vmem:[#allocation4 + $0x1f4] sm:$0xf]
    %v7120 = vld [vmem:[#allocation4 + $0x220] sm:$0xf]
    %v7121 = vld [vmem:[#allocation4 + $0x24c] sm:$0xf]
    %v7122 = vld [vmem:[#allocation4 + $0x278] sm:$0xf]
    %v7123 = vld [vmem:[#allocation4 + $0x2a4] sm:$0xf]
    %v7124 = vld [vmem:[#allocation4 + $0x2d0] sm:$0xf]
    %v7125 = vld [vmem:[#allocation4 + $0x2fc] sm:$0xf]
    %v7126 = vld [vmem:[#allocation4 + $0x328] sm:$0xf]
    %v7127 = vld [vmem:[#allocation4 + $0x354] sm:$0xf]
    %v7128 = vld [vmem:[#allocation4 + $0x380] sm:$0xf]
    %v7129 = vld [vmem:[#allocation4 + $0x3ac] sm:$0xf]
    %v7130 = vld [vmem:[#allocation4 + $0x3d8] sm:$0xf]
    %v7131 = vld [vmem:[#allocation4 + $0x404] sm:$0xf]
    %v7132 = vld [vmem:[#allocation4 + $0x430] sm:$0xf]
    %v7133 = vld [vmem:[#allocation4 + $0x45c] sm:$0xf]
    %v7134 = vld [vmem:[#allocation4 + $0x488] sm:$0xf]
    %v7135 = vld [vmem:[#allocation4 + $0x4b4] sm:$0xf]
    %v7136 = vld [vmem:[#allocation4 + $0x4e0] sm:$0xf]
    %v7137 = vld [vmem:[#allocation4 + $0x50c] sm:$0xf]
    %v7138 = vld [vmem:[#allocation4 + $0x538] sm:$0xf]
    %v7139 = vld [vmem:[#allocation4 + $0x564] sm:$0xf]
    %v7140 = vld [vmem:[#allocation4 + $0x590] sm:$0xf]
    %v7141 = vld [vmem:[#allocation4 + $0x5bc] sm:$0xf]
    %v7142 = vld [vmem:[#allocation4 + $0x5e8] sm:$0xf]
    %v7143 = vld [vmem:[#allocation4 + $0x614] sm:$0xf]
    %v7144 = vld [vmem:[#allocation4 + $0x640] sm:$0xf]
    %v7145 = vld [vmem:[#allocation4 + $0x66c] sm:$0xf]
    %v7146 = vld [vmem:[#allocation4 + $0x698] sm:$0xf]
    %v7147 = vld [vmem:[#allocation4 + $0x6c4] sm:$0xf]
    %v7148 = vld [vmem:[#allocation4 + $0x6f0] sm:$0xf]
    %v7149 = vld [vmem:[#allocation4 + $0x71c] sm:$0xf]
    %v7150 = vld [vmem:[#allocation4 + $0x748] sm:$0xf]
    %v7151 = vld [vmem:[#allocation4 + $0x774] sm:$0xf]
    %v7152 = vld [vmem:[#allocation4 + $0x7a0] sm:$0xf]
    %v7153 = vld [vmem:[#allocation4 + $0x7cc] sm:$0xf]
    %v7154 = vld [vmem:[#allocation4 + $0x7f8] sm:$0xf]
    %v7155 = vld [vmem:[#allocation4 + $0x824] sm:$0xf]
    %v7156 = vld [vmem:[#allocation4 + $0x850] sm:$0xf]
    %v7157 = vld [vmem:[#allocation4 + $0x87c] sm:$0xf]
    %v7158 = vld [vmem:[#allocation4 + $0x8a8] sm:$0xf]
    %v7159 = vld [vmem:[#allocation4 + $0x8d4] sm:$0xf]
    %v7160 = vld [vmem:[#allocation4 + $0x900] sm:$0xf]
    %v7161 = vld [vmem:[#allocation4 + $0x92c] sm:$0xf]
    %v7162 = vld [vmem:[#allocation4 + $0x958] sm:$0xf]
    %v7163 = vld [vmem:[#allocation4 + $0x984] sm:$0xf]
    %v7164 = vld [vmem:[#allocation4 + $0x9b0] sm:$0xf]
    %v7165 = vld [vmem:[#allocation4 + $0x9dc] sm:$0xf]
    %v7166 = vld [vmem:[#allocation4 + $0xa08] sm:$0xf]
    %v7167 = vld [vmem:[#allocation4 + $0xa34] sm:$0xf]
    %v7168 = vld [vmem:[#allocation4 + $0xa60] sm:$0xf]
    %v7169 = vld [vmem:[#allocation4 + $0xa8c] sm:$0xf]
    %v7170 = vld [vmem:[#allocation4 + $0xab8] sm:$0xf]
    %v7171 = vld [vmem:[#allocation4 + $0xae4] sm:$0xf]
    %v7172 = vld [vmem:[%s8 + $0x4] sm:$0x1]
    %v7174 = vlaneseq
    %v7175 = vshrl.u32 %v7174, 7
    %v7176 = vsub.s32 0, %v7175
    %v7177 = vrot.slane %v7172, %v7176
    %v7243 = vunpack.c.l.b16 %v7108
    %v7244 = vunpack.c.l.b16 %v7109
    %v7245 = vunpack.c.l.b16 %v7110
    %v7246 = vunpack.c.l.b16 %v7111
    %v7247 = vunpack.c.l.b16 %v7112
    %v7248 = vunpack.c.l.b16 %v7113
    %v7249 = vunpack.c.l.b16 %v7114
    %v7250 = vunpack.c.l.b16 %v7115
    %v7251 = vunpack.c.l.b16 %v7116
    %v7252 = vunpack.c.l.b16 %v7117
    %v7253 = vunpack.c.l.b16 %v7118
    %v7254 = vunpack.c.l.b16 %v7119
    %v7255 = vunpack.c.l.b16 %v7120
    %v7256 = vunpack.c.l.b16 %v7121
    %v7257 = vunpack.c.l.b16 %v7122
    %v7258 = vunpack.c.l.b16 %v7123
    %v7259 = vunpack.c.l.b16 %v7124
    %v7260 = vunpack.c.l.b16 %v7125
    %v7261 = vunpack.c.l.b16 %v7126
    %v7262 = vunpack.c.l.b16 %v7127
    %v7263 = vunpack.c.l.b16 %v7128
    %v7264 = vunpack.c.l.b16 %v7129
    %v7265 = vunpack.c.l.b16 %v7130
    %v7266 = vunpack.c.l.b16 %v7131
    %v7267 = vunpack.c.l.b16 %v7132
    %v7268 = vunpack.c.l.b16 %v7133
    %v7269 = vunpack.c.l.b16 %v7134
    %v7270 = vunpack.c.l.b16 %v7135
    %v7271 = vunpack.c.l.b16 %v7136
    %v7272 = vunpack.c.l.b16 %v7137
    %v7273 = vunpack.c.l.b16 %v7138
    %v7274 = vunpack.c.l.b16 %v7139
    %v7275 = vunpack.c.l.b16 %v7140
    %v7276 = vunpack.c.l.b16 %v7141
    %v7277 = vunpack.c.l.b16 %v7142
    %v7278 = vunpack.c.l.b16 %v7143
    %v7279 = vunpack.c.l.b16 %v7144
    %v7280 = vunpack.c.l.b16 %v7145
    %v7281 = vunpack.c.l.b16 %v7146
    %v7282 = vunpack.c.l.b16 %v7147
    %v7283 = vunpack.c.l.b16 %v7148
    %v7284 = vunpack.c.l.b16 %v7149
    %v7285 = vunpack.c.l.b16 %v7150
    %v7286 = vunpack.c.l.b16 %v7151
    %v7287 = vunpack.c.l.b16 %v7152
    %v7288 = vunpack.c.l.b16 %v7153
    %v7289 = vunpack.c.l.b16 %v7154
    %v7290 = vunpack.c.l.b16 %v7155
    %v7291 = vunpack.c.l.b16 %v7156
    %v7292 = vunpack.c.l.b16 %v7157
    %v7293 = vunpack.c.l.b16 %v7158
    %v7294 = vunpack.c.l.b16 %v7159
    %v7295 = vunpack.c.l.b16 %v7160
    %v7296 = vunpack.c.l.b16 %v7161
    %v7297 = vunpack.c.l.b16 %v7162
    %v7298 = vunpack.c.l.b16 %v7163
    %v7299 = vunpack.c.l.b16 %v7164
    %v7300 = vunpack.c.l.b16 %v7165
    %v7301 = vunpack.c.l.b16 %v7166
    %v7302 = vunpack.c.l.b16 %v7167
    %v7303 = vunpack.c.l.b16 %v7168
    %v7304 = vunpack.c.l.b16 %v7169
    %v7305 = vunpack.c.l.b16 %v7170
    %v7306 = vunpack.c.l.b16 %v7171
    %v7307 = vpack.c.b16 %v7244, %v7243
    %v7308 = vpack.c.b16 %v7246, %v7245
    %v7309 = vpack.c.b16 %v7248, %v7247
    %v7310 = vpack.c.b16 %v7250, %v7249
    %v7311 = vpack.c.b16 %v7252, %v7251
    %v7312 = vpack.c.b16 %v7254, %v7253
    %v7313 = vpack.c.b16 %v7256, %v7255
    %v7314 = vpack.c.b16 %v7258, %v7257
    %v7315 = vpack.c.b16 %v7260, %v7259
    %v7316 = vpack.c.b16 %v7262, %v7261
    %v7317 = vpack.c.b16 %v7264, %v7263
    %v7318 = vpack.c.b16 %v7266, %v7265
    %v7319 = vpack.c.b16 %v7268, %v7267
    %v7320 = vpack.c.b16 %v7270, %v7269
    %v7321 = vpack.c.b16 %v7272, %v7271
    %v7322 = vpack.c.b16 %v7274, %v7273
    %v7323 = vpack.c.b16 %v7276, %v7275
    %v7324 = vpack.c.b16 %v7278, %v7277
    %v7325 = vpack.c.b16 %v7280, %v7279
    %v7326 = vpack.c.b16 %v7282, %v7281
    %v7327 = vpack.c.b16 %v7284, %v7283
    %v7328 = vpack.c.b16 %v7286, %v7285
    %v7329 = vpack.c.b16 %v7288, %v7287
    %v7330 = vpack.c.b16 %v7290, %v7289
    %v7331 = vpack.c.b16 %v7292, %v7291
    %v7332 = vpack.c.b16 %v7294, %v7293
    %v7333 = vpack.c.b16 %v7296, %v7295
    %v7334 = vpack.c.b16 %v7298, %v7297
    %v7335 = vpack.c.b16 %v7300, %v7299
    %v7336 = vpack.c.b16 %v7302, %v7301
    %v7337 = vpack.c.b16 %v7304, %v7303
    %v7338 = vpack.c.b16 %v7306, %v7305
    %7371 = vmatprep.subr.bf16.mxu0 0
    %7372 = vmatpush1.bf16.msra.mxu0 %v7307
    %7373 = vmatprep.subr.bf16.mxu0 0
    %7374 = vmatpush1.bf16.msra.mxu0 %v7308
    %7375 = vmatprep.subr.bf16.mxu0 0
    %7376 = vmatpush1.bf16.msra.mxu0 %v7309
    %7377 = vmatprep.subr.bf16.mxu0 0
    %7378 = vmatpush1.bf16.msra.mxu0 %v7310
    %7379 = vmatprep.subr.bf16.mxu0 0
    %7380 = vmatpush1.bf16.msra.mxu0 %v7311
    %7381 = vmatprep.subr.bf16.mxu0 0
    %7382 = vmatpush1.bf16.msra.mxu0 %v7312
    %7383 = vmatprep.subr.bf16.mxu0 0
    %7384 = vmatpush1.bf16.msra.mxu0 %v7313
    %7385 = vmatprep.subr.bf16.mxu0 0
    %7386 = vmatpush1.bf16.msra.mxu0 %v7314
    %7387 = vmatprep.subr.bf16.mxu0 0
    %7388 = vmatpush1.bf16.msra.mxu0 %v7315
    %7389 = vmatprep.subr.bf16.mxu0 0
    %7390 = vmatpush1.bf16.msra.mxu0 %v7316
    %7391 = vmatprep.subr.bf16.mxu0 0
    %7392 = vmatpush1.bf16.msra.mxu0 %v7317
    %7393 = vmatprep.subr.bf16.mxu0 0
    %7394 = vmatpush1.bf16.msra.mxu0 %v7318
    %7395 = vmatprep.subr.bf16.mxu0 0
    %7396 = vmatpush1.bf16.msra.mxu0 %v7319
    %7397 = vmatprep.subr.bf16.mxu0 0
    %7398 = vmatpush1.bf16.msra.mxu0 %v7320
    %7399 = vmatprep.subr.bf16.mxu0 0
    %7400 = vmatpush1.bf16.msra.mxu0 %v7321
    %7401 = vmatprep.subr.bf16.mxu0 0
    %7402 = vmatpush1.bf16.msra.mxu0 %v7322
    %7403 = vmatprep.mubr.bf16.mxu0 %v5725
    %7404 = vmatmul.mubr.bf16.gmra.mrb[0].mxu0 %v5724
    %v7405 = vpop.f32.mrb[0].mxu0
    %v7406 = vadd.f32 %v7177, %v7405
    %v7407 = vpop.f32.mrb[0].mxu0
    %v7408 = vpop.f32.mrb[0].mxu0
    %v7409 = vpop.f32.mrb[0].mxu0
    %7410 = vdwg.mxu0
    %7411 = vmatprep.subr.bf16.mxu0 0
    %7412 = vmatpush1.bf16.msra.mxu0 %v7323
    %7413 = vmatprep.subr.bf16.mxu0 0
    %7414 = vmatpush1.bf16.msra.mxu0 %v7324
    %7415 = vmatprep.subr.bf16.mxu0 0
    %7416 = vmatpush1.bf16.msra.mxu0 %v7325
    %7417 = vmatprep.subr.bf16.mxu0 0
    %7418 = vmatpush1.bf16.msra.mxu0 %v7326
    %7419 = vmatprep.subr.bf16.mxu0 0
    %7420 = vmatpush1.bf16.msra.mxu0 %v7327
    %7421 = vmatprep.subr.bf16.mxu0 0
    %7422 = vmatpush1.bf16.msra.mxu0 %v7328
    %7423 = vmatprep.subr.bf16.mxu0 0
    %7424 = vmatpush1.bf16.msra.mxu0 %v7329
    %7425 = vmatprep.subr.bf16.mxu0 0
    %7426 = vmatpush1.bf16.msra.mxu0 %v7330
    %7427 = vmatprep.subr.bf16.mxu0 0
    %7428 = vmatpush1.bf16.msra.mxu0 %v7331
    %7429 = vmatprep.subr.bf16.mxu0 0
    %7430 = vmatpush1.bf16.msra.mxu0 %v7332
    %7431 = vmatprep.subr.bf16.mxu0 0
    %7432 = vmatpush1.bf16.msra.mxu0 %v7333
    %7433 = vmatprep.subr.bf16.mxu0 0
    %7434 = vmatpush1.bf16.msra.mxu0 %v7334
    %7435 = vmatprep.subr.bf16.mxu0 0
    %7436 = vmatpush1.bf16.msra.mxu0 %v7335
    %7437 = vmatprep.subr.bf16.mxu0 0
    %7438 = vmatpush1.bf16.msra.mxu0 %v7336
    %7439 = vmatprep.subr.bf16.mxu0 0
    %7440 = vmatpush1.bf16.msra.mxu0 %v7337
    %7441 = vmatprep.subr.bf16.mxu0 0
    %7442 = vmatpush1.bf16.msra.mxu0 %v7338
    %7443 = vmatprep.mubr.bf16.mxu0 %v5727
    %7444 = vmatmul.mubr.bf16.gmra.mrb[0].mxu0 %v5726
    %v7445 = vpop.f32.mrb[0].mxu0
    %v7446 = vadd.f32 %v7406, %v7445
    %v7447 = vpop.f32.mrb[0].mxu0
    %v7448 = vpop.f32.mrb[0].mxu0
    %v7449 = vpop.f32.mrb[0].mxu0
    %7450 = vdwg.mxu0
    %7451 = vst [vmem:[%s9 + $0x8] sm:$0x3] %v7446
    %v7452 = vld [vmem:[#allocation4 + $0x14] sm:$0xff]
    %v7453 = vld [vmem:[#allocation4 + $0x1c] sm:$0xff]
    %v7454 = vld [vmem:[#allocation4 + $0x24] sm:$0xff]
    %v7455 = vld [vmem:[#allocation4 + $0x40] sm:$0xff]
    %v7456 = vld [vmem:[#allocation4 + $0x48] sm:$0xff]
    %v7457 = vld [vmem:[#allocation4 + $0x50] sm:$0xff]
    %v7458 = vld [vmem:[#allocation4 + $0x6c] sm:$0xff]
    %v7459 = vld [vmem:[#allocation4 + $0x74] sm:$0xff]
    %v7460 = vld [vmem:[#allocation4 + $0x7c] sm:$0xff]
    %v7461 = vld [vmem:[#allocation4 + $0x98] sm:$0xff]
    %v7462 = vld [vmem:[#allocation4 + $0xa0] sm:$0xff]
    %v7463 = vld [vmem:[#allocation4 + $0xa8] sm:$0xff]
    %v7464 = vld [vmem:[#allocation4 + $0xc4] sm:$0xff]
    %v7465 = vld [vmem:[#allocation4 + $0xcc] sm:$0xff]
    %v7466 = vld [vmem:[#allocation4 + $0xd4] sm:$0xff]
    %v7467 = vld [vmem:[#allocation4 + $0xf0] sm:$0xff]
    %v7468 = vld [vmem:[#allocation4 + $0xf8] sm:$0xff]
    %v7469 = vld [vmem:[#allocation4 + $0x100] sm:$0xff]
    %v7470 = vld [vmem:[#allocation4 + $0x11c] sm:$0xff]
    %v7471 = vld [vmem:[#allocation4 + $0x124] sm:$0xff]
    %v7472 = vld [vmem:[#allocation4 + $0x12c] sm:$0xff]
    %v7473 = vld [vmem:[#allocation4 + $0x148] sm:$0xff]
    %v7474 = vld [vmem:[#allocation4 + $0x150] sm:$0xff]
    %v7475 = vld [vmem:[#allocation4 + $0x158] sm:$0xff]
    %v7476 = vld [vmem:[#allocation4 + $0x174] sm:$0xff]
    %v7477 = vld [vmem:[#allocation4 + $0x17c] sm:$0xff]
    %v7478 = vld [vmem:[#allocation4 + $0x184] sm:$0xff]
    %v7479 = vld [vmem:[#allocation4 + $0x1a0] sm:$0xff]
    %v7480 = vld [vmem:[#allocation4 + $0x1a8] sm:$0xff]
    %v7481 = vld [vmem:[#allocation4 + $0x1b0] sm:$0xff]
    %v7482 = vld [vmem:[#allocation4 + $0x1cc] sm:$0xff]
    %v7483 = vld [vmem:[#allocation4 + $0x1d4] sm:$0xff]
    %v7484 = vld [vmem:[#allocation4 + $0x1dc] sm:$0xff]
    %v7485 = vld [vmem:[#allocation4 + $0x1f8] sm:$0xff]
    %v7486 = vld [vmem:[#allocation4 + $0x200] sm:$0xff]
    %v7487 = vld [vmem:[#allocation4 + $0x208] sm:$0xff]
    %v7488 = vld [vmem:[#allocation4 + $0x224] sm:$0xff]
    %v7489 = vld [vmem:[#allocation4 + $0x22c] sm:$0xff]
    %v7490 = vld [vmem:[#allocation4 + $0x234] sm:$0xff]
    %v7491 = vld [vmem:[#allocation4 + $0x250] sm:$0xff]
    %v7492 = vld [vmem:[#allocation4 + $0x258] sm:$0xff]
    %v7493 = vld [vmem:[#allocation4 + $0x260] sm:$0xff]
    %v7494 = vld [vmem:[#allocation4 + $0x27c] sm:$0xff]
    %v7495 = vld [vmem:[#allocation4 + $0x284] sm:$0xff]
    %v7496 = vld [vmem:[#allocation4 + $0x28c] sm:$0xff]
    %v7497 = vld [vmem:[#allocation4 + $0x2a8] sm:$0xff]
    %v7498 = vld [vmem:[#allocation4 + $0x2b0] sm:$0xff]
    %v7499 = vld [vmem:[#allocation4 + $0x2b8] sm:$0xff]
    %v7500 = vld [vmem:[#allocation4 + $0x2d4] sm:$0xff]
    %v7501 = vld [vmem:[#allocation4 + $0x2dc] sm:$0xff]
    %v7502 = vld [vmem:[#allocation4 + $0x2e4] sm:$0xff]
    %v7503 = vld [vmem:[#allocation4 + $0x300] sm:$0xff]
    %v7504 = vld [vmem:[#allocation4 + $0x308] sm:$0xff]
    %v7505 = vld [vmem:[#allocation4 + $0x310] sm:$0xff]
    %v7506 = vld [vmem:[#allocation4 + $0x32c] sm:$0xff]
    %v7507 = vld [vmem:[#allocation4 + $0x334] sm:$0xff]
    %v7508 = vld [vmem:[#allocation4 + $0x33c] sm:$0xff]
    %v7509 = vld [vmem:[#allocation4 + $0x358] sm:$0xff]
    %v7510 = vld [vmem:[#allocation4 + $0x360] sm:$0xff]
    %v7511 = vld [vmem:[#allocation4 + $0x368] sm:$0xff]
    %v7512 = vld [vmem:[#allocation4 + $0x384] sm:$0xff]
    %v7513 = vld [vmem:[#allocation4 + $0x38c] sm:$0xff]
    %v7514 = vld [vmem:[#allocation4 + $0x394] sm:$0xff]
    %v7515 = vld [vmem:[#allocation4 + $0x3b0] sm:$0xff]
    %v7516 = vld [vmem:[#allocation4 + $0x3b8] sm:$0xff]
    %v7517 = vld [vmem:[#allocation4 + $0x3c0] sm:$0xff]
    %v7518 = vld [vmem:[#allocation4 + $0x3dc] sm:$0xff]
    %v7519 = vld [vmem:[#allocation4 + $0x3e4] sm:$0xff]
    %v7520 = vld [vmem:[#allocation4 + $0x3ec] sm:$0xff]
    %v7521 = vld [vmem:[#allocation4 + $0x408] sm:$0xff]
    %v7522 = vld [vmem:[#allocation4 + $0x410] sm:$0xff]
    %v7523 = vld [vmem:[#allocation4 + $0x418] sm:$0xff]
    %v7524 = vld [vmem:[#allocation4 + $0x434] sm:$0xff]
    %v7525 = vld [vmem:[#allocation4 + $0x43c] sm:$0xff]
    %v7526 = vld [vmem:[#allocation4 + $0x444] sm:$0xff]
    %v7527 = vld [vmem:[#allocation4 + $0x460] sm:$0xff]
    %v7528 = vld [vmem:[#allocation4 + $0x468] sm:$0xff]
    %v7529 = vld [vmem:[#allocation4 + $0x470] sm:$0xff]
    %v7530 = vld [vmem:[#allocation4 + $0x48c] sm:$0xff]
    %v7531 = vld [vmem:[#allocation4 + $0x494] sm:$0xff]
    %v7532 = vld [vmem:[#allocation4 + $0x49c] sm:$0xff]
    %v7533 = vld [vmem:[#allocation4 + $0x4b8] sm:$0xff]
    %v7534 = vld [vmem:[#allocation4 + $0x4c0] sm:$0xff]
    %v7535 = vld [vmem:[#allocation4 + $0x4c8] sm:$0xff]
    %v7536 = vld [vmem:[#allocation4 + $0x4e4] sm:$0xff]
    %v7537 = vld [vmem:[#allocation4 + $0x4ec] sm:$0xff]
    %v7538 = vld [vmem:[#allocation4 + $0x4f4] sm:$0xff]
    %v7539 = vld [vmem:[#allocation4 + $0x510] sm:$0xff]
    %v7540 = vld [vmem:[#allocation4 + $0x518] sm:$0xff]
    %v7541 = vld [vmem:[#allocation4 + $0x520] sm:$0xff]
    %v7542 = vld [vmem:[#allocation4 + $0x53c] sm:$0xff]
    %v7543 = vld [vmem:[#allocation4 + $0x544] sm:$0xff]
    %v7544 = vld [vmem:[#allocation4 + $0x54c] sm:$0xff]
    %v7545 = vld [vmem:[#allocation4 + $0x568] sm:$0xff]
    %v7546 = vld [vmem:[#allocation4 + $0x570] sm:$0xff]
    %v7547 = vld [vmem:[#allocation4 + $0x578] sm:$0xff]
    %v7548 = vld [vmem:[#allocation4 + $0x594] sm:$0xff]
    %v7549 = vld [vmem:[#allocation4 + $0x59c] sm:$0xff]
    %v7550 = vld [vmem:[#allocation4 + $0x5a4] sm:$0xff]
    %v7551 = vld [vmem:[#allocation4 + $0x5c0] sm:$0xff]
    %v7552 = vld [vmem:[#allocation4 + $0x5c8] sm:$0xff]
    %v7553 = vld [vmem:[#allocation4 + $0x5d0] sm:$0xff]
    %v7554 = vld [vmem:[#allocation4 + $0x5ec] sm:$0xff]
    %v7555 = vld [vmem:[#allocation4 + $0x5f4] sm:$0xff]
    %v7556 = vld [vmem:[#allocation4 + $0x5fc] sm:$0xff]
    %v7557 = vld [vmem:[#allocation4 + $0x618] sm:$0xff]
    %v7558 = vld [vmem:[#allocation4 + $0x620] sm:$0xff]
    %v7559 = vld [vmem:[#allocation4 + $0x628] sm:$0xff]
    %v7560 = vld [vmem:[#allocation4 + $0x644] sm:$0xff]
    %v7561 = vld [vmem:[#allocation4 + $0x64c] sm:$0xff]
    %v7562 = vld [vmem:[#allocation4 + $0x654] sm:$0xff]
    %v7563 = vld [vmem:[#allocation4 + $0x670] sm:$0xff]
    %v7564 = vld [vmem:[#allocation4 + $0x678] sm:$0xff]
    %v7565 = vld [vmem:[#allocation4 + $0x680] sm:$0xff]
    %v7566 = vld [vmem:[#allocation4 + $0x69c] sm:$0xff]
    %v7567 = vld [vmem:[#allocation4 + $0x6a4] sm:$0xff]
    %v7568 = vld [vmem:[#allocation4 + $0x6ac] sm:$0xff]
    %v7569 = vld [vmem:[#allocation4 + $0x6c8] sm:$0xff]
    %v7570 = vld [vmem:[#allocation4 + $0x6d0] sm:$0xff]
    %v7571 = vld [vmem:[#allocation4 + $0x6d8] sm:$0xff]
    %v7572 = vld [vmem:[#allocation4 + $0x6f4] sm:$0xff]
    %v7573 = vld [vmem:[#allocation4 + $0x6fc] sm:$0xff]
    %v7574 = vld [vmem:[#allocation4 + $0x704] sm:$0xff]
    %v7575 = vld [vmem:[#allocation4 + $0x720] sm:$0xff]
    %v7576 = vld [vmem:[#allocation4 + $0x728] sm:$0xff]
    %v7577 = vld [vmem:[#allocation4 + $0x730] sm:$0xff]
    %v7578 = vld [vmem:[#allocation4 + $0x74c] sm:$0xff]
    %v7579 = vld [vmem:[#allocation4 + $0x754] sm:$0xff]
    %v7580 = vld [vmem:[#allocation4 + $0x75c] sm:$0xff]
    %v7581 = vld [vmem:[#allocation4 + $0x778] sm:$0xff]
    %v7582 = vld [vmem:[#allocation4 + $0x780] sm:$0xff]
    %v7583 = vld [vmem:[#allocation4 + $0x788] sm:$0xff]
    %v7584 = vld [vmem:[#allocation4 + $0x7a4] sm:$0xff]
    %v7585 = vld [vmem:[#allocation4 + $0x7ac] sm:$0xff]
    %v7586 = vld [vmem:[#allocation4 + $0x7b4] sm:$0xff]
    %v7587 = vld [vmem:[#allocation4 + $0x7d0] sm:$0xff]
    %v7588 = vld [vmem:[#allocation4 + $0x7d8] sm:$0xff]
    %v7589 = vld [vmem:[#allocation4 + $0x7e0] sm:$0xff]
    %v7590 = vld [vmem:[#allocation4 + $0x7fc] sm:$0xff]
    %v7591 = vld [vmem:[#allocation4 + $0x804] sm:$0xff]
    %v7592 = vld [vmem:[#allocation4 + $0x80c] sm:$0xff]
    %v7593 = vld [vmem:[#allocation4 + $0x828] sm:$0xff]
    %v7594 = vld [vmem:[#allocation4 + $0x830] sm:$0xff]
    %v7595 = vld [vmem:[#allocation4 + $0x838] sm:$0xff]
    %v7596 = vld [vmem:[#allocation4 + $0x854] sm:$0xff]
    %v7597 = vld [vmem:[#allocation4 + $0x85c] sm:$0xff]
    %v7598 = vld [vmem:[#allocation4 + $0x864] sm:$0xff]
    %v7599 = vld [vmem:[#allocation4 + $0x880] sm:$0xff]
    %v7600 = vld [vmem:[#allocation4 + $0x888] sm:$0xff]
    %v7601 = vld [vmem:[#allocation4 + $0x890] sm:$0xff]
    %v7602 = vld [vmem:[#allocation4 + $0x8ac] sm:$0xff]
    %v7603 = vld [vmem:[#allocation4 + $0x8b4] sm:$0xff]
    %v7604 = vld [vmem:[#allocation4 + $0x8bc] sm:$0xff]
    %v7605 = vld [vmem:[#allocation4 + $0x8d8] sm:$0xff]
    %v7606 = vld [vmem:[#allocation4 + $0x8e0] sm:$0xff]
    %v7607 = vld [vmem:[#allocation4 + $0x8e8] sm:$0xff]
    %v7608 = vld [vmem:[#allocation4 + $0x904] sm:$0xff]
    %v7609 = vld [vmem:[#allocation4 + $0x90c] sm:$0xff]
    %v7610 = vld [vmem:[#allocation4 + $0x914] sm:$0xff]
    %v7611 = vld [vmem:[#allocation4 + $0x930] sm:$0xff]
    %v7612 = vld [vmem:[#allocation4 + $0x938] sm:$0xff]
    %v7613 = vld [vmem:[#allocation4 + $0x940] sm:$0xff]
    %v7614 = vld [vmem:[#allocation4 + $0x95c] sm:$0xff]
    %v7615 = vld [vmem:[#allocation4 + $0x964] sm:$0xff]
    %v7616 = vld [vmem:[#allocation4 + $0x96c] sm:$0xff]
    %v7617 = vld [vmem:[#allocation4 + $0x988] sm:$0xff]
    %v7618 = vld [vmem:[#allocation4 + $0x990] sm:$0xff]
    %v7619 = vld [vmem:[#allocation4 + $0x998] sm:$0xff]
    %v7620 = vld [vmem:[#allocation4 + $0x9b4] sm:$0xff]
    %v7621 = vld [vmem:[#allocation4 + $0x9bc] sm:$0xff]
    %v7622 = vld [vmem:[#allocation4 + $0x9c4] sm:$0xff]
    %v7623 = vld [vmem:[#allocation4 + $0x9e0] sm:$0xff]
    %v7624 = vld [vmem:[#allocation4 + $0x9e8] sm:$0xff]
    %v7625 = vld [vmem:[#allocation4 + $0x9f0] sm:$0xff]
    %v7626 = vld [vmem:[#allocation4 + $0xa0c] sm:$0xff]
    %v7627 = vld [vmem:[#allocation4 + $0xa14] sm:$0xff]
    %v7628 = vld [vmem:[#allocation4 + $0xa1c] sm:$0xff]
    %v7629 = vld [vmem:[#allocation4 + $0xa38] sm:$0xff]
    %v7630 = vld [vmem:[#allocation4 + $0xa40] sm:$0xff]
    %v7631 = vld [vmem:[#allocation4 + $0xa48] sm:$0xff]
    %v7632 = vld [vmem:[#allocation4 + $0xa64] sm:$0xff]
    %v7633 = vld [vmem:[#allocation4 + $0xa6c] sm:$0xff]
    %v7634 = vld [vmem:[#allocation4 + $0xa74] sm:$0xff]
    %v7635 = vld [vmem:[#allocation4 + $0xa90] sm:$0xff]
    %v7636 = vld [vmem:[#allocation4 + $0xa98] sm:$0xff]
    %v7637 = vld [vmem:[#allocation4 + $0xaa0] sm:$0xff]
    %v7638 = vld [vmem:[#allocation4 + $0xabc] sm:$0xff]
    %v7639 = vld [vmem:[#allocation4 + $0xac4] sm:$0xff]
    %v7640 = vld [vmem:[#allocation4 + $0xacc] sm:$0xff]
    %v7641 = vld [vmem:[#allocation4 + $0xae8] sm:$0xff]
    %v7642 = vld [vmem:[#allocation4 + $0xaf0] sm:$0xff]
    %v7643 = vld [vmem:[#allocation4 + $0xaf8] sm:$0xff]
    %v7644 = vld [vmem:[%s8 + $0x5] sm:$0x3f]
    %v7646 = vlaneseq
    %v7647 = vshrl.u32 %v7646, 7
    %v7648 = vsub.s32 0, %v7647
    %v7649 = vrot.slane %v7644, %v7648
    %v7650 = vlaneseq
    %v7651 = vshrl.u32 %v7650, 7
    %v7652 = vsub.s32 1, %v7651
    %v7653 = vrot.slane %v7644, %v7652
    %v7654 = vlaneseq
    %v7655 = vshrl.u32 %v7654, 7
    %v7656 = vsub.s32 2, %v7655
    %v7657 = vrot.slane %v7644, %v7656
    %v7658 = vlaneseq
    %v7659 = vshrl.u32 %v7658, 7
    %v7660 = vsub.s32 3, %v7659
    %v7661 = vrot.slane %v7644, %v7660
    %v7662 = vlaneseq
    %v7663 = vshrl.u32 %v7662, 7
    %v7664 = vsub.s32 4, %v7663
    %v7665 = vrot.slane %v7644, %v7664
    %v7666 = vlaneseq
    %v7667 = vshrl.u32 %v7666, 7
    %v7668 = vsub.s32 5, %v7667
    %v7669 = vrot.slane %v7644, %v7668
    %v7868 = vunpack.c.l.b16 %v7452
    %v7869 = vunpack.c.h.b16 %v7452
    %v7870 = vunpack.c.l.b16 %v7453
    %v7871 = vunpack.c.h.b16 %v7453
    %v7872 = vunpack.c.l.b16 %v7454
    %v7873 = vunpack.c.h.b16 %v7454
    %v7874 = vunpack.c.l.b16 %v7455
    %v7875 = vunpack.c.h.b16 %v7455
    %v7876 = vunpack.c.l.b16 %v7456
    %v7877 = vunpack.c.h.b16 %v7456
    %v7878 = vunpack.c.l.b16 %v7457
    %v7879 = vunpack.c.h.b16 %v7457
    %v7880 = vunpack.c.l.b16 %v7458
    %v7881 = vunpack.c.h.b16 %v7458
    %v7882 = vunpack.c.l.b16 %v7459
    %v7883 = vunpack.c.h.b16 %v7459
    %v7884 = vunpack.c.l.b16 %v7460
    %v7885 = vunpack.c.h.b16 %v7460
    %v7886 = vunpack.c.l.b16 %v7461
    %v7887 = vunpack.c.h.b16 %v7461
    %v7888 = vunpack.c.l.b16 %v7462
    %v7889 = vunpack.c.h.b16 %v7462
    %v7890 = vunpack.c.l.b16 %v7463
    %v7891 = vunpack.c.h.b16 %v7463
    %v7892 = vunpack.c.l.b16 %v7464
    %v7893 = vunpack.c.h.b16 %v7464
    %v7894 = vunpack.c.l.b16 %v7465
    %v7895 = vunpack.c.h.b16 %v7465
    %v7896 = vunpack.c.l.b16 %v7466
    %v7897 = vunpack.c.h.b16 %v7466
    %v7898 = vunpack.c.l.b16 %v7467
    %v7899 = vunpack.c.h.b16 %v7467
    %v7900 = vunpack.c.l.b16 %v7468
    %v7901 = vunpack.c.h.b16 %v7468
    %v7902 = vunpack.c.l.b16 %v7469
    %v7903 = vunpack.c.h.b16 %v7469
    %v7904 = vunpack.c.l.b16 %v7470
    %v7905 = vunpack.c.h.b16 %v7470
    %v7906 = vunpack.c.l.b16 %v7471
    %v7907 = vunpack.c.h.b16 %v7471
    %v7908 = vunpack.c.l.b16 %v7472
    %v7909 = vunpack.c.h.b16 %v7472
    %v7910 = vunpack.c.l.b16 %v7473
    %v7911 = vunpack.c.h.b16 %v7473
    %v7912 = vunpack.c.l.b16 %v7474
    %v7913 = vunpack.c.h.b16 %v7474
    %v7914 = vunpack.c.l.b16 %v7475
    %v7915 = vunpack.c.h.b16 %v7475
    %v7916 = vunpack.c.l.b16 %v7476
    %v7917 = vunpack.c.h.b16 %v7476
    %v7918 = vunpack.c.l.b16 %v7477
    %v7919 = vunpack.c.h.b16 %v7477
    %v7920 = vunpack.c.l.b16 %v7478
    %v7921 = vunpack.c.h.b16 %v7478
    %v7922 = vunpack.c.l.b16 %v7479
    %v7923 = vunpack.c.h.b16 %v7479
    %v7924 = vunpack.c.l.b16 %v7480
    %v7925 = vunpack.c.h.b16 %v7480
    %v7926 = vunpack.c.l.b16 %v7481
    %v7927 = vunpack.c.h.b16 %v7481
    %v7928 = vunpack.c.l.b16 %v7482
    %v7929 = vunpack.c.h.b16 %v7482
    %v7930 = vunpack.c.l.b16 %v7483
    %v7931 = vunpack.c.h.b16 %v7483
    %v7932 = vunpack.c.l.b16 %v7484
    %v7933 = vunpack.c.h.b16 %v7484
    %v7934 = vunpack.c.l.b16 %v7485
    %v7935 = vunpack.c.h.b16 %v7485
    %v7936 = vunpack.c.l.b16 %v7486
    %v7937 = vunpack.c.h.b16 %v7486
    %v7938 = vunpack.c.l.b16 %v7487
    %v7939 = vunpack.c.h.b16 %v7487
    %v7940 = vunpack.c.l.b16 %v7488
    %v7941 = vunpack.c.h.b16 %v7488
    %v7942 = vunpack.c.l.b16 %v7489
    %v7943 = vunpack.c.h.b16 %v7489
    %v7944 = vunpack.c.l.b16 %v7490
    %v7945 = vunpack.c.h.b16 %v7490
    %v7946 = vunpack.c.l.b16 %v7491
    %v7947 = vunpack.c.h.b16 %v7491
    %v7948 = vunpack.c.l.b16 %v7492
    %v7949 = vunpack.c.h.b16 %v7492
    %v7950 = vunpack.c.l.b16 %v7493
    %v7951 = vunpack.c.h.b16 %v7493
    %v7952 = vunpack.c.l.b16 %v7494
    %v7953 = vunpack.c.h.b16 %v7494
    %v7954 = vunpack.c.l.b16 %v7495
    %v7955 = vunpack.c.h.b16 %v7495
    %v7956 = vunpack.c.l.b16 %v7496
    %v7957 = vunpack.c.h.b16 %v7496
    %v7958 = vunpack.c.l.b16 %v7497
    %v7959 = vunpack.c.h.b16 %v7497
    %v7960 = vunpack.c.l.b16 %v7498
    %v7961 = vunpack.c.h.b16 %v7498
    %v7962 = vunpack.c.l.b16 %v7499
    %v7963 = vunpack.c.h.b16 %v7499
    %v7964 = vunpack.c.l.b16 %v7500
    %v7965 = vunpack.c.h.b16 %v7500
    %v7966 = vunpack.c.l.b16 %v7501
    %v7967 = vunpack.c.h.b16 %v7501
    %v7968 = vunpack.c.l.b16 %v7502
    %v7969 = vunpack.c.h.b16 %v7502
    %v7970 = vunpack.c.l.b16 %v7503
    %v7971 = vunpack.c.h.b16 %v7503
    %v7972 = vunpack.c.l.b16 %v7504
    %v7973 = vunpack.c.h.b16 %v7504
    %v7974 = vunpack.c.l.b16 %v7505
    %v7975 = vunpack.c.h.b16 %v7505
    %v7976 = vunpack.c.l.b16 %v7506
    %v7977 = vunpack.c.h.b16 %v7506
    %v7978 = vunpack.c.l.b16 %v7507
    %v7979 = vunpack.c.h.b16 %v7507
    %v7980 = vunpack.c.l.b16 %v7508
    %v7981 = vunpack.c.h.b16 %v7508
    %v7982 = vunpack.c.l.b16 %v7509
    %v7983 = vunpack.c.h.b16 %v7509
    %v7984 = vunpack.c.l.b16 %v7510
    %v7985 = vunpack.c.h.b16 %v7510
    %v7986 = vunpack.c.l.b16 %v7511
    %v7987 = vunpack.c.h.b16 %v7511
    %v7988 = vunpack.c.l.b16 %v7512
    %v7989 = vunpack.c.h.b16 %v7512
    %v7990 = vunpack.c.l.b16 %v7513
    %v7991 = vunpack.c.h.b16 %v7513
    %v7992 = vunpack.c.l.b16 %v7514
    %v7993 = vunpack.c.h.b16 %v7514
    %v7994 = vunpack.c.l.b16 %v7515
    %v7995 = vunpack.c.h.b16 %v7515
    %v7996 = vunpack.c.l.b16 %v7516
    %v7997 = vunpack.c.h.b16 %v7516
    %v7998 = vunpack.c.l.b16 %v7517
    %v7999 = vunpack.c.h.b16 %v7517
    %v8000 = vunpack.c.l.b16 %v7518
    %v8001 = vunpack.c.h.b16 %v7518
    %v8002 = vunpack.c.l.b16 %v7519
    %v8003 = vunpack.c.h.b16 %v7519
    %v8004 = vunpack.c.l.b16 %v7520
    %v8005 = vunpack.c.h.b16 %v7520
    %v8006 = vunpack.c.l.b16 %v7521
    %v8007 = vunpack.c.h.b16 %v7521
    %v8008 = vunpack.c.l.b16 %v7522
    %v8009 = vunpack.c.h.b16 %v7522
    %v8010 = vunpack.c.l.b16 %v7523
    %v8011 = vunpack.c.h.b16 %v7523
    %v8012 = vunpack.c.l.b16 %v7524
    %v8013 = vunpack.c.h.b16 %v7524
    %v8014 = vunpack.c.l.b16 %v7525
    %v8015 = vunpack.c.h.b16 %v7525
    %v8016 = vunpack.c.l.b16 %v7526
    %v8017 = vunpack.c.h.b16 %v7526
    %v8018 = vunpack.c.l.b16 %v7527
    %v8019 = vunpack.c.h.b16 %v7527
    %v8020 = vunpack.c.l.b16 %v7528
    %v8021 = vunpack.c.h.b16 %v7528
    %v8022 = vunpack.c.l.b16 %v7529
    %v8023 = vunpack.c.h.b16 %v7529
    %v8024 = vunpack.c.l.b16 %v7530
    %v8025 = vunpack.c.h.b16 %v7530
    %v8026 = vunpack.c.l.b16 %v7531
    %v8027 = vunpack.c.h.b16 %v7531
    %v8028 = vunpack.c.l.b16 %v7532
    %v8029 = vunpack.c.h.b16 %v7532
    %v8030 = vunpack.c.l.b16 %v7533
    %v8031 = vunpack.c.h.b16 %v7533
    %v8032 = vunpack.c.l.b16 %v7534
    %v8033 = vunpack.c.h.b16 %v7534
    %v8034 = vunpack.c.l.b16 %v7535
    %v8035 = vunpack.c.h.b16 %v7535
    %v8036 = vunpack.c.l.b16 %v7536
    %v8037 = vunpack.c.h.b16 %v7536
    %v8038 = vunpack.c.l.b16 %v7537
    %v8039 = vunpack.c.h.b16 %v7537
    %v8040 = vunpack.c.l.b16 %v7538
    %v8041 = vunpack.c.h.b16 %v7538
    %v8042 = vunpack.c.l.b16 %v7539
    %v8043 = vunpack.c.h.b16 %v7539
    %v8044 = vunpack.c.l.b16 %v7540
    %v8045 = vunpack.c.h.b16 %v7540
    %v8046 = vunpack.c.l.b16 %v7541
    %v8047 = vunpack.c.h.b16 %v7541
    %v8048 = vunpack.c.l.b16 %v7542
    %v8049 = vunpack.c.h.b16 %v7542
    %v8050 = vunpack.c.l.b16 %v7543
    %v8051 = vunpack.c.h.b16 %v7543
    %v8052 = vunpack.c.l.b16 %v7544
    %v8053 = vunpack.c.h.b16 %v7544
    %v8054 = vunpack.c.l.b16 %v7545
    %v8055 = vunpack.c.h.b16 %v7545
    %v8056 = vunpack.c.l.b16 %v7546
    %v8057 = vunpack.c.h.b16 %v7546
    %v8058 = vunpack.c.l.b16 %v7547
    %v8059 = vunpack.c.h.b16 %v7547
    %v8060 = vunpack.c.l.b16 %v7548
    %v8061 = vunpack.c.h.b16 %v7548
    %v8062 = vunpack.c.l.b16 %v7549
    %v8063 = vunpack.c.h.b16 %v7549
    %v8064 = vunpack.c.l.b16 %v7550
    %v8065 = vunpack.c.h.b16 %v7550
    %v8066 = vunpack.c.l.b16 %v7551
    %v8067 = vunpack.c.h.b16 %v7551
    %v8068 = vunpack.c.l.b16 %v7552
    %v8069 = vunpack.c.h.b16 %v7552
    %v8070 = vunpack.c.l.b16 %v7553
    %v8071 = vunpack.c.h.b16 %v7553
    %v8072 = vunpack.c.l.b16 %v7554
    %v8073 = vunpack.c.h.b16 %v7554
    %v8074 = vunpack.c.l.b16 %v7555
    %v8075 = vunpack.c.h.b16 %v7555
    %v8076 = vunpack.c.l.b16 %v7556
    %v8077 = vunpack.c.h.b16 %v7556
    %v8078 = vunpack.c.l.b16 %v7557
    %v8079 = vunpack.c.h.b16 %v7557
    %v8080 = vunpack.c.l.b16 %v7558
    %v8081 = vunpack.c.h.b16 %v7558
    %v8082 = vunpack.c.l.b16 %v7559
    %v8083 = vunpack.c.h.b16 %v7559
    %v8084 = vunpack.c.l.b16 %v7560
    %v8085 = vunpack.c.h.b16 %v7560
    %v8086 = vunpack.c.l.b16 %v7561
    %v8087 = vunpack.c.h.b16 %v7561
    %v8088 = vunpack.c.l.b16 %v7562
    %v8089 = vunpack.c.h.b16 %v7562
    %v8090 = vunpack.c.l.b16 %v7563
    %v8091 = vunpack.c.h.b16 %v7563
    %v8092 = vunpack.c.l.b16 %v7564
    %v8093 = vunpack.c.h.b16 %v7564
    %v8094 = vunpack.c.l.b16 %v7565
    %v8095 = vunpack.c.h.b16 %v7565
    %v8096 = vunpack.c.l.b16 %v7566
    %v8097 = vunpack.c.h.b16 %v7566
    %v8098 = vunpack.c.l.b16 %v7567
    %v8099 = vunpack.c.h.b16 %v7567
    %v8100 = vunpack.c.l.b16 %v7568
    %v8101 = vunpack.c.h.b16 %v7568
    %v8102 = vunpack.c.l.b16 %v7569
    %v8103 = vunpack.c.h.b16 %v7569
    %v8104 = vunpack.c.l.b16 %v7570
    %v8105 = vunpack.c.h.b16 %v7570
    %v8106 = vunpack.c.l.b16 %v7571
    %v8107 = vunpack.c.h.b16 %v7571
    %v8108 = vunpack.c.l.b16 %v7572
    %v8109 = vunpack.c.h.b16 %v7572
    %v8110 = vunpack.c.l.b16 %v7573
    %v8111 = vunpack.c.h.b16 %v7573
    %v8112 = vunpack.c.l.b16 %v7574
    %v8113 = vunpack.c.h.b16 %v7574
    %v8114 = vunpack.c.l.b16 %v7575
    %v8115 = vunpack.c.h.b16 %v7575
    %v8116 = vunpack.c.l.b16 %v7576
    %v8117 = vunpack.c.h.b16 %v7576
    %v8118 = vunpack.c.l.b16 %v7577
    %v8119 = vunpack.c.h.b16 %v7577
    %v8120 = vunpack.c.l.b16 %v7578
    %v8121 = vunpack.c.h.b16 %v7578
    %v8122 = vunpack.c.l.b16 %v7579
    %v8123 = vunpack.c.h.b16 %v7579
    %v8124 = vunpack.c.l.b16 %v7580
    %v8125 = vunpack.c.h.b16 %v7580
    %v8126 = vunpack.c.l.b16 %v7581
    %v8127 = vunpack.c.h.b16 %v7581
    %v8128 = vunpack.c.l.b16 %v7582
    %v8129 = vunpack.c.h.b16 %v7582
    %v8130 = vunpack.c.l.b16 %v7583
    %v8131 = vunpack.c.h.b16 %v7583
    %v8132 = vunpack.c.l.b16 %v7584
    %v8133 = vunpack.c.h.b16 %v7584
    %v8134 = vunpack.c.l.b16 %v7585
    %v8135 = vunpack.c.h.b16 %v7585
    %v8136 = vunpack.c.l.b16 %v7586
    %v8137 = vunpack.c.h.b16 %v7586
    %v8138 = vunpack.c.l.b16 %v7587
    %v8139 = vunpack.c.h.b16 %v7587
    %v8140 = vunpack.c.l.b16 %v7588
    %v8141 = vunpack.c.h.b16 %v7588
    %v8142 = vunpack.c.l.b16 %v7589
    %v8143 = vunpack.c.h.b16 %v7589
    %v8144 = vunpack.c.l.b16 %v7590
    %v8145 = vunpack.c.h.b16 %v7590
    %v8146 = vunpack.c.l.b16 %v7591
    %v8147 = vunpack.c.h.b16 %v7591
    %v8148 = vunpack.c.l.b16 %v7592
    %v8149 = vunpack.c.h.b16 %v7592
    %v8150 = vunpack.c.l.b16 %v7593
    %v8151 = vunpack.c.h.b16 %v7593
    %v8152 = vunpack.c.l.b16 %v7594
    %v8153 = vunpack.c.h.b16 %v7594
    %v8154 = vunpack.c.l.b16 %v7595
    %v8155 = vunpack.c.h.b16 %v7595
    %v8156 = vunpack.c.l.b16 %v7596
    %v8157 = vunpack.c.h.b16 %v7596
    %v8158 = vunpack.c.l.b16 %v7597
    %v8159 = vunpack.c.h.b16 %v7597
    %v8160 = vunpack.c.l.b16 %v7598
    %v8161 = vunpack.c.h.b16 %v7598
    %v8162 = vunpack.c.l.b16 %v7599
    %v8163 = vunpack.c.h.b16 %v7599
    %v8164 = vunpack.c.l.b16 %v7600
    %v8165 = vunpack.c.h.b16 %v7600
    %v8166 = vunpack.c.l.b16 %v7601
    %v8167 = vunpack.c.h.b16 %v7601
    %v8168 = vunpack.c.l.b16 %v7602
    %v8169 = vunpack.c.h.b16 %v7602
    %v8170 = vunpack.c.l.b16 %v7603
    %v8171 = vunpack.c.h.b16 %v7603
    %v8172 = vunpack.c.l.b16 %v7604
    %v8173 = vunpack.c.h.b16 %v7604
    %v8174 = vunpack.c.l.b16 %v7605
    %v8175 = vunpack.c.h.b16 %v7605
    %v8176 = vunpack.c.l.b16 %v7606
    %v8177 = vunpack.c.h.b16 %v7606
    %v8178 = vunpack.c.l.b16 %v7607
    %v8179 = vunpack.c.h.b16 %v7607
    %v8180 = vunpack.c.l.b16 %v7608
    %v8181 = vunpack.c.h.b16 %v7608
    %v8182 = vunpack.c.l.b16 %v7609
    %v8183 = vunpack.c.h.b16 %v7609
    %v8184 = vunpack.c.l.b16 %v7610
    %v8185 = vunpack.c.h.b16 %v7610
    %v8186 = vunpack.c.l.b16 %v7611
    %v8187 = vunpack.c.h.b16 %v7611
    %v8188 = vunpack.c.l.b16 %v7612
    %v8189 = vunpack.c.h.b16 %v7612
    %v8190 = vunpack.c.l.b16 %v7613
    %v8191 = vunpack.c.h.b16 %v7613
    %v8192 = vunpack.c.l.b16 %v7614
    %v8193 = vunpack.c.h.b16 %v7614
    %v8194 = vunpack.c.l.b16 %v7615
    %v8195 = vunpack.c.h.b16 %v7615
    %v8196 = vunpack.c.l.b16 %v7616
    %v8197 = vunpack.c.h.b16 %v7616
    %v8198 = vunpack.c.l.b16 %v7617
    %v8199 = vunpack.c.h.b16 %v7617
    %v8200 = vunpack.c.l.b16 %v7618
    %v8201 = vunpack.c.h.b16 %v7618
    %v8202 = vunpack.c.l.b16 %v7619
    %v8203 = vunpack.c.h.b16 %v7619
    %v8204 = vunpack.c.l.b16 %v7620
    %v8205 = vunpack.c.h.b16 %v7620
    %v8206 = vunpack.c.l.b16 %v7621
    %v8207 = vunpack.c.h.b16 %v7621
    %v8208 = vunpack.c.l.b16 %v7622
    %v8209 = vunpack.c.h.b16 %v7622
    %v8210 = vunpack.c.l.b16 %v7623
    %v8211 = vunpack.c.h.b16 %v7623
    %v8212 = vunpack.c.l.b16 %v7624
    %v8213 = vunpack.c.h.b16 %v7624
    %v8214 = vunpack.c.l.b16 %v7625
    %v8215 = vunpack.c.h.b16 %v7625
    %v8216 = vunpack.c.l.b16 %v7626
    %v8217 = vunpack.c.h.b16 %v7626
    %v8218 = vunpack.c.l.b16 %v7627
    %v8219 = vunpack.c.h.b16 %v7627
    %v8220 = vunpack.c.l.b16 %v7628
    %v8221 = vunpack.c.h.b16 %v7628
    %v8222 = vunpack.c.l.b16 %v7629
    %v8223 = vunpack.c.h.b16 %v7629
    %v8224 = vunpack.c.l.b16 %v7630
    %v8225 = vunpack.c.h.b16 %v7630
    %v8226 = vunpack.c.l.b16 %v7631
    %v8227 = vunpack.c.h.b16 %v7631
    %v8228 = vunpack.c.l.b16 %v7632
    %v8229 = vunpack.c.h.b16 %v7632
    %v8230 = vunpack.c.l.b16 %v7633
    %v8231 = vunpack.c.h.b16 %v7633
    %v8232 = vunpack.c.l.b16 %v7634
    %v8233 = vunpack.c.h.b16 %v7634
    %v8234 = vunpack.c.l.b16 %v7635
    %v8235 = vunpack.c.h.b16 %v7635
    %v8236 = vunpack.c.l.b16 %v7636
    %v8237 = vunpack.c.h.b16 %v7636
    %v8238 = vunpack.c.l.b16 %v7637
    %v8239 = vunpack.c.h.b16 %v7637
    %v8240 = vunpack.c.l.b16 %v7638
    %v8241 = vunpack.c.h.b16 %v7638
    %v8242 = vunpack.c.l.b16 %v7639
    %v8243 = vunpack.c.h.b16 %v7639
    %v8244 = vunpack.c.l.b16 %v7640
    %v8245 = vunpack.c.h.b16 %v7640
    %v8246 = vunpack.c.l.b16 %v7641
    %v8247 = vunpack.c.h.b16 %v7641
    %v8248 = vunpack.c.l.b16 %v7642
    %v8249 = vunpack.c.h.b16 %v7642
    %v8250 = vunpack.c.l.b16 %v7643
    %v8251 = vunpack.c.h.b16 %v7643
    %v8252 = vpack.c.b16 %v7874, %v7868
    %v8253 = vpack.c.b16 %v7875, %v7869
    %v8254 = vpack.c.b16 %v7876, %v7870
    %v8255 = vpack.c.b16 %v7877, %v7871
    %v8256 = vpack.c.b16 %v7878, %v7872
    %v8257 = vpack.c.b16 %v7879, %v7873
    %v8258 = vpack.c.b16 %v7886, %v7880
    %v8259 = vpack.c.b16 %v7887, %v7881
    %v8260 = vpack.c.b16 %v7888, %v7882
    %v8261 = vpack.c.b16 %v7889, %v7883
    %v8262 = vpack.c.b16 %v7890, %v7884
    %v8263 = vpack.c.b16 %v7891, %v7885
    %v8264 = vpack.c.b16 %v7898, %v7892
    %v8265 = vpack.c.b16 %v7899, %v7893
    %v8266 = vpack.c.b16 %v7900, %v7894
    %v8267 = vpack.c.b16 %v7901, %v7895
    %v8268 = vpack.c.b16 %v7902, %v7896
    %v8269 = vpack.c.b16 %v7903, %v7897
    %v8270 = vpack.c.b16 %v7910, %v7904
    %v8271 = vpack.c.b16 %v7911, %v7905
    %v8272 = vpack.c.b16 %v7912, %v7906
    %v8273 = vpack.c.b16 %v7913, %v7907
    %v8274 = vpack.c.b16 %v7914, %v7908
    %v8275 = vpack.c.b16 %v7915, %v7909
    %v8276 = vpack.c.b16 %v7922, %v7916
    %v8277 = vpack.c.b16 %v7923, %v7917
    %v8278 = vpack.c.b16 %v7924, %v7918
    %v8279 = vpack.c.b16 %v7925, %v7919
    %v8280 = vpack.c.b16 %v7926, %v7920
    %v8281 = vpack.c.b16 %v7927, %v7921
    %v8282 = vpack.c.b16 %v7934, %v7928
    %v8283 = vpack.c.b16 %v7935, %v7929
    %v8284 = vpack.c.b16 %v7936, %v7930
    %v8285 = vpack.c.b16 %v7937, %v7931
    %v8286 = vpack.c.b16 %v7938, %v7932
    %v8287 = vpack.c.b16 %v7939, %v7933
    %v8288 = vpack.c.b16 %v7946, %v7940
    %v8289 = vpack.c.b16 %v7947, %v7941
    %v8290 = vpack.c.b16 %v7948, %v7942
    %v8291 = vpack.c.b16 %v7949, %v7943
    %v8292 = vpack.c.b16 %v7950, %v7944
    %v8293 = vpack.c.b16 %v7951, %v7945
    %v8294 = vpack.c.b16 %v7958, %v7952
    %v8295 = vpack.c.b16 %v7959, %v7953
    %v8296 = vpack.c.b16 %v7960, %v7954
    %v8297 = vpack.c.b16 %v7961, %v7955
    %v8298 = vpack.c.b16 %v7962, %v7956
    %v8299 = vpack.c.b16 %v7963, %v7957
    %v8300 = vpack.c.b16 %v7970, %v7964
    %v8301 = vpack.c.b16 %v7971, %v7965
    %v8302 = vpack.c.b16 %v7972, %v7966
    %v8303 = vpack.c.b16 %v7973, %v7967
    %v8304 = vpack.c.b16 %v7974, %v7968
    %v8305 = vpack.c.b16 %v7975, %v7969
    %v8306 = vpack.c.b16 %v7982, %v7976
    %v8307 = vpack.c.b16 %v7983, %v7977
    %v8308 = vpack.c.b16 %v7984, %v7978
    %v8309 = vpack.c.b16 %v7985, %v7979
    %v8310 = vpack.c.b16 %v7986, %v7980
    %v8311 = vpack.c.b16 %v7987, %v7981
    %v8312 = vpack.c.b16 %v7994, %v7988
    %v8313 = vpack.c.b16 %v7995, %v7989
    %v8314 = vpack.c.b16 %v7996, %v7990
    %v8315 = vpack.c.b16 %v7997, %v7991
    %v8316 = vpack.c.b16 %v7998, %v7992
    %v8317 = vpack.c.b16 %v7999, %v7993
    %v8318 = vpack.c.b16 %v8006, %v8000
    %v8319 = vpack.c.b16 %v8007, %v8001
    %v8320 = vpack.c.b16 %v8008, %v8002
    %v8321 = vpack.c.b16 %v8009, %v8003
    %v8322 = vpack.c.b16 %v8010, %v8004
    %v8323 = vpack.c.b16 %v8011, %v8005
    %v8324 = vpack.c.b16 %v8018, %v8012
    %v8325 = vpack.c.b16 %v8019, %v8013
    %v8326 = vpack.c.b16 %v8020, %v8014
    %v8327 = vpack.c.b16 %v8021, %v8015
    %v8328 = vpack.c.b16 %v8022, %v8016
    %v8329 = vpack.c.b16 %v8023, %v8017
    %v8330 = vpack.c.b16 %v8030, %v8024
    %v8331 = vpack.c.b16 %v8031, %v8025
    %v8332 = vpack.c.b16 %v8032, %v8026
    %v8333 = vpack.c.b16 %v8033, %v8027
    %v8334 = vpack.c.b16 %v8034, %v8028
    %v8335 = vpack.c.b16 %v8035, %v8029
    %v8336 = vpack.c.b16 %v8042, %v8036
    %v8337 = vpack.c.b16 %v8043, %v8037
    %v8338 = vpack.c.b16 %v8044, %v8038
    %v8339 = vpack.c.b16 %v8045, %v8039
    %v8340 = vpack.c.b16 %v8046, %v8040
    %v8341 = vpack.c.b16 %v8047, %v8041
    %v8342 = vpack.c.b16 %v8054, %v8048
    %v8343 = vpack.c.b16 %v8055, %v8049
    %v8344 = vpack.c.b16 %v8056, %v8050
    %v8345 = vpack.c.b16 %v8057, %v8051
    %v8346 = vpack.c.b16 %v8058, %v8052
    %v8347 = vpack.c.b16 %v8059, %v8053
    %v8348 = vpack.c.b16 %v8066, %v8060
    %v8349 = vpack.c.b16 %v8067, %v8061
    %v8350 = vpack.c.b16 %v8068, %v8062
    %v8351 = vpack.c.b16 %v8069, %v8063
    %v8352 = vpack.c.b16 %v8070, %v8064
    %v8353 = vpack.c.b16 %v8071, %v8065
    %v8354 = vpack.c.b16 %v8078, %v8072
    %v8355 = vpack.c.b16 %v8079, %v8073
    %v8356 = vpack.c.b16 %v8080, %v8074
    %v8357 = vpack.c.b16 %v8081, %v8075
    %v8358 = vpack.c.b16 %v8082, %v8076
    %v8359 = vpack.c.b16 %v8083, %v8077
    %v8360 = vpack.c.b16 %v8090, %v8084
    %v8361 = vpack.c.b16 %v8091, %v8085
    %v8362 = vpack.c.b16 %v8092, %v8086
    %v8363 = vpack.c.b16 %v8093, %v8087
    %v8364 = vpack.c.b16 %v8094, %v8088
    %v8365 = vpack.c.b16 %v8095, %v8089
    %v8366 = vpack.c.b16 %v8102, %v8096
    %v8367 = vpack.c.b16 %v8103, %v8097
    %v8368 = vpack.c.b16 %v8104, %v8098
    %v8369 = vpack.c.b16 %v8105, %v8099
    %v8370 = vpack.c.b16 %v8106, %v8100
    %v8371 = vpack.c.b16 %v8107, %v8101
    %v8372 = vpack.c.b16 %v8114, %v8108
    %v8373 = vpack.c.b16 %v8115, %v8109
    %v8374 = vpack.c.b16 %v8116, %v8110
    %v8375 = vpack.c.b16 %v8117, %v8111
    %v8376 = vpack.c.b16 %v8118, %v8112
    %v8377 = vpack.c.b16 %v8119, %v8113
    %v8378 = vpack.c.b16 %v8126, %v8120
    %v8379 = vpack.c.b16 %v8127, %v8121
    %v8380 = vpack.c.b16 %v8128, %v8122
    %v8381 = vpack.c.b16 %v8129, %v8123
    %v8382 = vpack.c.b16 %v8130, %v8124
    %v8383 = vpack.c.b16 %v8131, %v8125
    %v8384 = vpack.c.b16 %v8138, %v8132
    %v8385 = vpack.c.b16 %v8139, %v8133
    %v8386 = vpack.c.b16 %v8140, %v8134
    %v8387 = vpack.c.b16 %v8141, %v8135
    %v8388 = vpack.c.b16 %v8142, %v8136
    %v8389 = vpack.c.b16 %v8143, %v8137
    %v8390 = vpack.c.b16 %v8150, %v8144
    %v8391 = vpack.c.b16 %v8151, %v8145
    %v8392 = vpack.c.b16 %v8152, %v8146
    %v8393 = vpack.c.b16 %v8153, %v8147
    %v8394 = vpack.c.b16 %v8154, %v8148
    %v8395 = vpack.c.b16 %v8155, %v8149
    %v8396 = vpack.c.b16 %v8162, %v8156
    %v8397 = vpack.c.b16 %v8163, %v8157
    %v8398 = vpack.c.b16 %v8164, %v8158
    %v8399 = vpack.c.b16 %v8165, %v8159
    %v8400 = vpack.c.b16 %v8166, %v8160
    %v8401 = vpack.c.b16 %v8167, %v8161
    %v8402 = vpack.c.b16 %v8174, %v8168
    %v8403 = vpack.c.b16 %v8175, %v8169
    %v8404 = vpack.c.b16 %v8176, %v8170
    %v8405 = vpack.c.b16 %v8177, %v8171
    %v8406 = vpack.c.b16 %v8178, %v8172
    %v8407 = vpack.c.b16 %v8179, %v8173
    %v8408 = vpack.c.b16 %v8186, %v8180
    %v8409 = vpack.c.b16 %v8187, %v8181
    %v8410 = vpack.c.b16 %v8188, %v8182
    %v8411 = vpack.c.b16 %v8189, %v8183
    %v8412 = vpack.c.b16 %v8190, %v8184
    %v8413 = vpack.c.b16 %v8191, %v8185
    %v8414 = vpack.c.b16 %v8198, %v8192
    %v8415 = vpack.c.b16 %v8199, %v8193
    %v8416 = vpack.c.b16 %v8200, %v8194
    %v8417 = vpack.c.b16 %v8201, %v8195
    %v8418 = vpack.c.b16 %v8202, %v8196
    %v8419 = vpack.c.b16 %v8203, %v8197
    %v8420 = vpack.c.b16 %v8210, %v8204
    %v8421 = vpack.c.b16 %v8211, %v8205
    %v8422 = vpack.c.b16 %v8212, %v8206
    %v8423 = vpack.c.b16 %v8213, %v8207
    %v8424 = vpack.c.b16 %v8214, %v8208
    %v8425 = vpack.c.b16 %v8215, %v8209
    %v8426 = vpack.c.b16 %v8222, %v8216
    %v8427 = vpack.c.b16 %v8223, %v8217
    %v8428 = vpack.c.b16 %v8224, %v8218
    %v8429 = vpack.c.b16 %v8225, %v8219
    %v8430 = vpack.c.b16 %v8226, %v8220
    %v8431 = vpack.c.b16 %v8227, %v8221
    %v8432 = vpack.c.b16 %v8234, %v8228
    %v8433 = vpack.c.b16 %v8235, %v8229
    %v8434 = vpack.c.b16 %v8236, %v8230
    %v8435 = vpack.c.b16 %v8237, %v8231
    %v8436 = vpack.c.b16 %v8238, %v8232
    %v8437 = vpack.c.b16 %v8239, %v8233
    %v8438 = vpack.c.b16 %v8246, %v8240
    %v8439 = vpack.c.b16 %v8247, %v8241
    %v8440 = vpack.c.b16 %v8248, %v8242
    %v8441 = vpack.c.b16 %v8249, %v8243
    %v8442 = vpack.c.b16 %v8250, %v8244
    %v8443 = vpack.c.b16 %v8251, %v8245
    %8636 = vmatprep.subr.bf16.mxu0 %v8253
    %8637 = vmatpush1.bf16.msra.mxu0 %v8252
    %8638 = vmatprep.subr.bf16.mxu0 %v8259
    %8639 = vmatpush1.bf16.msra.mxu0 %v8258
    %8640 = vmatprep.subr.bf16.mxu0 %v8265
    %8641 = vmatpush1.bf16.msra.mxu0 %v8264
    %8642 = vmatprep.subr.bf16.mxu0 %v8271
    %8643 = vmatpush1.bf16.msra.mxu0 %v8270
    %8644 = vmatprep.subr.bf16.mxu0 %v8277
    %8645 = vmatpush1.bf16.msra.mxu0 %v8276
    %8646 = vmatprep.subr.bf16.mxu0 %v8283
    %8647 = vmatpush1.bf16.msra.mxu0 %v8282
    %8648 = vmatprep.subr.bf16.mxu0 %v8289
    %8649 = vmatpush1.bf16.msra.mxu0 %v8288
    %8650 = vmatprep.subr.bf16.mxu0 %v8295
    %8651 = vmatpush1.bf16.msra.mxu0 %v8294
    %8652 = vmatprep.subr.bf16.mxu0 %v8301
    %8653 = vmatpush1.bf16.msra.mxu0 %v8300
    %8654 = vmatprep.subr.bf16.mxu0 %v8307
    %8655 = vmatpush1.bf16.msra.mxu0 %v8306
    %8656 = vmatprep.subr.bf16.mxu0 %v8313
    %8657 = vmatpush1.bf16.msra.mxu0 %v8312
    %8658 = vmatprep.subr.bf16.mxu0 %v8319
    %8659 = vmatpush1.bf16.msra.mxu0 %v8318
    %8660 = vmatprep.subr.bf16.mxu0 %v8325
    %8661 = vmatpush1.bf16.msra.mxu0 %v8324
    %8662 = vmatprep.subr.bf16.mxu0 %v8331
    %8663 = vmatpush1.bf16.msra.mxu0 %v8330
    %8664 = vmatprep.subr.bf16.mxu0 %v8337
    %8665 = vmatpush1.bf16.msra.mxu0 %v8336
    %8666 = vmatprep.subr.bf16.mxu0 %v8343
    %8667 = vmatpush1.bf16.msra.mxu0 %v8342
    %8668 = vmatprep.mubr.bf16.mxu0 %v5729
    %8669 = vmatmul.mubr.bf16.gmra.mrb[0].mxu0 %v5728
    %v8670 = vpop.f32.mrb[0].mxu0
    %v8671 = vadd.f32 %v7649, %v8670
    %v8672 = vpop.f32.mrb[0].mxu0
    %v8673 = vadd.f32 %v7653, %v8672
    %v8674 = vpop.f32.mrb[0].mxu0
    %v8675 = vpop.f32.mrb[0].mxu0
    %8676 = vdwg.mxu0
    %8677 = vmatprep.subr.bf16.mxu0 %v8349
    %8678 = vmatpush1.bf16.msra.mxu0 %v8348
    %8679 = vmatprep.subr.bf16.mxu0 %v8355
    %8680 = vmatpush1.bf16.msra.mxu0 %v8354
    %8681 = vmatprep.subr.bf16.mxu0 %v8361
    %8682 = vmatpush1.bf16.msra.mxu0 %v8360
    %8683 = vmatprep.subr.bf16.mxu0 %v8367
    %8684 = vmatpush1.bf16.msra.mxu0 %v8366
    %8685 = vmatprep.subr.bf16.mxu0 %v8373
    %8686 = vmatpush1.bf16.msra.mxu0 %v8372
    %8687 = vmatprep.subr.bf16.mxu0 %v8379
    %8688 = vmatpush1.bf16.msra.mxu0 %v8378
    %8689 = vmatprep.subr.bf16.mxu0 %v8385
    %8690 = vmatpush1.bf16.msra.mxu0 %v8384
    %8691 = vmatprep.subr.bf16.mxu0 %v8391
    %8692 = vmatpush1.bf16.msra.mxu0 %v8390
    %8693 = vmatprep.subr.bf16.mxu0 %v8397
    %8694 = vmatpush1.bf16.msra.mxu0 %v8396
    %8695 = vmatprep.subr.bf16.mxu0 %v8403
    %8696 = vmatpush1.bf16.msra.mxu0 %v8402
    %8697 = vmatprep.subr.bf16.mxu0 %v8409
    %8698 = vmatpush1.bf16.msra.mxu0 %v8408
    %8699 = vmatprep.subr.bf16.mxu0 %v8415
    %8700 = vmatpush1.bf16.msra.mxu0 %v8414
    %8701 = vmatprep.subr.bf16.mxu0 %v8421
    %8702 = vmatpush1.bf16.msra.mxu0 %v8420
    %8703 = vmatprep.subr.bf16.mxu0 %v8427
    %8704 = vmatpush1.bf16.msra.mxu0 %v8426
    %8705 = vmatprep.subr.bf16.mxu0 %v8433
    %8706 = vmatpush1.bf16.msra.mxu0 %v8432
    %8707 = vmatprep.subr.bf16.mxu0 %v8439
    %8708 = vmatpush1.bf16.msra.mxu0 %v8438
    %8709 = vmatprep.mubr.bf16.mxu0 %v5731
    %8710 = vmatmul.mubr.bf16.gmra.mrb[0].mxu0 %v5730
    %v8711 = vpop.f32.mrb[0].mxu0
    %v8712 = vadd.f32 %v8671, %v8711
    %v8713 = vpop.f32.mrb[0].mxu0
    %v8714 = vadd.f32 %v8673, %v8713
    %v8715 = vpop.f32.mrb[0].mxu0
    %v8716 = vpop.f32.mrb[0].mxu0
    %8717 = vdwg.mxu0
    %8718 = vmatprep.subr.bf16.mxu0 %v8255
    %8719 = vmatpush1.bf16.msra.mxu0 %v8254
    %8720 = vmatprep.subr.bf16.mxu0 %v8261
    %8721 = vmatpush1.bf16.msra.mxu0 %v8260
    %8722 = vmatprep.subr.bf16.mxu0 %v8267
    %8723 = vmatpush1.bf16.msra.mxu0 %v8266
    %8724 = vmatprep.subr.bf16.mxu0 %v8273
    %8725 = vmatpush1.bf16.msra.mxu0 %v8272
    %8726 = vmatprep.subr.bf16.mxu0 %v8279
    %8727 = vmatpush1.bf16.msra.mxu0 %v8278
    %8728 = vmatprep.subr.bf16.mxu0 %v8285
    %8729 = vmatpush1.bf16.msra.mxu0 %v8284
    %8730 = vmatprep.subr.bf16.mxu0 %v8291
    %8731 = vmatpush1.bf16.msra.mxu0 %v8290
    %8732 = vmatprep.subr.bf16.mxu0 %v8297
    %8733 = vmatpush1.bf16.msra.mxu0 %v8296
    %8734 = vmatprep.subr.bf16.mxu0 %v8303
    %8735 = vmatpush1.bf16.msra.mxu0 %v8302
    %8736 = vmatprep.subr.bf16.mxu0 %v8309
    %8737 = vmatpush1.bf16.msra.mxu0 %v8308
    %8738 = vmatprep.subr.bf16.mxu0 %v8315
    %8739 = vmatpush1.bf16.msra.mxu0 %v8314
    %8740 = vmatprep.subr.bf16.mxu0 %v8321
    %8741 = vmatpush1.bf16.msra.mxu0 %v8320
    %8742 = vmatprep.subr.bf16.mxu0 %v8327
    %8743 = vmatpush1.bf16.msra.mxu0 %v8326
    %8744 = vmatprep.subr.bf16.mxu0 %v8333
    %8745 = vmatpush1.bf16.msra.mxu0 %v8332
    %8746 = vmatprep.subr.bf16.mxu0 %v8339
    %8747 = vmatpush1.bf16.msra.mxu0 %v8338
    %8748 = vmatprep.subr.bf16.mxu0 %v8345
    %8749 = vmatpush1.bf16.msra.mxu0 %v8344
    %8750 = vmatprep.mubr.bf16.mxu0 %v5729
    %8751 = vmatmul.mubr.bf16.gmra.mrb[0].mxu0 %v5728
    %v8752 = vpop.f32.mrb[0].mxu0
    %v8753 = vadd.f32 %v7657, %v8752
    %v8754 = vpop.f32.mrb[0].mxu0
    %v8755 = vadd.f32 %v7661, %v8754
    %v8756 = vpop.f32.mrb[0].mxu0
    %v8757 = vpop.f32.mrb[0].mxu0
    %8758 = vdwg.mxu0
    %8759 = vmatprep.subr.bf16.mxu0 %v8351
    %8760 = vmatpush1.bf16.msra.mxu0 %v8350
    %8761 = vmatprep.subr.bf16.mxu0 %v8357
    %8762 = vmatpush1.bf16.msra.mxu0 %v8356
    %8763 = vmatprep.subr.bf16.mxu0 %v8363
    %8764 = vmatpush1.bf16.msra.mxu0 %v8362
    %8765 = vmatprep.subr.bf16.mxu0 %v8369
    %8766 = vmatpush1.bf16.msra.mxu0 %v8368
    %8767 = vmatprep.subr.bf16.mxu0 %v8375
    %8768 = vmatpush1.bf16.msra.mxu0 %v8374
    %8769 = vmatprep.subr.bf16.mxu0 %v8381
    %8770 = vmatpush1.bf16.msra.mxu0 %v8380
    %8771 = vmatprep.subr.bf16.mxu0 %v8387
    %8772 = vmatpush1.bf16.msra.mxu0 %v8386
    %8773 = vmatprep.subr.bf16.mxu0 %v8393
    %8774 = vmatpush1.bf16.msra.mxu0 %v8392
    %8775 = vmatprep.subr.bf16.mxu0 %v8399
    %8776 = vmatpush1.bf16.msra.mxu0 %v8398
    %8777 = vmatprep.subr.bf16.mxu0 %v8405
    %8778 = vmatpush1.bf16.msra.mxu0 %v8404
    %8779 = vmatprep.subr.bf16.mxu0 %v8411
    %8780 = vmatpush1.bf16.msra.mxu0 %v8410
    %8781 = vmatprep.subr.bf16.mxu0 %v8417
    %8782 = vmatpush1.bf16.msra.mxu0 %v8416
    %8783 = vmatprep.subr.bf16.mxu0 %v8423
    %8784 = vmatpush1.bf16.msra.mxu0 %v8422
    %8785 = vmatprep.subr.bf16.mxu0 %v8429
    %8786 = vmatpush1.bf16.msra.mxu0 %v8428
    %8787 = vmatprep.subr.bf16.mxu0 %v8435
    %8788 = vmatpush1.bf16.msra.mxu0 %v8434
    %8789 = vmatprep.subr.bf16.mxu0 %v8441
    %8790 = vmatpush1.bf16.msra.mxu0 %v8440
    %8791 = vmatprep.mubr.bf16.mxu0 %v5731
    %8792 = vmatmul.mubr.bf16.gmra.mrb[0].mxu0 %v5730
    %v8793 = vpop.f32.mrb[0].mxu0
    %v8794 = vadd.f32 %v8753, %v8793
    %v8795 = vpop.f32.mrb[0].mxu0
    %v8796 = vadd.f32 %v8755, %v8795
    %v8797 = vpop.f32.mrb[0].mxu0
    %v8798 = vpop.f32.mrb[0].mxu0
    %8799 = vdwg.mxu0
    %8800 = vmatprep.subr.bf16.mxu0 %v8257
    %8801 = vmatpush1.bf16.msra.mxu0 %v8256
    %8802 = vmatprep.subr.bf16.mxu0 %v8263
    %8803 = vmatpush1.bf16.msra.mxu0 %v8262
    %8804 = vmatprep.subr.bf16.mxu0 %v8269
    %8805 = vmatpush1.bf16.msra.mxu0 %v8268
    %8806 = vmatprep.subr.bf16.mxu0 %v8275
    %8807 = vmatpush1.bf16.msra.mxu0 %v8274
    %8808 = vmatprep.subr.bf16.mxu0 %v8281
    %8809 = vmatpush1.bf16.msra.mxu0 %v8280
    %8810 = vmatprep.subr.bf16.mxu0 %v8287
    %8811 = vmatpush1.bf16.msra.mxu0 %v8286
    %8812 = vmatprep.subr.bf16.mxu0 %v8293
    %8813 = vmatpush1.bf16.msra.mxu0 %v8292
    %8814 = vmatprep.subr.bf16.mxu0 %v8299
    %8815 = vmatpush1.bf16.msra.mxu0 %v8298
    %8816 = vmatprep.subr.bf16.mxu0 %v8305
    %8817 = vmatpush1.bf16.msra.mxu0 %v8304
    %8818 = vmatprep.subr.bf16.mxu0 %v8311
    %8819 = vmatpush1.bf16.msra.mxu0 %v8310
    %8820 = vmatprep.subr.bf16.mxu0 %v8317
    %8821 = vmatpush1.bf16.msra.mxu0 %v8316
    %8822 = vmatprep.subr.bf16.mxu0 %v8323
    %8823 = vmatpush1.bf16.msra.mxu0 %v8322
    %8824 = vmatprep.subr.bf16.mxu0 %v8329
    %8825 = vmatpush1.bf16.msra.mxu0 %v8328
    %8826 = vmatprep.subr.bf16.mxu0 %v8335
    %8827 = vmatpush1.bf16.msra.mxu0 %v8334
    %8828 = vmatprep.subr.bf16.mxu0 %v8341
    %8829 = vmatpush1.bf16.msra.mxu0 %v8340
    %8830 = vmatprep.subr.bf16.mxu0 %v8347
    %8831 = vmatpush1.bf16.msra.mxu0 %v8346
    %8832 = vmatprep.mubr.bf16.mxu0 %v5729
    %8833 = vmatmul.mubr.bf16.gmra.mrb[0].mxu0 %v5728
    %v8834 = vpop.f32.mrb[0].mxu0
    %v8835 = vadd.f32 %v7665, %v8834
    %v8836 = vpop.f32.mrb[0].mxu0
    %v8837 = vadd.f32 %v7669, %v8836
    %v8838 = vpop.f32.mrb[0].mxu0
    %v8839 = vpop.f32.mrb[0].mxu0
    %8840 = vdwg.mxu0
    %8841 = vmatprep.subr.bf16.mxu0 %v8353
    %8842 = vmatpush1.bf16.msra.mxu0 %v8352
    %8843 = vmatprep.subr.bf16.mxu0 %v8359
    %8844 = vmatpush1.bf16.msra.mxu0 %v8358
    %8845 = vmatprep.subr.bf16.mxu0 %v8365
    %8846 = vmatpush1.bf16.msra.mxu0 %v8364
    %8847 = vmatprep.subr.bf16.mxu0 %v8371
    %8848 = vmatpush1.bf16.msra.mxu0 %v8370
    %8849 = vmatprep.subr.bf16.mxu0 %v8377
    %8850 = vmatpush1.bf16.msra.mxu0 %v8376
    %8851 = vmatprep.subr.bf16.mxu0 %v8383
    %8852 = vmatpush1.bf16.msra.mxu0 %v8382
    %8853 = vmatprep.subr.bf16.mxu0 %v8389
    %8854 = vmatpush1.bf16.msra.mxu0 %v8388
    %8855 = vmatprep.subr.bf16.mxu0 %v8395
    %8856 = vmatpush1.bf16.msra.mxu0 %v8394
    %8857 = vmatprep.subr.bf16.mxu0 %v8401
    %8858 = vmatpush1.bf16.msra.mxu0 %v8400
    %8859 = vmatprep.subr.bf16.mxu0 %v8407
    %8860 = vmatpush1.bf16.msra.mxu0 %v8406
    %8861 = vmatprep.subr.bf16.mxu0 %v8413
    %8862 = vmatpush1.bf16.msra.mxu0 %v8412
    %8863 = vmatprep.subr.bf16.mxu0 %v8419
    %8864 = vmatpush1.bf16.msra.mxu0 %v8418
    %8865 = vmatprep.subr.bf16.mxu0 %v8425
    %8866 = vmatpush1.bf16.msra.mxu0 %v8424
    %8867 = vmatprep.subr.bf16.mxu0 %v8431
    %8868 = vmatpush1.bf16.msra.mxu0 %v8430
    %8869 = vmatprep.subr.bf16.mxu0 %v8437
    %8870 = vmatpush1.bf16.msra.mxu0 %v8436
    %8871 = vmatprep.subr.bf16.mxu0 %v8443
    %8872 = vmatpush1.bf16.msra.mxu0 %v8442
    %8873 = vmatprep.mubr.bf16.mxu0 %v5731
    %8874 = vmatmul.mubr.bf16.gmra.mrb[0].mxu0 %v5730
    %v8875 = vpop.f32.mrb[0].mxu0
    %v8876 = vadd.f32 %v8835, %v8875
    %v8877 = vpop.f32.mrb[0].mxu0
    %v8878 = vadd.f32 %v8837, %v8877
    %v8879 = vpop.f32.mrb[0].mxu0
    %v8880 = vpop.f32.mrb[0].mxu0
    %8881 = vdwg.mxu0
    %v8888 = vcombine.low %v8712, %v8714
    %v8889 = vcombine.low %v8794, %v8796
    %v8891 = vunpack.c.l.s4 1983009808
    %v8892 = vunpack.c.0.s8 %v8891
    %v8893 = vlaneseq
    %v8894 = vshrl.u32 %v8893, 7
    %v8895 = vsub.s32 %v8892, %v8894
    %v8896 = vrot.slane %v8888, %v8895
    %v8898 = vunpack.c.l.s4 1983009808
    %v8899 = vunpack.c.0.s8 %v8898
    %v8900 = vlaneseq
    %v8901 = vshrl.u32 %v8900, 7
    %v8902 = vsub.s32 %v8899, %v8901
    %v8903 = vrot.slane %v8889, %v8902
    %v8904 = vcombine.low %v8896, %v8903
    %v8905 = vcombine.low %v8876, %v8878
    %v8907 = vunpack.c.l.s4 1983009808
    %v8908 = vunpack.c.0.s8 %v8907
    %v8909 = vlaneseq
    %v8910 = vshrl.u32 %v8909, 7
    %v8911 = vsub.s32 %v8908, %v8910
    %v8912 = vrot.slane %v8905, %v8911
    %8915 = vst [vmem:[%s9 + $0xa] sm:$0xff] %v8904
    %8916 = vst [vmem:[%s9 + $0x12] sm:$0xf] %v8912
    // Predicated region
    $region46: #{feed_forward_gaussian_splatting.7} parent=1 // pred_check
      _
    $region47: #{feed_forward_gaussian_splatting.7} parent=1 // pred_check_branch
      %8918 = sbr.rel (0) target = $region49
    $region48: #{feed_forward_gaussian_splatting.7} parent=1 // pred_region
      _
    $region49: #{feed_forward_gaussian_splatting.7} parent=1 // pred_fallthru
      _
    // Predicated region
    $region50: #{feed_forward_gaussian_splatting.7} parent=1 // pred_check
      _
    $region51: #{feed_forward_gaussian_splatting.7} parent=1 // pred_check_branch
      %8920 = sbr.rel (0) target = $region53
    $region52: #{feed_forward_gaussian_splatting.7} parent=1 // pred_region
      _
    $region53: #{feed_forward_gaussian_splatting.7} parent=1 // pred_fallthru
      _
    %8921 = vsyncpa [#allocation3], 1
    %8922 = vsyncpa [#allocation5], 1

</llo_original>
